<compile_context>
chip_gen: v7x
topology: tpu7x:2x2x1
jax: 0.10.0
libtpu: 0.0.40
codegen_flags: <defaults>
</compile_context>

<pallas_src>
import jax
import jax.numpy as jnp
from jax.experimental import pallas as pl
from jax.experimental.pallas import tpu as pltpu

HID1, HID2, OUT = 2048, 1024, 32
OUT_PAD = 128  # lane-dense fc3 output width; sliced back to OUT after the call


def _leaky_relu(x, slope=0.01):
    return jnp.where(x > 0, x, slope * x)


def _round_up(x, m):
    return (x + m - 1) // m * m


def visual_mlp_kernel(x_ref, w1_ref, b1_ref, w2_ref, b2_ref, w3_ref, b3_ref,
                      o_ref):
    compute_dtype = w1_ref.dtype  # bf16 weights; f32 accumulation on the MXU
    x = x_ref[...].astype(compute_dtype)

    # fc1 + LeakyReLU (+ dropout(eval) = identity)
    h1 = jnp.dot(x, w1_ref[...],
                 preferred_element_type=jnp.float32) + b1_ref[...]
    h1 = _leaky_relu(h1)

    # fc2 + LeakyReLU (+ dropout(eval) = identity)
    h2 = jnp.dot(h1.astype(compute_dtype), w2_ref[...],
                 preferred_element_type=jnp.float32) + b2_ref[...]
    h2 = _leaky_relu(h2)

    # fc3 (no activation), lane-padded output
    out = jnp.dot(h2.astype(compute_dtype), w3_ref[...],
                  preferred_element_type=jnp.float32) + b3_ref[...]
    o_ref[...] = out.astype(o_ref.dtype)


def visual_mlp(x, params, *, block_m=256, weight_dtype=jnp.bfloat16):
    """Fused VisualMLP forward.

    x: (B, input_dim) float32.
    params: f32 dict of (in, out) weights and (1, out) biases (w1/b1, w2/b2, w3/b3).
    """
    w1, b1 = params["w1"], params["b1"]
    w2, b2 = params["w2"], params["b2"]
    w3, b3 = params["w3"], params["b3"]
    B, input_dim = x.shape
    out_dim = w3.shape[1]

    # Lane-dense fc3: pad (1024, 32) -> (1024, 128) so output stores are full vst.
    w3p = jnp.pad(w3, ((0, 0), (0, OUT_PAD - out_dim)))
    b3p = jnp.pad(b3, ((0, 0), (0, OUT_PAD - out_dim)))

    # bf16 weights: halve HBM weight traffic (kernel accumulates in f32).
    w1c = w1.astype(weight_dtype)
    w2c = w2.astype(weight_dtype)
    w3c = w3p.astype(weight_dtype)

    # Batch tiling: pad B up to a multiple of the tile so every grid step is full.
    tm = min(block_m, _round_up(B, 8))
    b_pad = _round_up(B, tm)
    if b_pad != B:
        x = jnp.pad(x, ((0, b_pad - B), (0, 0)))
    grid = (b_pad // tm,)

    wbytes = jnp.dtype(weight_dtype).itemsize
    flops = 2 * b_pad * (input_dim * HID1 + HID1 * HID2 + HID2 * OUT_PAD)
    bytes_accessed = (
        b_pad * input_dim * 4                                    # x (f32)
        + (w1c.size + w2c.size + w3c.size) * wbytes              # weights (bf16)
        + (b1.size + b2.size + b3p.size) * 4                     # biases (f32)
        + b_pad * OUT_PAD * 4                                    # output (f32)
    )

    # Weights/biases: same block every grid step -> stay VMEM-resident.
    resident = lambda shape: pl.BlockSpec(shape, lambda i: (0, 0))

    out_padded = pl.pallas_call(
        visual_mlp_kernel,
        out_shape=jax.ShapeDtypeStruct((b_pad, OUT_PAD), x.dtype),
        grid=grid,
        in_specs=[
            pl.BlockSpec((tm, input_dim), lambda i: (i, 0)),   # x: batch-tiled
            resident(w1c.shape), resident(b1.shape),
            resident(w2c.shape), resident(b2.shape),
            resident(w3c.shape), resident(b3p.shape),
        ],
        out_specs=pl.BlockSpec((tm, OUT_PAD), lambda i: (i, 0)),
        compiler_params=pltpu.CompilerParams(
            dimension_semantics=("parallel",),      # shards batch over v7x's 2 TCs
            vmem_limit_bytes=48 << 20,              # fits v7x's 64 MiB VMEM
        ),
        cost_estimate=pl.CostEstimate(
            flops=flops, transcendentals=0, bytes_accessed=bytes_accessed),
    )(x, w1c, b1, w2c, b2, w3c, b3p)

    return out_padded[:B, :out_dim]


def init_params(key, input_dim):
    """Deterministic init mirroring nn.Linear shapes (stored transposed, f32)."""
    dims = [(input_dim, HID1), (HID1, HID2), (HID2, OUT)]
    params = {}
    for i, (din, dout) in enumerate(dims, start=1):
        key, kw, kb = jax.random.split(key, 3)
        bound = 1.0 / jnp.sqrt(din)
        params[f"w{i}"] = jax.random.uniform(
            kw, (din, dout), jnp.float32, minval=-bound, maxval=bound)
        params[f"b{i}"] = jax.random.uniform(
            kb, (1, dout), jnp.float32, minval=-bound, maxval=bound)
    return params


def visual_mlp_ref(x, params, weight_dtype=jnp.bfloat16):
    """Pure-JAX reference mirroring the kernel's bf16-weight / f32-accum math."""
    def dot32(a, w):
        return jnp.dot(a.astype(weight_dtype), w.astype(weight_dtype),
                       preferred_element_type=jnp.float32)
    h = _leaky_relu(dot32(x, params["w1"]) + params["b1"])
    h = _leaky_relu(dot32(h, params["w2"]) + params["b2"])
    return dot32(h, params["w3"]) + params["b3"]


if __name__ == "__main__":
    key = jax.random.PRNGKey(0)
    # Small shapes; hidden dims (2048 / 1024 / 32) match the module.
    batch, input_dim = 12, 256

    kx, kp = jax.random.split(key)
    x = jax.random.normal(kx, (batch, input_dim), dtype=jnp.float32)
    params = init_params(kp, input_dim)

    # block_m=8 exercises the batch grid (2 steps, resident weights) and the
    # batch-padding path at this tiny batch; real calls use the default 256.
    out = visual_mlp(x, params, block_m=8)
    out = jax.block_until_ready(out)

    ref = visual_mlp_ref(x, params)
    assert out.shape == (batch, OUT), out.shape
    assert jnp.allclose(out, ref, atol=1e-2, rtol=1e-2), float(
        jnp.max(jnp.abs(out - ref)))
    print("KERNEL_OK")
</pallas_src>

<mosaic_0001>
module attributes {stable_mosaic.version = 11 : i64} {
  func.func @visual_mlp_kernel(%arg0: i32, %arg1: memref<8x256xf32, #tpu.memory_space<vmem>>, %arg2: memref<256x2048xbf16, #tpu.memory_space<vmem>>, %arg3: memref<1x2048xf32, #tpu.memory_space<vmem>>, %arg4: memref<2048x1024xbf16, #tpu.memory_space<vmem>>, %arg5: memref<1x1024xf32, #tpu.memory_space<vmem>>, %arg6: memref<1024x128xbf16, #tpu.memory_space<vmem>>, %arg7: memref<1x128xf32, #tpu.memory_space<vmem>>, %arg8: memref<8x128xf32, #tpu.memory_space<vmem>>) attributes {dimension_semantics = [#tpu.dimension_semantics<parallel>], iteration_bounds = array<i64: 2>, scalar_prefetch = 0 : i64, scratch_operands = 0 : i64, tpu.core_type = #tpu.core_type<tc>, window_params = [{transform_indices = @transform_0, window_bounds = array<i64: 8, 256>}, {pipeline_mode = #tpu.pipeline_mode<synchronous>, transform_indices = @transform_1, window_bounds = array<i64: 256, 2048>}, {pipeline_mode = #tpu.pipeline_mode<synchronous>, transform_indices = @transform_2, window_bounds = array<i64: 1, 2048>}, {pipeline_mode = #tpu.pipeline_mode<synchronous>, transform_indices = @transform_3, window_bounds = array<i64: 2048, 1024>}, {pipeline_mode = #tpu.pipeline_mode<synchronous>, transform_indices = @transform_4, window_bounds = array<i64: 1, 1024>}, {pipeline_mode = #tpu.pipeline_mode<synchronous>, transform_indices = @transform_5, window_bounds = array<i64: 1024, 128>}, {pipeline_mode = #tpu.pipeline_mode<synchronous>, transform_indices = @transform_6, window_bounds = array<i64: 1, 128>}, {transform_indices = @transform_7, window_bounds = array<i64: 8, 128>}]} {
    %c0 = arith.constant 0 : index
    %c0_0 = arith.constant 0 : index
    %0 = vector.load %arg1[%c0, %c0_0] : memref<8x256xf32, #tpu.memory_space<vmem>>, vector<8x256xf32>
    %1 = arith.truncf %0 : vector<8x256xf32> to vector<8x256xbf16>
    %c0_1 = arith.constant 0 : index
    %c0_2 = arith.constant 0 : index
    %2 = vector.load %arg2[%c0_1, %c0_2] : memref<256x2048xbf16, #tpu.memory_space<vmem>>, vector<256x2048xbf16>
    %cst = arith.constant dense<0.000000e+00> : vector<8x2048xf32>
    %3 = tpu.matmul %1, %2, %cst {dimension_numbers = #tpu.dot_dimension_numbers<[1], [0], [0], [1], [0, 0, 1, 1], [], []>} : vector<8x256xbf16>, vector<256x2048xbf16>, vector<8x2048xf32> -> vector<8x2048xf32>
    %c0_3 = arith.constant 0 : index
    %c0_4 = arith.constant 0 : index
    %4 = vector.load %arg3[%c0_3, %c0_4] : memref<1x2048xf32, #tpu.memory_space<vmem>>, vector<1x2048xf32>
    %5 = vector.broadcast %4 : vector<1x2048xf32> to vector<8x2048xf32>
    %6 = arith.addf %3, %5 : vector<8x2048xf32>
    %cst_5 = arith.constant 0.000000e+00 : f32
    %7 = vector.broadcast %cst_5 : f32 to vector<8x2048xf32>
    %8 = arith.cmpf ogt, %6, %7 : vector<8x2048xf32>
    %cst_6 = arith.constant 0.00999999977 : f32
    %9 = vector.broadcast %cst_6 : f32 to vector<8x2048xf32>
    %10 = arith.mulf %9, %6 : vector<8x2048xf32>
    %11 = arith.select %8, %6, %10 : vector<8x2048xi1>, vector<8x2048xf32>
    %12 = arith.truncf %11 : vector<8x2048xf32> to vector<8x2048xbf16>
    %c0_7 = arith.constant 0 : index
    %c0_8 = arith.constant 0 : index
    %13 = vector.load %arg4[%c0_7, %c0_8] : memref<2048x1024xbf16, #tpu.memory_space<vmem>>, vector<2048x1024xbf16>
    %cst_9 = arith.constant dense<0.000000e+00> : vector<8x1024xf32>
    %14 = tpu.matmul %12, %13, %cst_9 {dimension_numbers = #tpu.dot_dimension_numbers<[1], [0], [0], [1], [0, 0, 1, 1], [], []>} : vector<8x2048xbf16>, vector<2048x1024xbf16>, vector<8x1024xf32> -> vector<8x1024xf32>
    %c0_10 = arith.constant 0 : index
    %c0_11 = arith.constant 0 : index
    %15 = vector.load %arg5[%c0_10, %c0_11] : memref<1x1024xf32, #tpu.memory_space<vmem>>, vector<1x1024xf32>
    %16 = vector.broadcast %15 : vector<1x1024xf32> to vector<8x1024xf32>
    %17 = arith.addf %14, %16 : vector<8x1024xf32>
    %cst_12 = arith.constant 0.000000e+00 : f32
    %18 = vector.broadcast %cst_12 : f32 to vector<8x1024xf32>
    %19 = arith.cmpf ogt, %17, %18 : vector<8x1024xf32>
    %cst_13 = arith.constant 0.00999999977 : f32
    %20 = vector.broadcast %cst_13 : f32 to vector<8x1024xf32>
    %21 = arith.mulf %20, %17 : vector<8x1024xf32>
    %22 = arith.select %19, %17, %21 : vector<8x1024xi1>, vector<8x1024xf32>
    %23 = arith.truncf %22 : vector<8x1024xf32> to vector<8x1024xbf16>
    %c0_14 = arith.constant 0 : index
    %c0_15 = arith.constant 0 : index
    %24 = vector.load %arg6[%c0_14, %c0_15] : memref<1024x128xbf16, #tpu.memory_space<vmem>>, vector<1024x128xbf16>
    %cst_16 = arith.constant dense<0.000000e+00> : vector<8x128xf32>
    %25 = tpu.matmul %23, %24, %cst_16 {dimension_numbers = #tpu.dot_dimension_numbers<[1], [0], [0], [1], [0, 0, 1, 1], [], []>} : vector<8x1024xbf16>, vector<1024x128xbf16>, vector<8x128xf32> -> vector<8x128xf32>
    %c0_17 = arith.constant 0 : index
    %c0_18 = arith.constant 0 : index
    %26 = vector.load %arg7[%c0_17, %c0_18] : memref<1x128xf32, #tpu.memory_space<vmem>>, vector<1x128xf32>
    %27 = vector.broadcast %26 : vector<1x128xf32> to vector<8x128xf32>
    %28 = arith.addf %25, %27 : vector<8x128xf32>
    %c0_19 = arith.constant 0 : index
    %c0_20 = arith.constant 0 : index
    %29 = vector.load %arg8[%c0_19, %c0_20] : memref<8x128xf32, #tpu.memory_space<vmem>>, vector<8x128xf32>
    tpu.vector_store %arg8[%c0_19, %c0_20], %28 {strides = array<i32>} : memref<8x128xf32, #tpu.memory_space<vmem>>, vector<8x128xf32>,
    return
  }
  func.func @transform_0(%arg0: i32) -> (i32, i32) {
    %c0_i32 = arith.constant 0 : i32
    %c0_i32_0 = arith.constant 0 : i32
    return %arg0, %c0_i32 : i32, i32
  }
  func.func @transform_1(%arg0: i32) -> (i32, i32) {
    %c0_i32 = arith.constant 0 : i32
    %c0_i32_0 = arith.constant 0 : i32
    %c0_i32_1 = arith.constant 0 : i32
    return %c0_i32, %c0_i32_0 : i32, i32
  }
  func.func @transform_2(%arg0: i32) -> (i32, i32) {
    %c0_i32 = arith.constant 0 : i32
    %c0_i32_0 = arith.constant 0 : i32
    %c0_i32_1 = arith.constant 0 : i32
    return %c0_i32, %c0_i32_0 : i32, i32
  }
  func.func @transform_3(%arg0: i32) -> (i32, i32) {
    %c0_i32 = arith.constant 0 : i32
    %c0_i32_0 = arith.constant 0 : i32
    %c0_i32_1 = arith.constant 0 : i32
    return %c0_i32, %c0_i32_0 : i32, i32
  }
  func.func @transform_4(%arg0: i32) -> (i32, i32) {
    %c0_i32 = arith.constant 0 : i32
    %c0_i32_0 = arith.constant 0 : i32
    %c0_i32_1 = arith.constant 0 : i32
    return %c0_i32, %c0_i32_0 : i32, i32
  }
  func.func @transform_5(%arg0: i32) -> (i32, i32) {
    %c0_i32 = arith.constant 0 : i32
    %c0_i32_0 = arith.constant 0 : i32
    %c0_i32_1 = arith.constant 0 : i32
    return %c0_i32, %c0_i32_0 : i32, i32
  }
  func.func @transform_6(%arg0: i32) -> (i32, i32) {
    %c0_i32 = arith.constant 0 : i32
    %c0_i32_0 = arith.constant 0 : i32
    %c0_i32_1 = arith.constant 0 : i32
    return %c0_i32, %c0_i32_0 : i32, i32
  }
  func.func @transform_7(%arg0: i32) -> (i32, i32) {
    %c0_i32 = arith.constant 0 : i32
    %c0_i32_0 = arith.constant 0 : i32
    return %arg0, %c0_i32 : i32, i32
  }
}

</mosaic_0001>

<llo_original>
// kernel: tpu_custom_call.1
$region0: #{tpu_custom_call.1}
  #allocation0 [shape = 'u32[]', space=smem, size = 0x4, offset = 0x4, fixed_abs, tag = 'smem constant byte address 0x4 - core index']
  #allocation1 [shape = 'u32[144,128]{1,0:T(1,128)}', space=vmem, size = 0x12000, scoped, tag = 'internal scratch']
  %s0 = inlined_call_operand.hbm [shape: f32[16,256], index: 0, kind: input, shape index: {}]
  %s1 = inlined_call_operand.hbm [shape: bf16[256,2048], index: 1, kind: input, shape index: {}]
  %s2 = inlined_call_operand.hbm [shape: f32[1,2048], index: 2, kind: input, shape index: {}]
  %s3 = inlined_call_operand.hbm [shape: bf16[2048,1024], index: 3, kind: input, shape index: {}]
  %s4 = inlined_call_operand.hbm [shape: f32[1,1024], index: 4, kind: input, shape index: {}]
  %s5 = inlined_call_operand.hbm [shape: bf16[1024,128], index: 5, kind: input, shape index: {}]
  %s6 = inlined_call_operand.hbm [shape: f32[1,128], index: 6, kind: input, shape index: {}]
  %s7 = inlined_call_operand.hbm [shape: f32[16,128], index: 7, kind: output, shape index: {}]
  %s8 = sld [smem:[#allocation0]]
  $region89: #{tpu_custom_call.1} parent=0
    _
  %s10 = ssub.s32 1, %s8
  %s11 = scalar_select 0, %s10, %s8
  $region1: #{tpu_custom_call.1} parent=0
    #allocation2 [shape = 'u8[16384]{0}', space=vmem, size = 0x4000, scoped, tag = 'input window, operand 0']
    #allocation3 [shape = 's32[2]{0}', space=sflag, size = 0x8, scoped, tag = 'scoped memory for tpu_custom_call.1']
    #allocation4 [shape = 's32[2]{0}', space=sflag, size = 0x8, scoped, tag = 'scoped memory for tpu_custom_call.1']
    #allocation5 [shape = 'u8[1048576]{0}', space=vmem, size = 0x100000, scoped, tag = 'input window, operand 1, single buffered']
    #allocation6 [shape = 's32[1]{0}', space=sflag, size = 0x4, scoped, tag = 'scoped memory for tpu_custom_call.1']
    #allocation7 [shape = 'u8[8192]{0}', space=vmem, size = 0x2000, scoped, tag = 'input window, operand 2, single buffered']
    #allocation8 [shape = 'u8[4194304]{0}', space=vmem, size = 0x400000, scoped, tag = 'input window, operand 3, single buffered']
    #allocation9 [shape = 's32[1]{0}', space=sflag, size = 0x4, scoped, tag = 'scoped memory for tpu_custom_call.1']
    #allocation10 [shape = 'u8[4096]{0}', space=vmem, size = 0x1000, scoped, tag = 'input window, operand 4, single buffered']
    #allocation11 [shape = 'u8[262144]{0}', space=vmem, size = 0x40000, scoped, tag = 'input window, operand 5, single buffered']
    #allocation12 [shape = 's32[1]{0}', space=sflag, size = 0x4, scoped, tag = 'scoped memory for tpu_custom_call.1']
    #allocation13 [shape = 'u8[512]{0}', space=vmem, size = 0x400, scoped, tag = 'input window, operand 6, single buffered']
    #allocation14 [shape = 'u8[8192]{0}', space=vmem, size = 0x2000, scoped, tag = 'output window, operand 0']
    %12 = vsyncpa [#allocation3], 0
    %s13 = scalar_lea.sflag [#allocation3], 1
    %14 = vsyncpa %s13, 0
    %15 = vsyncpa [#allocation6], 0
    %16 = vsyncpa [#allocation9], 0
    %17 = vsyncpa [#allocation12], 0
    %18 = vsyncpa [#allocation4], 0
    %s19 = scalar_lea.sflag [#allocation4], 1
    %20 = vsyncpa %s19, 0
    loop: start=0, step=1, limit=4
    $region2: #{tpu_custom_call.1} parent=1 // loop_pre_header
      _
    $region3: #{tpu_custom_call.1} parent=1 // loop_header
      %s22 = sphi 0, %s26
      %p23 = scmp.ge.s32.totalorder %s22, 4
      %s32 = sphi 0, %s34
      %s35 = sphi 0, %s32
      %s36 = sphi 0, %s35
      %s52 = sphi 0, %s36
      %s56 = sphi 0, %s56
      %s58 = sphi 0, %s56
      %s59 = sphi 0, %s58
      %s73 = sphi 0, %s59
      %s77 = sphi 0, %s77
      %s79 = sphi 0, %s77
      %s80 = sphi 0, %s79
      %s94 = sphi 0, %s80
      %s98 = sphi 0, %s98
      %s100 = sphi 0, %s98
      %s101 = sphi 0, %s100
      %s115 = sphi 0, %s101
      %s119 = sphi 0, %s119
      %s121 = sphi 0, %s119
      %s122 = sphi 0, %s121
      %s136 = sphi 0, %s122
      %s140 = sphi 0, %s140
      %s142 = sphi 0, %s140
      %s143 = sphi 0, %s142
      %s157 = sphi 0, %s143
      %s161 = sphi 0, %s161
      %s163 = sphi 0, %s161
      %s164 = sphi 0, %s163
      %s178 = sphi 0, %s164
      %s184 = sphi 0, %s186
      %s187 = sphi 0, %s184
      %s188 = sphi 0, %s187
      %s204 = sphi 0, %s188
    $region4: #{tpu_custom_call.1} parent=1 // loop_header_branch
      %25 = sbr.rel (%p23) target = $region8
    $region5: #{tpu_custom_call.1} parent=1 // loop_body
      %s27 = ssub.s32 %s22, 1
      %s28 = ssub.s32 %s22, 2
      %s29 = sadd.s32 %s22, 1
      %s30 = ssub.s32 %s22, %s29
      %p31 = scmp.eq.s32.totalorder %s30, 0
      %s33 = sadd.s32 %s32, 1
      %s34 = scalar_select %p31, %s32, %s33
      %p37 = pneg %p31
      %p38 = scmp.eq.s32.totalorder %s22, 1
      %p39 = por %p37, %p38
      %p40 = scmp.ne.s32.totalorder %s32, %s35
      %p41 = scmp.eq.s32.totalorder %s22, 0
      %p42 = por %p40, %p41
      %p43 = scmp.ne.s32.totalorder %s32, %s35
      %p44 = scmp.eq.s32.totalorder %s27, 1
      %p45 = por %p43, %p44
      %p46 = scmp.ne.s32.totalorder %s35, %s36
      %p47 = scmp.eq.s32.totalorder %s27, 0
      %p48 = por %p46, %p47
      %p49 = scmp.ne.s32.totalorder %s35, %s36
      %p50 = scmp.eq.s32.totalorder %s28, 1
      %p51 = por %p49, %p50
      %p53 = scmp.ne.s32.totalorder %s36, %s52
      %p54 = scmp.eq.s32.totalorder %s28, 0
      %p55 = por %p53, %p54
      %s57 = sadd.s32 %s56, 1
      %p60 = scmp.eq.s32.totalorder %s22, 1
      %p61 = scmp.ne.s32.totalorder %s56, %s58
      %p62 = scmp.eq.s32.totalorder %s22, 0
      %p63 = por %p61, %p62
      %p64 = scmp.ne.s32.totalorder %s56, %s58
      %p65 = scmp.eq.s32.totalorder %s27, 1
      %p66 = por %p64, %p65
      %p67 = scmp.ne.s32.totalorder %s58, %s59
      %p68 = scmp.eq.s32.totalorder %s27, 0
      %p69 = por %p67, %p68
      %p70 = scmp.ne.s32.totalorder %s58, %s59
      %p71 = scmp.eq.s32.totalorder %s28, 1
      %p72 = por %p70, %p71
      %p74 = scmp.ne.s32.totalorder %s59, %s73
      %p75 = scmp.eq.s32.totalorder %s28, 0
      %p76 = por %p74, %p75
      %s78 = sadd.s32 %s77, 1
      %p81 = scmp.eq.s32.totalorder %s22, 1
      %p82 = scmp.ne.s32.totalorder %s77, %s79
      %p83 = scmp.eq.s32.totalorder %s22, 0
      %p84 = por %p82, %p83
      %p85 = scmp.ne.s32.totalorder %s77, %s79
      %p86 = scmp.eq.s32.totalorder %s27, 1
      %p87 = por %p85, %p86
      %p88 = scmp.ne.s32.totalorder %s79, %s80
      %p89 = scmp.eq.s32.totalorder %s27, 0
      %p90 = por %p88, %p89
      %p91 = scmp.ne.s32.totalorder %s79, %s80
      %p92 = scmp.eq.s32.totalorder %s28, 1
      %p93 = por %p91, %p92
      %p95 = scmp.ne.s32.totalorder %s80, %s94
      %p96 = scmp.eq.s32.totalorder %s28, 0
      %p97 = por %p95, %p96
      %s99 = sadd.s32 %s98, 1
      %p102 = scmp.eq.s32.totalorder %s22, 1
      %p103 = scmp.ne.s32.totalorder %s98, %s100
      %p104 = scmp.eq.s32.totalorder %s22, 0
      %p105 = por %p103, %p104
      %p106 = scmp.ne.s32.totalorder %s98, %s100
      %p107 = scmp.eq.s32.totalorder %s27, 1
      %p108 = por %p106, %p107
      %p109 = scmp.ne.s32.totalorder %s100, %s101
      %p110 = scmp.eq.s32.totalorder %s27, 0
      %p111 = por %p109, %p110
      %p112 = scmp.ne.s32.totalorder %s100, %s101
      %p113 = scmp.eq.s32.totalorder %s28, 1
      %p114 = por %p112, %p113
      %p116 = scmp.ne.s32.totalorder %s101, %s115
      %p117 = scmp.eq.s32.totalorder %s28, 0
      %p118 = por %p116, %p117
      %s120 = sadd.s32 %s119, 1
      %p123 = scmp.eq.s32.totalorder %s22, 1
      %p124 = scmp.ne.s32.totalorder %s119, %s121
      %p125 = scmp.eq.s32.totalorder %s22, 0
      %p126 = por %p124, %p125
      %p127 = scmp.ne.s32.totalorder %s119, %s121
      %p128 = scmp.eq.s32.totalorder %s27, 1
      %p129 = por %p127, %p128
      %p130 = scmp.ne.s32.totalorder %s121, %s122
      %p131 = scmp.eq.s32.totalorder %s27, 0
      %p132 = por %p130, %p131
      %p133 = scmp.ne.s32.totalorder %s121, %s122
      %p134 = scmp.eq.s32.totalorder %s28, 1
      %p135 = por %p133, %p134
      %p137 = scmp.ne.s32.totalorder %s122, %s136
      %p138 = scmp.eq.s32.totalorder %s28, 0
      %p139 = por %p137, %p138
      %s141 = sadd.s32 %s140, 1
      %p144 = scmp.eq.s32.totalorder %s22, 1
      %p145 = scmp.ne.s32.totalorder %s140, %s142
      %p146 = scmp.eq.s32.totalorder %s22, 0
      %p147 = por %p145, %p146
      %p148 = scmp.ne.s32.totalorder %s140, %s142
      %p149 = scmp.eq.s32.totalorder %s27, 1
      %p150 = por %p148, %p149
      %p151 = scmp.ne.s32.totalorder %s142, %s143
      %p152 = scmp.eq.s32.totalorder %s27, 0
      %p153 = por %p151, %p152
      %p154 = scmp.ne.s32.totalorder %s142, %s143
      %p155 = scmp.eq.s32.totalorder %s28, 1
      %p156 = por %p154, %p155
      %p158 = scmp.ne.s32.totalorder %s143, %s157
      %p159 = scmp.eq.s32.totalorder %s28, 0
      %p160 = por %p158, %p159
      %s162 = sadd.s32 %s161, 1
      %p165 = scmp.eq.s32.totalorder %s22, 1
      %p166 = scmp.ne.s32.totalorder %s161, %s163
      %p167 = scmp.eq.s32.totalorder %s22, 0
      %p168 = por %p166, %p167
      %p169 = scmp.ne.s32.totalorder %s161, %s163
      %p170 = scmp.eq.s32.totalorder %s27, 1
      %p171 = por %p169, %p170
      %p172 = scmp.ne.s32.totalorder %s163, %s164
      %p173 = scmp.eq.s32.totalorder %s27, 0
      %p174 = por %p172, %p173
      %p175 = scmp.ne.s32.totalorder %s163, %s164
      %p176 = scmp.eq.s32.totalorder %s28, 1
      %p177 = por %p175, %p176
      %p179 = scmp.ne.s32.totalorder %s164, %s178
      %p180 = scmp.eq.s32.totalorder %s28, 0
      %p181 = por %p179, %p180
      %s182 = ssub.s32 %s22, %s29
      %p183 = scmp.eq.s32.totalorder %s182, 0
      %s185 = sadd.s32 %s184, 1
      %s186 = scalar_select %p183, %s184, %s185
      %p189 = pneg %p183
      %p190 = scmp.eq.s32.totalorder %s22, 1
      %p191 = por %p189, %p190
      %p192 = scmp.ne.s32.totalorder %s184, %s187
      %p193 = scmp.eq.s32.totalorder %s22, 0
      %p194 = por %p192, %p193
      %p195 = scmp.ne.s32.totalorder %s184, %s187
      %p196 = scmp.eq.s32.totalorder %s27, 1
      %p197 = por %p195, %p196
      %p198 = scmp.ne.s32.totalorder %s187, %s188
      %p199 = scmp.eq.s32.totalorder %s27, 0
      %p200 = por %p198, %p199
      %p201 = scmp.ne.s32.totalorder %s187, %s188
      %p202 = scmp.eq.s32.totalorder %s28, 1
      %p203 = por %p201, %p202
      %p205 = scmp.ne.s32.totalorder %s188, %s204
      %p206 = scmp.eq.s32.totalorder %s28, 0
      %p207 = por %p205, %p206
      %p208 = scmp.le.s32.totalorder 1, %s22
      %p209 = scmp.lt.s32.totalorder %s22, 3
      %p210 = pnand %p208, %p209
      %p211 = pneg %p210
      // Predicated region
      $region9: #{tpu_custom_call.1} parent=5 // pred_check
        _
      $region10: #{tpu_custom_call.1} parent=5 // pred_check_branch
        %213 = sbr.rel (%p210) target = $region12
      $region11: #{tpu_custom_call.1} parent=5 // pred_region
        %s214 = ssub.s32 %s22, 1
        // Predicated region
        $region13: #{tpu_custom_call.1} parent=11 // pred_check
          %p215 = pneg %p69
        $region14: #{tpu_custom_call.1} parent=11 // pred_check_branch
          %217 = sbr.rel (%p215) target = $region16
        $region15: #{tpu_custom_call.1} parent=11 // pred_region
          %s219 = ssub.s32 32768, 32768
          %220 = vsyncadd [#allocation6], %s219
          %s221 = sshll.u32 [#allocation5], 4
          %s222 = int_to_ptr.vmem [resolvable:$true] %s221
          %227 = dma.hbm_to_vmem [thread:$0]  %s1, 32768, %s222, [#allocation6], 1024, 1024, 64
        $region16: #{tpu_custom_call.1} parent=11 // pred_fallthru
          _
        // Predicated region
        $region17: #{tpu_custom_call.1} parent=11 // pred_check
          %p228 = pneg %p90
        $region18: #{tpu_custom_call.1} parent=11 // pred_check_branch
          %230 = sbr.rel (%p228) target = $region20
        $region19: #{tpu_custom_call.1} parent=11 // pred_region
          %s232 = ssub.s32 256, 256
          %233 = vsyncadd [#allocation6], %s232
          %s235 = sshll.u32 [#allocation7], 4
          %s236 = int_to_ptr.vmem [resolvable:$true] %s235
          %238 = dma.hbm_to_vmem [thread:$0]  %s2, 256, %s236, [#allocation6]
        $region20: #{tpu_custom_call.1} parent=11 // pred_fallthru
          _
        // Predicated region
        $region21: #{tpu_custom_call.1} parent=11 // pred_check
          %p239 = pneg %p111
        $region22: #{tpu_custom_call.1} parent=11 // pred_check_branch
          %241 = sbr.rel (%p239) target = $region24
        $region23: #{tpu_custom_call.1} parent=11 // pred_region
          %s243 = ssub.s32 131072, 131072
          %244 = vsyncadd [#allocation9], %s243
          %s245 = sshll.u32 [#allocation8], 4
          %s246 = int_to_ptr.vmem [resolvable:$true] %s245
          %251 = dma.hbm_to_vmem [thread:$0]  %s3, 131072, %s246, [#allocation9], 512, 512, 32
        $region24: #{tpu_custom_call.1} parent=11 // pred_fallthru
          _
        // Predicated region
        $region25: #{tpu_custom_call.1} parent=11 // pred_check
          %p252 = pneg %p132
        $region26: #{tpu_custom_call.1} parent=11 // pred_check_branch
          %254 = sbr.rel (%p252) target = $region28
        $region27: #{tpu_custom_call.1} parent=11 // pred_region
          %s256 = ssub.s32 128, 128
          %257 = vsyncadd [#allocation9], %s256
          %s259 = sshll.u32 [#allocation10], 4
          %s260 = int_to_ptr.vmem [resolvable:$true] %s259
          %262 = dma.hbm_to_vmem [thread:$0]  %s4, 128, %s260, [#allocation9]
        $region28: #{tpu_custom_call.1} parent=11 // pred_fallthru
          _
        // Predicated region
        $region29: #{tpu_custom_call.1} parent=11 // pred_check
          %p263 = pneg %p153
        $region30: #{tpu_custom_call.1} parent=11 // pred_check_branch
          %265 = sbr.rel (%p263) target = $region32
        $region31: #{tpu_custom_call.1} parent=11 // pred_region
          %s267 = ssub.s32 8192, 8192
          %268 = vsyncadd [#allocation12], %s267
          %s269 = sshll.u32 [#allocation11], 4
          %s270 = int_to_ptr.vmem [resolvable:$true] %s269
          %275 = dma.hbm_to_vmem [thread:$0]  %s5, 8192, %s270, [#allocation12], 64, 64, 4
        $region32: #{tpu_custom_call.1} parent=11 // pred_fallthru
          _
        // Predicated region
        $region33: #{tpu_custom_call.1} parent=11 // pred_check
          %p276 = pneg %p174
        $region34: #{tpu_custom_call.1} parent=11 // pred_check_branch
          %278 = sbr.rel (%p276) target = $region36
        $region35: #{tpu_custom_call.1} parent=11 // pred_region
          %s280 = ssub.s32 16, 16
          %281 = vsyncadd [#allocation12], %s280
          %s283 = sshll.u32 [#allocation13], 4
          %s284 = int_to_ptr.vmem [resolvable:$true] %s283
          %286 = dma.hbm_to_vmem [thread:$0]  %s6, 16, %s284, [#allocation12]
        $region36: #{tpu_custom_call.1} parent=11 // pred_fallthru
          _
      $region12: #{tpu_custom_call.1} parent=5 // pred_fallthru
        _
      %p287 = scmp.lt.s32.totalorder %s22, 2
      // Predicated region
      $region37: #{tpu_custom_call.1} parent=5 // pred_check
        %p288 = pneg %p287
      $region38: #{tpu_custom_call.1} parent=5 // pred_check_branch
        %290 = sbr.rel (%p288) target = $region40
      $region39: #{tpu_custom_call.1} parent=5 // pred_region
        // Predicated region
        $region41: #{tpu_custom_call.1} parent=39 // pred_check
          %p291 = pneg %p42
        $region42: #{tpu_custom_call.1} parent=39 // pred_check_branch
          %293 = sbr.rel (%p291) target = $region44
        $region43: #{tpu_custom_call.1} parent=39 // pred_region
          %s294 = sand.u32 %s32, 1
          %s295 = scalar_lea.sflag [#allocation3], %s294
          %s296 = sand.u32 %s32, 1
          %s297 = smul.addr %s296, 16
          %s298 = scalar_lea.vmem [#allocation2], %s297
          %s300 = ssub.s32 256, 256
          %301 = vsyncadd %s295, %s300
          %s302 = smul.addr %s22, 2
          %s303 = smul.addr %s302, 128
          %s304 = scalar_lea.hbm %s0, %s303
          %s306 = sshll.u32 %s298, 4
          %s307 = int_to_ptr.vmem [resolvable:$true] %s306
          %309 = dma.hbm_to_vmem [thread:$0]  %s304, 256, %s307, %s295
        $region44: #{tpu_custom_call.1} parent=39 // pred_fallthru
          _
      $region40: #{tpu_custom_call.1} parent=5 // pred_fallthru
        _
      %p310 = scmp.le.s32.totalorder 1, %s22
      %p311 = scmp.lt.s32.totalorder %s22, 3
      %p312 = pnand %p310, %p311
      %p313 = pneg %p312
      // Predicated region
      $region45: #{tpu_custom_call.1} parent=5 // pred_check
        _
      $region46: #{tpu_custom_call.1} parent=5 // pred_check_branch
        %315 = sbr.rel (%p312) target = $region48
      $region47: #{tpu_custom_call.1} parent=5 // pred_region
        %s316 = ssub.s32 %s22, 1
        %s317 = sand.u32 %s35, 1
        %s318 = scalar_lea.sflag [#allocation3], %s317
        %s319 = sand.u32 %s35, 1
        %s320 = smul.addr %s319, 16
        %s321 = scalar_lea.vmem [#allocation2], %s320
        // Predicated region
        $region49: #{tpu_custom_call.1} parent=47 // pred_check
          %p322 = pneg %p48
        $region50: #{tpu_custom_call.1} parent=47 // pred_check_branch
          %324 = sbr.rel (%p322) target = $region52
        $region51: #{tpu_custom_call.1} parent=47 // pred_region
          %325 = dma.done %s318, 256
        $region52: #{tpu_custom_call.1} parent=47 // pred_fallthru
          _
        // Predicated region
        $region53: #{tpu_custom_call.1} parent=47 // pred_check
          %p326 = pneg %p69
        $region54: #{tpu_custom_call.1} parent=47 // pred_check_branch
          %328 = sbr.rel (%p326) target = $region56
        $region55: #{tpu_custom_call.1} parent=47 // pred_region
          %329 = dma.done [#allocation6], 32768
        $region56: #{tpu_custom_call.1} parent=47 // pred_fallthru
          _
        // Predicated region
        $region57: #{tpu_custom_call.1} parent=47 // pred_check
          %p330 = pneg %p90
        $region58: #{tpu_custom_call.1} parent=47 // pred_check_branch
          %332 = sbr.rel (%p330) target = $region60
        $region59: #{tpu_custom_call.1} parent=47 // pred_region
          %333 = dma.done [#allocation6], 256
        $region60: #{tpu_custom_call.1} parent=47 // pred_fallthru
          _
        // Predicated region
        $region61: #{tpu_custom_call.1} parent=47 // pred_check
          %p334 = pneg %p111
        $region62: #{tpu_custom_call.1} parent=47 // pred_check_branch
          %336 = sbr.rel (%p334) target = $region64
        $region63: #{tpu_custom_call.1} parent=47 // pred_region
          %337 = dma.done [#allocation9], 131072
        $region64: #{tpu_custom_call.1} parent=47 // pred_fallthru
          _
        // Predicated region
        $region65: #{tpu_custom_call.1} parent=47 // pred_check
          %p338 = pneg %p132
        $region66: #{tpu_custom_call.1} parent=47 // pred_check_branch
          %340 = sbr.rel (%p338) target = $region68
        $region67: #{tpu_custom_call.1} parent=47 // pred_region
          %341 = dma.done [#allocation9], 128
        $region68: #{tpu_custom_call.1} parent=47 // pred_fallthru
          _
        // Predicated region
        $region69: #{tpu_custom_call.1} parent=47 // pred_check
          %p342 = pneg %p153
        $region70: #{tpu_custom_call.1} parent=47 // pred_check_branch
          %344 = sbr.rel (%p342) target = $region72
        $region71: #{tpu_custom_call.1} parent=47 // pred_region
          %345 = dma.done [#allocation12], 8192
        $region72: #{tpu_custom_call.1} parent=47 // pred_fallthru
          _
        // Predicated region
        $region73: #{tpu_custom_call.1} parent=47 // pred_check
          %p346 = pneg %p174
        $region74: #{tpu_custom_call.1} parent=47 // pred_check_branch
          %348 = sbr.rel (%p346) target = $region76
        $region75: #{tpu_custom_call.1} parent=47 // pred_region
          %349 = dma.done [#allocation12], 16
        $region76: #{tpu_custom_call.1} parent=47 // pred_fallthru
          _
        %s350 = sand.u32 %s35, 1
        %s351 = scalar_lea.sflag [#allocation3], %s350
        %s352 = sand.u32 %s35, 1
        %s353 = smul.addr %s352, 16
        %s354 = scalar_lea.vmem [#allocation2], %s353
        %p355 = pneg %p48
        %p356 = pneg %p45
        %p357 = pneg %p69
        %p358 = pneg %p66
        %p359 = pneg %p90
        %p360 = pneg %p87
        %p361 = pneg %p111
        %p362 = pneg %p108
        %p363 = pneg %p132
        %p364 = pneg %p129
        %p365 = pneg %p153
        %p366 = pneg %p150
        %p367 = pneg %p174
        %p368 = pneg %p171
        %p369 = pneg %p200
        %p370 = pneg %p197
        %s371 = sand.u32 %s187, 1
        %s372 = scalar_lea.sflag [#allocation4], %s371
        %s373 = sand.u32 %s187, 1
        %s374 = smul.addr %s373, 8
        %s375 = scalar_lea.vmem [#allocation14], %s374
        %v377 = vld [vmem:[%s321] sm:$0xff]
        %v378 = vld [vmem:[%s321 + $0x8] sm:$0xff]
        %v379 = vpack.c.bf16 %v377, %v377
        %v380 = vpack.c.bf16 %v378, %v378
        %v381 = vld [vmem:[#allocation5] sm:$0xff]
        %v382 = vld [vmem:[#allocation5 + $0x8] sm:$0xff]
        %v383 = vld [vmem:[#allocation5 + $0x10] sm:$0xff]
        %v384 = vld [vmem:[#allocation5 + $0x18] sm:$0xff]
        %v385 = vld [vmem:[#allocation5 + $0x20] sm:$0xff]
        %v386 = vld [vmem:[#allocation5 + $0x28] sm:$0xff]
        %v387 = vld [vmem:[#allocation5 + $0x30] sm:$0xff]
        %v388 = vld [vmem:[#allocation5 + $0x38] sm:$0xff]
        %v389 = vld [vmem:[#allocation5 + $0x40] sm:$0xff]
        %v390 = vld [vmem:[#allocation5 + $0x48] sm:$0xff]
        %v391 = vld [vmem:[#allocation5 + $0x50] sm:$0xff]
        %v392 = vld [vmem:[#allocation5 + $0x58] sm:$0xff]
        %v393 = vld [vmem:[#allocation5 + $0x60] sm:$0xff]
        %v394 = vld [vmem:[#allocation5 + $0x68] sm:$0xff]
        %v395 = vld [vmem:[#allocation5 + $0x70] sm:$0xff]
        %v396 = vld [vmem:[#allocation5 + $0x78] sm:$0xff]
        %v397 = vld [vmem:[#allocation5 + $0x80] sm:$0xff]
        %v398 = vld [vmem:[#allocation5 + $0x88] sm:$0xff]
        %v399 = vld [vmem:[#allocation5 + $0x90] sm:$0xff]
        %v400 = vld [vmem:[#allocation5 + $0x98] sm:$0xff]
        %v401 = vld [vmem:[#allocation5 + $0xa0] sm:$0xff]
        %v402 = vld [vmem:[#allocation5 + $0xa8] sm:$0xff]
        %v403 = vld [vmem:[#allocation5 + $0xb0] sm:$0xff]
        %v404 = vld [vmem:[#allocation5 + $0xb8] sm:$0xff]
        %v405 = vld [vmem:[#allocation5 + $0xc0] sm:$0xff]
        %v406 = vld [vmem:[#allocation5 + $0xc8] sm:$0xff]
        %v407 = vld [vmem:[#allocation5 + $0xd0] sm:$0xff]
        %v408 = vld [vmem:[#allocation5 + $0xd8] sm:$0xff]
        %v409 = vld [vmem:[#allocation5 + $0xe0] sm:$0xff]
        %v410 = vld [vmem:[#allocation5 + $0xe8] sm:$0xff]
        %v411 = vld [vmem:[#allocation5 + $0xf0] sm:$0xff]
        %v412 = vld [vmem:[#allocation5 + $0xf8] sm:$0xff]
        %v413 = vld [vmem:[#allocation5 + $0x100] sm:$0xff]
        %v414 = vld [vmem:[#allocation5 + $0x108] sm:$0xff]
        %v415 = vld [vmem:[#allocation5 + $0x110] sm:$0xff]
        %v416 = vld [vmem:[#allocation5 + $0x118] sm:$0xff]
        %v417 = vld [vmem:[#allocation5 + $0x120] sm:$0xff]
        %v418 = vld [vmem:[#allocation5 + $0x128] sm:$0xff]
        %v419 = vld [vmem:[#allocation5 + $0x130] sm:$0xff]
        %v420 = vld [vmem:[#allocation5 + $0x138] sm:$0xff]
        %v421 = vld [vmem:[#allocation5 + $0x140] sm:$0xff]
        %v422 = vld [vmem:[#allocation5 + $0x148] sm:$0xff]
        %v423 = vld [vmem:[#allocation5 + $0x150] sm:$0xff]
        %v424 = vld [vmem:[#allocation5 + $0x158] sm:$0xff]
        %v425 = vld [vmem:[#allocation5 + $0x160] sm:$0xff]
        %v426 = vld [vmem:[#allocation5 + $0x168] sm:$0xff]
        %v427 = vld [vmem:[#allocation5 + $0x170] sm:$0xff]
        %v428 = vld [vmem:[#allocation5 + $0x178] sm:$0xff]
        %v429 = vld [vmem:[#allocation5 + $0x180] sm:$0xff]
        %v430 = vld [vmem:[#allocation5 + $0x188] sm:$0xff]
        %v431 = vld [vmem:[#allocation5 + $0x190] sm:$0xff]
        %v432 = vld [vmem:[#allocation5 + $0x198] sm:$0xff]
        %v433 = vld [vmem:[#allocation5 + $0x1a0] sm:$0xff]
        %v434 = vld [vmem:[#allocation5 + $0x1a8] sm:$0xff]
        %v435 = vld [vmem:[#allocation5 + $0x1b0] sm:$0xff]
        %v436 = vld [vmem:[#allocation5 + $0x1b8] sm:$0xff]
        %v437 = vld [vmem:[#allocation5 + $0x1c0] sm:$0xff]
        %v438 = vld [vmem:[#allocation5 + $0x1c8] sm:$0xff]
        %v439 = vld [vmem:[#allocation5 + $0x1d0] sm:$0xff]
        %v440 = vld [vmem:[#allocation5 + $0x1d8] sm:$0xff]
        %v441 = vld [vmem:[#allocation5 + $0x1e0] sm:$0xff]
        %v442 = vld [vmem:[#allocation5 + $0x1e8] sm:$0xff]
        %v443 = vld [vmem:[#allocation5 + $0x1f0] sm:$0xff]
        %v444 = vld [vmem:[#allocation5 + $0x1f8] sm:$0xff]
        %v445 = vld [vmem:[#allocation5 + $0x200] sm:$0xff]
        %v446 = vld [vmem:[#allocation5 + $0x208] sm:$0xff]
        %v447 = vld [vmem:[#allocation5 + $0x210] sm:$0xff]
        %v448 = vld [vmem:[#allocation5 + $0x218] sm:$0xff]
        %v449 = vld [vmem:[#allocation5 + $0x220] sm:$0xff]
        %v450 = vld [vmem:[#allocation5 + $0x228] sm:$0xff]
        %v451 = vld [vmem:[#allocation5 + $0x230] sm:$0xff]
        %v452 = vld [vmem:[#allocation5 + $0x238] sm:$0xff]
        %v453 = vld [vmem:[#allocation5 + $0x240] sm:$0xff]
        %v454 = vld [vmem:[#allocation5 + $0x248] sm:$0xff]
        %v455 = vld [vmem:[#allocation5 + $0x250] sm:$0xff]
        %v456 = vld [vmem:[#allocation5 + $0x258] sm:$0xff]
        %v457 = vld [vmem:[#allocation5 + $0x260] sm:$0xff]
        %v458 = vld [vmem:[#allocation5 + $0x268] sm:$0xff]
        %v459 = vld [vmem:[#allocation5 + $0x270] sm:$0xff]
        %v460 = vld [vmem:[#allocation5 + $0x278] sm:$0xff]
        %v461 = vld [vmem:[#allocation5 + $0x280] sm:$0xff]
        %v462 = vld [vmem:[#allocation5 + $0x288] sm:$0xff]
        %v463 = vld [vmem:[#allocation5 + $0x290] sm:$0xff]
        %v464 = vld [vmem:[#allocation5 + $0x298] sm:$0xff]
        %v465 = vld [vmem:[#allocation5 + $0x2a0] sm:$0xff]
        %v466 = vld [vmem:[#allocation5 + $0x2a8] sm:$0xff]
        %v467 = vld [vmem:[#allocation5 + $0x2b0] sm:$0xff]
        %v468 = vld [vmem:[#allocation5 + $0x2b8] sm:$0xff]
        %v469 = vld [vmem:[#allocation5 + $0x2c0] sm:$0xff]
        %v470 = vld [vmem:[#allocation5 + $0x2c8] sm:$0xff]
        %v471 = vld [vmem:[#allocation5 + $0x2d0] sm:$0xff]
        %v472 = vld [vmem:[#allocation5 + $0x2d8] sm:$0xff]
        %v473 = vld [vmem:[#allocation5 + $0x2e0] sm:$0xff]
        %v474 = vld [vmem:[#allocation5 + $0x2e8] sm:$0xff]
        %v475 = vld [vmem:[#allocation5 + $0x2f0] sm:$0xff]
        %v476 = vld [vmem:[#allocation5 + $0x2f8] sm:$0xff]
        %v477 = vld [vmem:[#allocation5 + $0x300] sm:$0xff]
        %v478 = vld [vmem:[#allocation5 + $0x308] sm:$0xff]
        %v479 = vld [vmem:[#allocation5 + $0x310] sm:$0xff]
        %v480 = vld [vmem:[#allocation5 + $0x318] sm:$0xff]
        %v481 = vld [vmem:[#allocation5 + $0x320] sm:$0xff]
        %v482 = vld [vmem:[#allocation5 + $0x328] sm:$0xff]
        %v483 = vld [vmem:[#allocation5 + $0x330] sm:$0xff]
        %v484 = vld [vmem:[#allocation5 + $0x338] sm:$0xff]
        %v485 = vld [vmem:[#allocation5 + $0x340] sm:$0xff]
        %v486 = vld [vmem:[#allocation5 + $0x348] sm:$0xff]
        %v487 = vld [vmem:[#allocation5 + $0x350] sm:$0xff]
        %v488 = vld [vmem:[#allocation5 + $0x358] sm:$0xff]
        %v489 = vld [vmem:[#allocation5 + $0x360] sm:$0xff]
        %v490 = vld [vmem:[#allocation5 + $0x368] sm:$0xff]
        %v491 = vld [vmem:[#allocation5 + $0x370] sm:$0xff]
        %v492 = vld [vmem:[#allocation5 + $0x378] sm:$0xff]
        %v493 = vld [vmem:[#allocation5 + $0x380] sm:$0xff]
        %v494 = vld [vmem:[#allocation5 + $0x388] sm:$0xff]
        %v495 = vld [vmem:[#allocation5 + $0x390] sm:$0xff]
        %v496 = vld [vmem:[#allocation5 + $0x398] sm:$0xff]
        %v497 = vld [vmem:[#allocation5 + $0x3a0] sm:$0xff]
        %v498 = vld [vmem:[#allocation5 + $0x3a8] sm:$0xff]
        %v499 = vld [vmem:[#allocation5 + $0x3b0] sm:$0xff]
        %v500 = vld [vmem:[#allocation5 + $0x3b8] sm:$0xff]
        %v501 = vld [vmem:[#allocation5 + $0x3c0] sm:$0xff]
        %v502 = vld [vmem:[#allocation5 + $0x3c8] sm:$0xff]
        %v503 = vld [vmem:[#allocation5 + $0x3d0] sm:$0xff]
        %v504 = vld [vmem:[#allocation5 + $0x3d8] sm:$0xff]
        %v505 = vld [vmem:[#allocation5 + $0x3e0] sm:$0xff]
        %v506 = vld [vmem:[#allocation5 + $0x3e8] sm:$0xff]
        %v507 = vld [vmem:[#allocation5 + $0x3f0] sm:$0xff]
        %v508 = vld [vmem:[#allocation5 + $0x3f8] sm:$0xff]
        %v509 = vld [vmem:[#allocation5 + $0x400] sm:$0xff]
        %v510 = vld [vmem:[#allocation5 + $0x408] sm:$0xff]
        %v511 = vld [vmem:[#allocation5 + $0x410] sm:$0xff]
        %v512 = vld [vmem:[#allocation5 + $0x418] sm:$0xff]
        %v513 = vld [vmem:[#allocation5 + $0x420] sm:$0xff]
        %v514 = vld [vmem:[#allocation5 + $0x428] sm:$0xff]
        %v515 = vld [vmem:[#allocation5 + $0x430] sm:$0xff]
        %v516 = vld [vmem:[#allocation5 + $0x438] sm:$0xff]
        %v517 = vld [vmem:[#allocation5 + $0x440] sm:$0xff]
        %v518 = vld [vmem:[#allocation5 + $0x448] sm:$0xff]
        %v519 = vld [vmem:[#allocation5 + $0x450] sm:$0xff]
        %v520 = vld [vmem:[#allocation5 + $0x458] sm:$0xff]
        %v521 = vld [vmem:[#allocation5 + $0x460] sm:$0xff]
        %v522 = vld [vmem:[#allocation5 + $0x468] sm:$0xff]
        %v523 = vld [vmem:[#allocation5 + $0x470] sm:$0xff]
        %v524 = vld [vmem:[#allocation5 + $0x478] sm:$0xff]
        %v525 = vld [vmem:[#allocation5 + $0x480] sm:$0xff]
        %v526 = vld [vmem:[#allocation5 + $0x488] sm:$0xff]
        %v527 = vld [vmem:[#allocation5 + $0x490] sm:$0xff]
        %v528 = vld [vmem:[#allocation5 + $0x498] sm:$0xff]
        %v529 = vld [vmem:[#allocation5 + $0x4a0] sm:$0xff]
        %v530 = vld [vmem:[#allocation5 + $0x4a8] sm:$0xff]
        %v531 = vld [vmem:[#allocation5 + $0x4b0] sm:$0xff]
        %v532 = vld [vmem:[#allocation5 + $0x4b8] sm:$0xff]
        %v533 = vld [vmem:[#allocation5 + $0x4c0] sm:$0xff]
        %v534 = vld [vmem:[#allocation5 + $0x4c8] sm:$0xff]
        %v535 = vld [vmem:[#allocation5 + $0x4d0] sm:$0xff]
        %v536 = vld [vmem:[#allocation5 + $0x4d8] sm:$0xff]
        %v537 = vld [vmem:[#allocation5 + $0x4e0] sm:$0xff]
        %v538 = vld [vmem:[#allocation5 + $0x4e8] sm:$0xff]
        %v539 = vld [vmem:[#allocation5 + $0x4f0] sm:$0xff]
        %v540 = vld [vmem:[#allocation5 + $0x4f8] sm:$0xff]
        %v541 = vld [vmem:[#allocation5 + $0x500] sm:$0xff]
        %v542 = vld [vmem:[#allocation5 + $0x508] sm:$0xff]
        %v543 = vld [vmem:[#allocation5 + $0x510] sm:$0xff]
        %v544 = vld [vmem:[#allocation5 + $0x518] sm:$0xff]
        %v545 = vld [vmem:[#allocation5 + $0x520] sm:$0xff]
        %v546 = vld [vmem:[#allocation5 + $0x528] sm:$0xff]
        %v547 = vld [vmem:[#allocation5 + $0x530] sm:$0xff]
        %v548 = vld [vmem:[#allocation5 + $0x538] sm:$0xff]
        %v549 = vld [vmem:[#allocation5 + $0x540] sm:$0xff]
        %v550 = vld [vmem:[#allocation5 + $0x548] sm:$0xff]
        %v551 = vld [vmem:[#allocation5 + $0x550] sm:$0xff]
        %v552 = vld [vmem:[#allocation5 + $0x558] sm:$0xff]
        %v553 = vld [vmem:[#allocation5 + $0x560] sm:$0xff]
        %v554 = vld [vmem:[#allocation5 + $0x568] sm:$0xff]
        %v555 = vld [vmem:[#allocation5 + $0x570] sm:$0xff]
        %v556 = vld [vmem:[#allocation5 + $0x578] sm:$0xff]
        %v557 = vld [vmem:[#allocation5 + $0x580] sm:$0xff]
        %v558 = vld [vmem:[#allocation5 + $0x588] sm:$0xff]
        %v559 = vld [vmem:[#allocation5 + $0x590] sm:$0xff]
        %v560 = vld [vmem:[#allocation5 + $0x598] sm:$0xff]
        %v561 = vld [vmem:[#allocation5 + $0x5a0] sm:$0xff]
        %v562 = vld [vmem:[#allocation5 + $0x5a8] sm:$0xff]
        %v563 = vld [vmem:[#allocation5 + $0x5b0] sm:$0xff]
        %v564 = vld [vmem:[#allocation5 + $0x5b8] sm:$0xff]
        %v565 = vld [vmem:[#allocation5 + $0x5c0] sm:$0xff]
        %v566 = vld [vmem:[#allocation5 + $0x5c8] sm:$0xff]
        %v567 = vld [vmem:[#allocation5 + $0x5d0] sm:$0xff]
        %v568 = vld [vmem:[#allocation5 + $0x5d8] sm:$0xff]
        %v569 = vld [vmem:[#allocation5 + $0x5e0] sm:$0xff]
        %v570 = vld [vmem:[#allocation5 + $0x5e8] sm:$0xff]
        %v571 = vld [vmem:[#allocation5 + $0x5f0] sm:$0xff]
        %v572 = vld [vmem:[#allocation5 + $0x5f8] sm:$0xff]
        %v573 = vld [vmem:[#allocation5 + $0x600] sm:$0xff]
        %v574 = vld [vmem:[#allocation5 + $0x608] sm:$0xff]
        %v575 = vld [vmem:[#allocation5 + $0x610] sm:$0xff]
        %v576 = vld [vmem:[#allocation5 + $0x618] sm:$0xff]
        %v577 = vld [vmem:[#allocation5 + $0x620] sm:$0xff]
        %v578 = vld [vmem:[#allocation5 + $0x628] sm:$0xff]
        %v579 = vld [vmem:[#allocation5 + $0x630] sm:$0xff]
        %v580 = vld [vmem:[#allocation5 + $0x638] sm:$0xff]
        %v581 = vld [vmem:[#allocation5 + $0x640] sm:$0xff]
        %v582 = vld [vmem:[#allocation5 + $0x648] sm:$0xff]
        %v583 = vld [vmem:[#allocation5 + $0x650] sm:$0xff]
        %v584 = vld [vmem:[#allocation5 + $0x658] sm:$0xff]
        %v585 = vld [vmem:[#allocation5 + $0x660] sm:$0xff]
        %v586 = vld [vmem:[#allocation5 + $0x668] sm:$0xff]
        %v587 = vld [vmem:[#allocation5 + $0x670] sm:$0xff]
        %v588 = vld [vmem:[#allocation5 + $0x678] sm:$0xff]
        %v589 = vld [vmem:[#allocation5 + $0x680] sm:$0xff]
        %v590 = vld [vmem:[#allocation5 + $0x688] sm:$0xff]
        %v591 = vld [vmem:[#allocation5 + $0x690] sm:$0xff]
        %v592 = vld [vmem:[#allocation5 + $0x698] sm:$0xff]
        %v593 = vld [vmem:[#allocation5 + $0x6a0] sm:$0xff]
        %v594 = vld [vmem:[#allocation5 + $0x6a8] sm:$0xff]
        %v595 = vld [vmem:[#allocation5 + $0x6b0] sm:$0xff]
        %v596 = vld [vmem:[#allocation5 + $0x6b8] sm:$0xff]
        %v597 = vld [vmem:[#allocation5 + $0x6c0] sm:$0xff]
        %v598 = vld [vmem:[#allocation5 + $0x6c8] sm:$0xff]
        %v599 = vld [vmem:[#allocation5 + $0x6d0] sm:$0xff]
        %v600 = vld [vmem:[#allocation5 + $0x6d8] sm:$0xff]
        %v601 = vld [vmem:[#allocation5 + $0x6e0] sm:$0xff]
        %v602 = vld [vmem:[#allocation5 + $0x6e8] sm:$0xff]
        %v603 = vld [vmem:[#allocation5 + $0x6f0] sm:$0xff]
        %v604 = vld [vmem:[#allocation5 + $0x6f8] sm:$0xff]
        %v605 = vld [vmem:[#allocation5 + $0x700] sm:$0xff]
        %v606 = vld [vmem:[#allocation5 + $0x708] sm:$0xff]
        %v607 = vld [vmem:[#allocation5 + $0x710] sm:$0xff]
        %v608 = vld [vmem:[#allocation5 + $0x718] sm:$0xff]
        %v609 = vld [vmem:[#allocation5 + $0x720] sm:$0xff]
        %v610 = vld [vmem:[#allocation5 + $0x728] sm:$0xff]
        %v611 = vld [vmem:[#allocation5 + $0x730] sm:$0xff]
        %v612 = vld [vmem:[#allocation5 + $0x738] sm:$0xff]
        %v613 = vld [vmem:[#allocation5 + $0x740] sm:$0xff]
        %v614 = vld [vmem:[#allocation5 + $0x748] sm:$0xff]
        %v615 = vld [vmem:[#allocation5 + $0x750] sm:$0xff]
        %v616 = vld [vmem:[#allocation5 + $0x758] sm:$0xff]
        %v617 = vld [vmem:[#allocation5 + $0x760] sm:$0xff]
        %v618 = vld [vmem:[#allocation5 + $0x768] sm:$0xff]
        %v619 = vld [vmem:[#allocation5 + $0x770] sm:$0xff]
        %v620 = vld [vmem:[#allocation5 + $0x778] sm:$0xff]
        %v621 = vld [vmem:[#allocation5 + $0x780] sm:$0xff]
        %v622 = vld [vmem:[#allocation5 + $0x788] sm:$0xff]
        %v623 = vld [vmem:[#allocation5 + $0x790] sm:$0xff]
        %v624 = vld [vmem:[#allocation5 + $0x798] sm:$0xff]
        %v625 = vld [vmem:[#allocation5 + $0x7a0] sm:$0xff]
        %v626 = vld [vmem:[#allocation5 + $0x7a8] sm:$0xff]
        %v627 = vld [vmem:[#allocation5 + $0x7b0] sm:$0xff]
        %v628 = vld [vmem:[#allocation5 + $0x7b8] sm:$0xff]
        %v629 = vld [vmem:[#allocation5 + $0x7c0] sm:$0xff]
        %v630 = vld [vmem:[#allocation5 + $0x7c8] sm:$0xff]
        %v631 = vld [vmem:[#allocation5 + $0x7d0] sm:$0xff]
        %v632 = vld [vmem:[#allocation5 + $0x7d8] sm:$0xff]
        %v633 = vld [vmem:[#allocation5 + $0x7e0] sm:$0xff]
        %v634 = vld [vmem:[#allocation5 + $0x7e8] sm:$0xff]
        %v635 = vld [vmem:[#allocation5 + $0x7f0] sm:$0xff]
        %v636 = vld [vmem:[#allocation5 + $0x7f8] sm:$0xff]
        %v637 = vld [vmem:[#allocation7] sm:$0xff]
        %v638 = vld [vmem:[#allocation7 + $0x8] sm:$0xff]
        %v641 = vlaneseq
        %v642 = vshrl.u32 %v641, 7
        %v643 = vsub.s32 0, %v642
        %v644 = vrot.slane %v637, %v643
        %v645 = vlaneseq
        %v646 = vshrl.u32 %v645, 7
        %v647 = vsub.s32 1, %v646
        %v648 = vrot.slane %v637, %v647
        %v649 = vlaneseq
        %v650 = vshrl.u32 %v649, 7
        %v651 = vsub.s32 2, %v650
        %v652 = vrot.slane %v637, %v651
        %v653 = vlaneseq
        %v654 = vshrl.u32 %v653, 7
        %v655 = vsub.s32 3, %v654
        %v656 = vrot.slane %v637, %v655
        %v657 = vlaneseq
        %v658 = vshrl.u32 %v657, 7
        %v659 = vsub.s32 4, %v658
        %v660 = vrot.slane %v637, %v659
        %v661 = vlaneseq
        %v662 = vshrl.u32 %v661, 7
        %v663 = vsub.s32 5, %v662
        %v664 = vrot.slane %v637, %v663
        %v665 = vlaneseq
        %v666 = vshrl.u32 %v665, 7
        %v667 = vsub.s32 6, %v666
        %v668 = vrot.slane %v637, %v667
        %v669 = vlaneseq
        %v670 = vshrl.u32 %v669, 7
        %v671 = vsub.s32 7, %v670
        %v672 = vrot.slane %v637, %v671
        %v673 = vlaneseq
        %v674 = vshrl.u32 %v673, 7
        %v675 = vsub.s32 0, %v674
        %v676 = vrot.slane %v638, %v675
        %v677 = vlaneseq
        %v678 = vshrl.u32 %v677, 7
        %v679 = vsub.s32 1, %v678
        %v680 = vrot.slane %v638, %v679
        %v681 = vlaneseq
        %v682 = vshrl.u32 %v681, 7
        %v683 = vsub.s32 2, %v682
        %v684 = vrot.slane %v638, %v683
        %v685 = vlaneseq
        %v686 = vshrl.u32 %v685, 7
        %v687 = vsub.s32 3, %v686
        %v688 = vrot.slane %v638, %v687
        %v689 = vlaneseq
        %v690 = vshrl.u32 %v689, 7
        %v691 = vsub.s32 4, %v690
        %v692 = vrot.slane %v638, %v691
        %v693 = vlaneseq
        %v694 = vshrl.u32 %v693, 7
        %v695 = vsub.s32 5, %v694
        %v696 = vrot.slane %v638, %v695
        %v697 = vlaneseq
        %v698 = vshrl.u32 %v697, 7
        %v699 = vsub.s32 6, %v698
        %v700 = vrot.slane %v638, %v699
        %v701 = vlaneseq
        %v702 = vshrl.u32 %v701, 7
        %v703 = vsub.s32 7, %v702
        %v704 = vrot.slane %v638, %v703
        %v977 = vunpack.c.l.b16 %v381
        %v978 = vunpack.c.h.b16 %v381
        %v979 = vunpack.c.l.b16 %v382
        %v980 = vunpack.c.h.b16 %v382
        %v981 = vunpack.c.l.b16 %v383
        %v982 = vunpack.c.h.b16 %v383
        %v983 = vunpack.c.l.b16 %v384
        %v984 = vunpack.c.h.b16 %v384
        %v985 = vunpack.c.l.b16 %v385
        %v986 = vunpack.c.h.b16 %v385
        %v987 = vunpack.c.l.b16 %v386
        %v988 = vunpack.c.h.b16 %v386
        %v989 = vunpack.c.l.b16 %v387
        %v990 = vunpack.c.h.b16 %v387
        %v991 = vunpack.c.l.b16 %v388
        %v992 = vunpack.c.h.b16 %v388
        %v993 = vunpack.c.l.b16 %v389
        %v994 = vunpack.c.h.b16 %v389
        %v995 = vunpack.c.l.b16 %v390
        %v996 = vunpack.c.h.b16 %v390
        %v997 = vunpack.c.l.b16 %v391
        %v998 = vunpack.c.h.b16 %v391
        %v999 = vunpack.c.l.b16 %v392
        %v1000 = vunpack.c.h.b16 %v392
        %v1001 = vunpack.c.l.b16 %v393
        %v1002 = vunpack.c.h.b16 %v393
        %v1003 = vunpack.c.l.b16 %v394
        %v1004 = vunpack.c.h.b16 %v394
        %v1005 = vunpack.c.l.b16 %v395
        %v1006 = vunpack.c.h.b16 %v395
        %v1007 = vunpack.c.l.b16 %v396
        %v1008 = vunpack.c.h.b16 %v396
        %v1009 = vunpack.c.l.b16 %v397
        %v1010 = vunpack.c.h.b16 %v397
        %v1011 = vunpack.c.l.b16 %v398
        %v1012 = vunpack.c.h.b16 %v398
        %v1013 = vunpack.c.l.b16 %v399
        %v1014 = vunpack.c.h.b16 %v399
        %v1015 = vunpack.c.l.b16 %v400
        %v1016 = vunpack.c.h.b16 %v400
        %v1017 = vunpack.c.l.b16 %v401
        %v1018 = vunpack.c.h.b16 %v401
        %v1019 = vunpack.c.l.b16 %v402
        %v1020 = vunpack.c.h.b16 %v402
        %v1021 = vunpack.c.l.b16 %v403
        %v1022 = vunpack.c.h.b16 %v403
        %v1023 = vunpack.c.l.b16 %v404
        %v1024 = vunpack.c.h.b16 %v404
        %v1025 = vunpack.c.l.b16 %v405
        %v1026 = vunpack.c.h.b16 %v405
        %v1027 = vunpack.c.l.b16 %v406
        %v1028 = vunpack.c.h.b16 %v406
        %v1029 = vunpack.c.l.b16 %v407
        %v1030 = vunpack.c.h.b16 %v407
        %v1031 = vunpack.c.l.b16 %v408
        %v1032 = vunpack.c.h.b16 %v408
        %v1033 = vunpack.c.l.b16 %v409
        %v1034 = vunpack.c.h.b16 %v409
        %v1035 = vunpack.c.l.b16 %v410
        %v1036 = vunpack.c.h.b16 %v410
        %v1037 = vunpack.c.l.b16 %v411
        %v1038 = vunpack.c.h.b16 %v411
        %v1039 = vunpack.c.l.b16 %v412
        %v1040 = vunpack.c.h.b16 %v412
        %v1041 = vunpack.c.l.b16 %v413
        %v1042 = vunpack.c.h.b16 %v413
        %v1043 = vunpack.c.l.b16 %v414
        %v1044 = vunpack.c.h.b16 %v414
        %v1045 = vunpack.c.l.b16 %v415
        %v1046 = vunpack.c.h.b16 %v415
        %v1047 = vunpack.c.l.b16 %v416
        %v1048 = vunpack.c.h.b16 %v416
        %v1049 = vunpack.c.l.b16 %v417
        %v1050 = vunpack.c.h.b16 %v417
        %v1051 = vunpack.c.l.b16 %v418
        %v1052 = vunpack.c.h.b16 %v418
        %v1053 = vunpack.c.l.b16 %v419
        %v1054 = vunpack.c.h.b16 %v419
        %v1055 = vunpack.c.l.b16 %v420
        %v1056 = vunpack.c.h.b16 %v420
        %v1057 = vunpack.c.l.b16 %v421
        %v1058 = vunpack.c.h.b16 %v421
        %v1059 = vunpack.c.l.b16 %v422
        %v1060 = vunpack.c.h.b16 %v422
        %v1061 = vunpack.c.l.b16 %v423
        %v1062 = vunpack.c.h.b16 %v423
        %v1063 = vunpack.c.l.b16 %v424
        %v1064 = vunpack.c.h.b16 %v424
        %v1065 = vunpack.c.l.b16 %v425
        %v1066 = vunpack.c.h.b16 %v425
        %v1067 = vunpack.c.l.b16 %v426
        %v1068 = vunpack.c.h.b16 %v426
        %v1069 = vunpack.c.l.b16 %v427
        %v1070 = vunpack.c.h.b16 %v427
        %v1071 = vunpack.c.l.b16 %v428
        %v1072 = vunpack.c.h.b16 %v428
        %v1073 = vunpack.c.l.b16 %v429
        %v1074 = vunpack.c.h.b16 %v429
        %v1075 = vunpack.c.l.b16 %v430
        %v1076 = vunpack.c.h.b16 %v430
        %v1077 = vunpack.c.l.b16 %v431
        %v1078 = vunpack.c.h.b16 %v431
        %v1079 = vunpack.c.l.b16 %v432
        %v1080 = vunpack.c.h.b16 %v432
        %v1081 = vunpack.c.l.b16 %v433
        %v1082 = vunpack.c.h.b16 %v433
        %v1083 = vunpack.c.l.b16 %v434
        %v1084 = vunpack.c.h.b16 %v434
        %v1085 = vunpack.c.l.b16 %v435
        %v1086 = vunpack.c.h.b16 %v435
        %v1087 = vunpack.c.l.b16 %v436
        %v1088 = vunpack.c.h.b16 %v436
        %v1089 = vunpack.c.l.b16 %v437
        %v1090 = vunpack.c.h.b16 %v437
        %v1091 = vunpack.c.l.b16 %v438
        %v1092 = vunpack.c.h.b16 %v438
        %v1093 = vunpack.c.l.b16 %v439
        %v1094 = vunpack.c.h.b16 %v439
        %v1095 = vunpack.c.l.b16 %v440
        %v1096 = vunpack.c.h.b16 %v440
        %v1097 = vunpack.c.l.b16 %v441
        %v1098 = vunpack.c.h.b16 %v441
        %v1099 = vunpack.c.l.b16 %v442
        %v1100 = vunpack.c.h.b16 %v442
        %v1101 = vunpack.c.l.b16 %v443
        %v1102 = vunpack.c.h.b16 %v443
        %v1103 = vunpack.c.l.b16 %v444
        %v1104 = vunpack.c.h.b16 %v444
        %v1105 = vunpack.c.l.b16 %v445
        %v1106 = vunpack.c.h.b16 %v445
        %v1107 = vunpack.c.l.b16 %v446
        %v1108 = vunpack.c.h.b16 %v446
        %v1109 = vunpack.c.l.b16 %v447
        %v1110 = vunpack.c.h.b16 %v447
        %v1111 = vunpack.c.l.b16 %v448
        %v1112 = vunpack.c.h.b16 %v448
        %v1113 = vunpack.c.l.b16 %v449
        %v1114 = vunpack.c.h.b16 %v449
        %v1115 = vunpack.c.l.b16 %v450
        %v1116 = vunpack.c.h.b16 %v450
        %v1117 = vunpack.c.l.b16 %v451
        %v1118 = vunpack.c.h.b16 %v451
        %v1119 = vunpack.c.l.b16 %v452
        %v1120 = vunpack.c.h.b16 %v452
        %v1121 = vunpack.c.l.b16 %v453
        %v1122 = vunpack.c.h.b16 %v453
        %v1123 = vunpack.c.l.b16 %v454
        %v1124 = vunpack.c.h.b16 %v454
        %v1125 = vunpack.c.l.b16 %v455
        %v1126 = vunpack.c.h.b16 %v455
        %v1127 = vunpack.c.l.b16 %v456
        %v1128 = vunpack.c.h.b16 %v456
        %v1129 = vunpack.c.l.b16 %v457
        %v1130 = vunpack.c.h.b16 %v457
        %v1131 = vunpack.c.l.b16 %v458
        %v1132 = vunpack.c.h.b16 %v458
        %v1133 = vunpack.c.l.b16 %v459
        %v1134 = vunpack.c.h.b16 %v459
        %v1135 = vunpack.c.l.b16 %v460
        %v1136 = vunpack.c.h.b16 %v460
        %v1137 = vunpack.c.l.b16 %v461
        %v1138 = vunpack.c.h.b16 %v461
        %v1139 = vunpack.c.l.b16 %v462
        %v1140 = vunpack.c.h.b16 %v462
        %v1141 = vunpack.c.l.b16 %v463
        %v1142 = vunpack.c.h.b16 %v463
        %v1143 = vunpack.c.l.b16 %v464
        %v1144 = vunpack.c.h.b16 %v464
        %v1145 = vunpack.c.l.b16 %v465
        %v1146 = vunpack.c.h.b16 %v465
        %v1147 = vunpack.c.l.b16 %v466
        %v1148 = vunpack.c.h.b16 %v466
        %v1149 = vunpack.c.l.b16 %v467
        %v1150 = vunpack.c.h.b16 %v467
        %v1151 = vunpack.c.l.b16 %v468
        %v1152 = vunpack.c.h.b16 %v468
        %v1153 = vunpack.c.l.b16 %v469
        %v1154 = vunpack.c.h.b16 %v469
        %v1155 = vunpack.c.l.b16 %v470
        %v1156 = vunpack.c.h.b16 %v470
        %v1157 = vunpack.c.l.b16 %v471
        %v1158 = vunpack.c.h.b16 %v471
        %v1159 = vunpack.c.l.b16 %v472
        %v1160 = vunpack.c.h.b16 %v472
        %v1161 = vunpack.c.l.b16 %v473
        %v1162 = vunpack.c.h.b16 %v473
        %v1163 = vunpack.c.l.b16 %v474
        %v1164 = vunpack.c.h.b16 %v474
        %v1165 = vunpack.c.l.b16 %v475
        %v1166 = vunpack.c.h.b16 %v475
        %v1167 = vunpack.c.l.b16 %v476
        %v1168 = vunpack.c.h.b16 %v476
        %v1169 = vunpack.c.l.b16 %v477
        %v1170 = vunpack.c.h.b16 %v477
        %v1171 = vunpack.c.l.b16 %v478
        %v1172 = vunpack.c.h.b16 %v478
        %v1173 = vunpack.c.l.b16 %v479
        %v1174 = vunpack.c.h.b16 %v479
        %v1175 = vunpack.c.l.b16 %v480
        %v1176 = vunpack.c.h.b16 %v480
        %v1177 = vunpack.c.l.b16 %v481
        %v1178 = vunpack.c.h.b16 %v481
        %v1179 = vunpack.c.l.b16 %v482
        %v1180 = vunpack.c.h.b16 %v482
        %v1181 = vunpack.c.l.b16 %v483
        %v1182 = vunpack.c.h.b16 %v483
        %v1183 = vunpack.c.l.b16 %v484
        %v1184 = vunpack.c.h.b16 %v484
        %v1185 = vunpack.c.l.b16 %v485
        %v1186 = vunpack.c.h.b16 %v485
        %v1187 = vunpack.c.l.b16 %v486
        %v1188 = vunpack.c.h.b16 %v486
        %v1189 = vunpack.c.l.b16 %v487
        %v1190 = vunpack.c.h.b16 %v487
        %v1191 = vunpack.c.l.b16 %v488
        %v1192 = vunpack.c.h.b16 %v488
        %v1193 = vunpack.c.l.b16 %v489
        %v1194 = vunpack.c.h.b16 %v489
        %v1195 = vunpack.c.l.b16 %v490
        %v1196 = vunpack.c.h.b16 %v490
        %v1197 = vunpack.c.l.b16 %v491
        %v1198 = vunpack.c.h.b16 %v491
        %v1199 = vunpack.c.l.b16 %v492
        %v1200 = vunpack.c.h.b16 %v492
        %v1201 = vunpack.c.l.b16 %v493
        %v1202 = vunpack.c.h.b16 %v493
        %v1203 = vunpack.c.l.b16 %v494
        %v1204 = vunpack.c.h.b16 %v494
        %v1205 = vunpack.c.l.b16 %v495
        %v1206 = vunpack.c.h.b16 %v495
        %v1207 = vunpack.c.l.b16 %v496
        %v1208 = vunpack.c.h.b16 %v496
        %v1209 = vunpack.c.l.b16 %v497
        %v1210 = vunpack.c.h.b16 %v497
        %v1211 = vunpack.c.l.b16 %v498
        %v1212 = vunpack.c.h.b16 %v498
        %v1213 = vunpack.c.l.b16 %v499
        %v1214 = vunpack.c.h.b16 %v499
        %v1215 = vunpack.c.l.b16 %v500
        %v1216 = vunpack.c.h.b16 %v500
        %v1217 = vunpack.c.l.b16 %v501
        %v1218 = vunpack.c.h.b16 %v501
        %v1219 = vunpack.c.l.b16 %v502
        %v1220 = vunpack.c.h.b16 %v502
        %v1221 = vunpack.c.l.b16 %v503
        %v1222 = vunpack.c.h.b16 %v503
        %v1223 = vunpack.c.l.b16 %v504
        %v1224 = vunpack.c.h.b16 %v504
        %v1225 = vunpack.c.l.b16 %v505
        %v1226 = vunpack.c.h.b16 %v505
        %v1227 = vunpack.c.l.b16 %v506
        %v1228 = vunpack.c.h.b16 %v506
        %v1229 = vunpack.c.l.b16 %v507
        %v1230 = vunpack.c.h.b16 %v507
        %v1231 = vunpack.c.l.b16 %v508
        %v1232 = vunpack.c.h.b16 %v508
        %v1233 = vunpack.c.l.b16 %v509
        %v1234 = vunpack.c.h.b16 %v509
        %v1235 = vunpack.c.l.b16 %v510
        %v1236 = vunpack.c.h.b16 %v510
        %v1237 = vunpack.c.l.b16 %v511
        %v1238 = vunpack.c.h.b16 %v511
        %v1239 = vunpack.c.l.b16 %v512
        %v1240 = vunpack.c.h.b16 %v512
        %v1241 = vunpack.c.l.b16 %v513
        %v1242 = vunpack.c.h.b16 %v513
        %v1243 = vunpack.c.l.b16 %v514
        %v1244 = vunpack.c.h.b16 %v514
        %v1245 = vunpack.c.l.b16 %v515
        %v1246 = vunpack.c.h.b16 %v515
        %v1247 = vunpack.c.l.b16 %v516
        %v1248 = vunpack.c.h.b16 %v516
        %v1249 = vunpack.c.l.b16 %v517
        %v1250 = vunpack.c.h.b16 %v517
        %v1251 = vunpack.c.l.b16 %v518
        %v1252 = vunpack.c.h.b16 %v518
        %v1253 = vunpack.c.l.b16 %v519
        %v1254 = vunpack.c.h.b16 %v519
        %v1255 = vunpack.c.l.b16 %v520
        %v1256 = vunpack.c.h.b16 %v520
        %v1257 = vunpack.c.l.b16 %v521
        %v1258 = vunpack.c.h.b16 %v521
        %v1259 = vunpack.c.l.b16 %v522
        %v1260 = vunpack.c.h.b16 %v522
        %v1261 = vunpack.c.l.b16 %v523
        %v1262 = vunpack.c.h.b16 %v523
        %v1263 = vunpack.c.l.b16 %v524
        %v1264 = vunpack.c.h.b16 %v524
        %v1265 = vunpack.c.l.b16 %v525
        %v1266 = vunpack.c.h.b16 %v525
        %v1267 = vunpack.c.l.b16 %v526
        %v1268 = vunpack.c.h.b16 %v526
        %v1269 = vunpack.c.l.b16 %v527
        %v1270 = vunpack.c.h.b16 %v527
        %v1271 = vunpack.c.l.b16 %v528
        %v1272 = vunpack.c.h.b16 %v528
        %v1273 = vunpack.c.l.b16 %v529
        %v1274 = vunpack.c.h.b16 %v529
        %v1275 = vunpack.c.l.b16 %v530
        %v1276 = vunpack.c.h.b16 %v530
        %v1277 = vunpack.c.l.b16 %v531
        %v1278 = vunpack.c.h.b16 %v531
        %v1279 = vunpack.c.l.b16 %v532
        %v1280 = vunpack.c.h.b16 %v532
        %v1281 = vunpack.c.l.b16 %v533
        %v1282 = vunpack.c.h.b16 %v533
        %v1283 = vunpack.c.l.b16 %v534
        %v1284 = vunpack.c.h.b16 %v534
        %v1285 = vunpack.c.l.b16 %v535
        %v1286 = vunpack.c.h.b16 %v535
        %v1287 = vunpack.c.l.b16 %v536
        %v1288 = vunpack.c.h.b16 %v536
        %v1289 = vunpack.c.l.b16 %v537
        %v1290 = vunpack.c.h.b16 %v537
        %v1291 = vunpack.c.l.b16 %v538
        %v1292 = vunpack.c.h.b16 %v538
        %v1293 = vunpack.c.l.b16 %v539
        %v1294 = vunpack.c.h.b16 %v539
        %v1295 = vunpack.c.l.b16 %v540
        %v1296 = vunpack.c.h.b16 %v540
        %v1297 = vunpack.c.l.b16 %v541
        %v1298 = vunpack.c.h.b16 %v541
        %v1299 = vunpack.c.l.b16 %v542
        %v1300 = vunpack.c.h.b16 %v542
        %v1301 = vunpack.c.l.b16 %v543
        %v1302 = vunpack.c.h.b16 %v543
        %v1303 = vunpack.c.l.b16 %v544
        %v1304 = vunpack.c.h.b16 %v544
        %v1305 = vunpack.c.l.b16 %v545
        %v1306 = vunpack.c.h.b16 %v545
        %v1307 = vunpack.c.l.b16 %v546
        %v1308 = vunpack.c.h.b16 %v546
        %v1309 = vunpack.c.l.b16 %v547
        %v1310 = vunpack.c.h.b16 %v547
        %v1311 = vunpack.c.l.b16 %v548
        %v1312 = vunpack.c.h.b16 %v548
        %v1313 = vunpack.c.l.b16 %v549
        %v1314 = vunpack.c.h.b16 %v549
        %v1315 = vunpack.c.l.b16 %v550
        %v1316 = vunpack.c.h.b16 %v550
        %v1317 = vunpack.c.l.b16 %v551
        %v1318 = vunpack.c.h.b16 %v551
        %v1319 = vunpack.c.l.b16 %v552
        %v1320 = vunpack.c.h.b16 %v552
        %v1321 = vunpack.c.l.b16 %v553
        %v1322 = vunpack.c.h.b16 %v553
        %v1323 = vunpack.c.l.b16 %v554
        %v1324 = vunpack.c.h.b16 %v554
        %v1325 = vunpack.c.l.b16 %v555
        %v1326 = vunpack.c.h.b16 %v555
        %v1327 = vunpack.c.l.b16 %v556
        %v1328 = vunpack.c.h.b16 %v556
        %v1329 = vunpack.c.l.b16 %v557
        %v1330 = vunpack.c.h.b16 %v557
        %v1331 = vunpack.c.l.b16 %v558
        %v1332 = vunpack.c.h.b16 %v558
        %v1333 = vunpack.c.l.b16 %v559
        %v1334 = vunpack.c.h.b16 %v559
        %v1335 = vunpack.c.l.b16 %v560
        %v1336 = vunpack.c.h.b16 %v560
        %v1337 = vunpack.c.l.b16 %v561
        %v1338 = vunpack.c.h.b16 %v561
        %v1339 = vunpack.c.l.b16 %v562
        %v1340 = vunpack.c.h.b16 %v562
        %v1341 = vunpack.c.l.b16 %v563
        %v1342 = vunpack.c.h.b16 %v563
        %v1343 = vunpack.c.l.b16 %v564
        %v1344 = vunpack.c.h.b16 %v564
        %v1345 = vunpack.c.l.b16 %v565
        %v1346 = vunpack.c.h.b16 %v565
        %v1347 = vunpack.c.l.b16 %v566
        %v1348 = vunpack.c.h.b16 %v566
        %v1349 = vunpack.c.l.b16 %v567
        %v1350 = vunpack.c.h.b16 %v567
        %v1351 = vunpack.c.l.b16 %v568
        %v1352 = vunpack.c.h.b16 %v568
        %v1353 = vunpack.c.l.b16 %v569
        %v1354 = vunpack.c.h.b16 %v569
        %v1355 = vunpack.c.l.b16 %v570
        %v1356 = vunpack.c.h.b16 %v570
        %v1357 = vunpack.c.l.b16 %v571
        %v1358 = vunpack.c.h.b16 %v571
        %v1359 = vunpack.c.l.b16 %v572
        %v1360 = vunpack.c.h.b16 %v572
        %v1361 = vunpack.c.l.b16 %v573
        %v1362 = vunpack.c.h.b16 %v573
        %v1363 = vunpack.c.l.b16 %v574
        %v1364 = vunpack.c.h.b16 %v574
        %v1365 = vunpack.c.l.b16 %v575
        %v1366 = vunpack.c.h.b16 %v575
        %v1367 = vunpack.c.l.b16 %v576
        %v1368 = vunpack.c.h.b16 %v576
        %v1369 = vunpack.c.l.b16 %v577
        %v1370 = vunpack.c.h.b16 %v577
        %v1371 = vunpack.c.l.b16 %v578
        %v1372 = vunpack.c.h.b16 %v578
        %v1373 = vunpack.c.l.b16 %v579
        %v1374 = vunpack.c.h.b16 %v579
        %v1375 = vunpack.c.l.b16 %v580
        %v1376 = vunpack.c.h.b16 %v580
        %v1377 = vunpack.c.l.b16 %v581
        %v1378 = vunpack.c.h.b16 %v581
        %v1379 = vunpack.c.l.b16 %v582
        %v1380 = vunpack.c.h.b16 %v582
        %v1381 = vunpack.c.l.b16 %v583
        %v1382 = vunpack.c.h.b16 %v583
        %v1383 = vunpack.c.l.b16 %v584
        %v1384 = vunpack.c.h.b16 %v584
        %v1385 = vunpack.c.l.b16 %v585
        %v1386 = vunpack.c.h.b16 %v585
        %v1387 = vunpack.c.l.b16 %v586
        %v1388 = vunpack.c.h.b16 %v586
        %v1389 = vunpack.c.l.b16 %v587
        %v1390 = vunpack.c.h.b16 %v587
        %v1391 = vunpack.c.l.b16 %v588
        %v1392 = vunpack.c.h.b16 %v588
        %v1393 = vunpack.c.l.b16 %v589
        %v1394 = vunpack.c.h.b16 %v589
        %v1395 = vunpack.c.l.b16 %v590
        %v1396 = vunpack.c.h.b16 %v590
        %v1397 = vunpack.c.l.b16 %v591
        %v1398 = vunpack.c.h.b16 %v591
        %v1399 = vunpack.c.l.b16 %v592
        %v1400 = vunpack.c.h.b16 %v592
        %v1401 = vunpack.c.l.b16 %v593
        %v1402 = vunpack.c.h.b16 %v593
        %v1403 = vunpack.c.l.b16 %v594
        %v1404 = vunpack.c.h.b16 %v594
        %v1405 = vunpack.c.l.b16 %v595
        %v1406 = vunpack.c.h.b16 %v595
        %v1407 = vunpack.c.l.b16 %v596
        %v1408 = vunpack.c.h.b16 %v596
        %v1409 = vunpack.c.l.b16 %v597
        %v1410 = vunpack.c.h.b16 %v597
        %v1411 = vunpack.c.l.b16 %v598
        %v1412 = vunpack.c.h.b16 %v598
        %v1413 = vunpack.c.l.b16 %v599
        %v1414 = vunpack.c.h.b16 %v599
        %v1415 = vunpack.c.l.b16 %v600
        %v1416 = vunpack.c.h.b16 %v600
        %v1417 = vunpack.c.l.b16 %v601
        %v1418 = vunpack.c.h.b16 %v601
        %v1419 = vunpack.c.l.b16 %v602
        %v1420 = vunpack.c.h.b16 %v602
        %v1421 = vunpack.c.l.b16 %v603
        %v1422 = vunpack.c.h.b16 %v603
        %v1423 = vunpack.c.l.b16 %v604
        %v1424 = vunpack.c.h.b16 %v604
        %v1425 = vunpack.c.l.b16 %v605
        %v1426 = vunpack.c.h.b16 %v605
        %v1427 = vunpack.c.l.b16 %v606
        %v1428 = vunpack.c.h.b16 %v606
        %v1429 = vunpack.c.l.b16 %v607
        %v1430 = vunpack.c.h.b16 %v607
        %v1431 = vunpack.c.l.b16 %v608
        %v1432 = vunpack.c.h.b16 %v608
        %v1433 = vunpack.c.l.b16 %v609
        %v1434 = vunpack.c.h.b16 %v609
        %v1435 = vunpack.c.l.b16 %v610
        %v1436 = vunpack.c.h.b16 %v610
        %v1437 = vunpack.c.l.b16 %v611
        %v1438 = vunpack.c.h.b16 %v611
        %v1439 = vunpack.c.l.b16 %v612
        %v1440 = vunpack.c.h.b16 %v612
        %v1441 = vunpack.c.l.b16 %v613
        %v1442 = vunpack.c.h.b16 %v613
        %v1443 = vunpack.c.l.b16 %v614
        %v1444 = vunpack.c.h.b16 %v614
        %v1445 = vunpack.c.l.b16 %v615
        %v1446 = vunpack.c.h.b16 %v615
        %v1447 = vunpack.c.l.b16 %v616
        %v1448 = vunpack.c.h.b16 %v616
        %v1449 = vunpack.c.l.b16 %v617
        %v1450 = vunpack.c.h.b16 %v617
        %v1451 = vunpack.c.l.b16 %v618
        %v1452 = vunpack.c.h.b16 %v618
        %v1453 = vunpack.c.l.b16 %v619
        %v1454 = vunpack.c.h.b16 %v619
        %v1455 = vunpack.c.l.b16 %v620
        %v1456 = vunpack.c.h.b16 %v620
        %v1457 = vunpack.c.l.b16 %v621
        %v1458 = vunpack.c.h.b16 %v621
        %v1459 = vunpack.c.l.b16 %v622
        %v1460 = vunpack.c.h.b16 %v622
        %v1461 = vunpack.c.l.b16 %v623
        %v1462 = vunpack.c.h.b16 %v623
        %v1463 = vunpack.c.l.b16 %v624
        %v1464 = vunpack.c.h.b16 %v624
        %v1465 = vunpack.c.l.b16 %v625
        %v1466 = vunpack.c.h.b16 %v625
        %v1467 = vunpack.c.l.b16 %v626
        %v1468 = vunpack.c.h.b16 %v626
        %v1469 = vunpack.c.l.b16 %v627
        %v1470 = vunpack.c.h.b16 %v627
        %v1471 = vunpack.c.l.b16 %v628
        %v1472 = vunpack.c.h.b16 %v628
        %v1473 = vunpack.c.l.b16 %v629
        %v1474 = vunpack.c.h.b16 %v629
        %v1475 = vunpack.c.l.b16 %v630
        %v1476 = vunpack.c.h.b16 %v630
        %v1477 = vunpack.c.l.b16 %v631
        %v1478 = vunpack.c.h.b16 %v631
        %v1479 = vunpack.c.l.b16 %v632
        %v1480 = vunpack.c.h.b16 %v632
        %v1481 = vunpack.c.l.b16 %v633
        %v1482 = vunpack.c.h.b16 %v633
        %v1483 = vunpack.c.l.b16 %v634
        %v1484 = vunpack.c.h.b16 %v634
        %v1485 = vunpack.c.l.b16 %v635
        %v1486 = vunpack.c.h.b16 %v635
        %v1487 = vunpack.c.l.b16 %v636
        %v1488 = vunpack.c.h.b16 %v636
        %v1489 = vpack.c.b16 %v993, %v977
        %v1490 = vpack.c.b16 %v994, %v978
        %v1491 = vpack.c.b16 %v995, %v979
        %v1492 = vpack.c.b16 %v996, %v980
        %v1493 = vpack.c.b16 %v997, %v981
        %v1494 = vpack.c.b16 %v998, %v982
        %v1495 = vpack.c.b16 %v999, %v983
        %v1496 = vpack.c.b16 %v1000, %v984
        %v1497 = vpack.c.b16 %v1001, %v985
        %v1498 = vpack.c.b16 %v1002, %v986
        %v1499 = vpack.c.b16 %v1003, %v987
        %v1500 = vpack.c.b16 %v1004, %v988
        %v1501 = vpack.c.b16 %v1005, %v989
        %v1502 = vpack.c.b16 %v1006, %v990
        %v1503 = vpack.c.b16 %v1007, %v991
        %v1504 = vpack.c.b16 %v1008, %v992
        %v1505 = vpack.c.b16 %v1025, %v1009
        %v1506 = vpack.c.b16 %v1026, %v1010
        %v1507 = vpack.c.b16 %v1027, %v1011
        %v1508 = vpack.c.b16 %v1028, %v1012
        %v1509 = vpack.c.b16 %v1029, %v1013
        %v1510 = vpack.c.b16 %v1030, %v1014
        %v1511 = vpack.c.b16 %v1031, %v1015
        %v1512 = vpack.c.b16 %v1032, %v1016
        %v1513 = vpack.c.b16 %v1033, %v1017
        %v1514 = vpack.c.b16 %v1034, %v1018
        %v1515 = vpack.c.b16 %v1035, %v1019
        %v1516 = vpack.c.b16 %v1036, %v1020
        %v1517 = vpack.c.b16 %v1037, %v1021
        %v1518 = vpack.c.b16 %v1038, %v1022
        %v1519 = vpack.c.b16 %v1039, %v1023
        %v1520 = vpack.c.b16 %v1040, %v1024
        %v1521 = vpack.c.b16 %v1057, %v1041
        %v1522 = vpack.c.b16 %v1058, %v1042
        %v1523 = vpack.c.b16 %v1059, %v1043
        %v1524 = vpack.c.b16 %v1060, %v1044
        %v1525 = vpack.c.b16 %v1061, %v1045
        %v1526 = vpack.c.b16 %v1062, %v1046
        %v1527 = vpack.c.b16 %v1063, %v1047
        %v1528 = vpack.c.b16 %v1064, %v1048
        %v1529 = vpack.c.b16 %v1065, %v1049
        %v1530 = vpack.c.b16 %v1066, %v1050
        %v1531 = vpack.c.b16 %v1067, %v1051
        %v1532 = vpack.c.b16 %v1068, %v1052
        %v1533 = vpack.c.b16 %v1069, %v1053
        %v1534 = vpack.c.b16 %v1070, %v1054
        %v1535 = vpack.c.b16 %v1071, %v1055
        %v1536 = vpack.c.b16 %v1072, %v1056
        %v1537 = vpack.c.b16 %v1089, %v1073
        %v1538 = vpack.c.b16 %v1090, %v1074
        %v1539 = vpack.c.b16 %v1091, %v1075
        %v1540 = vpack.c.b16 %v1092, %v1076
        %v1541 = vpack.c.b16 %v1093, %v1077
        %v1542 = vpack.c.b16 %v1094, %v1078
        %v1543 = vpack.c.b16 %v1095, %v1079
        %v1544 = vpack.c.b16 %v1096, %v1080
        %v1545 = vpack.c.b16 %v1097, %v1081
        %v1546 = vpack.c.b16 %v1098, %v1082
        %v1547 = vpack.c.b16 %v1099, %v1083
        %v1548 = vpack.c.b16 %v1100, %v1084
        %v1549 = vpack.c.b16 %v1101, %v1085
        %v1550 = vpack.c.b16 %v1102, %v1086
        %v1551 = vpack.c.b16 %v1103, %v1087
        %v1552 = vpack.c.b16 %v1104, %v1088
        %v1553 = vpack.c.b16 %v1121, %v1105
        %v1554 = vpack.c.b16 %v1122, %v1106
        %v1555 = vpack.c.b16 %v1123, %v1107
        %v1556 = vpack.c.b16 %v1124, %v1108
        %v1557 = vpack.c.b16 %v1125, %v1109
        %v1558 = vpack.c.b16 %v1126, %v1110
        %v1559 = vpack.c.b16 %v1127, %v1111
        %v1560 = vpack.c.b16 %v1128, %v1112
        %v1561 = vpack.c.b16 %v1129, %v1113
        %v1562 = vpack.c.b16 %v1130, %v1114
        %v1563 = vpack.c.b16 %v1131, %v1115
        %v1564 = vpack.c.b16 %v1132, %v1116
        %v1565 = vpack.c.b16 %v1133, %v1117
        %v1566 = vpack.c.b16 %v1134, %v1118
        %v1567 = vpack.c.b16 %v1135, %v1119
        %v1568 = vpack.c.b16 %v1136, %v1120
        %v1569 = vpack.c.b16 %v1153, %v1137
        %v1570 = vpack.c.b16 %v1154, %v1138
        %v1571 = vpack.c.b16 %v1155, %v1139
        %v1572 = vpack.c.b16 %v1156, %v1140
        %v1573 = vpack.c.b16 %v1157, %v1141
        %v1574 = vpack.c.b16 %v1158, %v1142
        %v1575 = vpack.c.b16 %v1159, %v1143
        %v1576 = vpack.c.b16 %v1160, %v1144
        %v1577 = vpack.c.b16 %v1161, %v1145
        %v1578 = vpack.c.b16 %v1162, %v1146
        %v1579 = vpack.c.b16 %v1163, %v1147
        %v1580 = vpack.c.b16 %v1164, %v1148
        %v1581 = vpack.c.b16 %v1165, %v1149
        %v1582 = vpack.c.b16 %v1166, %v1150
        %v1583 = vpack.c.b16 %v1167, %v1151
        %v1584 = vpack.c.b16 %v1168, %v1152
        %v1585 = vpack.c.b16 %v1185, %v1169
        %v1586 = vpack.c.b16 %v1186, %v1170
        %v1587 = vpack.c.b16 %v1187, %v1171
        %v1588 = vpack.c.b16 %v1188, %v1172
        %v1589 = vpack.c.b16 %v1189, %v1173
        %v1590 = vpack.c.b16 %v1190, %v1174
        %v1591 = vpack.c.b16 %v1191, %v1175
        %v1592 = vpack.c.b16 %v1192, %v1176
        %v1593 = vpack.c.b16 %v1193, %v1177
        %v1594 = vpack.c.b16 %v1194, %v1178
        %v1595 = vpack.c.b16 %v1195, %v1179
        %v1596 = vpack.c.b16 %v1196, %v1180
        %v1597 = vpack.c.b16 %v1197, %v1181
        %v1598 = vpack.c.b16 %v1198, %v1182
        %v1599 = vpack.c.b16 %v1199, %v1183
        %v1600 = vpack.c.b16 %v1200, %v1184
        %v1601 = vpack.c.b16 %v1217, %v1201
        %v1602 = vpack.c.b16 %v1218, %v1202
        %v1603 = vpack.c.b16 %v1219, %v1203
        %v1604 = vpack.c.b16 %v1220, %v1204
        %v1605 = vpack.c.b16 %v1221, %v1205
        %v1606 = vpack.c.b16 %v1222, %v1206
        %v1607 = vpack.c.b16 %v1223, %v1207
        %v1608 = vpack.c.b16 %v1224, %v1208
        %v1609 = vpack.c.b16 %v1225, %v1209
        %v1610 = vpack.c.b16 %v1226, %v1210
        %v1611 = vpack.c.b16 %v1227, %v1211
        %v1612 = vpack.c.b16 %v1228, %v1212
        %v1613 = vpack.c.b16 %v1229, %v1213
        %v1614 = vpack.c.b16 %v1230, %v1214
        %v1615 = vpack.c.b16 %v1231, %v1215
        %v1616 = vpack.c.b16 %v1232, %v1216
        %v1617 = vpack.c.b16 %v1249, %v1233
        %v1618 = vpack.c.b16 %v1250, %v1234
        %v1619 = vpack.c.b16 %v1251, %v1235
        %v1620 = vpack.c.b16 %v1252, %v1236
        %v1621 = vpack.c.b16 %v1253, %v1237
        %v1622 = vpack.c.b16 %v1254, %v1238
        %v1623 = vpack.c.b16 %v1255, %v1239
        %v1624 = vpack.c.b16 %v1256, %v1240
        %v1625 = vpack.c.b16 %v1257, %v1241
        %v1626 = vpack.c.b16 %v1258, %v1242
        %v1627 = vpack.c.b16 %v1259, %v1243
        %v1628 = vpack.c.b16 %v1260, %v1244
        %v1629 = vpack.c.b16 %v1261, %v1245
        %v1630 = vpack.c.b16 %v1262, %v1246
        %v1631 = vpack.c.b16 %v1263, %v1247
        %v1632 = vpack.c.b16 %v1264, %v1248
        %v1633 = vpack.c.b16 %v1281, %v1265
        %v1634 = vpack.c.b16 %v1282, %v1266
        %v1635 = vpack.c.b16 %v1283, %v1267
        %v1636 = vpack.c.b16 %v1284, %v1268
        %v1637 = vpack.c.b16 %v1285, %v1269
        %v1638 = vpack.c.b16 %v1286, %v1270
        %v1639 = vpack.c.b16 %v1287, %v1271
        %v1640 = vpack.c.b16 %v1288, %v1272
        %v1641 = vpack.c.b16 %v1289, %v1273
        %v1642 = vpack.c.b16 %v1290, %v1274
        %v1643 = vpack.c.b16 %v1291, %v1275
        %v1644 = vpack.c.b16 %v1292, %v1276
        %v1645 = vpack.c.b16 %v1293, %v1277
        %v1646 = vpack.c.b16 %v1294, %v1278
        %v1647 = vpack.c.b16 %v1295, %v1279
        %v1648 = vpack.c.b16 %v1296, %v1280
        %v1649 = vpack.c.b16 %v1313, %v1297
        %v1650 = vpack.c.b16 %v1314, %v1298
        %v1651 = vpack.c.b16 %v1315, %v1299
        %v1652 = vpack.c.b16 %v1316, %v1300
        %v1653 = vpack.c.b16 %v1317, %v1301
        %v1654 = vpack.c.b16 %v1318, %v1302
        %v1655 = vpack.c.b16 %v1319, %v1303
        %v1656 = vpack.c.b16 %v1320, %v1304
        %v1657 = vpack.c.b16 %v1321, %v1305
        %v1658 = vpack.c.b16 %v1322, %v1306
        %v1659 = vpack.c.b16 %v1323, %v1307
        %v1660 = vpack.c.b16 %v1324, %v1308
        %v1661 = vpack.c.b16 %v1325, %v1309
        %v1662 = vpack.c.b16 %v1326, %v1310
        %v1663 = vpack.c.b16 %v1327, %v1311
        %v1664 = vpack.c.b16 %v1328, %v1312
        %v1665 = vpack.c.b16 %v1345, %v1329
        %v1666 = vpack.c.b16 %v1346, %v1330
        %v1667 = vpack.c.b16 %v1347, %v1331
        %v1668 = vpack.c.b16 %v1348, %v1332
        %v1669 = vpack.c.b16 %v1349, %v1333
        %v1670 = vpack.c.b16 %v1350, %v1334
        %v1671 = vpack.c.b16 %v1351, %v1335
        %v1672 = vpack.c.b16 %v1352, %v1336
        %v1673 = vpack.c.b16 %v1353, %v1337
        %v1674 = vpack.c.b16 %v1354, %v1338
        %v1675 = vpack.c.b16 %v1355, %v1339
        %v1676 = vpack.c.b16 %v1356, %v1340
        %v1677 = vpack.c.b16 %v1357, %v1341
        %v1678 = vpack.c.b16 %v1358, %v1342
        %v1679 = vpack.c.b16 %v1359, %v1343
        %v1680 = vpack.c.b16 %v1360, %v1344
        %v1681 = vpack.c.b16 %v1377, %v1361
        %v1682 = vpack.c.b16 %v1378, %v1362
        %v1683 = vpack.c.b16 %v1379, %v1363
        %v1684 = vpack.c.b16 %v1380, %v1364
        %v1685 = vpack.c.b16 %v1381, %v1365
        %v1686 = vpack.c.b16 %v1382, %v1366
        %v1687 = vpack.c.b16 %v1383, %v1367
        %v1688 = vpack.c.b16 %v1384, %v1368
        %v1689 = vpack.c.b16 %v1385, %v1369
        %v1690 = vpack.c.b16 %v1386, %v1370
        %v1691 = vpack.c.b16 %v1387, %v1371
        %v1692 = vpack.c.b16 %v1388, %v1372
        %v1693 = vpack.c.b16 %v1389, %v1373
        %v1694 = vpack.c.b16 %v1390, %v1374
        %v1695 = vpack.c.b16 %v1391, %v1375
        %v1696 = vpack.c.b16 %v1392, %v1376
        %v1697 = vpack.c.b16 %v1409, %v1393
        %v1698 = vpack.c.b16 %v1410, %v1394
        %v1699 = vpack.c.b16 %v1411, %v1395
        %v1700 = vpack.c.b16 %v1412, %v1396
        %v1701 = vpack.c.b16 %v1413, %v1397
        %v1702 = vpack.c.b16 %v1414, %v1398
        %v1703 = vpack.c.b16 %v1415, %v1399
        %v1704 = vpack.c.b16 %v1416, %v1400
        %v1705 = vpack.c.b16 %v1417, %v1401
        %v1706 = vpack.c.b16 %v1418, %v1402
        %v1707 = vpack.c.b16 %v1419, %v1403
        %v1708 = vpack.c.b16 %v1420, %v1404
        %v1709 = vpack.c.b16 %v1421, %v1405
        %v1710 = vpack.c.b16 %v1422, %v1406
        %v1711 = vpack.c.b16 %v1423, %v1407
        %v1712 = vpack.c.b16 %v1424, %v1408
        %v1713 = vpack.c.b16 %v1441, %v1425
        %v1714 = vpack.c.b16 %v1442, %v1426
        %v1715 = vpack.c.b16 %v1443, %v1427
        %v1716 = vpack.c.b16 %v1444, %v1428
        %v1717 = vpack.c.b16 %v1445, %v1429
        %v1718 = vpack.c.b16 %v1446, %v1430
        %v1719 = vpack.c.b16 %v1447, %v1431
        %v1720 = vpack.c.b16 %v1448, %v1432
        %v1721 = vpack.c.b16 %v1449, %v1433
        %v1722 = vpack.c.b16 %v1450, %v1434
        %v1723 = vpack.c.b16 %v1451, %v1435
        %v1724 = vpack.c.b16 %v1452, %v1436
        %v1725 = vpack.c.b16 %v1453, %v1437
        %v1726 = vpack.c.b16 %v1454, %v1438
        %v1727 = vpack.c.b16 %v1455, %v1439
        %v1728 = vpack.c.b16 %v1456, %v1440
        %v1729 = vpack.c.b16 %v1473, %v1457
        %v1730 = vpack.c.b16 %v1474, %v1458
        %v1731 = vpack.c.b16 %v1475, %v1459
        %v1732 = vpack.c.b16 %v1476, %v1460
        %v1733 = vpack.c.b16 %v1477, %v1461
        %v1734 = vpack.c.b16 %v1478, %v1462
        %v1735 = vpack.c.b16 %v1479, %v1463
        %v1736 = vpack.c.b16 %v1480, %v1464
        %v1737 = vpack.c.b16 %v1481, %v1465
        %v1738 = vpack.c.b16 %v1482, %v1466
        %v1739 = vpack.c.b16 %v1483, %v1467
        %v1740 = vpack.c.b16 %v1484, %v1468
        %v1741 = vpack.c.b16 %v1485, %v1469
        %v1742 = vpack.c.b16 %v1486, %v1470
        %v1743 = vpack.c.b16 %v1487, %v1471
        %v1744 = vpack.c.b16 %v1488, %v1472
        %2001 = vmatprep.subr.bf16.mxu0 %v1490
        %2002 = vmatpush1.bf16.msra.mxu0 %v1489
        %2003 = vmatprep.subr.bf16.mxu0 %v1506
        %2004 = vmatpush1.bf16.msra.mxu0 %v1505
        %2005 = vmatprep.subr.bf16.mxu0 %v1522
        %2006 = vmatpush1.bf16.msra.mxu0 %v1521
        %2007 = vmatprep.subr.bf16.mxu0 %v1538
        %2008 = vmatpush1.bf16.msra.mxu0 %v1537
        %2009 = vmatprep.subr.bf16.mxu0 %v1554
        %2010 = vmatpush1.bf16.msra.mxu0 %v1553
        %2011 = vmatprep.subr.bf16.mxu0 %v1570
        %2012 = vmatpush1.bf16.msra.mxu0 %v1569
        %2013 = vmatprep.subr.bf16.mxu0 %v1586
        %2014 = vmatpush1.bf16.msra.mxu0 %v1585
        %2015 = vmatprep.subr.bf16.mxu0 %v1602
        %2016 = vmatpush1.bf16.msra.mxu0 %v1601
        %2017 = vmatprep.subr.bf16.mxu0 %v1618
        %2018 = vmatpush1.bf16.msra.mxu0 %v1617
        %2019 = vmatprep.subr.bf16.mxu0 %v1634
        %2020 = vmatpush1.bf16.msra.mxu0 %v1633
        %2021 = vmatprep.subr.bf16.mxu0 %v1650
        %2022 = vmatpush1.bf16.msra.mxu0 %v1649
        %2023 = vmatprep.subr.bf16.mxu0 %v1666
        %2024 = vmatpush1.bf16.msra.mxu0 %v1665
        %2025 = vmatprep.subr.bf16.mxu0 %v1682
        %2026 = vmatpush1.bf16.msra.mxu0 %v1681
        %2027 = vmatprep.subr.bf16.mxu0 %v1698
        %2028 = vmatpush1.bf16.msra.mxu0 %v1697
        %2029 = vmatprep.subr.bf16.mxu0 %v1714
        %2030 = vmatpush1.bf16.msra.mxu0 %v1713
        %2031 = vmatprep.subr.bf16.mxu0 %v1730
        %2032 = vmatpush1.bf16.msra.mxu0 %v1729
        %2033 = vmatprep.mubr.bf16.mxu0 %v380
        %2034 = vmatmul.mubr.bf16.gmra.mrb[0].mxu0 %v379
        %v2035 = vpop.f32.mrb[0].mxu0
        %v2036 = vadd.f32 %v644, %v2035
        %v2037 = vpop.f32.mrb[0].mxu0
        %v2038 = vadd.f32 %v648, %v2037
        %v2039 = vpop.f32.mrb[0].mxu0
        %v2040 = vpop.f32.mrb[0].mxu0
        %2041 = vdwg.mxu0
        %2042 = vmatprep.subr.bf16.mxu0 %v1492
        %2043 = vmatpush1.bf16.msra.mxu0 %v1491
        %2044 = vmatprep.subr.bf16.mxu0 %v1508
        %2045 = vmatpush1.bf16.msra.mxu0 %v1507
        %2046 = vmatprep.subr.bf16.mxu0 %v1524
        %2047 = vmatpush1.bf16.msra.mxu0 %v1523
        %2048 = vmatprep.subr.bf16.mxu0 %v1540
        %2049 = vmatpush1.bf16.msra.mxu0 %v1539
        %2050 = vmatprep.subr.bf16.mxu0 %v1556
        %2051 = vmatpush1.bf16.msra.mxu0 %v1555
        %2052 = vmatprep.subr.bf16.mxu0 %v1572
        %2053 = vmatpush1.bf16.msra.mxu0 %v1571
        %2054 = vmatprep.subr.bf16.mxu0 %v1588
        %2055 = vmatpush1.bf16.msra.mxu0 %v1587
        %2056 = vmatprep.subr.bf16.mxu0 %v1604
        %2057 = vmatpush1.bf16.msra.mxu0 %v1603
        %2058 = vmatprep.subr.bf16.mxu0 %v1620
        %2059 = vmatpush1.bf16.msra.mxu0 %v1619
        %2060 = vmatprep.subr.bf16.mxu0 %v1636
        %2061 = vmatpush1.bf16.msra.mxu0 %v1635
        %2062 = vmatprep.subr.bf16.mxu0 %v1652
        %2063 = vmatpush1.bf16.msra.mxu0 %v1651
        %2064 = vmatprep.subr.bf16.mxu0 %v1668
        %2065 = vmatpush1.bf16.msra.mxu0 %v1667
        %2066 = vmatprep.subr.bf16.mxu0 %v1684
        %2067 = vmatpush1.bf16.msra.mxu0 %v1683
        %2068 = vmatprep.subr.bf16.mxu0 %v1700
        %2069 = vmatpush1.bf16.msra.mxu0 %v1699
        %2070 = vmatprep.subr.bf16.mxu0 %v1716
        %2071 = vmatpush1.bf16.msra.mxu0 %v1715
        %2072 = vmatprep.subr.bf16.mxu0 %v1732
        %2073 = vmatpush1.bf16.msra.mxu0 %v1731
        %2074 = vmatprep.mubr.bf16.mxu0 %v380
        %2075 = vmatmul.mubr.bf16.gmra.mrb[0].mxu0 %v379
        %v2076 = vpop.f32.mrb[0].mxu0
        %v2077 = vadd.f32 %v652, %v2076
        %v2078 = vpop.f32.mrb[0].mxu0
        %v2079 = vadd.f32 %v656, %v2078
        %v2080 = vpop.f32.mrb[0].mxu0
        %v2081 = vpop.f32.mrb[0].mxu0
        %2082 = vdwg.mxu0
        %2083 = vmatprep.subr.bf16.mxu0 %v1494
        %2084 = vmatpush1.bf16.msra.mxu0 %v1493
        %2085 = vmatprep.subr.bf16.mxu0 %v1510
        %2086 = vmatpush1.bf16.msra.mxu0 %v1509
        %2087 = vmatprep.subr.bf16.mxu0 %v1526
        %2088 = vmatpush1.bf16.msra.mxu0 %v1525
        %2089 = vmatprep.subr.bf16.mxu0 %v1542
        %2090 = vmatpush1.bf16.msra.mxu0 %v1541
        %2091 = vmatprep.subr.bf16.mxu0 %v1558
        %2092 = vmatpush1.bf16.msra.mxu0 %v1557
        %2093 = vmatprep.subr.bf16.mxu0 %v1574
        %2094 = vmatpush1.bf16.msra.mxu0 %v1573
        %2095 = vmatprep.subr.bf16.mxu0 %v1590
        %2096 = vmatpush1.bf16.msra.mxu0 %v1589
        %2097 = vmatprep.subr.bf16.mxu0 %v1606
        %2098 = vmatpush1.bf16.msra.mxu0 %v1605
        %2099 = vmatprep.subr.bf16.mxu0 %v1622
        %2100 = vmatpush1.bf16.msra.mxu0 %v1621
        %2101 = vmatprep.subr.bf16.mxu0 %v1638
        %2102 = vmatpush1.bf16.msra.mxu0 %v1637
        %2103 = vmatprep.subr.bf16.mxu0 %v1654
        %2104 = vmatpush1.bf16.msra.mxu0 %v1653
        %2105 = vmatprep.subr.bf16.mxu0 %v1670
        %2106 = vmatpush1.bf16.msra.mxu0 %v1669
        %2107 = vmatprep.subr.bf16.mxu0 %v1686
        %2108 = vmatpush1.bf16.msra.mxu0 %v1685
        %2109 = vmatprep.subr.bf16.mxu0 %v1702
        %2110 = vmatpush1.bf16.msra.mxu0 %v1701
        %2111 = vmatprep.subr.bf16.mxu0 %v1718
        %2112 = vmatpush1.bf16.msra.mxu0 %v1717
        %2113 = vmatprep.subr.bf16.mxu0 %v1734
        %2114 = vmatpush1.bf16.msra.mxu0 %v1733
        %2115 = vmatprep.mubr.bf16.mxu0 %v380
        %2116 = vmatmul.mubr.bf16.gmra.mrb[0].mxu0 %v379
        %v2117 = vpop.f32.mrb[0].mxu0
        %v2118 = vadd.f32 %v660, %v2117
        %v2119 = vpop.f32.mrb[0].mxu0
        %v2120 = vadd.f32 %v664, %v2119
        %v2121 = vpop.f32.mrb[0].mxu0
        %v2122 = vpop.f32.mrb[0].mxu0
        %2123 = vdwg.mxu0
        %2124 = vmatprep.subr.bf16.mxu0 %v1496
        %2125 = vmatpush1.bf16.msra.mxu0 %v1495
        %2126 = vmatprep.subr.bf16.mxu0 %v1512
        %2127 = vmatpush1.bf16.msra.mxu0 %v1511
        %2128 = vmatprep.subr.bf16.mxu0 %v1528
        %2129 = vmatpush1.bf16.msra.mxu0 %v1527
        %2130 = vmatprep.subr.bf16.mxu0 %v1544
        %2131 = vmatpush1.bf16.msra.mxu0 %v1543
        %2132 = vmatprep.subr.bf16.mxu0 %v1560
        %2133 = vmatpush1.bf16.msra.mxu0 %v1559
        %2134 = vmatprep.subr.bf16.mxu0 %v1576
        %2135 = vmatpush1.bf16.msra.mxu0 %v1575
        %2136 = vmatprep.subr.bf16.mxu0 %v1592
        %2137 = vmatpush1.bf16.msra.mxu0 %v1591
        %2138 = vmatprep.subr.bf16.mxu0 %v1608
        %2139 = vmatpush1.bf16.msra.mxu0 %v1607
        %2140 = vmatprep.subr.bf16.mxu0 %v1624
        %2141 = vmatpush1.bf16.msra.mxu0 %v1623
        %2142 = vmatprep.subr.bf16.mxu0 %v1640
        %2143 = vmatpush1.bf16.msra.mxu0 %v1639
        %2144 = vmatprep.subr.bf16.mxu0 %v1656
        %2145 = vmatpush1.bf16.msra.mxu0 %v1655
        %2146 = vmatprep.subr.bf16.mxu0 %v1672
        %2147 = vmatpush1.bf16.msra.mxu0 %v1671
        %2148 = vmatprep.subr.bf16.mxu0 %v1688
        %2149 = vmatpush1.bf16.msra.mxu0 %v1687
        %2150 = vmatprep.subr.bf16.mxu0 %v1704
        %2151 = vmatpush1.bf16.msra.mxu0 %v1703
        %2152 = vmatprep.subr.bf16.mxu0 %v1720
        %2153 = vmatpush1.bf16.msra.mxu0 %v1719
        %2154 = vmatprep.subr.bf16.mxu0 %v1736
        %2155 = vmatpush1.bf16.msra.mxu0 %v1735
        %2156 = vmatprep.mubr.bf16.mxu0 %v380
        %2157 = vmatmul.mubr.bf16.gmra.mrb[0].mxu0 %v379
        %v2158 = vpop.f32.mrb[0].mxu0
        %v2159 = vadd.f32 %v668, %v2158
        %v2160 = vpop.f32.mrb[0].mxu0
        %v2161 = vadd.f32 %v672, %v2160
        %v2162 = vpop.f32.mrb[0].mxu0
        %v2163 = vpop.f32.mrb[0].mxu0
        %2164 = vdwg.mxu0
        %2165 = vmatprep.subr.bf16.mxu0 %v1498
        %2166 = vmatpush1.bf16.msra.mxu0 %v1497
        %2167 = vmatprep.subr.bf16.mxu0 %v1514
        %2168 = vmatpush1.bf16.msra.mxu0 %v1513
        %2169 = vmatprep.subr.bf16.mxu0 %v1530
        %2170 = vmatpush1.bf16.msra.mxu0 %v1529
        %2171 = vmatprep.subr.bf16.mxu0 %v1546
        %2172 = vmatpush1.bf16.msra.mxu0 %v1545
        %2173 = vmatprep.subr.bf16.mxu0 %v1562
        %2174 = vmatpush1.bf16.msra.mxu0 %v1561
        %2175 = vmatprep.subr.bf16.mxu0 %v1578
        %2176 = vmatpush1.bf16.msra.mxu0 %v1577
        %2177 = vmatprep.subr.bf16.mxu0 %v1594
        %2178 = vmatpush1.bf16.msra.mxu0 %v1593
        %2179 = vmatprep.subr.bf16.mxu0 %v1610
        %2180 = vmatpush1.bf16.msra.mxu0 %v1609
        %2181 = vmatprep.subr.bf16.mxu0 %v1626
        %2182 = vmatpush1.bf16.msra.mxu0 %v1625
        %2183 = vmatprep.subr.bf16.mxu0 %v1642
        %2184 = vmatpush1.bf16.msra.mxu0 %v1641
        %2185 = vmatprep.subr.bf16.mxu0 %v1658
        %2186 = vmatpush1.bf16.msra.mxu0 %v1657
        %2187 = vmatprep.subr.bf16.mxu0 %v1674
        %2188 = vmatpush1.bf16.msra.mxu0 %v1673
        %2189 = vmatprep.subr.bf16.mxu0 %v1690
        %2190 = vmatpush1.bf16.msra.mxu0 %v1689
        %2191 = vmatprep.subr.bf16.mxu0 %v1706
        %2192 = vmatpush1.bf16.msra.mxu0 %v1705
        %2193 = vmatprep.subr.bf16.mxu0 %v1722
        %2194 = vmatpush1.bf16.msra.mxu0 %v1721
        %2195 = vmatprep.subr.bf16.mxu0 %v1738
        %2196 = vmatpush1.bf16.msra.mxu0 %v1737
        %2197 = vmatprep.mubr.bf16.mxu0 %v380
        %2198 = vmatmul.mubr.bf16.gmra.mrb[0].mxu0 %v379
        %v2199 = vpop.f32.mrb[0].mxu0
        %v2200 = vadd.f32 %v676, %v2199
        %v2201 = vpop.f32.mrb[0].mxu0
        %v2202 = vadd.f32 %v680, %v2201
        %v2203 = vpop.f32.mrb[0].mxu0
        %v2204 = vpop.f32.mrb[0].mxu0
        %2205 = vdwg.mxu0
        %2206 = vmatprep.subr.bf16.mxu0 %v1500
        %2207 = vmatpush1.bf16.msra.mxu0 %v1499
        %2208 = vmatprep.subr.bf16.mxu0 %v1516
        %2209 = vmatpush1.bf16.msra.mxu0 %v1515
        %2210 = vmatprep.subr.bf16.mxu0 %v1532
        %2211 = vmatpush1.bf16.msra.mxu0 %v1531
        %2212 = vmatprep.subr.bf16.mxu0 %v1548
        %2213 = vmatpush1.bf16.msra.mxu0 %v1547
        %2214 = vmatprep.subr.bf16.mxu0 %v1564
        %2215 = vmatpush1.bf16.msra.mxu0 %v1563
        %2216 = vmatprep.subr.bf16.mxu0 %v1580
        %2217 = vmatpush1.bf16.msra.mxu0 %v1579
        %2218 = vmatprep.subr.bf16.mxu0 %v1596
        %2219 = vmatpush1.bf16.msra.mxu0 %v1595
        %2220 = vmatprep.subr.bf16.mxu0 %v1612
        %2221 = vmatpush1.bf16.msra.mxu0 %v1611
        %2222 = vmatprep.subr.bf16.mxu0 %v1628
        %2223 = vmatpush1.bf16.msra.mxu0 %v1627
        %2224 = vmatprep.subr.bf16.mxu0 %v1644
        %2225 = vmatpush1.bf16.msra.mxu0 %v1643
        %2226 = vmatprep.subr.bf16.mxu0 %v1660
        %2227 = vmatpush1.bf16.msra.mxu0 %v1659
        %2228 = vmatprep.subr.bf16.mxu0 %v1676
        %2229 = vmatpush1.bf16.msra.mxu0 %v1675
        %2230 = vmatprep.subr.bf16.mxu0 %v1692
        %2231 = vmatpush1.bf16.msra.mxu0 %v1691
        %2232 = vmatprep.subr.bf16.mxu0 %v1708
        %2233 = vmatpush1.bf16.msra.mxu0 %v1707
        %2234 = vmatprep.subr.bf16.mxu0 %v1724
        %2235 = vmatpush1.bf16.msra.mxu0 %v1723
        %2236 = vmatprep.subr.bf16.mxu0 %v1740
        %2237 = vmatpush1.bf16.msra.mxu0 %v1739
        %2238 = vmatprep.mubr.bf16.mxu0 %v380
        %2239 = vmatmul.mubr.bf16.gmra.mrb[0].mxu0 %v379
        %v2240 = vpop.f32.mrb[0].mxu0
        %v2241 = vadd.f32 %v684, %v2240
        %v2242 = vpop.f32.mrb[0].mxu0
        %v2243 = vadd.f32 %v688, %v2242
        %v2244 = vpop.f32.mrb[0].mxu0
        %v2245 = vpop.f32.mrb[0].mxu0
        %2246 = vdwg.mxu0
        %2247 = vmatprep.subr.bf16.mxu0 %v1502
        %2248 = vmatpush1.bf16.msra.mxu0 %v1501
        %2249 = vmatprep.subr.bf16.mxu0 %v1518
        %2250 = vmatpush1.bf16.msra.mxu0 %v1517
        %2251 = vmatprep.subr.bf16.mxu0 %v1534
        %2252 = vmatpush1.bf16.msra.mxu0 %v1533
        %2253 = vmatprep.subr.bf16.mxu0 %v1550
        %2254 = vmatpush1.bf16.msra.mxu0 %v1549
        %2255 = vmatprep.subr.bf16.mxu0 %v1566
        %2256 = vmatpush1.bf16.msra.mxu0 %v1565
        %2257 = vmatprep.subr.bf16.mxu0 %v1582
        %2258 = vmatpush1.bf16.msra.mxu0 %v1581
        %2259 = vmatprep.subr.bf16.mxu0 %v1598
        %2260 = vmatpush1.bf16.msra.mxu0 %v1597
        %2261 = vmatprep.subr.bf16.mxu0 %v1614
        %2262 = vmatpush1.bf16.msra.mxu0 %v1613
        %2263 = vmatprep.subr.bf16.mxu0 %v1630
        %2264 = vmatpush1.bf16.msra.mxu0 %v1629
        %2265 = vmatprep.subr.bf16.mxu0 %v1646
        %2266 = vmatpush1.bf16.msra.mxu0 %v1645
        %2267 = vmatprep.subr.bf16.mxu0 %v1662
        %2268 = vmatpush1.bf16.msra.mxu0 %v1661
        %2269 = vmatprep.subr.bf16.mxu0 %v1678
        %2270 = vmatpush1.bf16.msra.mxu0 %v1677
        %2271 = vmatprep.subr.bf16.mxu0 %v1694
        %2272 = vmatpush1.bf16.msra.mxu0 %v1693
        %2273 = vmatprep.subr.bf16.mxu0 %v1710
        %2274 = vmatpush1.bf16.msra.mxu0 %v1709
        %2275 = vmatprep.subr.bf16.mxu0 %v1726
        %2276 = vmatpush1.bf16.msra.mxu0 %v1725
        %2277 = vmatprep.subr.bf16.mxu0 %v1742
        %2278 = vmatpush1.bf16.msra.mxu0 %v1741
        %2279 = vmatprep.mubr.bf16.mxu0 %v380
        %2280 = vmatmul.mubr.bf16.gmra.mrb[0].mxu0 %v379
        %v2281 = vpop.f32.mrb[0].mxu0
        %v2282 = vadd.f32 %v692, %v2281
        %v2283 = vpop.f32.mrb[0].mxu0
        %v2284 = vadd.f32 %v696, %v2283
        %v2285 = vpop.f32.mrb[0].mxu0
        %v2286 = vpop.f32.mrb[0].mxu0
        %2287 = vdwg.mxu0
        %2288 = vmatprep.subr.bf16.mxu0 %v1504
        %2289 = vmatpush1.bf16.msra.mxu0 %v1503
        %2290 = vmatprep.subr.bf16.mxu0 %v1520
        %2291 = vmatpush1.bf16.msra.mxu0 %v1519
        %2292 = vmatprep.subr.bf16.mxu0 %v1536
        %2293 = vmatpush1.bf16.msra.mxu0 %v1535
        %2294 = vmatprep.subr.bf16.mxu0 %v1552
        %2295 = vmatpush1.bf16.msra.mxu0 %v1551
        %2296 = vmatprep.subr.bf16.mxu0 %v1568
        %2297 = vmatpush1.bf16.msra.mxu0 %v1567
        %2298 = vmatprep.subr.bf16.mxu0 %v1584
        %2299 = vmatpush1.bf16.msra.mxu0 %v1583
        %2300 = vmatprep.subr.bf16.mxu0 %v1600
        %2301 = vmatpush1.bf16.msra.mxu0 %v1599
        %2302 = vmatprep.subr.bf16.mxu0 %v1616
        %2303 = vmatpush1.bf16.msra.mxu0 %v1615
        %2304 = vmatprep.subr.bf16.mxu0 %v1632
        %2305 = vmatpush1.bf16.msra.mxu0 %v1631
        %2306 = vmatprep.subr.bf16.mxu0 %v1648
        %2307 = vmatpush1.bf16.msra.mxu0 %v1647
        %2308 = vmatprep.subr.bf16.mxu0 %v1664
        %2309 = vmatpush1.bf16.msra.mxu0 %v1663
        %2310 = vmatprep.subr.bf16.mxu0 %v1680
        %2311 = vmatpush1.bf16.msra.mxu0 %v1679
        %2312 = vmatprep.subr.bf16.mxu0 %v1696
        %2313 = vmatpush1.bf16.msra.mxu0 %v1695
        %2314 = vmatprep.subr.bf16.mxu0 %v1712
        %2315 = vmatpush1.bf16.msra.mxu0 %v1711
        %2316 = vmatprep.subr.bf16.mxu0 %v1728
        %2317 = vmatpush1.bf16.msra.mxu0 %v1727
        %2318 = vmatprep.subr.bf16.mxu0 %v1744
        %2319 = vmatpush1.bf16.msra.mxu0 %v1743
        %2320 = vmatprep.mubr.bf16.mxu0 %v380
        %2321 = vmatmul.mubr.bf16.gmra.mrb[0].mxu0 %v379
        %v2322 = vpop.f32.mrb[0].mxu0
        %v2323 = vadd.f32 %v700, %v2322
        %v2324 = vpop.f32.mrb[0].mxu0
        %v2325 = vadd.f32 %v704, %v2324
        %v2326 = vpop.f32.mrb[0].mxu0
        %v2327 = vpop.f32.mrb[0].mxu0
        %2328 = vdwg.mxu0
        %vm2329 = vcmp.gt.f32.partialorder %v2036, 0.0
        %vm2330 = vcmp.gt.f32.partialorder %v2038, 0.0
        %vm2331 = vcmp.gt.f32.partialorder %v2077, 0.0
        %vm2332 = vcmp.gt.f32.partialorder %v2079, 0.0
        %vm2333 = vcmp.gt.f32.partialorder %v2118, 0.0
        %vm2334 = vcmp.gt.f32.partialorder %v2120, 0.0
        %vm2335 = vcmp.gt.f32.partialorder %v2159, 0.0
        %vm2336 = vcmp.gt.f32.partialorder %v2161, 0.0
        %vm2337 = vcmp.gt.f32.partialorder %v2200, 0.0
        %vm2338 = vcmp.gt.f32.partialorder %v2202, 0.0
        %vm2339 = vcmp.gt.f32.partialorder %v2241, 0.0
        %vm2340 = vcmp.gt.f32.partialorder %v2243, 0.0
        %vm2341 = vcmp.gt.f32.partialorder %v2282, 0.0
        %vm2342 = vcmp.gt.f32.partialorder %v2284, 0.0
        %vm2343 = vcmp.gt.f32.partialorder %v2323, 0.0
        %vm2344 = vcmp.gt.f32.partialorder %v2325, 0.0
        %v2345 = vmul.f32 %v2036, 0.01
        %v2346 = vmul.f32 %v2038, 0.01
        %v2347 = vmul.f32 %v2077, 0.01
        %v2348 = vmul.f32 %v2079, 0.01
        %v2349 = vmul.f32 %v2118, 0.01
        %v2350 = vmul.f32 %v2120, 0.01
        %v2351 = vmul.f32 %v2159, 0.01
        %v2352 = vmul.f32 %v2161, 0.01
        %v2353 = vmul.f32 %v2200, 0.01
        %v2354 = vmul.f32 %v2202, 0.01
        %v2355 = vmul.f32 %v2241, 0.01
        %v2356 = vmul.f32 %v2243, 0.01
        %v2357 = vmul.f32 %v2282, 0.01
        %v2358 = vmul.f32 %v2284, 0.01
        %v2359 = vmul.f32 %v2323, 0.01
        %v2360 = vmul.f32 %v2325, 0.01
        %v2361 = vsel %vm2329, %v2036, %v2345
        %v2362 = vsel %vm2330, %v2038, %v2346
        %v2363 = vsel %vm2331, %v2077, %v2347
        %v2364 = vsel %vm2332, %v2079, %v2348
        %v2365 = vsel %vm2333, %v2118, %v2349
        %v2366 = vsel %vm2334, %v2120, %v2350
        %v2367 = vsel %vm2335, %v2159, %v2351
        %v2368 = vsel %vm2336, %v2161, %v2352
        %v2369 = vsel %vm2337, %v2200, %v2353
        %v2370 = vsel %vm2338, %v2202, %v2354
        %v2371 = vsel %vm2339, %v2241, %v2355
        %v2372 = vsel %vm2340, %v2243, %v2356
        %v2373 = vsel %vm2341, %v2282, %v2357
        %v2374 = vsel %vm2342, %v2284, %v2358
        %v2375 = vsel %vm2343, %v2323, %v2359
        %v2376 = vsel %vm2344, %v2325, %v2360
        %v2377 = vpack.c.bf16 %v2361, %v2361
        %v2378 = vpack.c.bf16 %v2362, %v2362
        %v2379 = vpack.c.bf16 %v2363, %v2363
        %v2380 = vpack.c.bf16 %v2364, %v2364
        %v2381 = vpack.c.bf16 %v2365, %v2365
        %v2382 = vpack.c.bf16 %v2366, %v2366
        %v2383 = vpack.c.bf16 %v2367, %v2367
        %v2384 = vpack.c.bf16 %v2368, %v2368
        %v2385 = vpack.c.bf16 %v2369, %v2369
        %v2386 = vpack.c.bf16 %v2370, %v2370
        %v2387 = vpack.c.bf16 %v2371, %v2371
        %v2388 = vpack.c.bf16 %v2372, %v2372
        %v2389 = vpack.c.bf16 %v2373, %v2373
        %v2390 = vpack.c.bf16 %v2374, %v2374
        %v2391 = vpack.c.bf16 %v2375, %v2375
        %v2392 = vpack.c.bf16 %v2376, %v2376
        %v2393 = vld [vmem:[#allocation8] sm:$0xff]
        %v2394 = vld [vmem:[#allocation8 + $0x8] sm:$0xff]
        %v2395 = vld [vmem:[#allocation8 + $0x10] sm:$0xff]
        %v2396 = vld [vmem:[#allocation8 + $0x18] sm:$0xff]
        %v2397 = vld [vmem:[#allocation8 + $0x20] sm:$0xff]
        %v2398 = vld [vmem:[#allocation8 + $0x28] sm:$0xff]
        %v2399 = vld [vmem:[#allocation8 + $0x30] sm:$0xff]
        %v2400 = vld [vmem:[#allocation8 + $0x38] sm:$0xff]
        %v2401 = vld [vmem:[#allocation8 + $0x40] sm:$0xff]
        %v2402 = vld [vmem:[#allocation8 + $0x48] sm:$0xff]
        %v2403 = vld [vmem:[#allocation8 + $0x50] sm:$0xff]
        %v2404 = vld [vmem:[#allocation8 + $0x58] sm:$0xff]
        %v2405 = vld [vmem:[#allocation8 + $0x60] sm:$0xff]
        %v2406 = vld [vmem:[#allocation8 + $0x68] sm:$0xff]
        %v2407 = vld [vmem:[#allocation8 + $0x70] sm:$0xff]
        %v2408 = vld [vmem:[#allocation8 + $0x78] sm:$0xff]
        %v2409 = vld [vmem:[#allocation8 + $0x80] sm:$0xff]
        %v2410 = vld [vmem:[#allocation8 + $0x88] sm:$0xff]
        %v2411 = vld [vmem:[#allocation8 + $0x90] sm:$0xff]
        %v2412 = vld [vmem:[#allocation8 + $0x98] sm:$0xff]
        %v2413 = vld [vmem:[#allocation8 + $0xa0] sm:$0xff]
        %v2414 = vld [vmem:[#allocation8 + $0xa8] sm:$0xff]
        %v2415 = vld [vmem:[#allocation8 + $0xb0] sm:$0xff]
        %v2416 = vld [vmem:[#allocation8 + $0xb8] sm:$0xff]
        %v2417 = vld [vmem:[#allocation8 + $0xc0] sm:$0xff]
        %v2418 = vld [vmem:[#allocation8 + $0xc8] sm:$0xff]
        %v2419 = vld [vmem:[#allocation8 + $0xd0] sm:$0xff]
        %v2420 = vld [vmem:[#allocation8 + $0xd8] sm:$0xff]
        %v2421 = vld [vmem:[#allocation8 + $0xe0] sm:$0xff]
        %v2422 = vld [vmem:[#allocation8 + $0xe8] sm:$0xff]
        %v2423 = vld [vmem:[#allocation8 + $0xf0] sm:$0xff]
        %v2424 = vld [vmem:[#allocation8 + $0xf8] sm:$0xff]
        %v2425 = vld [vmem:[#allocation8 + $0x100] sm:$0xff]
        %v2426 = vld [vmem:[#allocation8 + $0x108] sm:$0xff]
        %v2427 = vld [vmem:[#allocation8 + $0x110] sm:$0xff]
        %v2428 = vld [vmem:[#allocation8 + $0x118] sm:$0xff]
        %v2429 = vld [vmem:[#allocation8 + $0x120] sm:$0xff]
        %v2430 = vld [vmem:[#allocation8 + $0x128] sm:$0xff]
        %v2431 = vld [vmem:[#allocation8 + $0x130] sm:$0xff]
        %v2432 = vld [vmem:[#allocation8 + $0x138] sm:$0xff]
        %v2433 = vld [vmem:[#allocation8 + $0x140] sm:$0xff]
        %v2434 = vld [vmem:[#allocation8 + $0x148] sm:$0xff]
        %v2435 = vld [vmem:[#allocation8 + $0x150] sm:$0xff]
        %v2436 = vld [vmem:[#allocation8 + $0x158] sm:$0xff]
        %v2437 = vld [vmem:[#allocation8 + $0x160] sm:$0xff]
        %v2438 = vld [vmem:[#allocation8 + $0x168] sm:$0xff]
        %v2439 = vld [vmem:[#allocation8 + $0x170] sm:$0xff]
        %v2440 = vld [vmem:[#allocation8 + $0x178] sm:$0xff]
        %v2441 = vld [vmem:[#allocation8 + $0x180] sm:$0xff]
        %v2442 = vld [vmem:[#allocation8 + $0x188] sm:$0xff]
        %v2443 = vld [vmem:[#allocation8 + $0x190] sm:$0xff]
        %v2444 = vld [vmem:[#allocation8 + $0x198] sm:$0xff]
        %v2445 = vld [vmem:[#allocation8 + $0x1a0] sm:$0xff]
        %v2446 = vld [vmem:[#allocation8 + $0x1a8] sm:$0xff]
        %v2447 = vld [vmem:[#allocation8 + $0x1b0] sm:$0xff]
        %v2448 = vld [vmem:[#allocation8 + $0x1b8] sm:$0xff]
        %v2449 = vld [vmem:[#allocation8 + $0x1c0] sm:$0xff]
        %v2450 = vld [vmem:[#allocation8 + $0x1c8] sm:$0xff]
        %v2451 = vld [vmem:[#allocation8 + $0x1d0] sm:$0xff]
        %v2452 = vld [vmem:[#allocation8 + $0x1d8] sm:$0xff]
        %v2453 = vld [vmem:[#allocation8 + $0x1e0] sm:$0xff]
        %v2454 = vld [vmem:[#allocation8 + $0x1e8] sm:$0xff]
        %v2455 = vld [vmem:[#allocation8 + $0x1f0] sm:$0xff]
        %v2456 = vld [vmem:[#allocation8 + $0x1f8] sm:$0xff]
        %v2457 = vld [vmem:[#allocation8 + $0x200] sm:$0xff]
        %v2458 = vld [vmem:[#allocation8 + $0x208] sm:$0xff]
        %v2459 = vld [vmem:[#allocation8 + $0x210] sm:$0xff]
        %v2460 = vld [vmem:[#allocation8 + $0x218] sm:$0xff]
        %v2461 = vld [vmem:[#allocation8 + $0x220] sm:$0xff]
        %v2462 = vld [vmem:[#allocation8 + $0x228] sm:$0xff]
        %v2463 = vld [vmem:[#allocation8 + $0x230] sm:$0xff]
        %v2464 = vld [vmem:[#allocation8 + $0x238] sm:$0xff]
        %v2465 = vld [vmem:[#allocation8 + $0x240] sm:$0xff]
        %v2466 = vld [vmem:[#allocation8 + $0x248] sm:$0xff]
        %v2467 = vld [vmem:[#allocation8 + $0x250] sm:$0xff]
        %v2468 = vld [vmem:[#allocation8 + $0x258] sm:$0xff]
        %v2469 = vld [vmem:[#allocation8 + $0x260] sm:$0xff]
        %v2470 = vld [vmem:[#allocation8 + $0x268] sm:$0xff]
        %v2471 = vld [vmem:[#allocation8 + $0x270] sm:$0xff]
        %v2472 = vld [vmem:[#allocation8 + $0x278] sm:$0xff]
        %v2473 = vld [vmem:[#allocation8 + $0x280] sm:$0xff]
        %v2474 = vld [vmem:[#allocation8 + $0x288] sm:$0xff]
        %v2475 = vld [vmem:[#allocation8 + $0x290] sm:$0xff]
        %v2476 = vld [vmem:[#allocation8 + $0x298] sm:$0xff]
        %v2477 = vld [vmem:[#allocation8 + $0x2a0] sm:$0xff]
        %v2478 = vld [vmem:[#allocation8 + $0x2a8] sm:$0xff]
        %v2479 = vld [vmem:[#allocation8 + $0x2b0] sm:$0xff]
        %v2480 = vld [vmem:[#allocation8 + $0x2b8] sm:$0xff]
        %v2481 = vld [vmem:[#allocation8 + $0x2c0] sm:$0xff]
        %v2482 = vld [vmem:[#allocation8 + $0x2c8] sm:$0xff]
        %v2483 = vld [vmem:[#allocation8 + $0x2d0] sm:$0xff]
        %v2484 = vld [vmem:[#allocation8 + $0x2d8] sm:$0xff]
        %v2485 = vld [vmem:[#allocation8 + $0x2e0] sm:$0xff]
        %v2486 = vld [vmem:[#allocation8 + $0x2e8] sm:$0xff]
        %v2487 = vld [vmem:[#allocation8 + $0x2f0] sm:$0xff]
        %v2488 = vld [vmem:[#allocation8 + $0x2f8] sm:$0xff]
        %v2489 = vld [vmem:[#allocation8 + $0x300] sm:$0xff]
        %v2490 = vld [vmem:[#allocation8 + $0x308] sm:$0xff]
        %v2491 = vld [vmem:[#allocation8 + $0x310] sm:$0xff]
        %v2492 = vld [vmem:[#allocation8 + $0x318] sm:$0xff]
        %v2493 = vld [vmem:[#allocation8 + $0x320] sm:$0xff]
        %v2494 = vld [vmem:[#allocation8 + $0x328] sm:$0xff]
        %v2495 = vld [vmem:[#allocation8 + $0x330] sm:$0xff]
        %v2496 = vld [vmem:[#allocation8 + $0x338] sm:$0xff]
        %v2497 = vld [vmem:[#allocation8 + $0x340] sm:$0xff]
        %v2498 = vld [vmem:[#allocation8 + $0x348] sm:$0xff]
        %v2499 = vld [vmem:[#allocation8 + $0x350] sm:$0xff]
        %v2500 = vld [vmem:[#allocation8 + $0x358] sm:$0xff]
        %v2501 = vld [vmem:[#allocation8 + $0x360] sm:$0xff]
        %v2502 = vld [vmem:[#allocation8 + $0x368] sm:$0xff]
        %v2503 = vld [vmem:[#allocation8 + $0x370] sm:$0xff]
        %v2504 = vld [vmem:[#allocation8 + $0x378] sm:$0xff]
        %v2505 = vld [vmem:[#allocation8 + $0x380] sm:$0xff]
        %v2506 = vld [vmem:[#allocation8 + $0x388] sm:$0xff]
        %v2507 = vld [vmem:[#allocation8 + $0x390] sm:$0xff]
        %v2508 = vld [vmem:[#allocation8 + $0x398] sm:$0xff]
        %v2509 = vld [vmem:[#allocation8 + $0x3a0] sm:$0xff]
        %v2510 = vld [vmem:[#allocation8 + $0x3a8] sm:$0xff]
        %v2511 = vld [vmem:[#allocation8 + $0x3b0] sm:$0xff]
        %v2512 = vld [vmem:[#allocation8 + $0x3b8] sm:$0xff]
        %v2513 = vld [vmem:[#allocation8 + $0x3c0] sm:$0xff]
        %v2514 = vld [vmem:[#allocation8 + $0x3c8] sm:$0xff]
        %v2515 = vld [vmem:[#allocation8 + $0x3d0] sm:$0xff]
        %v2516 = vld [vmem:[#allocation8 + $0x3d8] sm:$0xff]
        %v2517 = vld [vmem:[#allocation8 + $0x3e0] sm:$0xff]
        %v2518 = vld [vmem:[#allocation8 + $0x3e8] sm:$0xff]
        %v2519 = vld [vmem:[#allocation8 + $0x3f0] sm:$0xff]
        %v2520 = vld [vmem:[#allocation8 + $0x3f8] sm:$0xff]
        %v2521 = vld [vmem:[#allocation8 + $0x400] sm:$0xff]
        %v2522 = vld [vmem:[#allocation8 + $0x408] sm:$0xff]
        %v2523 = vld [vmem:[#allocation8 + $0x410] sm:$0xff]
        %v2524 = vld [vmem:[#allocation8 + $0x418] sm:$0xff]
        %v2525 = vld [vmem:[#allocation8 + $0x420] sm:$0xff]
        %v2526 = vld [vmem:[#allocation8 + $0x428] sm:$0xff]
        %v2527 = vld [vmem:[#allocation8 + $0x430] sm:$0xff]
        %v2528 = vld [vmem:[#allocation8 + $0x438] sm:$0xff]
        %v2529 = vld [vmem:[#allocation8 + $0x440] sm:$0xff]
        %v2530 = vld [vmem:[#allocation8 + $0x448] sm:$0xff]
        %v2531 = vld [vmem:[#allocation8 + $0x450] sm:$0xff]
        %v2532 = vld [vmem:[#allocation8 + $0x458] sm:$0xff]
        %v2533 = vld [vmem:[#allocation8 + $0x460] sm:$0xff]
        %v2534 = vld [vmem:[#allocation8 + $0x468] sm:$0xff]
        %v2535 = vld [vmem:[#allocation8 + $0x470] sm:$0xff]
        %v2536 = vld [vmem:[#allocation8 + $0x478] sm:$0xff]
        %v2537 = vld [vmem:[#allocation8 + $0x480] sm:$0xff]
        %v2538 = vld [vmem:[#allocation8 + $0x488] sm:$0xff]
        %v2539 = vld [vmem:[#allocation8 + $0x490] sm:$0xff]
        %v2540 = vld [vmem:[#allocation8 + $0x498] sm:$0xff]
        %v2541 = vld [vmem:[#allocation8 + $0x4a0] sm:$0xff]
        %v2542 = vld [vmem:[#allocation8 + $0x4a8] sm:$0xff]
        %v2543 = vld [vmem:[#allocation8 + $0x4b0] sm:$0xff]
        %v2544 = vld [vmem:[#allocation8 + $0x4b8] sm:$0xff]
        %v2545 = vld [vmem:[#allocation8 + $0x4c0] sm:$0xff]
        %v2546 = vld [vmem:[#allocation8 + $0x4c8] sm:$0xff]
        %v2547 = vld [vmem:[#allocation8 + $0x4d0] sm:$0xff]
        %v2548 = vld [vmem:[#allocation8 + $0x4d8] sm:$0xff]
        %v2549 = vld [vmem:[#allocation8 + $0x4e0] sm:$0xff]
        %v2550 = vld [vmem:[#allocation8 + $0x4e8] sm:$0xff]
        %v2551 = vld [vmem:[#allocation8 + $0x4f0] sm:$0xff]
        %v2552 = vld [vmem:[#allocation8 + $0x4f8] sm:$0xff]
        %v2553 = vld [vmem:[#allocation8 + $0x500] sm:$0xff]
        %v2554 = vld [vmem:[#allocation8 + $0x508] sm:$0xff]
        %v2555 = vld [vmem:[#allocation8 + $0x510] sm:$0xff]
        %v2556 = vld [vmem:[#allocation8 + $0x518] sm:$0xff]
        %v2557 = vld [vmem:[#allocation8 + $0x520] sm:$0xff]
        %v2558 = vld [vmem:[#allocation8 + $0x528] sm:$0xff]
        %v2559 = vld [vmem:[#allocation8 + $0x530] sm:$0xff]
        %v2560 = vld [vmem:[#allocation8 + $0x538] sm:$0xff]
        %v2561 = vld [vmem:[#allocation8 + $0x540] sm:$0xff]
        %v2562 = vld [vmem:[#allocation8 + $0x548] sm:$0xff]
        %v2563 = vld [vmem:[#allocation8 + $0x550] sm:$0xff]
        %v2564 = vld [vmem:[#allocation8 + $0x558] sm:$0xff]
        %v2565 = vld [vmem:[#allocation8 + $0x560] sm:$0xff]
        %v2566 = vld [vmem:[#allocation8 + $0x568] sm:$0xff]
        %v2567 = vld [vmem:[#allocation8 + $0x570] sm:$0xff]
        %v2568 = vld [vmem:[#allocation8 + $0x578] sm:$0xff]
        %v2569 = vld [vmem:[#allocation8 + $0x580] sm:$0xff]
        %v2570 = vld [vmem:[#allocation8 + $0x588] sm:$0xff]
        %v2571 = vld [vmem:[#allocation8 + $0x590] sm:$0xff]
        %v2572 = vld [vmem:[#allocation8 + $0x598] sm:$0xff]
        %v2573 = vld [vmem:[#allocation8 + $0x5a0] sm:$0xff]
        %v2574 = vld [vmem:[#allocation8 + $0x5a8] sm:$0xff]
        %v2575 = vld [vmem:[#allocation8 + $0x5b0] sm:$0xff]
        %v2576 = vld [vmem:[#allocation8 + $0x5b8] sm:$0xff]
        %v2577 = vld [vmem:[#allocation8 + $0x5c0] sm:$0xff]
        %v2578 = vld [vmem:[#allocation8 + $0x5c8] sm:$0xff]
        %v2579 = vld [vmem:[#allocation8 + $0x5d0] sm:$0xff]
        %v2580 = vld [vmem:[#allocation8 + $0x5d8] sm:$0xff]
        %v2581 = vld [vmem:[#allocation8 + $0x5e0] sm:$0xff]
        %v2582 = vld [vmem:[#allocation8 + $0x5e8] sm:$0xff]
        %v2583 = vld [vmem:[#allocation8 + $0x5f0] sm:$0xff]
        %v2584 = vld [vmem:[#allocation8 + $0x5f8] sm:$0xff]
        %v2585 = vld [vmem:[#allocation8 + $0x600] sm:$0xff]
        %v2586 = vld [vmem:[#allocation8 + $0x608] sm:$0xff]
        %v2587 = vld [vmem:[#allocation8 + $0x610] sm:$0xff]
        %v2588 = vld [vmem:[#allocation8 + $0x618] sm:$0xff]
        %v2589 = vld [vmem:[#allocation8 + $0x620] sm:$0xff]
        %v2590 = vld [vmem:[#allocation8 + $0x628] sm:$0xff]
        %v2591 = vld [vmem:[#allocation8 + $0x630] sm:$0xff]
        %v2592 = vld [vmem:[#allocation8 + $0x638] sm:$0xff]
        %v2593 = vld [vmem:[#allocation8 + $0x640] sm:$0xff]
        %v2594 = vld [vmem:[#allocation8 + $0x648] sm:$0xff]
        %v2595 = vld [vmem:[#allocation8 + $0x650] sm:$0xff]
        %v2596 = vld [vmem:[#allocation8 + $0x658] sm:$0xff]
        %v2597 = vld [vmem:[#allocation8 + $0x660] sm:$0xff]
        %v2598 = vld [vmem:[#allocation8 + $0x668] sm:$0xff]
        %v2599 = vld [vmem:[#allocation8 + $0x670] sm:$0xff]
        %v2600 = vld [vmem:[#allocation8 + $0x678] sm:$0xff]
        %v2601 = vld [vmem:[#allocation8 + $0x680] sm:$0xff]
        %v2602 = vld [vmem:[#allocation8 + $0x688] sm:$0xff]
        %v2603 = vld [vmem:[#allocation8 + $0x690] sm:$0xff]
        %v2604 = vld [vmem:[#allocation8 + $0x698] sm:$0xff]
        %v2605 = vld [vmem:[#allocation8 + $0x6a0] sm:$0xff]
        %v2606 = vld [vmem:[#allocation8 + $0x6a8] sm:$0xff]
        %v2607 = vld [vmem:[#allocation8 + $0x6b0] sm:$0xff]
        %v2608 = vld [vmem:[#allocation8 + $0x6b8] sm:$0xff]
        %v2609 = vld [vmem:[#allocation8 + $0x6c0] sm:$0xff]
        %v2610 = vld [vmem:[#allocation8 + $0x6c8] sm:$0xff]
        %v2611 = vld [vmem:[#allocation8 + $0x6d0] sm:$0xff]
        %v2612 = vld [vmem:[#allocation8 + $0x6d8] sm:$0xff]
        %v2613 = vld [vmem:[#allocation8 + $0x6e0] sm:$0xff]
        %v2614 = vld [vmem:[#allocation8 + $0x6e8] sm:$0xff]
        %v2615 = vld [vmem:[#allocation8 + $0x6f0] sm:$0xff]
        %v2616 = vld [vmem:[#allocation8 + $0x6f8] sm:$0xff]
        %v2617 = vld [vmem:[#allocation8 + $0x700] sm:$0xff]
        %v2618 = vld [vmem:[#allocation8 + $0x708] sm:$0xff]
        %v2619 = vld [vmem:[#allocation8 + $0x710] sm:$0xff]
        %v2620 = vld [vmem:[#allocation8 + $0x718] sm:$0xff]
        %v2621 = vld [vmem:[#allocation8 + $0x720] sm:$0xff]
        %v2622 = vld [vmem:[#allocation8 + $0x728] sm:$0xff]
        %v2623 = vld [vmem:[#allocation8 + $0x730] sm:$0xff]
        %v2624 = vld [vmem:[#allocation8 + $0x738] sm:$0xff]
        %v2625 = vld [vmem:[#allocation8 + $0x740] sm:$0xff]
        %v2626 = vld [vmem:[#allocation8 + $0x748] sm:$0xff]
        %v2627 = vld [vmem:[#allocation8 + $0x750] sm:$0xff]
        %v2628 = vld [vmem:[#allocation8 + $0x758] sm:$0xff]
        %v2629 = vld [vmem:[#allocation8 + $0x760] sm:$0xff]
        %v2630 = vld [vmem:[#allocation8 + $0x768] sm:$0xff]
        %v2631 = vld [vmem:[#allocation8 + $0x770] sm:$0xff]
        %v2632 = vld [vmem:[#allocation8 + $0x778] sm:$0xff]
        %v2633 = vld [vmem:[#allocation8 + $0x780] sm:$0xff]
        %v2634 = vld [vmem:[#allocation8 + $0x788] sm:$0xff]
        %v2635 = vld [vmem:[#allocation8 + $0x790] sm:$0xff]
        %v2636 = vld [vmem:[#allocation8 + $0x798] sm:$0xff]
        %v2637 = vld [vmem:[#allocation8 + $0x7a0] sm:$0xff]
        %v2638 = vld [vmem:[#allocation8 + $0x7a8] sm:$0xff]
        %v2639 = vld [vmem:[#allocation8 + $0x7b0] sm:$0xff]
        %v2640 = vld [vmem:[#allocation8 + $0x7b8] sm:$0xff]
        %v2641 = vld [vmem:[#allocation8 + $0x7c0] sm:$0xff]
        %v2642 = vld [vmem:[#allocation8 + $0x7c8] sm:$0xff]
        %v2643 = vld [vmem:[#allocation8 + $0x7d0] sm:$0xff]
        %v2644 = vld [vmem:[#allocation8 + $0x7d8] sm:$0xff]
        %v2645 = vld [vmem:[#allocation8 + $0x7e0] sm:$0xff]
        %v2646 = vld [vmem:[#allocation8 + $0x7e8] sm:$0xff]
        %v2647 = vld [vmem:[#allocation8 + $0x7f0] sm:$0xff]
        %v2648 = vld [vmem:[#allocation8 + $0x7f8] sm:$0xff]
        %v2649 = vld [vmem:[#allocation8 + $0x800] sm:$0xff]
        %v2650 = vld [vmem:[#allocation8 + $0x808] sm:$0xff]
        %v2651 = vld [vmem:[#allocation8 + $0x810] sm:$0xff]
        %v2652 = vld [vmem:[#allocation8 + $0x818] sm:$0xff]
        %v2653 = vld [vmem:[#allocation8 + $0x820] sm:$0xff]
        %v2654 = vld [vmem:[#allocation8 + $0x828] sm:$0xff]
        %v2655 = vld [vmem:[#allocation8 + $0x830] sm:$0xff]
        %v2656 = vld [vmem:[#allocation8 + $0x838] sm:$0xff]
        %v2657 = vld [vmem:[#allocation8 + $0x840] sm:$0xff]
        %v2658 = vld [vmem:[#allocation8 + $0x848] sm:$0xff]
        %v2659 = vld [vmem:[#allocation8 + $0x850] sm:$0xff]
        %v2660 = vld [vmem:[#allocation8 + $0x858] sm:$0xff]
        %v2661 = vld [vmem:[#allocation8 + $0x860] sm:$0xff]
        %v2662 = vld [vmem:[#allocation8 + $0x868] sm:$0xff]
        %v2663 = vld [vmem:[#allocation8 + $0x870] sm:$0xff]
        %v2664 = vld [vmem:[#allocation8 + $0x878] sm:$0xff]
        %v2665 = vld [vmem:[#allocation8 + $0x880] sm:$0xff]
        %v2666 = vld [vmem:[#allocation8 + $0x888] sm:$0xff]
        %v2667 = vld [vmem:[#allocation8 + $0x890] sm:$0xff]
        %v2668 = vld [vmem:[#allocation8 + $0x898] sm:$0xff]
        %v2669 = vld [vmem:[#allocation8 + $0x8a0] sm:$0xff]
        %v2670 = vld [vmem:[#allocation8 + $0x8a8] sm:$0xff]
        %v2671 = vld [vmem:[#allocation8 + $0x8b0] sm:$0xff]
        %v2672 = vld [vmem:[#allocation8 + $0x8b8] sm:$0xff]
        %v2673 = vld [vmem:[#allocation8 + $0x8c0] sm:$0xff]
        %v2674 = vld [vmem:[#allocation8 + $0x8c8] sm:$0xff]
        %v2675 = vld [vmem:[#allocation8 + $0x8d0] sm:$0xff]
        %v2676 = vld [vmem:[#allocation8 + $0x8d8] sm:$0xff]
        %v2677 = vld [vmem:[#allocation8 + $0x8e0] sm:$0xff]
        %v2678 = vld [vmem:[#allocation8 + $0x8e8] sm:$0xff]
        %v2679 = vld [vmem:[#allocation8 + $0x8f0] sm:$0xff]
        %v2680 = vld [vmem:[#allocation8 + $0x8f8] sm:$0xff]
        %v2681 = vld [vmem:[#allocation8 + $0x900] sm:$0xff]
        %v2682 = vld [vmem:[#allocation8 + $0x908] sm:$0xff]
        %v2683 = vld [vmem:[#allocation8 + $0x910] sm:$0xff]
        %v2684 = vld [vmem:[#allocation8 + $0x918] sm:$0xff]
        %v2685 = vld [vmem:[#allocation8 + $0x920] sm:$0xff]
        %v2686 = vld [vmem:[#allocation8 + $0x928] sm:$0xff]
        %v2687 = vld [vmem:[#allocation8 + $0x930] sm:$0xff]
        %v2688 = vld [vmem:[#allocation8 + $0x938] sm:$0xff]
        %v2689 = vld [vmem:[#allocation8 + $0x940] sm:$0xff]
        %v2690 = vld [vmem:[#allocation8 + $0x948] sm:$0xff]
        %v2691 = vld [vmem:[#allocation8 + $0x950] sm:$0xff]
        %v2692 = vld [vmem:[#allocation8 + $0x958] sm:$0xff]
        %v2693 = vld [vmem:[#allocation8 + $0x960] sm:$0xff]
        %v2694 = vld [vmem:[#allocation8 + $0x968] sm:$0xff]
        %v2695 = vld [vmem:[#allocation8 + $0x970] sm:$0xff]
        %v2696 = vld [vmem:[#allocation8 + $0x978] sm:$0xff]
        %v2697 = vld [vmem:[#allocation8 + $0x980] sm:$0xff]
        %v2698 = vld [vmem:[#allocation8 + $0x988] sm:$0xff]
        %v2699 = vld [vmem:[#allocation8 + $0x990] sm:$0xff]
        %v2700 = vld [vmem:[#allocation8 + $0x998] sm:$0xff]
        %v2701 = vld [vmem:[#allocation8 + $0x9a0] sm:$0xff]
        %v2702 = vld [vmem:[#allocation8 + $0x9a8] sm:$0xff]
        %v2703 = vld [vmem:[#allocation8 + $0x9b0] sm:$0xff]
        %v2704 = vld [vmem:[#allocation8 + $0x9b8] sm:$0xff]
        %v2705 = vld [vmem:[#allocation8 + $0x9c0] sm:$0xff]
        %v2706 = vld [vmem:[#allocation8 + $0x9c8] sm:$0xff]
        %v2707 = vld [vmem:[#allocation8 + $0x9d0] sm:$0xff]
        %v2708 = vld [vmem:[#allocation8 + $0x9d8] sm:$0xff]
        %v2709 = vld [vmem:[#allocation8 + $0x9e0] sm:$0xff]
        %v2710 = vld [vmem:[#allocation8 + $0x9e8] sm:$0xff]
        %v2711 = vld [vmem:[#allocation8 + $0x9f0] sm:$0xff]
        %v2712 = vld [vmem:[#allocation8 + $0x9f8] sm:$0xff]
        %v2713 = vld [vmem:[#allocation8 + $0xa00] sm:$0xff]
        %v2714 = vld [vmem:[#allocation8 + $0xa08] sm:$0xff]
        %v2715 = vld [vmem:[#allocation8 + $0xa10] sm:$0xff]
        %v2716 = vld [vmem:[#allocation8 + $0xa18] sm:$0xff]
        %v2717 = vld [vmem:[#allocation8 + $0xa20] sm:$0xff]
        %v2718 = vld [vmem:[#allocation8 + $0xa28] sm:$0xff]
        %v2719 = vld [vmem:[#allocation8 + $0xa30] sm:$0xff]
        %v2720 = vld [vmem:[#allocation8 + $0xa38] sm:$0xff]
        %v2721 = vld [vmem:[#allocation8 + $0xa40] sm:$0xff]
        %v2722 = vld [vmem:[#allocation8 + $0xa48] sm:$0xff]
        %v2723 = vld [vmem:[#allocation8 + $0xa50] sm:$0xff]
        %v2724 = vld [vmem:[#allocation8 + $0xa58] sm:$0xff]
        %v2725 = vld [vmem:[#allocation8 + $0xa60] sm:$0xff]
        %v2726 = vld [vmem:[#allocation8 + $0xa68] sm:$0xff]
        %v2727 = vld [vmem:[#allocation8 + $0xa70] sm:$0xff]
        %v2728 = vld [vmem:[#allocation8 + $0xa78] sm:$0xff]
        %v2729 = vld [vmem:[#allocation8 + $0xa80] sm:$0xff]
        %v2730 = vld [vmem:[#allocation8 + $0xa88] sm:$0xff]
        %v2731 = vld [vmem:[#allocation8 + $0xa90] sm:$0xff]
        %v2732 = vld [vmem:[#allocation8 + $0xa98] sm:$0xff]
        %v2733 = vld [vmem:[#allocation8 + $0xaa0] sm:$0xff]
        %v2734 = vld [vmem:[#allocation8 + $0xaa8] sm:$0xff]
        %v2735 = vld [vmem:[#allocation8 + $0xab0] sm:$0xff]
        %v2736 = vld [vmem:[#allocation8 + $0xab8] sm:$0xff]
        %v2737 = vld [vmem:[#allocation8 + $0xac0] sm:$0xff]
        %v2738 = vld [vmem:[#allocation8 + $0xac8] sm:$0xff]
        %v2739 = vld [vmem:[#allocation8 + $0xad0] sm:$0xff]
        %v2740 = vld [vmem:[#allocation8 + $0xad8] sm:$0xff]
        %v2741 = vld [vmem:[#allocation8 + $0xae0] sm:$0xff]
        %v2742 = vld [vmem:[#allocation8 + $0xae8] sm:$0xff]
        %v2743 = vld [vmem:[#allocation8 + $0xaf0] sm:$0xff]
        %v2744 = vld [vmem:[#allocation8 + $0xaf8] sm:$0xff]
        %v2745 = vld [vmem:[#allocation8 + $0xb00] sm:$0xff]
        %v2746 = vld [vmem:[#allocation8 + $0xb08] sm:$0xff]
        %v2747 = vld [vmem:[#allocation8 + $0xb10] sm:$0xff]
        %v2748 = vld [vmem:[#allocation8 + $0xb18] sm:$0xff]
        %v2749 = vld [vmem:[#allocation8 + $0xb20] sm:$0xff]
        %v2750 = vld [vmem:[#allocation8 + $0xb28] sm:$0xff]
        %v2751 = vld [vmem:[#allocation8 + $0xb30] sm:$0xff]
        %v2752 = vld [vmem:[#allocation8 + $0xb38] sm:$0xff]
        %v2753 = vld [vmem:[#allocation8 + $0xb40] sm:$0xff]
        %v2754 = vld [vmem:[#allocation8 + $0xb48] sm:$0xff]
        %v2755 = vld [vmem:[#allocation8 + $0xb50] sm:$0xff]
        %v2756 = vld [vmem:[#allocation8 + $0xb58] sm:$0xff]
        %v2757 = vld [vmem:[#allocation8 + $0xb60] sm:$0xff]
        %v2758 = vld [vmem:[#allocation8 + $0xb68] sm:$0xff]
        %v2759 = vld [vmem:[#allocation8 + $0xb70] sm:$0xff]
        %v2760 = vld [vmem:[#allocation8 + $0xb78] sm:$0xff]
        %v2761 = vld [vmem:[#allocation8 + $0xb80] sm:$0xff]
        %v2762 = vld [vmem:[#allocation8 + $0xb88] sm:$0xff]
        %v2763 = vld [vmem:[#allocation8 + $0xb90] sm:$0xff]
        %v2764 = vld [vmem:[#allocation8 + $0xb98] sm:$0xff]
        %v2765 = vld [vmem:[#allocation8 + $0xba0] sm:$0xff]
        %v2766 = vld [vmem:[#allocation8 + $0xba8] sm:$0xff]
        %v2767 = vld [vmem:[#allocation8 + $0xbb0] sm:$0xff]
        %v2768 = vld [vmem:[#allocation8 + $0xbb8] sm:$0xff]
        %v2769 = vld [vmem:[#allocation8 + $0xbc0] sm:$0xff]
        %v2770 = vld [vmem:[#allocation8 + $0xbc8] sm:$0xff]
        %v2771 = vld [vmem:[#allocation8 + $0xbd0] sm:$0xff]
        %v2772 = vld [vmem:[#allocation8 + $0xbd8] sm:$0xff]
        %v2773 = vld [vmem:[#allocation8 + $0xbe0] sm:$0xff]
        %v2774 = vld [vmem:[#allocation8 + $0xbe8] sm:$0xff]
        %v2775 = vld [vmem:[#allocation8 + $0xbf0] sm:$0xff]
        %v2776 = vld [vmem:[#allocation8 + $0xbf8] sm:$0xff]
        %v2777 = vld [vmem:[#allocation8 + $0xc00] sm:$0xff]
        %v2778 = vld [vmem:[#allocation8 + $0xc08] sm:$0xff]
        %v2779 = vld [vmem:[#allocation8 + $0xc10] sm:$0xff]
        %v2780 = vld [vmem:[#allocation8 + $0xc18] sm:$0xff]
        %v2781 = vld [vmem:[#allocation8 + $0xc20] sm:$0xff]
        %v2782 = vld [vmem:[#allocation8 + $0xc28] sm:$0xff]
        %v2783 = vld [vmem:[#allocation8 + $0xc30] sm:$0xff]
        %v2784 = vld [vmem:[#allocation8 + $0xc38] sm:$0xff]
        %v2785 = vld [vmem:[#allocation8 + $0xc40] sm:$0xff]
        %v2786 = vld [vmem:[#allocation8 + $0xc48] sm:$0xff]
        %v2787 = vld [vmem:[#allocation8 + $0xc50] sm:$0xff]
        %v2788 = vld [vmem:[#allocation8 + $0xc58] sm:$0xff]
        %v2789 = vld [vmem:[#allocation8 + $0xc60] sm:$0xff]
        %v2790 = vld [vmem:[#allocation8 + $0xc68] sm:$0xff]
        %v2791 = vld [vmem:[#allocation8 + $0xc70] sm:$0xff]
        %v2792 = vld [vmem:[#allocation8 + $0xc78] sm:$0xff]
        %v2793 = vld [vmem:[#allocation8 + $0xc80] sm:$0xff]
        %v2794 = vld [vmem:[#allocation8 + $0xc88] sm:$0xff]
        %v2795 = vld [vmem:[#allocation8 + $0xc90] sm:$0xff]
        %v2796 = vld [vmem:[#allocation8 + $0xc98] sm:$0xff]
        %v2797 = vld [vmem:[#allocation8 + $0xca0] sm:$0xff]
        %v2798 = vld [vmem:[#allocation8 + $0xca8] sm:$0xff]
        %v2799 = vld [vmem:[#allocation8 + $0xcb0] sm:$0xff]
        %v2800 = vld [vmem:[#allocation8 + $0xcb8] sm:$0xff]
        %v2801 = vld [vmem:[#allocation8 + $0xcc0] sm:$0xff]
        %v2802 = vld [vmem:[#allocation8 + $0xcc8] sm:$0xff]
        %v2803 = vld [vmem:[#allocation8 + $0xcd0] sm:$0xff]
        %v2804 = vld [vmem:[#allocation8 + $0xcd8] sm:$0xff]
        %v2805 = vld [vmem:[#allocation8 + $0xce0] sm:$0xff]
        %v2806 = vld [vmem:[#allocation8 + $0xce8] sm:$0xff]
        %v2807 = vld [vmem:[#allocation8 + $0xcf0] sm:$0xff]
        %v2808 = vld [vmem:[#allocation8 + $0xcf8] sm:$0xff]
        %v2809 = vld [vmem:[#allocation8 + $0xd00] sm:$0xff]
        %v2810 = vld [vmem:[#allocation8 + $0xd08] sm:$0xff]
        %v2811 = vld [vmem:[#allocation8 + $0xd10] sm:$0xff]
        %v2812 = vld [vmem:[#allocation8 + $0xd18] sm:$0xff]
        %v2813 = vld [vmem:[#allocation8 + $0xd20] sm:$0xff]
        %v2814 = vld [vmem:[#allocation8 + $0xd28] sm:$0xff]
        %v2815 = vld [vmem:[#allocation8 + $0xd30] sm:$0xff]
        %v2816 = vld [vmem:[#allocation8 + $0xd38] sm:$0xff]
        %v2817 = vld [vmem:[#allocation8 + $0xd40] sm:$0xff]
        %v2818 = vld [vmem:[#allocation8 + $0xd48] sm:$0xff]
        %v2819 = vld [vmem:[#allocation8 + $0xd50] sm:$0xff]
        %v2820 = vld [vmem:[#allocation8 + $0xd58] sm:$0xff]
        %v2821 = vld [vmem:[#allocation8 + $0xd60] sm:$0xff]
        %v2822 = vld [vmem:[#allocation8 + $0xd68] sm:$0xff]
        %v2823 = vld [vmem:[#allocation8 + $0xd70] sm:$0xff]
        %v2824 = vld [vmem:[#allocation8 + $0xd78] sm:$0xff]
        %v2825 = vld [vmem:[#allocation8 + $0xd80] sm:$0xff]
        %v2826 = vld [vmem:[#allocation8 + $0xd88] sm:$0xff]
        %v2827 = vld [vmem:[#allocation8 + $0xd90] sm:$0xff]
        %v2828 = vld [vmem:[#allocation8 + $0xd98] sm:$0xff]
        %v2829 = vld [vmem:[#allocation8 + $0xda0] sm:$0xff]
        %v2830 = vld [vmem:[#allocation8 + $0xda8] sm:$0xff]
        %v2831 = vld [vmem:[#allocation8 + $0xdb0] sm:$0xff]
        %v2832 = vld [vmem:[#allocation8 + $0xdb8] sm:$0xff]
        %v2833 = vld [vmem:[#allocation8 + $0xdc0] sm:$0xff]
        %v2834 = vld [vmem:[#allocation8 + $0xdc8] sm:$0xff]
        %v2835 = vld [vmem:[#allocation8 + $0xdd0] sm:$0xff]
        %v2836 = vld [vmem:[#allocation8 + $0xdd8] sm:$0xff]
        %v2837 = vld [vmem:[#allocation8 + $0xde0] sm:$0xff]
        %v2838 = vld [vmem:[#allocation8 + $0xde8] sm:$0xff]
        %v2839 = vld [vmem:[#allocation8 + $0xdf0] sm:$0xff]
        %v2840 = vld [vmem:[#allocation8 + $0xdf8] sm:$0xff]
        %v2841 = vld [vmem:[#allocation8 + $0xe00] sm:$0xff]
        %v2842 = vld [vmem:[#allocation8 + $0xe08] sm:$0xff]
        %v2843 = vld [vmem:[#allocation8 + $0xe10] sm:$0xff]
        %v2844 = vld [vmem:[#allocation8 + $0xe18] sm:$0xff]
        %v2845 = vld [vmem:[#allocation8 + $0xe20] sm:$0xff]
        %v2846 = vld [vmem:[#allocation8 + $0xe28] sm:$0xff]
        %v2847 = vld [vmem:[#allocation8 + $0xe30] sm:$0xff]
        %v2848 = vld [vmem:[#allocation8 + $0xe38] sm:$0xff]
        %v2849 = vld [vmem:[#allocation8 + $0xe40] sm:$0xff]
        %v2850 = vld [vmem:[#allocation8 + $0xe48] sm:$0xff]
        %v2851 = vld [vmem:[#allocation8 + $0xe50] sm:$0xff]
        %v2852 = vld [vmem:[#allocation8 + $0xe58] sm:$0xff]
        %v2853 = vld [vmem:[#allocation8 + $0xe60] sm:$0xff]
        %v2854 = vld [vmem:[#allocation8 + $0xe68] sm:$0xff]
        %v2855 = vld [vmem:[#allocation8 + $0xe70] sm:$0xff]
        %v2856 = vld [vmem:[#allocation8 + $0xe78] sm:$0xff]
        %v2857 = vld [vmem:[#allocation8 + $0xe80] sm:$0xff]
        %v2858 = vld [vmem:[#allocation8 + $0xe88] sm:$0xff]
        %v2859 = vld [vmem:[#allocation8 + $0xe90] sm:$0xff]
        %v2860 = vld [vmem:[#allocation8 + $0xe98] sm:$0xff]
        %v2861 = vld [vmem:[#allocation8 + $0xea0] sm:$0xff]
        %v2862 = vld [vmem:[#allocation8 + $0xea8] sm:$0xff]
        %v2863 = vld [vmem:[#allocation8 + $0xeb0] sm:$0xff]
        %v2864 = vld [vmem:[#allocation8 + $0xeb8] sm:$0xff]
        %v2865 = vld [vmem:[#allocation8 + $0xec0] sm:$0xff]
        %v2866 = vld [vmem:[#allocation8 + $0xec8] sm:$0xff]
        %v2867 = vld [vmem:[#allocation8 + $0xed0] sm:$0xff]
        %v2868 = vld [vmem:[#allocation8 + $0xed8] sm:$0xff]
        %v2869 = vld [vmem:[#allocation8 + $0xee0] sm:$0xff]
        %v2870 = vld [vmem:[#allocation8 + $0xee8] sm:$0xff]
        %v2871 = vld [vmem:[#allocation8 + $0xef0] sm:$0xff]
        %v2872 = vld [vmem:[#allocation8 + $0xef8] sm:$0xff]
        %v2873 = vld [vmem:[#allocation8 + $0xf00] sm:$0xff]
        %v2874 = vld [vmem:[#allocation8 + $0xf08] sm:$0xff]
        %v2875 = vld [vmem:[#allocation8 + $0xf10] sm:$0xff]
        %v2876 = vld [vmem:[#allocation8 + $0xf18] sm:$0xff]
        %v2877 = vld [vmem:[#allocation8 + $0xf20] sm:$0xff]
        %v2878 = vld [vmem:[#allocation8 + $0xf28] sm:$0xff]
        %v2879 = vld [vmem:[#allocation8 + $0xf30] sm:$0xff]
        %v2880 = vld [vmem:[#allocation8 + $0xf38] sm:$0xff]
        %v2881 = vld [vmem:[#allocation8 + $0xf40] sm:$0xff]
        %v2882 = vld [vmem:[#allocation8 + $0xf48] sm:$0xff]
        %v2883 = vld [vmem:[#allocation8 + $0xf50] sm:$0xff]
        %v2884 = vld [vmem:[#allocation8 + $0xf58] sm:$0xff]
        %v2885 = vld [vmem:[#allocation8 + $0xf60] sm:$0xff]
        %v2886 = vld [vmem:[#allocation8 + $0xf68] sm:$0xff]
        %v2887 = vld [vmem:[#allocation8 + $0xf70] sm:$0xff]
        %v2888 = vld [vmem:[#allocation8 + $0xf78] sm:$0xff]
        %v2889 = vld [vmem:[#allocation8 + $0xf80] sm:$0xff]
        %v2890 = vld [vmem:[#allocation8 + $0xf88] sm:$0xff]
        %v2891 = vld [vmem:[#allocation8 + $0xf90] sm:$0xff]
        %v2892 = vld [vmem:[#allocation8 + $0xf98] sm:$0xff]
        %v2893 = vld [vmem:[#allocation8 + $0xfa0] sm:$0xff]
        %v2894 = vld [vmem:[#allocation8 + $0xfa8] sm:$0xff]
        %v2895 = vld [vmem:[#allocation8 + $0xfb0] sm:$0xff]
        %v2896 = vld [vmem:[#allocation8 + $0xfb8] sm:$0xff]
        %v2897 = vld [vmem:[#allocation8 + $0xfc0] sm:$0xff]
        %v2898 = vld [vmem:[#allocation8 + $0xfc8] sm:$0xff]
        %v2899 = vld [vmem:[#allocation8 + $0xfd0] sm:$0xff]
        %v2900 = vld [vmem:[#allocation8 + $0xfd8] sm:$0xff]
        %v2901 = vld [vmem:[#allocation8 + $0xfe0] sm:$0xff]
        %v2902 = vld [vmem:[#allocation8 + $0xfe8] sm:$0xff]
        %v2903 = vld [vmem:[#allocation8 + $0xff0] sm:$0xff]
        %v2904 = vld [vmem:[#allocation8 + $0xff8] sm:$0xff]
        %v2905 = vld [vmem:[#allocation8 + $0x1000] sm:$0xff]
        %v2906 = vld [vmem:[#allocation8 + $0x1008] sm:$0xff]
        %v2907 = vld [vmem:[#allocation8 + $0x1010] sm:$0xff]
        %v2908 = vld [vmem:[#allocation8 + $0x1018] sm:$0xff]
        %v2909 = vld [vmem:[#allocation8 + $0x1020] sm:$0xff]
        %v2910 = vld [vmem:[#allocation8 + $0x1028] sm:$0xff]
        %v2911 = vld [vmem:[#allocation8 + $0x1030] sm:$0xff]
        %v2912 = vld [vmem:[#allocation8 + $0x1038] sm:$0xff]
        %v2913 = vld [vmem:[#allocation8 + $0x1040] sm:$0xff]
        %v2914 = vld [vmem:[#allocation8 + $0x1048] sm:$0xff]
        %v2915 = vld [vmem:[#allocation8 + $0x1050] sm:$0xff]
        %v2916 = vld [vmem:[#allocation8 + $0x1058] sm:$0xff]
        %v2917 = vld [vmem:[#allocation8 + $0x1060] sm:$0xff]
        %v2918 = vld [vmem:[#allocation8 + $0x1068] sm:$0xff]
        %v2919 = vld [vmem:[#allocation8 + $0x1070] sm:$0xff]
        %v2920 = vld [vmem:[#allocation8 + $0x1078] sm:$0xff]
        %v2921 = vld [vmem:[#allocation8 + $0x1080] sm:$0xff]
        %v2922 = vld [vmem:[#allocation8 + $0x1088] sm:$0xff]
        %v2923 = vld [vmem:[#allocation8 + $0x1090] sm:$0xff]
        %v2924 = vld [vmem:[#allocation8 + $0x1098] sm:$0xff]
        %v2925 = vld [vmem:[#allocation8 + $0x10a0] sm:$0xff]
        %v2926 = vld [vmem:[#allocation8 + $0x10a8] sm:$0xff]
        %v2927 = vld [vmem:[#allocation8 + $0x10b0] sm:$0xff]
        %v2928 = vld [vmem:[#allocation8 + $0x10b8] sm:$0xff]
        %v2929 = vld [vmem:[#allocation8 + $0x10c0] sm:$0xff]
        %v2930 = vld [vmem:[#allocation8 + $0x10c8] sm:$0xff]
        %v2931 = vld [vmem:[#allocation8 + $0x10d0] sm:$0xff]
        %v2932 = vld [vmem:[#allocation8 + $0x10d8] sm:$0xff]
        %v2933 = vld [vmem:[#allocation8 + $0x10e0] sm:$0xff]
        %v2934 = vld [vmem:[#allocation8 + $0x10e8] sm:$0xff]
        %v2935 = vld [vmem:[#allocation8 + $0x10f0] sm:$0xff]
        %v2936 = vld [vmem:[#allocation8 + $0x10f8] sm:$0xff]
        %v2937 = vld [vmem:[#allocation8 + $0x1100] sm:$0xff]
        %v2938 = vld [vmem:[#allocation8 + $0x1108] sm:$0xff]
        %v2939 = vld [vmem:[#allocation8 + $0x1110] sm:$0xff]
        %v2940 = vld [vmem:[#allocation8 + $0x1118] sm:$0xff]
        %v2941 = vld [vmem:[#allocation8 + $0x1120] sm:$0xff]
        %v2942 = vld [vmem:[#allocation8 + $0x1128] sm:$0xff]
        %v2943 = vld [vmem:[#allocation8 + $0x1130] sm:$0xff]
        %v2944 = vld [vmem:[#allocation8 + $0x1138] sm:$0xff]
        %v2945 = vld [vmem:[#allocation8 + $0x1140] sm:$0xff]
        %v2946 = vld [vmem:[#allocation8 + $0x1148] sm:$0xff]
        %v2947 = vld [vmem:[#allocation8 + $0x1150] sm:$0xff]
        %v2948 = vld [vmem:[#allocation8 + $0x1158] sm:$0xff]
        %v2949 = vld [vmem:[#allocation8 + $0x1160] sm:$0xff]
        %v2950 = vld [vmem:[#allocation8 + $0x1168] sm:$0xff]
        %v2951 = vld [vmem:[#allocation8 + $0x1170] sm:$0xff]
        %v2952 = vld [vmem:[#allocation8 + $0x1178] sm:$0xff]
        %v2953 = vld [vmem:[#allocation8 + $0x1180] sm:$0xff]
        %v2954 = vld [vmem:[#allocation8 + $0x1188] sm:$0xff]
        %v2955 = vld [vmem:[#allocation8 + $0x1190] sm:$0xff]
        %v2956 = vld [vmem:[#allocation8 + $0x1198] sm:$0xff]
        %v2957 = vld [vmem:[#allocation8 + $0x11a0] sm:$0xff]
        %v2958 = vld [vmem:[#allocation8 + $0x11a8] sm:$0xff]
        %v2959 = vld [vmem:[#allocation8 + $0x11b0] sm:$0xff]
        %v2960 = vld [vmem:[#allocation8 + $0x11b8] sm:$0xff]
        %v2961 = vld [vmem:[#allocation8 + $0x11c0] sm:$0xff]
        %v2962 = vld [vmem:[#allocation8 + $0x11c8] sm:$0xff]
        %v2963 = vld [vmem:[#allocation8 + $0x11d0] sm:$0xff]
        %v2964 = vld [vmem:[#allocation8 + $0x11d8] sm:$0xff]
        %v2965 = vld [vmem:[#allocation8 + $0x11e0] sm:$0xff]
        %v2966 = vld [vmem:[#allocation8 + $0x11e8] sm:$0xff]
        %v2967 = vld [vmem:[#allocation8 + $0x11f0] sm:$0xff]
        %v2968 = vld [vmem:[#allocation8 + $0x11f8] sm:$0xff]
        %v2969 = vld [vmem:[#allocation8 + $0x1200] sm:$0xff]
        %v2970 = vld [vmem:[#allocation8 + $0x1208] sm:$0xff]
        %v2971 = vld [vmem:[#allocation8 + $0x1210] sm:$0xff]
        %v2972 = vld [vmem:[#allocation8 + $0x1218] sm:$0xff]
        %v2973 = vld [vmem:[#allocation8 + $0x1220] sm:$0xff]
        %v2974 = vld [vmem:[#allocation8 + $0x1228] sm:$0xff]
        %v2975 = vld [vmem:[#allocation8 + $0x1230] sm:$0xff]
        %v2976 = vld [vmem:[#allocation8 + $0x1238] sm:$0xff]
        %v2977 = vld [vmem:[#allocation8 + $0x1240] sm:$0xff]
        %v2978 = vld [vmem:[#allocation8 + $0x1248] sm:$0xff]
        %v2979 = vld [vmem:[#allocation8 + $0x1250] sm:$0xff]
        %v2980 = vld [vmem:[#allocation8 + $0x1258] sm:$0xff]
        %v2981 = vld [vmem:[#allocation8 + $0x1260] sm:$0xff]
        %v2982 = vld [vmem:[#allocation8 + $0x1268] sm:$0xff]
        %v2983 = vld [vmem:[#allocation8 + $0x1270] sm:$0xff]
        %v2984 = vld [vmem:[#allocation8 + $0x1278] sm:$0xff]
        %v2985 = vld [vmem:[#allocation8 + $0x1280] sm:$0xff]
        %v2986 = vld [vmem:[#allocation8 + $0x1288] sm:$0xff]
        %v2987 = vld [vmem:[#allocation8 + $0x1290] sm:$0xff]
        %v2988 = vld [vmem:[#allocation8 + $0x1298] sm:$0xff]
        %v2989 = vld [vmem:[#allocation8 + $0x12a0] sm:$0xff]
        %v2990 = vld [vmem:[#allocation8 + $0x12a8] sm:$0xff]
        %v2991 = vld [vmem:[#allocation8 + $0x12b0] sm:$0xff]
        %v2992 = vld [vmem:[#allocation8 + $0x12b8] sm:$0xff]
        %v2993 = vld [vmem:[#allocation8 + $0x12c0] sm:$0xff]
        %v2994 = vld [vmem:[#allocation8 + $0x12c8] sm:$0xff]
        %v2995 = vld [vmem:[#allocation8 + $0x12d0] sm:$0xff]
        %v2996 = vld [vmem:[#allocation8 + $0x12d8] sm:$0xff]
        %v2997 = vld [vmem:[#allocation8 + $0x12e0] sm:$0xff]
        %v2998 = vld [vmem:[#allocation8 + $0x12e8] sm:$0xff]
        %v2999 = vld [vmem:[#allocation8 + $0x12f0] sm:$0xff]
        %v3000 = vld [vmem:[#allocation8 + $0x12f8] sm:$0xff]
        %v3001 = vld [vmem:[#allocation8 + $0x1300] sm:$0xff]
        %v3002 = vld [vmem:[#allocation8 + $0x1308] sm:$0xff]
        %v3003 = vld [vmem:[#allocation8 + $0x1310] sm:$0xff]
        %v3004 = vld [vmem:[#allocation8 + $0x1318] sm:$0xff]
        %v3005 = vld [vmem:[#allocation8 + $0x1320] sm:$0xff]
        %v3006 = vld [vmem:[#allocation8 + $0x1328] sm:$0xff]
        %v3007 = vld [vmem:[#allocation8 + $0x1330] sm:$0xff]
        %v3008 = vld [vmem:[#allocation8 + $0x1338] sm:$0xff]
        %v3009 = vld [vmem:[#allocation8 + $0x1340] sm:$0xff]
        %v3010 = vld [vmem:[#allocation8 + $0x1348] sm:$0xff]
        %v3011 = vld [vmem:[#allocation8 + $0x1350] sm:$0xff]
        %v3012 = vld [vmem:[#allocation8 + $0x1358] sm:$0xff]
        %v3013 = vld [vmem:[#allocation8 + $0x1360] sm:$0xff]
        %v3014 = vld [vmem:[#allocation8 + $0x1368] sm:$0xff]
        %v3015 = vld [vmem:[#allocation8 + $0x1370] sm:$0xff]
        %v3016 = vld [vmem:[#allocation8 + $0x1378] sm:$0xff]
        %v3017 = vld [vmem:[#allocation8 + $0x1380] sm:$0xff]
        %v3018 = vld [vmem:[#allocation8 + $0x1388] sm:$0xff]
        %v3019 = vld [vmem:[#allocation8 + $0x1390] sm:$0xff]
        %v3020 = vld [vmem:[#allocation8 + $0x1398] sm:$0xff]
        %v3021 = vld [vmem:[#allocation8 + $0x13a0] sm:$0xff]
        %v3022 = vld [vmem:[#allocation8 + $0x13a8] sm:$0xff]
        %v3023 = vld [vmem:[#allocation8 + $0x13b0] sm:$0xff]
        %v3024 = vld [vmem:[#allocation8 + $0x13b8] sm:$0xff]
        %v3025 = vld [vmem:[#allocation8 + $0x13c0] sm:$0xff]
        %v3026 = vld [vmem:[#allocation8 + $0x13c8] sm:$0xff]
        %v3027 = vld [vmem:[#allocation8 + $0x13d0] sm:$0xff]
        %v3028 = vld [vmem:[#allocation8 + $0x13d8] sm:$0xff]
        %v3029 = vld [vmem:[#allocation8 + $0x13e0] sm:$0xff]
        %v3030 = vld [vmem:[#allocation8 + $0x13e8] sm:$0xff]
        %v3031 = vld [vmem:[#allocation8 + $0x13f0] sm:$0xff]
        %v3032 = vld [vmem:[#allocation8 + $0x13f8] sm:$0xff]
        %v3033 = vld [vmem:[#allocation8 + $0x1400] sm:$0xff]
        %v3034 = vld [vmem:[#allocation8 + $0x1408] sm:$0xff]
        %v3035 = vld [vmem:[#allocation8 + $0x1410] sm:$0xff]
        %v3036 = vld [vmem:[#allocation8 + $0x1418] sm:$0xff]
        %v3037 = vld [vmem:[#allocation8 + $0x1420] sm:$0xff]
        %v3038 = vld [vmem:[#allocation8 + $0x1428] sm:$0xff]
        %v3039 = vld [vmem:[#allocation8 + $0x1430] sm:$0xff]
        %v3040 = vld [vmem:[#allocation8 + $0x1438] sm:$0xff]
        %v3041 = vld [vmem:[#allocation8 + $0x1440] sm:$0xff]
        %v3042 = vld [vmem:[#allocation8 + $0x1448] sm:$0xff]
        %v3043 = vld [vmem:[#allocation8 + $0x1450] sm:$0xff]
        %v3044 = vld [vmem:[#allocation8 + $0x1458] sm:$0xff]
        %v3045 = vld [vmem:[#allocation8 + $0x1460] sm:$0xff]
        %v3046 = vld [vmem:[#allocation8 + $0x1468] sm:$0xff]
        %v3047 = vld [vmem:[#allocation8 + $0x1470] sm:$0xff]
        %v3048 = vld [vmem:[#allocation8 + $0x1478] sm:$0xff]
        %v3049 = vld [vmem:[#allocation8 + $0x1480] sm:$0xff]
        %v3050 = vld [vmem:[#allocation8 + $0x1488] sm:$0xff]
        %v3051 = vld [vmem:[#allocation8 + $0x1490] sm:$0xff]
        %v3052 = vld [vmem:[#allocation8 + $0x1498] sm:$0xff]
        %v3053 = vld [vmem:[#allocation8 + $0x14a0] sm:$0xff]
        %v3054 = vld [vmem:[#allocation8 + $0x14a8] sm:$0xff]
        %v3055 = vld [vmem:[#allocation8 + $0x14b0] sm:$0xff]
        %v3056 = vld [vmem:[#allocation8 + $0x14b8] sm:$0xff]
        %v3057 = vld [vmem:[#allocation8 + $0x14c0] sm:$0xff]
        %v3058 = vld [vmem:[#allocation8 + $0x14c8] sm:$0xff]
        %v3059 = vld [vmem:[#allocation8 + $0x14d0] sm:$0xff]
        %v3060 = vld [vmem:[#allocation8 + $0x14d8] sm:$0xff]
        %v3061 = vld [vmem:[#allocation8 + $0x14e0] sm:$0xff]
        %v3062 = vld [vmem:[#allocation8 + $0x14e8] sm:$0xff]
        %v3063 = vld [vmem:[#allocation8 + $0x14f0] sm:$0xff]
        %v3064 = vld [vmem:[#allocation8 + $0x14f8] sm:$0xff]
        %v3065 = vld [vmem:[#allocation8 + $0x1500] sm:$0xff]
        %v3066 = vld [vmem:[#allocation8 + $0x1508] sm:$0xff]
        %v3067 = vld [vmem:[#allocation8 + $0x1510] sm:$0xff]
        %v3068 = vld [vmem:[#allocation8 + $0x1518] sm:$0xff]
        %v3069 = vld [vmem:[#allocation8 + $0x1520] sm:$0xff]
        %v3070 = vld [vmem:[#allocation8 + $0x1528] sm:$0xff]
        %v3071 = vld [vmem:[#allocation8 + $0x1530] sm:$0xff]
        %v3072 = vld [vmem:[#allocation8 + $0x1538] sm:$0xff]
        %v3073 = vld [vmem:[#allocation8 + $0x1540] sm:$0xff]
        %v3074 = vld [vmem:[#allocation8 + $0x1548] sm:$0xff]
        %v3075 = vld [vmem:[#allocation8 + $0x1550] sm:$0xff]
        %v3076 = vld [vmem:[#allocation8 + $0x1558] sm:$0xff]
        %v3077 = vld [vmem:[#allocation8 + $0x1560] sm:$0xff]
        %v3078 = vld [vmem:[#allocation8 + $0x1568] sm:$0xff]
        %v3079 = vld [vmem:[#allocation8 + $0x1570] sm:$0xff]
        %v3080 = vld [vmem:[#allocation8 + $0x1578] sm:$0xff]
        %v3081 = vld [vmem:[#allocation8 + $0x1580] sm:$0xff]
        %v3082 = vld [vmem:[#allocation8 + $0x1588] sm:$0xff]
        %v3083 = vld [vmem:[#allocation8 + $0x1590] sm:$0xff]
        %v3084 = vld [vmem:[#allocation8 + $0x1598] sm:$0xff]
        %v3085 = vld [vmem:[#allocation8 + $0x15a0] sm:$0xff]
        %v3086 = vld [vmem:[#allocation8 + $0x15a8] sm:$0xff]
        %v3087 = vld [vmem:[#allocation8 + $0x15b0] sm:$0xff]
        %v3088 = vld [vmem:[#allocation8 + $0x15b8] sm:$0xff]
        %v3089 = vld [vmem:[#allocation8 + $0x15c0] sm:$0xff]
        %v3090 = vld [vmem:[#allocation8 + $0x15c8] sm:$0xff]
        %v3091 = vld [vmem:[#allocation8 + $0x15d0] sm:$0xff]
        %v3092 = vld [vmem:[#allocation8 + $0x15d8] sm:$0xff]
        %v3093 = vld [vmem:[#allocation8 + $0x15e0] sm:$0xff]
        %v3094 = vld [vmem:[#allocation8 + $0x15e8] sm:$0xff]
        %v3095 = vld [vmem:[#allocation8 + $0x15f0] sm:$0xff]
        %v3096 = vld [vmem:[#allocation8 + $0x15f8] sm:$0xff]
        %v3097 = vld [vmem:[#allocation8 + $0x1600] sm:$0xff]
        %v3098 = vld [vmem:[#allocation8 + $0x1608] sm:$0xff]
        %v3099 = vld [vmem:[#allocation8 + $0x1610] sm:$0xff]
        %v3100 = vld [vmem:[#allocation8 + $0x1618] sm:$0xff]
        %v3101 = vld [vmem:[#allocation8 + $0x1620] sm:$0xff]
        %v3102 = vld [vmem:[#allocation8 + $0x1628] sm:$0xff]
        %v3103 = vld [vmem:[#allocation8 + $0x1630] sm:$0xff]
        %v3104 = vld [vmem:[#allocation8 + $0x1638] sm:$0xff]
        %v3105 = vld [vmem:[#allocation8 + $0x1640] sm:$0xff]
        %v3106 = vld [vmem:[#allocation8 + $0x1648] sm:$0xff]
        %v3107 = vld [vmem:[#allocation8 + $0x1650] sm:$0xff]
        %v3108 = vld [vmem:[#allocation8 + $0x1658] sm:$0xff]
        %v3109 = vld [vmem:[#allocation8 + $0x1660] sm:$0xff]
        %v3110 = vld [vmem:[#allocation8 + $0x1668] sm:$0xff]
        %v3111 = vld [vmem:[#allocation8 + $0x1670] sm:$0xff]
        %v3112 = vld [vmem:[#allocation8 + $0x1678] sm:$0xff]
        %v3113 = vld [vmem:[#allocation8 + $0x1680] sm:$0xff]
        %v3114 = vld [vmem:[#allocation8 + $0x1688] sm:$0xff]
        %v3115 = vld [vmem:[#allocation8 + $0x1690] sm:$0xff]
        %v3116 = vld [vmem:[#allocation8 + $0x1698] sm:$0xff]
        %v3117 = vld [vmem:[#allocation8 + $0x16a0] sm:$0xff]
        %v3118 = vld [vmem:[#allocation8 + $0x16a8] sm:$0xff]
        %v3119 = vld [vmem:[#allocation8 + $0x16b0] sm:$0xff]
        %v3120 = vld [vmem:[#allocation8 + $0x16b8] sm:$0xff]
        %v3121 = vld [vmem:[#allocation8 + $0x16c0] sm:$0xff]
        %v3122 = vld [vmem:[#allocation8 + $0x16c8] sm:$0xff]
        %v3123 = vld [vmem:[#allocation8 + $0x16d0] sm:$0xff]
        %v3124 = vld [vmem:[#allocation8 + $0x16d8] sm:$0xff]
        %v3125 = vld [vmem:[#allocation8 + $0x16e0] sm:$0xff]
        %v3126 = vld [vmem:[#allocation8 + $0x16e8] sm:$0xff]
        %v3127 = vld [vmem:[#allocation8 + $0x16f0] sm:$0xff]
        %v3128 = vld [vmem:[#allocation8 + $0x16f8] sm:$0xff]
        %v3129 = vld [vmem:[#allocation8 + $0x1700] sm:$0xff]
        %v3130 = vld [vmem:[#allocation8 + $0x1708] sm:$0xff]
        %v3131 = vld [vmem:[#allocation8 + $0x1710] sm:$0xff]
        %v3132 = vld [vmem:[#allocation8 + $0x1718] sm:$0xff]
        %v3133 = vld [vmem:[#allocation8 + $0x1720] sm:$0xff]
        %v3134 = vld [vmem:[#allocation8 + $0x1728] sm:$0xff]
        %v3135 = vld [vmem:[#allocation8 + $0x1730] sm:$0xff]
        %v3136 = vld [vmem:[#allocation8 + $0x1738] sm:$0xff]
        %v3137 = vld [vmem:[#allocation8 + $0x1740] sm:$0xff]
        %v3138 = vld [vmem:[#allocation8 + $0x1748] sm:$0xff]
        %v3139 = vld [vmem:[#allocation8 + $0x1750] sm:$0xff]
        %v3140 = vld [vmem:[#allocation8 + $0x1758] sm:$0xff]
        %v3141 = vld [vmem:[#allocation8 + $0x1760] sm:$0xff]
        %v3142 = vld [vmem:[#allocation8 + $0x1768] sm:$0xff]
        %v3143 = vld [vmem:[#allocation8 + $0x1770] sm:$0xff]
        %v3144 = vld [vmem:[#allocation8 + $0x1778] sm:$0xff]
        %v3145 = vld [vmem:[#allocation8 + $0x1780] sm:$0xff]
        %v3146 = vld [vmem:[#allocation8 + $0x1788] sm:$0xff]
        %v3147 = vld [vmem:[#allocation8 + $0x1790] sm:$0xff]
        %v3148 = vld [vmem:[#allocation8 + $0x1798] sm:$0xff]
        %v3149 = vld [vmem:[#allocation8 + $0x17a0] sm:$0xff]
        %v3150 = vld [vmem:[#allocation8 + $0x17a8] sm:$0xff]
        %v3151 = vld [vmem:[#allocation8 + $0x17b0] sm:$0xff]
        %v3152 = vld [vmem:[#allocation8 + $0x17b8] sm:$0xff]
        %v3153 = vld [vmem:[#allocation8 + $0x17c0] sm:$0xff]
        %v3154 = vld [vmem:[#allocation8 + $0x17c8] sm:$0xff]
        %v3155 = vld [vmem:[#allocation8 + $0x17d0] sm:$0xff]
        %v3156 = vld [vmem:[#allocation8 + $0x17d8] sm:$0xff]
        %v3157 = vld [vmem:[#allocation8 + $0x17e0] sm:$0xff]
        %v3158 = vld [vmem:[#allocation8 + $0x17e8] sm:$0xff]
        %v3159 = vld [vmem:[#allocation8 + $0x17f0] sm:$0xff]
        %v3160 = vld [vmem:[#allocation8 + $0x17f8] sm:$0xff]
        %v3161 = vld [vmem:[#allocation8 + $0x1800] sm:$0xff]
        %v3162 = vld [vmem:[#allocation8 + $0x1808] sm:$0xff]
        %v3163 = vld [vmem:[#allocation8 + $0x1810] sm:$0xff]
        %v3164 = vld [vmem:[#allocation8 + $0x1818] sm:$0xff]
        %v3165 = vld [vmem:[#allocation8 + $0x1820] sm:$0xff]
        %v3166 = vld [vmem:[#allocation8 + $0x1828] sm:$0xff]
        %v3167 = vld [vmem:[#allocation8 + $0x1830] sm:$0xff]
        %v3168 = vld [vmem:[#allocation8 + $0x1838] sm:$0xff]
        %v3169 = vld [vmem:[#allocation8 + $0x1840] sm:$0xff]
        %v3170 = vld [vmem:[#allocation8 + $0x1848] sm:$0xff]
        %v3171 = vld [vmem:[#allocation8 + $0x1850] sm:$0xff]
        %v3172 = vld [vmem:[#allocation8 + $0x1858] sm:$0xff]
        %v3173 = vld [vmem:[#allocation8 + $0x1860] sm:$0xff]
        %v3174 = vld [vmem:[#allocation8 + $0x1868] sm:$0xff]
        %v3175 = vld [vmem:[#allocation8 + $0x1870] sm:$0xff]
        %v3176 = vld [vmem:[#allocation8 + $0x1878] sm:$0xff]
        %v3177 = vld [vmem:[#allocation8 + $0x1880] sm:$0xff]
        %v3178 = vld [vmem:[#allocation8 + $0x1888] sm:$0xff]
        %v3179 = vld [vmem:[#allocation8 + $0x1890] sm:$0xff]
        %v3180 = vld [vmem:[#allocation8 + $0x1898] sm:$0xff]
        %v3181 = vld [vmem:[#allocation8 + $0x18a0] sm:$0xff]
        %v3182 = vld [vmem:[#allocation8 + $0x18a8] sm:$0xff]
        %v3183 = vld [vmem:[#allocation8 + $0x18b0] sm:$0xff]
        %v3184 = vld [vmem:[#allocation8 + $0x18b8] sm:$0xff]
        %v3185 = vld [vmem:[#allocation8 + $0x18c0] sm:$0xff]
        %v3186 = vld [vmem:[#allocation8 + $0x18c8] sm:$0xff]
        %v3187 = vld [vmem:[#allocation8 + $0x18d0] sm:$0xff]
        %v3188 = vld [vmem:[#allocation8 + $0x18d8] sm:$0xff]
        %v3189 = vld [vmem:[#allocation8 + $0x18e0] sm:$0xff]
        %v3190 = vld [vmem:[#allocation8 + $0x18e8] sm:$0xff]
        %v3191 = vld [vmem:[#allocation8 + $0x18f0] sm:$0xff]
        %v3192 = vld [vmem:[#allocation8 + $0x18f8] sm:$0xff]
        %v3193 = vld [vmem:[#allocation8 + $0x1900] sm:$0xff]
        %v3194 = vld [vmem:[#allocation8 + $0x1908] sm:$0xff]
        %v3195 = vld [vmem:[#allocation8 + $0x1910] sm:$0xff]
        %v3196 = vld [vmem:[#allocation8 + $0x1918] sm:$0xff]
        %v3197 = vld [vmem:[#allocation8 + $0x1920] sm:$0xff]
        %v3198 = vld [vmem:[#allocation8 + $0x1928] sm:$0xff]
        %v3199 = vld [vmem:[#allocation8 + $0x1930] sm:$0xff]
        %v3200 = vld [vmem:[#allocation8 + $0x1938] sm:$0xff]
        %v3201 = vld [vmem:[#allocation8 + $0x1940] sm:$0xff]
        %v3202 = vld [vmem:[#allocation8 + $0x1948] sm:$0xff]
        %v3203 = vld [vmem:[#allocation8 + $0x1950] sm:$0xff]
        %v3204 = vld [vmem:[#allocation8 + $0x1958] sm:$0xff]
        %v3205 = vld [vmem:[#allocation8 + $0x1960] sm:$0xff]
        %v3206 = vld [vmem:[#allocation8 + $0x1968] sm:$0xff]
        %v3207 = vld [vmem:[#allocation8 + $0x1970] sm:$0xff]
        %v3208 = vld [vmem:[#allocation8 + $0x1978] sm:$0xff]
        %v3209 = vld [vmem:[#allocation8 + $0x1980] sm:$0xff]
        %v3210 = vld [vmem:[#allocation8 + $0x1988] sm:$0xff]
        %v3211 = vld [vmem:[#allocation8 + $0x1990] sm:$0xff]
        %v3212 = vld [vmem:[#allocation8 + $0x1998] sm:$0xff]
        %v3213 = vld [vmem:[#allocation8 + $0x19a0] sm:$0xff]
        %v3214 = vld [vmem:[#allocation8 + $0x19a8] sm:$0xff]
        %v3215 = vld [vmem:[#allocation8 + $0x19b0] sm:$0xff]
        %v3216 = vld [vmem:[#allocation8 + $0x19b8] sm:$0xff]
        %v3217 = vld [vmem:[#allocation8 + $0x19c0] sm:$0xff]
        %v3218 = vld [vmem:[#allocation8 + $0x19c8] sm:$0xff]
        %v3219 = vld [vmem:[#allocation8 + $0x19d0] sm:$0xff]
        %v3220 = vld [vmem:[#allocation8 + $0x19d8] sm:$0xff]
        %v3221 = vld [vmem:[#allocation8 + $0x19e0] sm:$0xff]
        %v3222 = vld [vmem:[#allocation8 + $0x19e8] sm:$0xff]
        %v3223 = vld [vmem:[#allocation8 + $0x19f0] sm:$0xff]
        %v3224 = vld [vmem:[#allocation8 + $0x19f8] sm:$0xff]
        %v3225 = vld [vmem:[#allocation8 + $0x1a00] sm:$0xff]
        %v3226 = vld [vmem:[#allocation8 + $0x1a08] sm:$0xff]
        %v3227 = vld [vmem:[#allocation8 + $0x1a10] sm:$0xff]
        %v3228 = vld [vmem:[#allocation8 + $0x1a18] sm:$0xff]
        %v3229 = vld [vmem:[#allocation8 + $0x1a20] sm:$0xff]
        %v3230 = vld [vmem:[#allocation8 + $0x1a28] sm:$0xff]
        %v3231 = vld [vmem:[#allocation8 + $0x1a30] sm:$0xff]
        %v3232 = vld [vmem:[#allocation8 + $0x1a38] sm:$0xff]
        %v3233 = vld [vmem:[#allocation8 + $0x1a40] sm:$0xff]
        %v3234 = vld [vmem:[#allocation8 + $0x1a48] sm:$0xff]
        %v3235 = vld [vmem:[#allocation8 + $0x1a50] sm:$0xff]
        %v3236 = vld [vmem:[#allocation8 + $0x1a58] sm:$0xff]
        %v3237 = vld [vmem:[#allocation8 + $0x1a60] sm:$0xff]
        %v3238 = vld [vmem:[#allocation8 + $0x1a68] sm:$0xff]
        %v3239 = vld [vmem:[#allocation8 + $0x1a70] sm:$0xff]
        %v3240 = vld [vmem:[#allocation8 + $0x1a78] sm:$0xff]
        %v3241 = vld [vmem:[#allocation8 + $0x1a80] sm:$0xff]
        %v3242 = vld [vmem:[#allocation8 + $0x1a88] sm:$0xff]
        %v3243 = vld [vmem:[#allocation8 + $0x1a90] sm:$0xff]
        %v3244 = vld [vmem:[#allocation8 + $0x1a98] sm:$0xff]
        %v3245 = vld [vmem:[#allocation8 + $0x1aa0] sm:$0xff]
        %v3246 = vld [vmem:[#allocation8 + $0x1aa8] sm:$0xff]
        %v3247 = vld [vmem:[#allocation8 + $0x1ab0] sm:$0xff]
        %v3248 = vld [vmem:[#allocation8 + $0x1ab8] sm:$0xff]
        %v3249 = vld [vmem:[#allocation8 + $0x1ac0] sm:$0xff]
        %v3250 = vld [vmem:[#allocation8 + $0x1ac8] sm:$0xff]
        %v3251 = vld [vmem:[#allocation8 + $0x1ad0] sm:$0xff]
        %v3252 = vld [vmem:[#allocation8 + $0x1ad8] sm:$0xff]
        %v3253 = vld [vmem:[#allocation8 + $0x1ae0] sm:$0xff]
        %v3254 = vld [vmem:[#allocation8 + $0x1ae8] sm:$0xff]
        %v3255 = vld [vmem:[#allocation8 + $0x1af0] sm:$0xff]
        %v3256 = vld [vmem:[#allocation8 + $0x1af8] sm:$0xff]
        %v3257 = vld [vmem:[#allocation8 + $0x1b00] sm:$0xff]
        %v3258 = vld [vmem:[#allocation8 + $0x1b08] sm:$0xff]
        %v3259 = vld [vmem:[#allocation8 + $0x1b10] sm:$0xff]
        %v3260 = vld [vmem:[#allocation8 + $0x1b18] sm:$0xff]
        %v3261 = vld [vmem:[#allocation8 + $0x1b20] sm:$0xff]
        %v3262 = vld [vmem:[#allocation8 + $0x1b28] sm:$0xff]
        %v3263 = vld [vmem:[#allocation8 + $0x1b30] sm:$0xff]
        %v3264 = vld [vmem:[#allocation8 + $0x1b38] sm:$0xff]
        %v3265 = vld [vmem:[#allocation8 + $0x1b40] sm:$0xff]
        %v3266 = vld [vmem:[#allocation8 + $0x1b48] sm:$0xff]
        %v3267 = vld [vmem:[#allocation8 + $0x1b50] sm:$0xff]
        %v3268 = vld [vmem:[#allocation8 + $0x1b58] sm:$0xff]
        %v3269 = vld [vmem:[#allocation8 + $0x1b60] sm:$0xff]
        %v3270 = vld [vmem:[#allocation8 + $0x1b68] sm:$0xff]
        %v3271 = vld [vmem:[#allocation8 + $0x1b70] sm:$0xff]
        %v3272 = vld [vmem:[#allocation8 + $0x1b78] sm:$0xff]
        %v3273 = vld [vmem:[#allocation8 + $0x1b80] sm:$0xff]
        %v3274 = vld [vmem:[#allocation8 + $0x1b88] sm:$0xff]
        %v3275 = vld [vmem:[#allocation8 + $0x1b90] sm:$0xff]
        %v3276 = vld [vmem:[#allocation8 + $0x1b98] sm:$0xff]
        %v3277 = vld [vmem:[#allocation8 + $0x1ba0] sm:$0xff]
        %v3278 = vld [vmem:[#allocation8 + $0x1ba8] sm:$0xff]
        %v3279 = vld [vmem:[#allocation8 + $0x1bb0] sm:$0xff]
        %v3280 = vld [vmem:[#allocation8 + $0x1bb8] sm:$0xff]
        %v3281 = vld [vmem:[#allocation8 + $0x1bc0] sm:$0xff]
        %v3282 = vld [vmem:[#allocation8 + $0x1bc8] sm:$0xff]
        %v3283 = vld [vmem:[#allocation8 + $0x1bd0] sm:$0xff]
        %v3284 = vld [vmem:[#allocation8 + $0x1bd8] sm:$0xff]
        %v3285 = vld [vmem:[#allocation8 + $0x1be0] sm:$0xff]
        %v3286 = vld [vmem:[#allocation8 + $0x1be8] sm:$0xff]
        %v3287 = vld [vmem:[#allocation8 + $0x1bf0] sm:$0xff]
        %v3288 = vld [vmem:[#allocation8 + $0x1bf8] sm:$0xff]
        %v3289 = vld [vmem:[#allocation8 + $0x1c00] sm:$0xff]
        %v3290 = vld [vmem:[#allocation8 + $0x1c08] sm:$0xff]
        %v3291 = vld [vmem:[#allocation8 + $0x1c10] sm:$0xff]
        %v3292 = vld [vmem:[#allocation8 + $0x1c18] sm:$0xff]
        %v3293 = vld [vmem:[#allocation8 + $0x1c20] sm:$0xff]
        %v3294 = vld [vmem:[#allocation8 + $0x1c28] sm:$0xff]
        %v3295 = vld [vmem:[#allocation8 + $0x1c30] sm:$0xff]
        %v3296 = vld [vmem:[#allocation8 + $0x1c38] sm:$0xff]
        %v3297 = vld [vmem:[#allocation8 + $0x1c40] sm:$0xff]
        %v3298 = vld [vmem:[#allocation8 + $0x1c48] sm:$0xff]
        %v3299 = vld [vmem:[#allocation8 + $0x1c50] sm:$0xff]
        %v3300 = vld [vmem:[#allocation8 + $0x1c58] sm:$0xff]
        %v3301 = vld [vmem:[#allocation8 + $0x1c60] sm:$0xff]
        %v3302 = vld [vmem:[#allocation8 + $0x1c68] sm:$0xff]
        %v3303 = vld [vmem:[#allocation8 + $0x1c70] sm:$0xff]
        %v3304 = vld [vmem:[#allocation8 + $0x1c78] sm:$0xff]
        %v3305 = vld [vmem:[#allocation8 + $0x1c80] sm:$0xff]
        %v3306 = vld [vmem:[#allocation8 + $0x1c88] sm:$0xff]
        %v3307 = vld [vmem:[#allocation8 + $0x1c90] sm:$0xff]
        %v3308 = vld [vmem:[#allocation8 + $0x1c98] sm:$0xff]
        %v3309 = vld [vmem:[#allocation8 + $0x1ca0] sm:$0xff]
        %v3310 = vld [vmem:[#allocation8 + $0x1ca8] sm:$0xff]
        %v3311 = vld [vmem:[#allocation8 + $0x1cb0] sm:$0xff]
        %v3312 = vld [vmem:[#allocation8 + $0x1cb8] sm:$0xff]
        %v3313 = vld [vmem:[#allocation8 + $0x1cc0] sm:$0xff]
        %v3314 = vld [vmem:[#allocation8 + $0x1cc8] sm:$0xff]
        %v3315 = vld [vmem:[#allocation8 + $0x1cd0] sm:$0xff]
        %v3316 = vld [vmem:[#allocation8 + $0x1cd8] sm:$0xff]
        %v3317 = vld [vmem:[#allocation8 + $0x1ce0] sm:$0xff]
        %v3318 = vld [vmem:[#allocation8 + $0x1ce8] sm:$0xff]
        %v3319 = vld [vmem:[#allocation8 + $0x1cf0] sm:$0xff]
        %v3320 = vld [vmem:[#allocation8 + $0x1cf8] sm:$0xff]
        %v3321 = vld [vmem:[#allocation8 + $0x1d00] sm:$0xff]
        %v3322 = vld [vmem:[#allocation8 + $0x1d08] sm:$0xff]
        %v3323 = vld [vmem:[#allocation8 + $0x1d10] sm:$0xff]
        %v3324 = vld [vmem:[#allocation8 + $0x1d18] sm:$0xff]
        %v3325 = vld [vmem:[#allocation8 + $0x1d20] sm:$0xff]
        %v3326 = vld [vmem:[#allocation8 + $0x1d28] sm:$0xff]
        %v3327 = vld [vmem:[#allocation8 + $0x1d30] sm:$0xff]
        %v3328 = vld [vmem:[#allocation8 + $0x1d38] sm:$0xff]
        %v3329 = vld [vmem:[#allocation8 + $0x1d40] sm:$0xff]
        %v3330 = vld [vmem:[#allocation8 + $0x1d48] sm:$0xff]
        %v3331 = vld [vmem:[#allocation8 + $0x1d50] sm:$0xff]
        %v3332 = vld [vmem:[#allocation8 + $0x1d58] sm:$0xff]
        %v3333 = vld [vmem:[#allocation8 + $0x1d60] sm:$0xff]
        %v3334 = vld [vmem:[#allocation8 + $0x1d68] sm:$0xff]
        %v3335 = vld [vmem:[#allocation8 + $0x1d70] sm:$0xff]
        %v3336 = vld [vmem:[#allocation8 + $0x1d78] sm:$0xff]
        %v3337 = vld [vmem:[#allocation8 + $0x1d80] sm:$0xff]
        %v3338 = vld [vmem:[#allocation8 + $0x1d88] sm:$0xff]
        %v3339 = vld [vmem:[#allocation8 + $0x1d90] sm:$0xff]
        %v3340 = vld [vmem:[#allocation8 + $0x1d98] sm:$0xff]
        %v3341 = vld [vmem:[#allocation8 + $0x1da0] sm:$0xff]
        %v3342 = vld [vmem:[#allocation8 + $0x1da8] sm:$0xff]
        %v3343 = vld [vmem:[#allocation8 + $0x1db0] sm:$0xff]
        %v3344 = vld [vmem:[#allocation8 + $0x1db8] sm:$0xff]
        %v3345 = vld [vmem:[#allocation8 + $0x1dc0] sm:$0xff]
        %v3346 = vld [vmem:[#allocation8 + $0x1dc8] sm:$0xff]
        %v3347 = vld [vmem:[#allocation8 + $0x1dd0] sm:$0xff]
        %v3348 = vld [vmem:[#allocation8 + $0x1dd8] sm:$0xff]
        %v3349 = vld [vmem:[#allocation8 + $0x1de0] sm:$0xff]
        %v3350 = vld [vmem:[#allocation8 + $0x1de8] sm:$0xff]
        %v3351 = vld [vmem:[#allocation8 + $0x1df0] sm:$0xff]
        %v3352 = vld [vmem:[#allocation8 + $0x1df8] sm:$0xff]
        %v3353 = vld [vmem:[#allocation8 + $0x1e00] sm:$0xff]
        %v3354 = vld [vmem:[#allocation8 + $0x1e08] sm:$0xff]
        %v3355 = vld [vmem:[#allocation8 + $0x1e10] sm:$0xff]
        %v3356 = vld [vmem:[#allocation8 + $0x1e18] sm:$0xff]
        %v3357 = vld [vmem:[#allocation8 + $0x1e20] sm:$0xff]
        %v3358 = vld [vmem:[#allocation8 + $0x1e28] sm:$0xff]
        %v3359 = vld [vmem:[#allocation8 + $0x1e30] sm:$0xff]
        %v3360 = vld [vmem:[#allocation8 + $0x1e38] sm:$0xff]
        %v3361 = vld [vmem:[#allocation8 + $0x1e40] sm:$0xff]
        %v3362 = vld [vmem:[#allocation8 + $0x1e48] sm:$0xff]
        %v3363 = vld [vmem:[#allocation8 + $0x1e50] sm:$0xff]
        %v3364 = vld [vmem:[#allocation8 + $0x1e58] sm:$0xff]
        %v3365 = vld [vmem:[#allocation8 + $0x1e60] sm:$0xff]
        %v3366 = vld [vmem:[#allocation8 + $0x1e68] sm:$0xff]
        %v3367 = vld [vmem:[#allocation8 + $0x1e70] sm:$0xff]
        %v3368 = vld [vmem:[#allocation8 + $0x1e78] sm:$0xff]
        %v3369 = vld [vmem:[#allocation8 + $0x1e80] sm:$0xff]
        %v3370 = vld [vmem:[#allocation8 + $0x1e88] sm:$0xff]
        %v3371 = vld [vmem:[#allocation8 + $0x1e90] sm:$0xff]
        %v3372 = vld [vmem:[#allocation8 + $0x1e98] sm:$0xff]
        %v3373 = vld [vmem:[#allocation8 + $0x1ea0] sm:$0xff]
        %v3374 = vld [vmem:[#allocation8 + $0x1ea8] sm:$0xff]
        %v3375 = vld [vmem:[#allocation8 + $0x1eb0] sm:$0xff]
        %v3376 = vld [vmem:[#allocation8 + $0x1eb8] sm:$0xff]
        %v3377 = vld [vmem:[#allocation8 + $0x1ec0] sm:$0xff]
        %v3378 = vld [vmem:[#allocation8 + $0x1ec8] sm:$0xff]
        %v3379 = vld [vmem:[#allocation8 + $0x1ed0] sm:$0xff]
        %v3380 = vld [vmem:[#allocation8 + $0x1ed8] sm:$0xff]
        %v3381 = vld [vmem:[#allocation8 + $0x1ee0] sm:$0xff]
        %v3382 = vld [vmem:[#allocation8 + $0x1ee8] sm:$0xff]
        %v3383 = vld [vmem:[#allocation8 + $0x1ef0] sm:$0xff]
        %v3384 = vld [vmem:[#allocation8 + $0x1ef8] sm:$0xff]
        %v3385 = vld [vmem:[#allocation8 + $0x1f00] sm:$0xff]
        %v3386 = vld [vmem:[#allocation8 + $0x1f08] sm:$0xff]
        %v3387 = vld [vmem:[#allocation8 + $0x1f10] sm:$0xff]
        %v3388 = vld [vmem:[#allocation8 + $0x1f18] sm:$0xff]
        %v3389 = vld [vmem:[#allocation8 + $0x1f20] sm:$0xff]
        %v3390 = vld [vmem:[#allocation8 + $0x1f28] sm:$0xff]
        %v3391 = vld [vmem:[#allocation8 + $0x1f30] sm:$0xff]
        %v3392 = vld [vmem:[#allocation8 + $0x1f38] sm:$0xff]
        %v3393 = vld [vmem:[#allocation8 + $0x1f40] sm:$0xff]
        %v3394 = vld [vmem:[#allocation8 + $0x1f48] sm:$0xff]
        %v3395 = vld [vmem:[#allocation8 + $0x1f50] sm:$0xff]
        %v3396 = vld [vmem:[#allocation8 + $0x1f58] sm:$0xff]
        %v3397 = vld [vmem:[#allocation8 + $0x1f60] sm:$0xff]
        %v3398 = vld [vmem:[#allocation8 + $0x1f68] sm:$0xff]
        %v3399 = vld [vmem:[#allocation8 + $0x1f70] sm:$0xff]
        %v3400 = vld [vmem:[#allocation8 + $0x1f78] sm:$0xff]
        %v3401 = vld [vmem:[#allocation8 + $0x1f80] sm:$0xff]
        %v3402 = vld [vmem:[#allocation8 + $0x1f88] sm:$0xff]
        %v3403 = vld [vmem:[#allocation8 + $0x1f90] sm:$0xff]
        %v3404 = vld [vmem:[#allocation8 + $0x1f98] sm:$0xff]
        %v3405 = vld [vmem:[#allocation8 + $0x1fa0] sm:$0xff]
        %v3406 = vld [vmem:[#allocation8 + $0x1fa8] sm:$0xff]
        %v3407 = vld [vmem:[#allocation8 + $0x1fb0] sm:$0xff]
        %v3408 = vld [vmem:[#allocation8 + $0x1fb8] sm:$0xff]
        %v3409 = vld [vmem:[#allocation8 + $0x1fc0] sm:$0xff]
        %v3410 = vld [vmem:[#allocation8 + $0x1fc8] sm:$0xff]
        %v3411 = vld [vmem:[#allocation8 + $0x1fd0] sm:$0xff]
        %v3412 = vld [vmem:[#allocation8 + $0x1fd8] sm:$0xff]
        %v3413 = vld [vmem:[#allocation8 + $0x1fe0] sm:$0xff]
        %v3414 = vld [vmem:[#allocation8 + $0x1fe8] sm:$0xff]
        %v3415 = vld [vmem:[#allocation8 + $0x1ff0] sm:$0xff]
        %v3416 = vld [vmem:[#allocation8 + $0x1ff8] sm:$0xff]
        %v3417 = vld [vmem:[#allocation10] sm:$0xff]
        %v3419 = vlaneseq
        %v3420 = vshrl.u32 %v3419, 7
        %v3421 = vsub.s32 0, %v3420
        %v3422 = vrot.slane %v3417, %v3421
        %v3423 = vlaneseq
        %v3424 = vshrl.u32 %v3423, 7
        %v3425 = vsub.s32 1, %v3424
        %v3426 = vrot.slane %v3417, %v3425
        %v3427 = vlaneseq
        %v3428 = vshrl.u32 %v3427, 7
        %v3429 = vsub.s32 2, %v3428
        %v3430 = vrot.slane %v3417, %v3429
        %v3431 = vlaneseq
        %v3432 = vshrl.u32 %v3431, 7
        %v3433 = vsub.s32 3, %v3432
        %v3434 = vrot.slane %v3417, %v3433
        %v3435 = vlaneseq
        %v3436 = vshrl.u32 %v3435, 7
        %v3437 = vsub.s32 4, %v3436
        %v3438 = vrot.slane %v3417, %v3437
        %v3439 = vlaneseq
        %v3440 = vshrl.u32 %v3439, 7
        %v3441 = vsub.s32 5, %v3440
        %v3442 = vrot.slane %v3417, %v3441
        %v3443 = vlaneseq
        %v3444 = vshrl.u32 %v3443, 7
        %v3445 = vsub.s32 6, %v3444
        %v3446 = vrot.slane %v3417, %v3445
        %v3447 = vlaneseq
        %v3448 = vshrl.u32 %v3447, 7
        %v3449 = vsub.s32 7, %v3448
        %v3450 = vrot.slane %v3417, %v3449
        %v4483 = vunpack.c.l.b16 %v2393
        %v4484 = vunpack.c.h.b16 %v2393
        %v4485 = vunpack.c.l.b16 %v2394
        %v4486 = vunpack.c.h.b16 %v2394
        %v4487 = vunpack.c.l.b16 %v2395
        %v4488 = vunpack.c.h.b16 %v2395
        %v4489 = vunpack.c.l.b16 %v2396
        %v4490 = vunpack.c.h.b16 %v2396
        %v4491 = vunpack.c.l.b16 %v2397
        %v4492 = vunpack.c.h.b16 %v2397
        %v4493 = vunpack.c.l.b16 %v2398
        %v4494 = vunpack.c.h.b16 %v2398
        %v4495 = vunpack.c.l.b16 %v2399
        %v4496 = vunpack.c.h.b16 %v2399
        %v4497 = vunpack.c.l.b16 %v2400
        %v4498 = vunpack.c.h.b16 %v2400
        %v4499 = vunpack.c.l.b16 %v2401
        %v4500 = vunpack.c.h.b16 %v2401
        %v4501 = vunpack.c.l.b16 %v2402
        %v4502 = vunpack.c.h.b16 %v2402
        %v4503 = vunpack.c.l.b16 %v2403
        %v4504 = vunpack.c.h.b16 %v2403
        %v4505 = vunpack.c.l.b16 %v2404
        %v4506 = vunpack.c.h.b16 %v2404
        %v4507 = vunpack.c.l.b16 %v2405
        %v4508 = vunpack.c.h.b16 %v2405
        %v4509 = vunpack.c.l.b16 %v2406
        %v4510 = vunpack.c.h.b16 %v2406
        %v4511 = vunpack.c.l.b16 %v2407
        %v4512 = vunpack.c.h.b16 %v2407
        %v4513 = vunpack.c.l.b16 %v2408
        %v4514 = vunpack.c.h.b16 %v2408
        %v4515 = vunpack.c.l.b16 %v2409
        %v4516 = vunpack.c.h.b16 %v2409
        %v4517 = vunpack.c.l.b16 %v2410
        %v4518 = vunpack.c.h.b16 %v2410
        %v4519 = vunpack.c.l.b16 %v2411
        %v4520 = vunpack.c.h.b16 %v2411
        %v4521 = vunpack.c.l.b16 %v2412
        %v4522 = vunpack.c.h.b16 %v2412
        %v4523 = vunpack.c.l.b16 %v2413
        %v4524 = vunpack.c.h.b16 %v2413
        %v4525 = vunpack.c.l.b16 %v2414
        %v4526 = vunpack.c.h.b16 %v2414
        %v4527 = vunpack.c.l.b16 %v2415
        %v4528 = vunpack.c.h.b16 %v2415
        %v4529 = vunpack.c.l.b16 %v2416
        %v4530 = vunpack.c.h.b16 %v2416
        %v4531 = vunpack.c.l.b16 %v2417
        %v4532 = vunpack.c.h.b16 %v2417
        %v4533 = vunpack.c.l.b16 %v2418
        %v4534 = vunpack.c.h.b16 %v2418
        %v4535 = vunpack.c.l.b16 %v2419
        %v4536 = vunpack.c.h.b16 %v2419
        %v4537 = vunpack.c.l.b16 %v2420
        %v4538 = vunpack.c.h.b16 %v2420
        %v4539 = vunpack.c.l.b16 %v2421
        %v4540 = vunpack.c.h.b16 %v2421
        %v4541 = vunpack.c.l.b16 %v2422
        %v4542 = vunpack.c.h.b16 %v2422
        %v4543 = vunpack.c.l.b16 %v2423
        %v4544 = vunpack.c.h.b16 %v2423
        %v4545 = vunpack.c.l.b16 %v2424
        %v4546 = vunpack.c.h.b16 %v2424
        %v4547 = vunpack.c.l.b16 %v2425
        %v4548 = vunpack.c.h.b16 %v2425
        %v4549 = vunpack.c.l.b16 %v2426
        %v4550 = vunpack.c.h.b16 %v2426
        %v4551 = vunpack.c.l.b16 %v2427
        %v4552 = vunpack.c.h.b16 %v2427
        %v4553 = vunpack.c.l.b16 %v2428
        %v4554 = vunpack.c.h.b16 %v2428
        %v4555 = vunpack.c.l.b16 %v2429
        %v4556 = vunpack.c.h.b16 %v2429
        %v4557 = vunpack.c.l.b16 %v2430
        %v4558 = vunpack.c.h.b16 %v2430
        %v4559 = vunpack.c.l.b16 %v2431
        %v4560 = vunpack.c.h.b16 %v2431
        %v4561 = vunpack.c.l.b16 %v2432
        %v4562 = vunpack.c.h.b16 %v2432
        %v4563 = vunpack.c.l.b16 %v2433
        %v4564 = vunpack.c.h.b16 %v2433
        %v4565 = vunpack.c.l.b16 %v2434
        %v4566 = vunpack.c.h.b16 %v2434
        %v4567 = vunpack.c.l.b16 %v2435
        %v4568 = vunpack.c.h.b16 %v2435
        %v4569 = vunpack.c.l.b16 %v2436
        %v4570 = vunpack.c.h.b16 %v2436
        %v4571 = vunpack.c.l.b16 %v2437
        %v4572 = vunpack.c.h.b16 %v2437
        %v4573 = vunpack.c.l.b16 %v2438
        %v4574 = vunpack.c.h.b16 %v2438
        %v4575 = vunpack.c.l.b16 %v2439
        %v4576 = vunpack.c.h.b16 %v2439
        %v4577 = vunpack.c.l.b16 %v2440
        %v4578 = vunpack.c.h.b16 %v2440
        %v4579 = vunpack.c.l.b16 %v2441
        %v4580 = vunpack.c.h.b16 %v2441
        %v4581 = vunpack.c.l.b16 %v2442
        %v4582 = vunpack.c.h.b16 %v2442
        %v4583 = vunpack.c.l.b16 %v2443
        %v4584 = vunpack.c.h.b16 %v2443
        %v4585 = vunpack.c.l.b16 %v2444
        %v4586 = vunpack.c.h.b16 %v2444
        %v4587 = vunpack.c.l.b16 %v2445
        %v4588 = vunpack.c.h.b16 %v2445
        %v4589 = vunpack.c.l.b16 %v2446
        %v4590 = vunpack.c.h.b16 %v2446
        %v4591 = vunpack.c.l.b16 %v2447
        %v4592 = vunpack.c.h.b16 %v2447
        %v4593 = vunpack.c.l.b16 %v2448
        %v4594 = vunpack.c.h.b16 %v2448
        %v4595 = vunpack.c.l.b16 %v2449
        %v4596 = vunpack.c.h.b16 %v2449
        %v4597 = vunpack.c.l.b16 %v2450
        %v4598 = vunpack.c.h.b16 %v2450
        %v4599 = vunpack.c.l.b16 %v2451
        %v4600 = vunpack.c.h.b16 %v2451
        %v4601 = vunpack.c.l.b16 %v2452
        %v4602 = vunpack.c.h.b16 %v2452
        %v4603 = vunpack.c.l.b16 %v2453
        %v4604 = vunpack.c.h.b16 %v2453
        %v4605 = vunpack.c.l.b16 %v2454
        %v4606 = vunpack.c.h.b16 %v2454
        %v4607 = vunpack.c.l.b16 %v2455
        %v4608 = vunpack.c.h.b16 %v2455
        %v4609 = vunpack.c.l.b16 %v2456
        %v4610 = vunpack.c.h.b16 %v2456
        %v4611 = vunpack.c.l.b16 %v2457
        %v4612 = vunpack.c.h.b16 %v2457
        %v4613 = vunpack.c.l.b16 %v2458
        %v4614 = vunpack.c.h.b16 %v2458
        %v4615 = vunpack.c.l.b16 %v2459
        %v4616 = vunpack.c.h.b16 %v2459
        %v4617 = vunpack.c.l.b16 %v2460
        %v4618 = vunpack.c.h.b16 %v2460
        %v4619 = vunpack.c.l.b16 %v2461
        %v4620 = vunpack.c.h.b16 %v2461
        %v4621 = vunpack.c.l.b16 %v2462
        %v4622 = vunpack.c.h.b16 %v2462
        %v4623 = vunpack.c.l.b16 %v2463
        %v4624 = vunpack.c.h.b16 %v2463
        %v4625 = vunpack.c.l.b16 %v2464
        %v4626 = vunpack.c.h.b16 %v2464
        %v4627 = vunpack.c.l.b16 %v2465
        %v4628 = vunpack.c.h.b16 %v2465
        %v4629 = vunpack.c.l.b16 %v2466
        %v4630 = vunpack.c.h.b16 %v2466
        %v4631 = vunpack.c.l.b16 %v2467
        %v4632 = vunpack.c.h.b16 %v2467
        %v4633 = vunpack.c.l.b16 %v2468
        %v4634 = vunpack.c.h.b16 %v2468
        %v4635 = vunpack.c.l.b16 %v2469
        %v4636 = vunpack.c.h.b16 %v2469
        %v4637 = vunpack.c.l.b16 %v2470
        %v4638 = vunpack.c.h.b16 %v2470
        %v4639 = vunpack.c.l.b16 %v2471
        %v4640 = vunpack.c.h.b16 %v2471
        %v4641 = vunpack.c.l.b16 %v2472
        %v4642 = vunpack.c.h.b16 %v2472
        %v4643 = vunpack.c.l.b16 %v2473
        %v4644 = vunpack.c.h.b16 %v2473
        %v4645 = vunpack.c.l.b16 %v2474
        %v4646 = vunpack.c.h.b16 %v2474
        %v4647 = vunpack.c.l.b16 %v2475
        %v4648 = vunpack.c.h.b16 %v2475
        %v4649 = vunpack.c.l.b16 %v2476
        %v4650 = vunpack.c.h.b16 %v2476
        %v4651 = vunpack.c.l.b16 %v2477
        %v4652 = vunpack.c.h.b16 %v2477
        %v4653 = vunpack.c.l.b16 %v2478
        %v4654 = vunpack.c.h.b16 %v2478
        %v4655 = vunpack.c.l.b16 %v2479
        %v4656 = vunpack.c.h.b16 %v2479
        %v4657 = vunpack.c.l.b16 %v2480
        %v4658 = vunpack.c.h.b16 %v2480
        %v4659 = vunpack.c.l.b16 %v2481
        %v4660 = vunpack.c.h.b16 %v2481
        %v4661 = vunpack.c.l.b16 %v2482
        %v4662 = vunpack.c.h.b16 %v2482
        %v4663 = vunpack.c.l.b16 %v2483
        %v4664 = vunpack.c.h.b16 %v2483
        %v4665 = vunpack.c.l.b16 %v2484
        %v4666 = vunpack.c.h.b16 %v2484
        %v4667 = vunpack.c.l.b16 %v2485
        %v4668 = vunpack.c.h.b16 %v2485
        %v4669 = vunpack.c.l.b16 %v2486
        %v4670 = vunpack.c.h.b16 %v2486
        %v4671 = vunpack.c.l.b16 %v2487
        %v4672 = vunpack.c.h.b16 %v2487
        %v4673 = vunpack.c.l.b16 %v2488
        %v4674 = vunpack.c.h.b16 %v2488
        %v4675 = vunpack.c.l.b16 %v2489
        %v4676 = vunpack.c.h.b16 %v2489
        %v4677 = vunpack.c.l.b16 %v2490
        %v4678 = vunpack.c.h.b16 %v2490
        %v4679 = vunpack.c.l.b16 %v2491
        %v4680 = vunpack.c.h.b16 %v2491
        %v4681 = vunpack.c.l.b16 %v2492
        %v4682 = vunpack.c.h.b16 %v2492
        %v4683 = vunpack.c.l.b16 %v2493
        %v4684 = vunpack.c.h.b16 %v2493
        %v4685 = vunpack.c.l.b16 %v2494
        %v4686 = vunpack.c.h.b16 %v2494
        %v4687 = vunpack.c.l.b16 %v2495
        %v4688 = vunpack.c.h.b16 %v2495
        %v4689 = vunpack.c.l.b16 %v2496
        %v4690 = vunpack.c.h.b16 %v2496
        %v4691 = vunpack.c.l.b16 %v2497
        %v4692 = vunpack.c.h.b16 %v2497
        %v4693 = vunpack.c.l.b16 %v2498
        %v4694 = vunpack.c.h.b16 %v2498
        %v4695 = vunpack.c.l.b16 %v2499
        %v4696 = vunpack.c.h.b16 %v2499
        %v4697 = vunpack.c.l.b16 %v2500
        %v4698 = vunpack.c.h.b16 %v2500
        %v4699 = vunpack.c.l.b16 %v2501
        %v4700 = vunpack.c.h.b16 %v2501
        %v4701 = vunpack.c.l.b16 %v2502
        %v4702 = vunpack.c.h.b16 %v2502
        %v4703 = vunpack.c.l.b16 %v2503
        %v4704 = vunpack.c.h.b16 %v2503
        %v4705 = vunpack.c.l.b16 %v2504
        %v4706 = vunpack.c.h.b16 %v2504
        %v4707 = vunpack.c.l.b16 %v2505
        %v4708 = vunpack.c.h.b16 %v2505
        %v4709 = vunpack.c.l.b16 %v2506
        %v4710 = vunpack.c.h.b16 %v2506
        %v4711 = vunpack.c.l.b16 %v2507
        %v4712 = vunpack.c.h.b16 %v2507
        %v4713 = vunpack.c.l.b16 %v2508
        %v4714 = vunpack.c.h.b16 %v2508
        %v4715 = vunpack.c.l.b16 %v2509
        %v4716 = vunpack.c.h.b16 %v2509
        %v4717 = vunpack.c.l.b16 %v2510
        %v4718 = vunpack.c.h.b16 %v2510
        %v4719 = vunpack.c.l.b16 %v2511
        %v4720 = vunpack.c.h.b16 %v2511
        %v4721 = vunpack.c.l.b16 %v2512
        %v4722 = vunpack.c.h.b16 %v2512
        %v4723 = vunpack.c.l.b16 %v2513
        %v4724 = vunpack.c.h.b16 %v2513
        %v4725 = vunpack.c.l.b16 %v2514
        %v4726 = vunpack.c.h.b16 %v2514
        %v4727 = vunpack.c.l.b16 %v2515
        %v4728 = vunpack.c.h.b16 %v2515
        %v4729 = vunpack.c.l.b16 %v2516
        %v4730 = vunpack.c.h.b16 %v2516
        %v4731 = vunpack.c.l.b16 %v2517
        %v4732 = vunpack.c.h.b16 %v2517
        %v4733 = vunpack.c.l.b16 %v2518
        %v4734 = vunpack.c.h.b16 %v2518
        %v4735 = vunpack.c.l.b16 %v2519
        %v4736 = vunpack.c.h.b16 %v2519
        %v4737 = vunpack.c.l.b16 %v2520
        %v4738 = vunpack.c.h.b16 %v2520
        %v4739 = vunpack.c.l.b16 %v2521
        %v4740 = vunpack.c.h.b16 %v2521
        %v4741 = vunpack.c.l.b16 %v2522
        %v4742 = vunpack.c.h.b16 %v2522
        %v4743 = vunpack.c.l.b16 %v2523
        %v4744 = vunpack.c.h.b16 %v2523
        %v4745 = vunpack.c.l.b16 %v2524
        %v4746 = vunpack.c.h.b16 %v2524
        %v4747 = vunpack.c.l.b16 %v2525
        %v4748 = vunpack.c.h.b16 %v2525
        %v4749 = vunpack.c.l.b16 %v2526
        %v4750 = vunpack.c.h.b16 %v2526
        %v4751 = vunpack.c.l.b16 %v2527
        %v4752 = vunpack.c.h.b16 %v2527
        %v4753 = vunpack.c.l.b16 %v2528
        %v4754 = vunpack.c.h.b16 %v2528
        %v4755 = vunpack.c.l.b16 %v2529
        %v4756 = vunpack.c.h.b16 %v2529
        %v4757 = vunpack.c.l.b16 %v2530
        %v4758 = vunpack.c.h.b16 %v2530
        %v4759 = vunpack.c.l.b16 %v2531
        %v4760 = vunpack.c.h.b16 %v2531
        %v4761 = vunpack.c.l.b16 %v2532
        %v4762 = vunpack.c.h.b16 %v2532
        %v4763 = vunpack.c.l.b16 %v2533
        %v4764 = vunpack.c.h.b16 %v2533
        %v4765 = vunpack.c.l.b16 %v2534
        %v4766 = vunpack.c.h.b16 %v2534
        %v4767 = vunpack.c.l.b16 %v2535
        %v4768 = vunpack.c.h.b16 %v2535
        %v4769 = vunpack.c.l.b16 %v2536
        %v4770 = vunpack.c.h.b16 %v2536
        %v4771 = vunpack.c.l.b16 %v2537
        %v4772 = vunpack.c.h.b16 %v2537
        %v4773 = vunpack.c.l.b16 %v2538
        %v4774 = vunpack.c.h.b16 %v2538
        %v4775 = vunpack.c.l.b16 %v2539
        %v4776 = vunpack.c.h.b16 %v2539
        %v4777 = vunpack.c.l.b16 %v2540
        %v4778 = vunpack.c.h.b16 %v2540
        %v4779 = vunpack.c.l.b16 %v2541
        %v4780 = vunpack.c.h.b16 %v2541
        %v4781 = vunpack.c.l.b16 %v2542
        %v4782 = vunpack.c.h.b16 %v2542
        %v4783 = vunpack.c.l.b16 %v2543
        %v4784 = vunpack.c.h.b16 %v2543
        %v4785 = vunpack.c.l.b16 %v2544
        %v4786 = vunpack.c.h.b16 %v2544
        %v4787 = vunpack.c.l.b16 %v2545
        %v4788 = vunpack.c.h.b16 %v2545
        %v4789 = vunpack.c.l.b16 %v2546
        %v4790 = vunpack.c.h.b16 %v2546
        %v4791 = vunpack.c.l.b16 %v2547
        %v4792 = vunpack.c.h.b16 %v2547
        %v4793 = vunpack.c.l.b16 %v2548
        %v4794 = vunpack.c.h.b16 %v2548
        %v4795 = vunpack.c.l.b16 %v2549
        %v4796 = vunpack.c.h.b16 %v2549
        %v4797 = vunpack.c.l.b16 %v2550
        %v4798 = vunpack.c.h.b16 %v2550
        %v4799 = vunpack.c.l.b16 %v2551
        %v4800 = vunpack.c.h.b16 %v2551
        %v4801 = vunpack.c.l.b16 %v2552
        %v4802 = vunpack.c.h.b16 %v2552
        %v4803 = vunpack.c.l.b16 %v2553
        %v4804 = vunpack.c.h.b16 %v2553
        %v4805 = vunpack.c.l.b16 %v2554
        %v4806 = vunpack.c.h.b16 %v2554
        %v4807 = vunpack.c.l.b16 %v2555
        %v4808 = vunpack.c.h.b16 %v2555
        %v4809 = vunpack.c.l.b16 %v2556
        %v4810 = vunpack.c.h.b16 %v2556
        %v4811 = vunpack.c.l.b16 %v2557
        %v4812 = vunpack.c.h.b16 %v2557
        %v4813 = vunpack.c.l.b16 %v2558
        %v4814 = vunpack.c.h.b16 %v2558
        %v4815 = vunpack.c.l.b16 %v2559
        %v4816 = vunpack.c.h.b16 %v2559
        %v4817 = vunpack.c.l.b16 %v2560
        %v4818 = vunpack.c.h.b16 %v2560
        %v4819 = vunpack.c.l.b16 %v2561
        %v4820 = vunpack.c.h.b16 %v2561
        %v4821 = vunpack.c.l.b16 %v2562
        %v4822 = vunpack.c.h.b16 %v2562
        %v4823 = vunpack.c.l.b16 %v2563
        %v4824 = vunpack.c.h.b16 %v2563
        %v4825 = vunpack.c.l.b16 %v2564
        %v4826 = vunpack.c.h.b16 %v2564
        %v4827 = vunpack.c.l.b16 %v2565
        %v4828 = vunpack.c.h.b16 %v2565
        %v4829 = vunpack.c.l.b16 %v2566
        %v4830 = vunpack.c.h.b16 %v2566
        %v4831 = vunpack.c.l.b16 %v2567
        %v4832 = vunpack.c.h.b16 %v2567
        %v4833 = vunpack.c.l.b16 %v2568
        %v4834 = vunpack.c.h.b16 %v2568
        %v4835 = vunpack.c.l.b16 %v2569
        %v4836 = vunpack.c.h.b16 %v2569
        %v4837 = vunpack.c.l.b16 %v2570
        %v4838 = vunpack.c.h.b16 %v2570
        %v4839 = vunpack.c.l.b16 %v2571
        %v4840 = vunpack.c.h.b16 %v2571
        %v4841 = vunpack.c.l.b16 %v2572
        %v4842 = vunpack.c.h.b16 %v2572
        %v4843 = vunpack.c.l.b16 %v2573
        %v4844 = vunpack.c.h.b16 %v2573
        %v4845 = vunpack.c.l.b16 %v2574
        %v4846 = vunpack.c.h.b16 %v2574
        %v4847 = vunpack.c.l.b16 %v2575
        %v4848 = vunpack.c.h.b16 %v2575
        %v4849 = vunpack.c.l.b16 %v2576
        %v4850 = vunpack.c.h.b16 %v2576
        %v4851 = vunpack.c.l.b16 %v2577
        %v4852 = vunpack.c.h.b16 %v2577
        %v4853 = vunpack.c.l.b16 %v2578
        %v4854 = vunpack.c.h.b16 %v2578
        %v4855 = vunpack.c.l.b16 %v2579
        %v4856 = vunpack.c.h.b16 %v2579
        %v4857 = vunpack.c.l.b16 %v2580
        %v4858 = vunpack.c.h.b16 %v2580
        %v4859 = vunpack.c.l.b16 %v2581
        %v4860 = vunpack.c.h.b16 %v2581
        %v4861 = vunpack.c.l.b16 %v2582
        %v4862 = vunpack.c.h.b16 %v2582
        %v4863 = vunpack.c.l.b16 %v2583
        %v4864 = vunpack.c.h.b16 %v2583
        %v4865 = vunpack.c.l.b16 %v2584
        %v4866 = vunpack.c.h.b16 %v2584
        %v4867 = vunpack.c.l.b16 %v2585
        %v4868 = vunpack.c.h.b16 %v2585
        %v4869 = vunpack.c.l.b16 %v2586
        %v4870 = vunpack.c.h.b16 %v2586
        %v4871 = vunpack.c.l.b16 %v2587
        %v4872 = vunpack.c.h.b16 %v2587
        %v4873 = vunpack.c.l.b16 %v2588
        %v4874 = vunpack.c.h.b16 %v2588
        %v4875 = vunpack.c.l.b16 %v2589
        %v4876 = vunpack.c.h.b16 %v2589
        %v4877 = vunpack.c.l.b16 %v2590
        %v4878 = vunpack.c.h.b16 %v2590
        %v4879 = vunpack.c.l.b16 %v2591
        %v4880 = vunpack.c.h.b16 %v2591
        %v4881 = vunpack.c.l.b16 %v2592
        %v4882 = vunpack.c.h.b16 %v2592
        %v4883 = vunpack.c.l.b16 %v2593
        %v4884 = vunpack.c.h.b16 %v2593
        %v4885 = vunpack.c.l.b16 %v2594
        %v4886 = vunpack.c.h.b16 %v2594
        %v4887 = vunpack.c.l.b16 %v2595
        %v4888 = vunpack.c.h.b16 %v2595
        %v4889 = vunpack.c.l.b16 %v2596
        %v4890 = vunpack.c.h.b16 %v2596
        %v4891 = vunpack.c.l.b16 %v2597
        %v4892 = vunpack.c.h.b16 %v2597
        %v4893 = vunpack.c.l.b16 %v2598
        %v4894 = vunpack.c.h.b16 %v2598
        %v4895 = vunpack.c.l.b16 %v2599
        %v4896 = vunpack.c.h.b16 %v2599
        %v4897 = vunpack.c.l.b16 %v2600
        %v4898 = vunpack.c.h.b16 %v2600
        %v4899 = vunpack.c.l.b16 %v2601
        %v4900 = vunpack.c.h.b16 %v2601
        %v4901 = vunpack.c.l.b16 %v2602
        %v4902 = vunpack.c.h.b16 %v2602
        %v4903 = vunpack.c.l.b16 %v2603
        %v4904 = vunpack.c.h.b16 %v2603
        %v4905 = vunpack.c.l.b16 %v2604
        %v4906 = vunpack.c.h.b16 %v2604
        %v4907 = vunpack.c.l.b16 %v2605
        %v4908 = vunpack.c.h.b16 %v2605
        %v4909 = vunpack.c.l.b16 %v2606
        %v4910 = vunpack.c.h.b16 %v2606
        %v4911 = vunpack.c.l.b16 %v2607
        %v4912 = vunpack.c.h.b16 %v2607
        %v4913 = vunpack.c.l.b16 %v2608
        %v4914 = vunpack.c.h.b16 %v2608
        %v4915 = vunpack.c.l.b16 %v2609
        %v4916 = vunpack.c.h.b16 %v2609
        %v4917 = vunpack.c.l.b16 %v2610
        %v4918 = vunpack.c.h.b16 %v2610
        %v4919 = vunpack.c.l.b16 %v2611
        %v4920 = vunpack.c.h.b16 %v2611
        %v4921 = vunpack.c.l.b16 %v2612
        %v4922 = vunpack.c.h.b16 %v2612
        %v4923 = vunpack.c.l.b16 %v2613
        %v4924 = vunpack.c.h.b16 %v2613
        %v4925 = vunpack.c.l.b16 %v2614
        %v4926 = vunpack.c.h.b16 %v2614
        %v4927 = vunpack.c.l.b16 %v2615
        %v4928 = vunpack.c.h.b16 %v2615
        %v4929 = vunpack.c.l.b16 %v2616
        %v4930 = vunpack.c.h.b16 %v2616
        %v4931 = vunpack.c.l.b16 %v2617
        %v4932 = vunpack.c.h.b16 %v2617
        %v4933 = vunpack.c.l.b16 %v2618
        %v4934 = vunpack.c.h.b16 %v2618
        %v4935 = vunpack.c.l.b16 %v2619
        %v4936 = vunpack.c.h.b16 %v2619
        %v4937 = vunpack.c.l.b16 %v2620
        %v4938 = vunpack.c.h.b16 %v2620
        %v4939 = vunpack.c.l.b16 %v2621
        %v4940 = vunpack.c.h.b16 %v2621
        %v4941 = vunpack.c.l.b16 %v2622
        %v4942 = vunpack.c.h.b16 %v2622
        %v4943 = vunpack.c.l.b16 %v2623
        %v4944 = vunpack.c.h.b16 %v2623
        %v4945 = vunpack.c.l.b16 %v2624
        %v4946 = vunpack.c.h.b16 %v2624
        %v4947 = vunpack.c.l.b16 %v2625
        %v4948 = vunpack.c.h.b16 %v2625
        %v4949 = vunpack.c.l.b16 %v2626
        %v4950 = vunpack.c.h.b16 %v2626
        %v4951 = vunpack.c.l.b16 %v2627
        %v4952 = vunpack.c.h.b16 %v2627
        %v4953 = vunpack.c.l.b16 %v2628
        %v4954 = vunpack.c.h.b16 %v2628
        %v4955 = vunpack.c.l.b16 %v2629
        %v4956 = vunpack.c.h.b16 %v2629
        %v4957 = vunpack.c.l.b16 %v2630
        %v4958 = vunpack.c.h.b16 %v2630
        %v4959 = vunpack.c.l.b16 %v2631
        %v4960 = vunpack.c.h.b16 %v2631
        %v4961 = vunpack.c.l.b16 %v2632
        %v4962 = vunpack.c.h.b16 %v2632
        %v4963 = vunpack.c.l.b16 %v2633
        %v4964 = vunpack.c.h.b16 %v2633
        %v4965 = vunpack.c.l.b16 %v2634
        %v4966 = vunpack.c.h.b16 %v2634
        %v4967 = vunpack.c.l.b16 %v2635
        %v4968 = vunpack.c.h.b16 %v2635
        %v4969 = vunpack.c.l.b16 %v2636
        %v4970 = vunpack.c.h.b16 %v2636
        %v4971 = vunpack.c.l.b16 %v2637
        %v4972 = vunpack.c.h.b16 %v2637
        %v4973 = vunpack.c.l.b16 %v2638
        %v4974 = vunpack.c.h.b16 %v2638
        %v4975 = vunpack.c.l.b16 %v2639
        %v4976 = vunpack.c.h.b16 %v2639
        %v4977 = vunpack.c.l.b16 %v2640
        %v4978 = vunpack.c.h.b16 %v2640
        %v4979 = vunpack.c.l.b16 %v2641
        %v4980 = vunpack.c.h.b16 %v2641
        %v4981 = vunpack.c.l.b16 %v2642
        %v4982 = vunpack.c.h.b16 %v2642
        %v4983 = vunpack.c.l.b16 %v2643
        %v4984 = vunpack.c.h.b16 %v2643
        %v4985 = vunpack.c.l.b16 %v2644
        %v4986 = vunpack.c.h.b16 %v2644
        %v4987 = vunpack.c.l.b16 %v2645
        %v4988 = vunpack.c.h.b16 %v2645
        %v4989 = vunpack.c.l.b16 %v2646
        %v4990 = vunpack.c.h.b16 %v2646
        %v4991 = vunpack.c.l.b16 %v2647
        %v4992 = vunpack.c.h.b16 %v2647
        %v4993 = vunpack.c.l.b16 %v2648
        %v4994 = vunpack.c.h.b16 %v2648
        %v4995 = vunpack.c.l.b16 %v2649
        %v4996 = vunpack.c.h.b16 %v2649
        %v4997 = vunpack.c.l.b16 %v2650
        %v4998 = vunpack.c.h.b16 %v2650
        %v4999 = vunpack.c.l.b16 %v2651
        %v5000 = vunpack.c.h.b16 %v2651
        %v5001 = vunpack.c.l.b16 %v2652
        %v5002 = vunpack.c.h.b16 %v2652
        %v5003 = vunpack.c.l.b16 %v2653
        %v5004 = vunpack.c.h.b16 %v2653
        %v5005 = vunpack.c.l.b16 %v2654
        %v5006 = vunpack.c.h.b16 %v2654
        %v5007 = vunpack.c.l.b16 %v2655
        %v5008 = vunpack.c.h.b16 %v2655
        %v5009 = vunpack.c.l.b16 %v2656
        %v5010 = vunpack.c.h.b16 %v2656
        %v5011 = vunpack.c.l.b16 %v2657
        %v5012 = vunpack.c.h.b16 %v2657
        %v5013 = vunpack.c.l.b16 %v2658
        %v5014 = vunpack.c.h.b16 %v2658
        %v5015 = vunpack.c.l.b16 %v2659
        %v5016 = vunpack.c.h.b16 %v2659
        %v5017 = vunpack.c.l.b16 %v2660
        %v5018 = vunpack.c.h.b16 %v2660
        %v5019 = vunpack.c.l.b16 %v2661
        %v5020 = vunpack.c.h.b16 %v2661
        %v5021 = vunpack.c.l.b16 %v2662
        %v5022 = vunpack.c.h.b16 %v2662
        %v5023 = vunpack.c.l.b16 %v2663
        %v5024 = vunpack.c.h.b16 %v2663
        %v5025 = vunpack.c.l.b16 %v2664
        %v5026 = vunpack.c.h.b16 %v2664
        %v5027 = vunpack.c.l.b16 %v2665
        %v5028 = vunpack.c.h.b16 %v2665
        %v5029 = vunpack.c.l.b16 %v2666
        %v5030 = vunpack.c.h.b16 %v2666
        %v5031 = vunpack.c.l.b16 %v2667
        %v5032 = vunpack.c.h.b16 %v2667
        %v5033 = vunpack.c.l.b16 %v2668
        %v5034 = vunpack.c.h.b16 %v2668
        %v5035 = vunpack.c.l.b16 %v2669
        %v5036 = vunpack.c.h.b16 %v2669
        %v5037 = vunpack.c.l.b16 %v2670
        %v5038 = vunpack.c.h.b16 %v2670
        %v5039 = vunpack.c.l.b16 %v2671
        %v5040 = vunpack.c.h.b16 %v2671
        %v5041 = vunpack.c.l.b16 %v2672
        %v5042 = vunpack.c.h.b16 %v2672
        %v5043 = vunpack.c.l.b16 %v2673
        %v5044 = vunpack.c.h.b16 %v2673
        %v5045 = vunpack.c.l.b16 %v2674
        %v5046 = vunpack.c.h.b16 %v2674
        %v5047 = vunpack.c.l.b16 %v2675
        %v5048 = vunpack.c.h.b16 %v2675
        %v5049 = vunpack.c.l.b16 %v2676
        %v5050 = vunpack.c.h.b16 %v2676
        %v5051 = vunpack.c.l.b16 %v2677
        %v5052 = vunpack.c.h.b16 %v2677
        %v5053 = vunpack.c.l.b16 %v2678
        %v5054 = vunpack.c.h.b16 %v2678
        %v5055 = vunpack.c.l.b16 %v2679
        %v5056 = vunpack.c.h.b16 %v2679
        %v5057 = vunpack.c.l.b16 %v2680
        %v5058 = vunpack.c.h.b16 %v2680
        %v5059 = vunpack.c.l.b16 %v2681
        %v5060 = vunpack.c.h.b16 %v2681
        %v5061 = vunpack.c.l.b16 %v2682
        %v5062 = vunpack.c.h.b16 %v2682
        %v5063 = vunpack.c.l.b16 %v2683
        %v5064 = vunpack.c.h.b16 %v2683
        %v5065 = vunpack.c.l.b16 %v2684
        %v5066 = vunpack.c.h.b16 %v2684
        %v5067 = vunpack.c.l.b16 %v2685
        %v5068 = vunpack.c.h.b16 %v2685
        %v5069 = vunpack.c.l.b16 %v2686
        %v5070 = vunpack.c.h.b16 %v2686
        %v5071 = vunpack.c.l.b16 %v2687
        %v5072 = vunpack.c.h.b16 %v2687
        %v5073 = vunpack.c.l.b16 %v2688
        %v5074 = vunpack.c.h.b16 %v2688
        %v5075 = vunpack.c.l.b16 %v2689
        %v5076 = vunpack.c.h.b16 %v2689
        %v5077 = vunpack.c.l.b16 %v2690
        %v5078 = vunpack.c.h.b16 %v2690
        %v5079 = vunpack.c.l.b16 %v2691
        %v5080 = vunpack.c.h.b16 %v2691
        %v5081 = vunpack.c.l.b16 %v2692
        %v5082 = vunpack.c.h.b16 %v2692
        %v5083 = vunpack.c.l.b16 %v2693
        %v5084 = vunpack.c.h.b16 %v2693
        %v5085 = vunpack.c.l.b16 %v2694
        %v5086 = vunpack.c.h.b16 %v2694
        %v5087 = vunpack.c.l.b16 %v2695
        %v5088 = vunpack.c.h.b16 %v2695
        %v5089 = vunpack.c.l.b16 %v2696
        %v5090 = vunpack.c.h.b16 %v2696
        %v5091 = vunpack.c.l.b16 %v2697
        %v5092 = vunpack.c.h.b16 %v2697
        %v5093 = vunpack.c.l.b16 %v2698
        %v5094 = vunpack.c.h.b16 %v2698
        %v5095 = vunpack.c.l.b16 %v2699
        %v5096 = vunpack.c.h.b16 %v2699
        %v5097 = vunpack.c.l.b16 %v2700
        %v5098 = vunpack.c.h.b16 %v2700
        %v5099 = vunpack.c.l.b16 %v2701
        %v5100 = vunpack.c.h.b16 %v2701
        %v5101 = vunpack.c.l.b16 %v2702
        %v5102 = vunpack.c.h.b16 %v2702
        %v5103 = vunpack.c.l.b16 %v2703
        %v5104 = vunpack.c.h.b16 %v2703
        %v5105 = vunpack.c.l.b16 %v2704
        %v5106 = vunpack.c.h.b16 %v2704
        %v5107 = vunpack.c.l.b16 %v2705
        %v5108 = vunpack.c.h.b16 %v2705
        %v5109 = vunpack.c.l.b16 %v2706
        %v5110 = vunpack.c.h.b16 %v2706
        %v5111 = vunpack.c.l.b16 %v2707
        %v5112 = vunpack.c.h.b16 %v2707
        %v5113 = vunpack.c.l.b16 %v2708
        %v5114 = vunpack.c.h.b16 %v2708
        %v5115 = vunpack.c.l.b16 %v2709
        %v5116 = vunpack.c.h.b16 %v2709
        %v5117 = vunpack.c.l.b16 %v2710
        %v5118 = vunpack.c.h.b16 %v2710
        %v5119 = vunpack.c.l.b16 %v2711
        %v5120 = vunpack.c.h.b16 %v2711
        %v5121 = vunpack.c.l.b16 %v2712
        %v5122 = vunpack.c.h.b16 %v2712
        %v5123 = vunpack.c.l.b16 %v2713
        %v5124 = vunpack.c.h.b16 %v2713
        %v5125 = vunpack.c.l.b16 %v2714
        %v5126 = vunpack.c.h.b16 %v2714
        %v5127 = vunpack.c.l.b16 %v2715
        %v5128 = vunpack.c.h.b16 %v2715
        %v5129 = vunpack.c.l.b16 %v2716
        %v5130 = vunpack.c.h.b16 %v2716
        %v5131 = vunpack.c.l.b16 %v2717
        %v5132 = vunpack.c.h.b16 %v2717
        %v5133 = vunpack.c.l.b16 %v2718
        %v5134 = vunpack.c.h.b16 %v2718
        %v5135 = vunpack.c.l.b16 %v2719
        %v5136 = vunpack.c.h.b16 %v2719
        %v5137 = vunpack.c.l.b16 %v2720
        %v5138 = vunpack.c.h.b16 %v2720
        %v5139 = vunpack.c.l.b16 %v2721
        %v5140 = vunpack.c.h.b16 %v2721
        %v5141 = vunpack.c.l.b16 %v2722
        %v5142 = vunpack.c.h.b16 %v2722
        %v5143 = vunpack.c.l.b16 %v2723
        %v5144 = vunpack.c.h.b16 %v2723
        %v5145 = vunpack.c.l.b16 %v2724
        %v5146 = vunpack.c.h.b16 %v2724
        %v5147 = vunpack.c.l.b16 %v2725
        %v5148 = vunpack.c.h.b16 %v2725
        %v5149 = vunpack.c.l.b16 %v2726
        %v5150 = vunpack.c.h.b16 %v2726
        %v5151 = vunpack.c.l.b16 %v2727
        %v5152 = vunpack.c.h.b16 %v2727
        %v5153 = vunpack.c.l.b16 %v2728
        %v5154 = vunpack.c.h.b16 %v2728
        %v5155 = vunpack.c.l.b16 %v2729
        %v5156 = vunpack.c.h.b16 %v2729
        %v5157 = vunpack.c.l.b16 %v2730
        %v5158 = vunpack.c.h.b16 %v2730
        %v5159 = vunpack.c.l.b16 %v2731
        %v5160 = vunpack.c.h.b16 %v2731
        %v5161 = vunpack.c.l.b16 %v2732
        %v5162 = vunpack.c.h.b16 %v2732
        %v5163 = vunpack.c.l.b16 %v2733
        %v5164 = vunpack.c.h.b16 %v2733
        %v5165 = vunpack.c.l.b16 %v2734
        %v5166 = vunpack.c.h.b16 %v2734
        %v5167 = vunpack.c.l.b16 %v2735
        %v5168 = vunpack.c.h.b16 %v2735
        %v5169 = vunpack.c.l.b16 %v2736
        %v5170 = vunpack.c.h.b16 %v2736
        %v5171 = vunpack.c.l.b16 %v2737
        %v5172 = vunpack.c.h.b16 %v2737
        %v5173 = vunpack.c.l.b16 %v2738
        %v5174 = vunpack.c.h.b16 %v2738
        %v5175 = vunpack.c.l.b16 %v2739
        %v5176 = vunpack.c.h.b16 %v2739
        %v5177 = vunpack.c.l.b16 %v2740
        %v5178 = vunpack.c.h.b16 %v2740
        %v5179 = vunpack.c.l.b16 %v2741
        %v5180 = vunpack.c.h.b16 %v2741
        %v5181 = vunpack.c.l.b16 %v2742
        %v5182 = vunpack.c.h.b16 %v2742
        %v5183 = vunpack.c.l.b16 %v2743
        %v5184 = vunpack.c.h.b16 %v2743
        %v5185 = vunpack.c.l.b16 %v2744
        %v5186 = vunpack.c.h.b16 %v2744
        %v5187 = vunpack.c.l.b16 %v2745
        %v5188 = vunpack.c.h.b16 %v2745
        %v5189 = vunpack.c.l.b16 %v2746
        %v5190 = vunpack.c.h.b16 %v2746
        %v5191 = vunpack.c.l.b16 %v2747
        %v5192 = vunpack.c.h.b16 %v2747
        %v5193 = vunpack.c.l.b16 %v2748
        %v5194 = vunpack.c.h.b16 %v2748
        %v5195 = vunpack.c.l.b16 %v2749
        %v5196 = vunpack.c.h.b16 %v2749
        %v5197 = vunpack.c.l.b16 %v2750
        %v5198 = vunpack.c.h.b16 %v2750
        %v5199 = vunpack.c.l.b16 %v2751
        %v5200 = vunpack.c.h.b16 %v2751
        %v5201 = vunpack.c.l.b16 %v2752
        %v5202 = vunpack.c.h.b16 %v2752
        %v5203 = vunpack.c.l.b16 %v2753
        %v5204 = vunpack.c.h.b16 %v2753
        %v5205 = vunpack.c.l.b16 %v2754
        %v5206 = vunpack.c.h.b16 %v2754
        %v5207 = vunpack.c.l.b16 %v2755
        %v5208 = vunpack.c.h.b16 %v2755
        %v5209 = vunpack.c.l.b16 %v2756
        %v5210 = vunpack.c.h.b16 %v2756
        %v5211 = vunpack.c.l.b16 %v2757
        %v5212 = vunpack.c.h.b16 %v2757
        %v5213 = vunpack.c.l.b16 %v2758
        %v5214 = vunpack.c.h.b16 %v2758
        %v5215 = vunpack.c.l.b16 %v2759
        %v5216 = vunpack.c.h.b16 %v2759
        %v5217 = vunpack.c.l.b16 %v2760
        %v5218 = vunpack.c.h.b16 %v2760
        %v5219 = vunpack.c.l.b16 %v2761
        %v5220 = vunpack.c.h.b16 %v2761
        %v5221 = vunpack.c.l.b16 %v2762
        %v5222 = vunpack.c.h.b16 %v2762
        %v5223 = vunpack.c.l.b16 %v2763
        %v5224 = vunpack.c.h.b16 %v2763
        %v5225 = vunpack.c.l.b16 %v2764
        %v5226 = vunpack.c.h.b16 %v2764
        %v5227 = vunpack.c.l.b16 %v2765
        %v5228 = vunpack.c.h.b16 %v2765
        %v5229 = vunpack.c.l.b16 %v2766
        %v5230 = vunpack.c.h.b16 %v2766
        %v5231 = vunpack.c.l.b16 %v2767
        %v5232 = vunpack.c.h.b16 %v2767
        %v5233 = vunpack.c.l.b16 %v2768
        %v5234 = vunpack.c.h.b16 %v2768
        %v5235 = vunpack.c.l.b16 %v2769
        %v5236 = vunpack.c.h.b16 %v2769
        %v5237 = vunpack.c.l.b16 %v2770
        %v5238 = vunpack.c.h.b16 %v2770
        %v5239 = vunpack.c.l.b16 %v2771
        %v5240 = vunpack.c.h.b16 %v2771
        %v5241 = vunpack.c.l.b16 %v2772
        %v5242 = vunpack.c.h.b16 %v2772
        %v5243 = vunpack.c.l.b16 %v2773
        %v5244 = vunpack.c.h.b16 %v2773
        %v5245 = vunpack.c.l.b16 %v2774
        %v5246 = vunpack.c.h.b16 %v2774
        %v5247 = vunpack.c.l.b16 %v2775
        %v5248 = vunpack.c.h.b16 %v2775
        %v5249 = vunpack.c.l.b16 %v2776
        %v5250 = vunpack.c.h.b16 %v2776
        %v5251 = vunpack.c.l.b16 %v2777
        %v5252 = vunpack.c.h.b16 %v2777
        %v5253 = vunpack.c.l.b16 %v2778
        %v5254 = vunpack.c.h.b16 %v2778
        %v5255 = vunpack.c.l.b16 %v2779
        %v5256 = vunpack.c.h.b16 %v2779
        %v5257 = vunpack.c.l.b16 %v2780
        %v5258 = vunpack.c.h.b16 %v2780
        %v5259 = vunpack.c.l.b16 %v2781
        %v5260 = vunpack.c.h.b16 %v2781
        %v5261 = vunpack.c.l.b16 %v2782
        %v5262 = vunpack.c.h.b16 %v2782
        %v5263 = vunpack.c.l.b16 %v2783
        %v5264 = vunpack.c.h.b16 %v2783
        %v5265 = vunpack.c.l.b16 %v2784
        %v5266 = vunpack.c.h.b16 %v2784
        %v5267 = vunpack.c.l.b16 %v2785
        %v5268 = vunpack.c.h.b16 %v2785
        %v5269 = vunpack.c.l.b16 %v2786
        %v5270 = vunpack.c.h.b16 %v2786
        %v5271 = vunpack.c.l.b16 %v2787
        %v5272 = vunpack.c.h.b16 %v2787
        %v5273 = vunpack.c.l.b16 %v2788
        %v5274 = vunpack.c.h.b16 %v2788
        %v5275 = vunpack.c.l.b16 %v2789
        %v5276 = vunpack.c.h.b16 %v2789
        %v5277 = vunpack.c.l.b16 %v2790
        %v5278 = vunpack.c.h.b16 %v2790
        %v5279 = vunpack.c.l.b16 %v2791
        %v5280 = vunpack.c.h.b16 %v2791
        %v5281 = vunpack.c.l.b16 %v2792
        %v5282 = vunpack.c.h.b16 %v2792
        %v5283 = vunpack.c.l.b16 %v2793
        %v5284 = vunpack.c.h.b16 %v2793
        %v5285 = vunpack.c.l.b16 %v2794
        %v5286 = vunpack.c.h.b16 %v2794
        %v5287 = vunpack.c.l.b16 %v2795
        %v5288 = vunpack.c.h.b16 %v2795
        %v5289 = vunpack.c.l.b16 %v2796
        %v5290 = vunpack.c.h.b16 %v2796
        %v5291 = vunpack.c.l.b16 %v2797
        %v5292 = vunpack.c.h.b16 %v2797
        %v5293 = vunpack.c.l.b16 %v2798
        %v5294 = vunpack.c.h.b16 %v2798
        %v5295 = vunpack.c.l.b16 %v2799
        %v5296 = vunpack.c.h.b16 %v2799
        %v5297 = vunpack.c.l.b16 %v2800
        %v5298 = vunpack.c.h.b16 %v2800
        %v5299 = vunpack.c.l.b16 %v2801
        %v5300 = vunpack.c.h.b16 %v2801
        %v5301 = vunpack.c.l.b16 %v2802
        %v5302 = vunpack.c.h.b16 %v2802
        %v5303 = vunpack.c.l.b16 %v2803
        %v5304 = vunpack.c.h.b16 %v2803
        %v5305 = vunpack.c.l.b16 %v2804
        %v5306 = vunpack.c.h.b16 %v2804
        %v5307 = vunpack.c.l.b16 %v2805
        %v5308 = vunpack.c.h.b16 %v2805
        %v5309 = vunpack.c.l.b16 %v2806
        %v5310 = vunpack.c.h.b16 %v2806
        %v5311 = vunpack.c.l.b16 %v2807
        %v5312 = vunpack.c.h.b16 %v2807
        %v5313 = vunpack.c.l.b16 %v2808
        %v5314 = vunpack.c.h.b16 %v2808
        %v5315 = vunpack.c.l.b16 %v2809
        %v5316 = vunpack.c.h.b16 %v2809
        %v5317 = vunpack.c.l.b16 %v2810
        %v5318 = vunpack.c.h.b16 %v2810
        %v5319 = vunpack.c.l.b16 %v2811
        %v5320 = vunpack.c.h.b16 %v2811
        %v5321 = vunpack.c.l.b16 %v2812
        %v5322 = vunpack.c.h.b16 %v2812
        %v5323 = vunpack.c.l.b16 %v2813
        %v5324 = vunpack.c.h.b16 %v2813
        %v5325 = vunpack.c.l.b16 %v2814
        %v5326 = vunpack.c.h.b16 %v2814
        %v5327 = vunpack.c.l.b16 %v2815
        %v5328 = vunpack.c.h.b16 %v2815
        %v5329 = vunpack.c.l.b16 %v2816
        %v5330 = vunpack.c.h.b16 %v2816
        %v5331 = vunpack.c.l.b16 %v2817
        %v5332 = vunpack.c.h.b16 %v2817
        %v5333 = vunpack.c.l.b16 %v2818
        %v5334 = vunpack.c.h.b16 %v2818
        %v5335 = vunpack.c.l.b16 %v2819
        %v5336 = vunpack.c.h.b16 %v2819
        %v5337 = vunpack.c.l.b16 %v2820
        %v5338 = vunpack.c.h.b16 %v2820
        %v5339 = vunpack.c.l.b16 %v2821
        %v5340 = vunpack.c.h.b16 %v2821
        %v5341 = vunpack.c.l.b16 %v2822
        %v5342 = vunpack.c.h.b16 %v2822
        %v5343 = vunpack.c.l.b16 %v2823
        %v5344 = vunpack.c.h.b16 %v2823
        %v5345 = vunpack.c.l.b16 %v2824
        %v5346 = vunpack.c.h.b16 %v2824
        %v5347 = vunpack.c.l.b16 %v2825
        %v5348 = vunpack.c.h.b16 %v2825
        %v5349 = vunpack.c.l.b16 %v2826
        %v5350 = vunpack.c.h.b16 %v2826
        %v5351 = vunpack.c.l.b16 %v2827
        %v5352 = vunpack.c.h.b16 %v2827
        %v5353 = vunpack.c.l.b16 %v2828
        %v5354 = vunpack.c.h.b16 %v2828
        %v5355 = vunpack.c.l.b16 %v2829
        %v5356 = vunpack.c.h.b16 %v2829
        %v5357 = vunpack.c.l.b16 %v2830
        %v5358 = vunpack.c.h.b16 %v2830
        %v5359 = vunpack.c.l.b16 %v2831
        %v5360 = vunpack.c.h.b16 %v2831
        %v5361 = vunpack.c.l.b16 %v2832
        %v5362 = vunpack.c.h.b16 %v2832
        %v5363 = vunpack.c.l.b16 %v2833
        %v5364 = vunpack.c.h.b16 %v2833
        %v5365 = vunpack.c.l.b16 %v2834
        %v5366 = vunpack.c.h.b16 %v2834
        %v5367 = vunpack.c.l.b16 %v2835
        %v5368 = vunpack.c.h.b16 %v2835
        %v5369 = vunpack.c.l.b16 %v2836
        %v5370 = vunpack.c.h.b16 %v2836
        %v5371 = vunpack.c.l.b16 %v2837
        %v5372 = vunpack.c.h.b16 %v2837
        %v5373 = vunpack.c.l.b16 %v2838
        %v5374 = vunpack.c.h.b16 %v2838
        %v5375 = vunpack.c.l.b16 %v2839
        %v5376 = vunpack.c.h.b16 %v2839
        %v5377 = vunpack.c.l.b16 %v2840
        %v5378 = vunpack.c.h.b16 %v2840
        %v5379 = vunpack.c.l.b16 %v2841
        %v5380 = vunpack.c.h.b16 %v2841
        %v5381 = vunpack.c.l.b16 %v2842
        %v5382 = vunpack.c.h.b16 %v2842
        %v5383 = vunpack.c.l.b16 %v2843
        %v5384 = vunpack.c.h.b16 %v2843
        %v5385 = vunpack.c.l.b16 %v2844
        %v5386 = vunpack.c.h.b16 %v2844
        %v5387 = vunpack.c.l.b16 %v2845
        %v5388 = vunpack.c.h.b16 %v2845
        %v5389 = vunpack.c.l.b16 %v2846
        %v5390 = vunpack.c.h.b16 %v2846
        %v5391 = vunpack.c.l.b16 %v2847
        %v5392 = vunpack.c.h.b16 %v2847
        %v5393 = vunpack.c.l.b16 %v2848
        %v5394 = vunpack.c.h.b16 %v2848
        %v5395 = vunpack.c.l.b16 %v2849
        %v5396 = vunpack.c.h.b16 %v2849
        %v5397 = vunpack.c.l.b16 %v2850
        %v5398 = vunpack.c.h.b16 %v2850
        %v5399 = vunpack.c.l.b16 %v2851
        %v5400 = vunpack.c.h.b16 %v2851
        %v5401 = vunpack.c.l.b16 %v2852
        %v5402 = vunpack.c.h.b16 %v2852
        %v5403 = vunpack.c.l.b16 %v2853
        %v5404 = vunpack.c.h.b16 %v2853
        %v5405 = vunpack.c.l.b16 %v2854
        %v5406 = vunpack.c.h.b16 %v2854
        %v5407 = vunpack.c.l.b16 %v2855
        %v5408 = vunpack.c.h.b16 %v2855
        %v5409 = vunpack.c.l.b16 %v2856
        %v5410 = vunpack.c.h.b16 %v2856
        %v5411 = vunpack.c.l.b16 %v2857
        %v5412 = vunpack.c.h.b16 %v2857
        %v5413 = vunpack.c.l.b16 %v2858
        %v5414 = vunpack.c.h.b16 %v2858
        %v5415 = vunpack.c.l.b16 %v2859
        %v5416 = vunpack.c.h.b16 %v2859
        %v5417 = vunpack.c.l.b16 %v2860
        %v5418 = vunpack.c.h.b16 %v2860
        %v5419 = vunpack.c.l.b16 %v2861
        %v5420 = vunpack.c.h.b16 %v2861
        %v5421 = vunpack.c.l.b16 %v2862
        %v5422 = vunpack.c.h.b16 %v2862
        %v5423 = vunpack.c.l.b16 %v2863
        %v5424 = vunpack.c.h.b16 %v2863
        %v5425 = vunpack.c.l.b16 %v2864
        %v5426 = vunpack.c.h.b16 %v2864
        %v5427 = vunpack.c.l.b16 %v2865
        %v5428 = vunpack.c.h.b16 %v2865
        %v5429 = vunpack.c.l.b16 %v2866
        %v5430 = vunpack.c.h.b16 %v2866
        %v5431 = vunpack.c.l.b16 %v2867
        %v5432 = vunpack.c.h.b16 %v2867
        %v5433 = vunpack.c.l.b16 %v2868
        %v5434 = vunpack.c.h.b16 %v2868
        %v5435 = vunpack.c.l.b16 %v2869
        %v5436 = vunpack.c.h.b16 %v2869
        %v5437 = vunpack.c.l.b16 %v2870
        %v5438 = vunpack.c.h.b16 %v2870
        %v5439 = vunpack.c.l.b16 %v2871
        %v5440 = vunpack.c.h.b16 %v2871
        %v5441 = vunpack.c.l.b16 %v2872
        %v5442 = vunpack.c.h.b16 %v2872
        %v5443 = vunpack.c.l.b16 %v2873
        %v5444 = vunpack.c.h.b16 %v2873
        %v5445 = vunpack.c.l.b16 %v2874
        %v5446 = vunpack.c.h.b16 %v2874
        %v5447 = vunpack.c.l.b16 %v2875
        %v5448 = vunpack.c.h.b16 %v2875
        %v5449 = vunpack.c.l.b16 %v2876
        %v5450 = vunpack.c.h.b16 %v2876
        %v5451 = vunpack.c.l.b16 %v2877
        %v5452 = vunpack.c.h.b16 %v2877
        %v5453 = vunpack.c.l.b16 %v2878
        %v5454 = vunpack.c.h.b16 %v2878
        %v5455 = vunpack.c.l.b16 %v2879
        %v5456 = vunpack.c.h.b16 %v2879
        %v5457 = vunpack.c.l.b16 %v2880
        %v5458 = vunpack.c.h.b16 %v2880
        %v5459 = vunpack.c.l.b16 %v2881
        %v5460 = vunpack.c.h.b16 %v2881
        %v5461 = vunpack.c.l.b16 %v2882
        %v5462 = vunpack.c.h.b16 %v2882
        %v5463 = vunpack.c.l.b16 %v2883
        %v5464 = vunpack.c.h.b16 %v2883
        %v5465 = vunpack.c.l.b16 %v2884
        %v5466 = vunpack.c.h.b16 %v2884
        %v5467 = vunpack.c.l.b16 %v2885
        %v5468 = vunpack.c.h.b16 %v2885
        %v5469 = vunpack.c.l.b16 %v2886
        %v5470 = vunpack.c.h.b16 %v2886
        %v5471 = vunpack.c.l.b16 %v2887
        %v5472 = vunpack.c.h.b16 %v2887
        %v5473 = vunpack.c.l.b16 %v2888
        %v5474 = vunpack.c.h.b16 %v2888
        %v5475 = vunpack.c.l.b16 %v2889
        %v5476 = vunpack.c.h.b16 %v2889
        %v5477 = vunpack.c.l.b16 %v2890
        %v5478 = vunpack.c.h.b16 %v2890
        %v5479 = vunpack.c.l.b16 %v2891
        %v5480 = vunpack.c.h.b16 %v2891
        %v5481 = vunpack.c.l.b16 %v2892
        %v5482 = vunpack.c.h.b16 %v2892
        %v5483 = vunpack.c.l.b16 %v2893
        %v5484 = vunpack.c.h.b16 %v2893
        %v5485 = vunpack.c.l.b16 %v2894
        %v5486 = vunpack.c.h.b16 %v2894
        %v5487 = vunpack.c.l.b16 %v2895
        %v5488 = vunpack.c.h.b16 %v2895
        %v5489 = vunpack.c.l.b16 %v2896
        %v5490 = vunpack.c.h.b16 %v2896
        %v5491 = vunpack.c.l.b16 %v2897
        %v5492 = vunpack.c.h.b16 %v2897
        %v5493 = vunpack.c.l.b16 %v2898
        %v5494 = vunpack.c.h.b16 %v2898
        %v5495 = vunpack.c.l.b16 %v2899
        %v5496 = vunpack.c.h.b16 %v2899
        %v5497 = vunpack.c.l.b16 %v2900
        %v5498 = vunpack.c.h.b16 %v2900
        %v5499 = vunpack.c.l.b16 %v2901
        %v5500 = vunpack.c.h.b16 %v2901
        %v5501 = vunpack.c.l.b16 %v2902
        %v5502 = vunpack.c.h.b16 %v2902
        %v5503 = vunpack.c.l.b16 %v2903
        %v5504 = vunpack.c.h.b16 %v2903
        %v5505 = vunpack.c.l.b16 %v2904
        %v5506 = vunpack.c.h.b16 %v2904
        %v5507 = vunpack.c.l.b16 %v2905
        %v5508 = vunpack.c.h.b16 %v2905
        %v5509 = vunpack.c.l.b16 %v2906
        %v5510 = vunpack.c.h.b16 %v2906
        %v5511 = vunpack.c.l.b16 %v2907
        %v5512 = vunpack.c.h.b16 %v2907
        %v5513 = vunpack.c.l.b16 %v2908
        %v5514 = vunpack.c.h.b16 %v2908
        %v5515 = vunpack.c.l.b16 %v2909
        %v5516 = vunpack.c.h.b16 %v2909
        %v5517 = vunpack.c.l.b16 %v2910
        %v5518 = vunpack.c.h.b16 %v2910
        %v5519 = vunpack.c.l.b16 %v2911
        %v5520 = vunpack.c.h.b16 %v2911
        %v5521 = vunpack.c.l.b16 %v2912
        %v5522 = vunpack.c.h.b16 %v2912
        %v5523 = vunpack.c.l.b16 %v2913
        %v5524 = vunpack.c.h.b16 %v2913
        %v5525 = vunpack.c.l.b16 %v2914
        %v5526 = vunpack.c.h.b16 %v2914
        %v5527 = vunpack.c.l.b16 %v2915
        %v5528 = vunpack.c.h.b16 %v2915
        %v5529 = vunpack.c.l.b16 %v2916
        %v5530 = vunpack.c.h.b16 %v2916
        %v5531 = vunpack.c.l.b16 %v2917
        %v5532 = vunpack.c.h.b16 %v2917
        %v5533 = vunpack.c.l.b16 %v2918
        %v5534 = vunpack.c.h.b16 %v2918
        %v5535 = vunpack.c.l.b16 %v2919
        %v5536 = vunpack.c.h.b16 %v2919
        %v5537 = vunpack.c.l.b16 %v2920
        %v5538 = vunpack.c.h.b16 %v2920
        %v5539 = vunpack.c.l.b16 %v2921
        %v5540 = vunpack.c.h.b16 %v2921
        %v5541 = vunpack.c.l.b16 %v2922
        %v5542 = vunpack.c.h.b16 %v2922
        %v5543 = vunpack.c.l.b16 %v2923
        %v5544 = vunpack.c.h.b16 %v2923
        %v5545 = vunpack.c.l.b16 %v2924
        %v5546 = vunpack.c.h.b16 %v2924
        %v5547 = vunpack.c.l.b16 %v2925
        %v5548 = vunpack.c.h.b16 %v2925
        %v5549 = vunpack.c.l.b16 %v2926
        %v5550 = vunpack.c.h.b16 %v2926
        %v5551 = vunpack.c.l.b16 %v2927
        %v5552 = vunpack.c.h.b16 %v2927
        %v5553 = vunpack.c.l.b16 %v2928
        %v5554 = vunpack.c.h.b16 %v2928
        %v5555 = vunpack.c.l.b16 %v2929
        %v5556 = vunpack.c.h.b16 %v2929
        %v5557 = vunpack.c.l.b16 %v2930
        %v5558 = vunpack.c.h.b16 %v2930
        %v5559 = vunpack.c.l.b16 %v2931
        %v5560 = vunpack.c.h.b16 %v2931
        %v5561 = vunpack.c.l.b16 %v2932
        %v5562 = vunpack.c.h.b16 %v2932
        %v5563 = vunpack.c.l.b16 %v2933
        %v5564 = vunpack.c.h.b16 %v2933
        %v5565 = vunpack.c.l.b16 %v2934
        %v5566 = vunpack.c.h.b16 %v2934
        %v5567 = vunpack.c.l.b16 %v2935
        %v5568 = vunpack.c.h.b16 %v2935
        %v5569 = vunpack.c.l.b16 %v2936
        %v5570 = vunpack.c.h.b16 %v2936
        %v5571 = vunpack.c.l.b16 %v2937
        %v5572 = vunpack.c.h.b16 %v2937
        %v5573 = vunpack.c.l.b16 %v2938
        %v5574 = vunpack.c.h.b16 %v2938
        %v5575 = vunpack.c.l.b16 %v2939
        %v5576 = vunpack.c.h.b16 %v2939
        %v5577 = vunpack.c.l.b16 %v2940
        %v5578 = vunpack.c.h.b16 %v2940
        %v5579 = vunpack.c.l.b16 %v2941
        %v5580 = vunpack.c.h.b16 %v2941
        %v5581 = vunpack.c.l.b16 %v2942
        %v5582 = vunpack.c.h.b16 %v2942
        %v5583 = vunpack.c.l.b16 %v2943
        %v5584 = vunpack.c.h.b16 %v2943
        %v5585 = vunpack.c.l.b16 %v2944
        %v5586 = vunpack.c.h.b16 %v2944
        %v5587 = vunpack.c.l.b16 %v2945
        %v5588 = vunpack.c.h.b16 %v2945
        %v5589 = vunpack.c.l.b16 %v2946
        %v5590 = vunpack.c.h.b16 %v2946
        %v5591 = vunpack.c.l.b16 %v2947
        %v5592 = vunpack.c.h.b16 %v2947
        %v5593 = vunpack.c.l.b16 %v2948
        %v5594 = vunpack.c.h.b16 %v2948
        %v5595 = vunpack.c.l.b16 %v2949
        %v5596 = vunpack.c.h.b16 %v2949
        %v5597 = vunpack.c.l.b16 %v2950
        %v5598 = vunpack.c.h.b16 %v2950
        %v5599 = vunpack.c.l.b16 %v2951
        %v5600 = vunpack.c.h.b16 %v2951
        %v5601 = vunpack.c.l.b16 %v2952
        %v5602 = vunpack.c.h.b16 %v2952
        %v5603 = vunpack.c.l.b16 %v2953
        %v5604 = vunpack.c.h.b16 %v2953
        %v5605 = vunpack.c.l.b16 %v2954
        %v5606 = vunpack.c.h.b16 %v2954
        %v5607 = vunpack.c.l.b16 %v2955
        %v5608 = vunpack.c.h.b16 %v2955
        %v5609 = vunpack.c.l.b16 %v2956
        %v5610 = vunpack.c.h.b16 %v2956
        %v5611 = vunpack.c.l.b16 %v2957
        %v5612 = vunpack.c.h.b16 %v2957
        %v5613 = vunpack.c.l.b16 %v2958
        %v5614 = vunpack.c.h.b16 %v2958
        %v5615 = vunpack.c.l.b16 %v2959
        %v5616 = vunpack.c.h.b16 %v2959
        %v5617 = vunpack.c.l.b16 %v2960
        %v5618 = vunpack.c.h.b16 %v2960
        %v5619 = vunpack.c.l.b16 %v2961
        %v5620 = vunpack.c.h.b16 %v2961
        %v5621 = vunpack.c.l.b16 %v2962
        %v5622 = vunpack.c.h.b16 %v2962
        %v5623 = vunpack.c.l.b16 %v2963
        %v5624 = vunpack.c.h.b16 %v2963
        %v5625 = vunpack.c.l.b16 %v2964
        %v5626 = vunpack.c.h.b16 %v2964
        %v5627 = vunpack.c.l.b16 %v2965
        %v5628 = vunpack.c.h.b16 %v2965
        %v5629 = vunpack.c.l.b16 %v2966
        %v5630 = vunpack.c.h.b16 %v2966
        %v5631 = vunpack.c.l.b16 %v2967
        %v5632 = vunpack.c.h.b16 %v2967
        %v5633 = vunpack.c.l.b16 %v2968
        %v5634 = vunpack.c.h.b16 %v2968
        %v5635 = vunpack.c.l.b16 %v2969
        %v5636 = vunpack.c.h.b16 %v2969
        %v5637 = vunpack.c.l.b16 %v2970
        %v5638 = vunpack.c.h.b16 %v2970
        %v5639 = vunpack.c.l.b16 %v2971
        %v5640 = vunpack.c.h.b16 %v2971
        %v5641 = vunpack.c.l.b16 %v2972
        %v5642 = vunpack.c.h.b16 %v2972
        %v5643 = vunpack.c.l.b16 %v2973
        %v5644 = vunpack.c.h.b16 %v2973
        %v5645 = vunpack.c.l.b16 %v2974
        %v5646 = vunpack.c.h.b16 %v2974
        %v5647 = vunpack.c.l.b16 %v2975
        %v5648 = vunpack.c.h.b16 %v2975
        %v5649 = vunpack.c.l.b16 %v2976
        %v5650 = vunpack.c.h.b16 %v2976
        %v5651 = vunpack.c.l.b16 %v2977
        %v5652 = vunpack.c.h.b16 %v2977
        %v5653 = vunpack.c.l.b16 %v2978
        %v5654 = vunpack.c.h.b16 %v2978
        %v5655 = vunpack.c.l.b16 %v2979
        %v5656 = vunpack.c.h.b16 %v2979
        %v5657 = vunpack.c.l.b16 %v2980
        %v5658 = vunpack.c.h.b16 %v2980
        %v5659 = vunpack.c.l.b16 %v2981
        %v5660 = vunpack.c.h.b16 %v2981
        %v5661 = vunpack.c.l.b16 %v2982
        %v5662 = vunpack.c.h.b16 %v2982
        %v5663 = vunpack.c.l.b16 %v2983
        %v5664 = vunpack.c.h.b16 %v2983
        %v5665 = vunpack.c.l.b16 %v2984
        %v5666 = vunpack.c.h.b16 %v2984
        %v5667 = vunpack.c.l.b16 %v2985
        %v5668 = vunpack.c.h.b16 %v2985
        %v5669 = vunpack.c.l.b16 %v2986
        %v5670 = vunpack.c.h.b16 %v2986
        %v5671 = vunpack.c.l.b16 %v2987
        %v5672 = vunpack.c.h.b16 %v2987
        %v5673 = vunpack.c.l.b16 %v2988
        %v5674 = vunpack.c.h.b16 %v2988
        %v5675 = vunpack.c.l.b16 %v2989
        %v5676 = vunpack.c.h.b16 %v2989
        %v5677 = vunpack.c.l.b16 %v2990
        %v5678 = vunpack.c.h.b16 %v2990
        %v5679 = vunpack.c.l.b16 %v2991
        %v5680 = vunpack.c.h.b16 %v2991
        %v5681 = vunpack.c.l.b16 %v2992
        %v5682 = vunpack.c.h.b16 %v2992
        %v5683 = vunpack.c.l.b16 %v2993
        %v5684 = vunpack.c.h.b16 %v2993
        %v5685 = vunpack.c.l.b16 %v2994
        %v5686 = vunpack.c.h.b16 %v2994
        %v5687 = vunpack.c.l.b16 %v2995
        %v5688 = vunpack.c.h.b16 %v2995
        %v5689 = vunpack.c.l.b16 %v2996
        %v5690 = vunpack.c.h.b16 %v2996
        %v5691 = vunpack.c.l.b16 %v2997
        %v5692 = vunpack.c.h.b16 %v2997
        %v5693 = vunpack.c.l.b16 %v2998
        %v5694 = vunpack.c.h.b16 %v2998
        %v5695 = vunpack.c.l.b16 %v2999
        %v5696 = vunpack.c.h.b16 %v2999
        %v5697 = vunpack.c.l.b16 %v3000
        %v5698 = vunpack.c.h.b16 %v3000
        %v5699 = vunpack.c.l.b16 %v3001
        %v5700 = vunpack.c.h.b16 %v3001
        %v5701 = vunpack.c.l.b16 %v3002
        %v5702 = vunpack.c.h.b16 %v3002
        %v5703 = vunpack.c.l.b16 %v3003
        %v5704 = vunpack.c.h.b16 %v3003
        %v5705 = vunpack.c.l.b16 %v3004
        %v5706 = vunpack.c.h.b16 %v3004
        %v5707 = vunpack.c.l.b16 %v3005
        %v5708 = vunpack.c.h.b16 %v3005
        %v5709 = vunpack.c.l.b16 %v3006
        %v5710 = vunpack.c.h.b16 %v3006
        %v5711 = vunpack.c.l.b16 %v3007
        %v5712 = vunpack.c.h.b16 %v3007
        %v5713 = vunpack.c.l.b16 %v3008
        %v5714 = vunpack.c.h.b16 %v3008
        %v5715 = vunpack.c.l.b16 %v3009
        %v5716 = vunpack.c.h.b16 %v3009
        %v5717 = vunpack.c.l.b16 %v3010
        %v5718 = vunpack.c.h.b16 %v3010
        %v5719 = vunpack.c.l.b16 %v3011
        %v5720 = vunpack.c.h.b16 %v3011
        %v5721 = vunpack.c.l.b16 %v3012
        %v5722 = vunpack.c.h.b16 %v3012
        %v5723 = vunpack.c.l.b16 %v3013
        %v5724 = vunpack.c.h.b16 %v3013
        %v5725 = vunpack.c.l.b16 %v3014
        %v5726 = vunpack.c.h.b16 %v3014
        %v5727 = vunpack.c.l.b16 %v3015
        %v5728 = vunpack.c.h.b16 %v3015
        %v5729 = vunpack.c.l.b16 %v3016
        %v5730 = vunpack.c.h.b16 %v3016
        %v5731 = vunpack.c.l.b16 %v3017
        %v5732 = vunpack.c.h.b16 %v3017
        %v5733 = vunpack.c.l.b16 %v3018
        %v5734 = vunpack.c.h.b16 %v3018
        %v5735 = vunpack.c.l.b16 %v3019
        %v5736 = vunpack.c.h.b16 %v3019
        %v5737 = vunpack.c.l.b16 %v3020
        %v5738 = vunpack.c.h.b16 %v3020
        %v5739 = vunpack.c.l.b16 %v3021
        %v5740 = vunpack.c.h.b16 %v3021
        %v5741 = vunpack.c.l.b16 %v3022
        %v5742 = vunpack.c.h.b16 %v3022
        %v5743 = vunpack.c.l.b16 %v3023
        %v5744 = vunpack.c.h.b16 %v3023
        %v5745 = vunpack.c.l.b16 %v3024
        %v5746 = vunpack.c.h.b16 %v3024
        %v5747 = vunpack.c.l.b16 %v3025
        %v5748 = vunpack.c.h.b16 %v3025
        %v5749 = vunpack.c.l.b16 %v3026
        %v5750 = vunpack.c.h.b16 %v3026
        %v5751 = vunpack.c.l.b16 %v3027
        %v5752 = vunpack.c.h.b16 %v3027
        %v5753 = vunpack.c.l.b16 %v3028
        %v5754 = vunpack.c.h.b16 %v3028
        %v5755 = vunpack.c.l.b16 %v3029
        %v5756 = vunpack.c.h.b16 %v3029
        %v5757 = vunpack.c.l.b16 %v3030
        %v5758 = vunpack.c.h.b16 %v3030
        %v5759 = vunpack.c.l.b16 %v3031
        %v5760 = vunpack.c.h.b16 %v3031
        %v5761 = vunpack.c.l.b16 %v3032
        %v5762 = vunpack.c.h.b16 %v3032
        %v5763 = vunpack.c.l.b16 %v3033
        %v5764 = vunpack.c.h.b16 %v3033
        %v5765 = vunpack.c.l.b16 %v3034
        %v5766 = vunpack.c.h.b16 %v3034
        %v5767 = vunpack.c.l.b16 %v3035
        %v5768 = vunpack.c.h.b16 %v3035
        %v5769 = vunpack.c.l.b16 %v3036
        %v5770 = vunpack.c.h.b16 %v3036
        %v5771 = vunpack.c.l.b16 %v3037
        %v5772 = vunpack.c.h.b16 %v3037
        %v5773 = vunpack.c.l.b16 %v3038
        %v5774 = vunpack.c.h.b16 %v3038
        %v5775 = vunpack.c.l.b16 %v3039
        %v5776 = vunpack.c.h.b16 %v3039
        %v5777 = vunpack.c.l.b16 %v3040
        %v5778 = vunpack.c.h.b16 %v3040
        %v5779 = vunpack.c.l.b16 %v3041
        %v5780 = vunpack.c.h.b16 %v3041
        %v5781 = vunpack.c.l.b16 %v3042
        %v5782 = vunpack.c.h.b16 %v3042
        %v5783 = vunpack.c.l.b16 %v3043
        %v5784 = vunpack.c.h.b16 %v3043
        %v5785 = vunpack.c.l.b16 %v3044
        %v5786 = vunpack.c.h.b16 %v3044
        %v5787 = vunpack.c.l.b16 %v3045
        %v5788 = vunpack.c.h.b16 %v3045
        %v5789 = vunpack.c.l.b16 %v3046
        %v5790 = vunpack.c.h.b16 %v3046
        %v5791 = vunpack.c.l.b16 %v3047
        %v5792 = vunpack.c.h.b16 %v3047
        %v5793 = vunpack.c.l.b16 %v3048
        %v5794 = vunpack.c.h.b16 %v3048
        %v5795 = vunpack.c.l.b16 %v3049
        %v5796 = vunpack.c.h.b16 %v3049
        %v5797 = vunpack.c.l.b16 %v3050
        %v5798 = vunpack.c.h.b16 %v3050
        %v5799 = vunpack.c.l.b16 %v3051
        %v5800 = vunpack.c.h.b16 %v3051
        %v5801 = vunpack.c.l.b16 %v3052
        %v5802 = vunpack.c.h.b16 %v3052
        %v5803 = vunpack.c.l.b16 %v3053
        %v5804 = vunpack.c.h.b16 %v3053
        %v5805 = vunpack.c.l.b16 %v3054
        %v5806 = vunpack.c.h.b16 %v3054
        %v5807 = vunpack.c.l.b16 %v3055
        %v5808 = vunpack.c.h.b16 %v3055
        %v5809 = vunpack.c.l.b16 %v3056
        %v5810 = vunpack.c.h.b16 %v3056
        %v5811 = vunpack.c.l.b16 %v3057
        %v5812 = vunpack.c.h.b16 %v3057
        %v5813 = vunpack.c.l.b16 %v3058
        %v5814 = vunpack.c.h.b16 %v3058
        %v5815 = vunpack.c.l.b16 %v3059
        %v5816 = vunpack.c.h.b16 %v3059
        %v5817 = vunpack.c.l.b16 %v3060
        %v5818 = vunpack.c.h.b16 %v3060
        %v5819 = vunpack.c.l.b16 %v3061
        %v5820 = vunpack.c.h.b16 %v3061
        %v5821 = vunpack.c.l.b16 %v3062
        %v5822 = vunpack.c.h.b16 %v3062
        %v5823 = vunpack.c.l.b16 %v3063
        %v5824 = vunpack.c.h.b16 %v3063
        %v5825 = vunpack.c.l.b16 %v3064
        %v5826 = vunpack.c.h.b16 %v3064
        %v5827 = vunpack.c.l.b16 %v3065
        %v5828 = vunpack.c.h.b16 %v3065
        %v5829 = vunpack.c.l.b16 %v3066
        %v5830 = vunpack.c.h.b16 %v3066
        %v5831 = vunpack.c.l.b16 %v3067
        %v5832 = vunpack.c.h.b16 %v3067
        %v5833 = vunpack.c.l.b16 %v3068
        %v5834 = vunpack.c.h.b16 %v3068
        %v5835 = vunpack.c.l.b16 %v3069
        %v5836 = vunpack.c.h.b16 %v3069
        %v5837 = vunpack.c.l.b16 %v3070
        %v5838 = vunpack.c.h.b16 %v3070
        %v5839 = vunpack.c.l.b16 %v3071
        %v5840 = vunpack.c.h.b16 %v3071
        %v5841 = vunpack.c.l.b16 %v3072
        %v5842 = vunpack.c.h.b16 %v3072
        %v5843 = vunpack.c.l.b16 %v3073
        %v5844 = vunpack.c.h.b16 %v3073
        %v5845 = vunpack.c.l.b16 %v3074
        %v5846 = vunpack.c.h.b16 %v3074
        %v5847 = vunpack.c.l.b16 %v3075
        %v5848 = vunpack.c.h.b16 %v3075
        %v5849 = vunpack.c.l.b16 %v3076
        %v5850 = vunpack.c.h.b16 %v3076
        %v5851 = vunpack.c.l.b16 %v3077
        %v5852 = vunpack.c.h.b16 %v3077
        %v5853 = vunpack.c.l.b16 %v3078
        %v5854 = vunpack.c.h.b16 %v3078
        %v5855 = vunpack.c.l.b16 %v3079
        %v5856 = vunpack.c.h.b16 %v3079
        %v5857 = vunpack.c.l.b16 %v3080
        %v5858 = vunpack.c.h.b16 %v3080
        %v5859 = vunpack.c.l.b16 %v3081
        %v5860 = vunpack.c.h.b16 %v3081
        %v5861 = vunpack.c.l.b16 %v3082
        %v5862 = vunpack.c.h.b16 %v3082
        %v5863 = vunpack.c.l.b16 %v3083
        %v5864 = vunpack.c.h.b16 %v3083
        %v5865 = vunpack.c.l.b16 %v3084
        %v5866 = vunpack.c.h.b16 %v3084
        %v5867 = vunpack.c.l.b16 %v3085
        %v5868 = vunpack.c.h.b16 %v3085
        %v5869 = vunpack.c.l.b16 %v3086
        %v5870 = vunpack.c.h.b16 %v3086
        %v5871 = vunpack.c.l.b16 %v3087
        %v5872 = vunpack.c.h.b16 %v3087
        %v5873 = vunpack.c.l.b16 %v3088
        %v5874 = vunpack.c.h.b16 %v3088
        %v5875 = vunpack.c.l.b16 %v3089
        %v5876 = vunpack.c.h.b16 %v3089
        %v5877 = vunpack.c.l.b16 %v3090
        %v5878 = vunpack.c.h.b16 %v3090
        %v5879 = vunpack.c.l.b16 %v3091
        %v5880 = vunpack.c.h.b16 %v3091
        %v5881 = vunpack.c.l.b16 %v3092
        %v5882 = vunpack.c.h.b16 %v3092
        %v5883 = vunpack.c.l.b16 %v3093
        %v5884 = vunpack.c.h.b16 %v3093
        %v5885 = vunpack.c.l.b16 %v3094
        %v5886 = vunpack.c.h.b16 %v3094
        %v5887 = vunpack.c.l.b16 %v3095
        %v5888 = vunpack.c.h.b16 %v3095
        %v5889 = vunpack.c.l.b16 %v3096
        %v5890 = vunpack.c.h.b16 %v3096
        %v5891 = vunpack.c.l.b16 %v3097
        %v5892 = vunpack.c.h.b16 %v3097
        %v5893 = vunpack.c.l.b16 %v3098
        %v5894 = vunpack.c.h.b16 %v3098
        %v5895 = vunpack.c.l.b16 %v3099
        %v5896 = vunpack.c.h.b16 %v3099
        %v5897 = vunpack.c.l.b16 %v3100
        %v5898 = vunpack.c.h.b16 %v3100
        %v5899 = vunpack.c.l.b16 %v3101
        %v5900 = vunpack.c.h.b16 %v3101
        %v5901 = vunpack.c.l.b16 %v3102
        %v5902 = vunpack.c.h.b16 %v3102
        %v5903 = vunpack.c.l.b16 %v3103
        %v5904 = vunpack.c.h.b16 %v3103
        %v5905 = vunpack.c.l.b16 %v3104
        %v5906 = vunpack.c.h.b16 %v3104
        %v5907 = vunpack.c.l.b16 %v3105
        %v5908 = vunpack.c.h.b16 %v3105
        %v5909 = vunpack.c.l.b16 %v3106
        %v5910 = vunpack.c.h.b16 %v3106
        %v5911 = vunpack.c.l.b16 %v3107
        %v5912 = vunpack.c.h.b16 %v3107
        %v5913 = vunpack.c.l.b16 %v3108
        %v5914 = vunpack.c.h.b16 %v3108
        %v5915 = vunpack.c.l.b16 %v3109
        %v5916 = vunpack.c.h.b16 %v3109
        %v5917 = vunpack.c.l.b16 %v3110
        %v5918 = vunpack.c.h.b16 %v3110
        %v5919 = vunpack.c.l.b16 %v3111
        %v5920 = vunpack.c.h.b16 %v3111
        %v5921 = vunpack.c.l.b16 %v3112
        %v5922 = vunpack.c.h.b16 %v3112
        %v5923 = vunpack.c.l.b16 %v3113
        %v5924 = vunpack.c.h.b16 %v3113
        %v5925 = vunpack.c.l.b16 %v3114
        %v5926 = vunpack.c.h.b16 %v3114
        %v5927 = vunpack.c.l.b16 %v3115
        %v5928 = vunpack.c.h.b16 %v3115
        %v5929 = vunpack.c.l.b16 %v3116
        %v5930 = vunpack.c.h.b16 %v3116
        %v5931 = vunpack.c.l.b16 %v3117
        %v5932 = vunpack.c.h.b16 %v3117
        %v5933 = vunpack.c.l.b16 %v3118
        %v5934 = vunpack.c.h.b16 %v3118
        %v5935 = vunpack.c.l.b16 %v3119
        %v5936 = vunpack.c.h.b16 %v3119
        %v5937 = vunpack.c.l.b16 %v3120
        %v5938 = vunpack.c.h.b16 %v3120
        %v5939 = vunpack.c.l.b16 %v3121
        %v5940 = vunpack.c.h.b16 %v3121
        %v5941 = vunpack.c.l.b16 %v3122
        %v5942 = vunpack.c.h.b16 %v3122
        %v5943 = vunpack.c.l.b16 %v3123
        %v5944 = vunpack.c.h.b16 %v3123
        %v5945 = vunpack.c.l.b16 %v3124
        %v5946 = vunpack.c.h.b16 %v3124
        %v5947 = vunpack.c.l.b16 %v3125
        %v5948 = vunpack.c.h.b16 %v3125
        %v5949 = vunpack.c.l.b16 %v3126
        %v5950 = vunpack.c.h.b16 %v3126
        %v5951 = vunpack.c.l.b16 %v3127
        %v5952 = vunpack.c.h.b16 %v3127
        %v5953 = vunpack.c.l.b16 %v3128
        %v5954 = vunpack.c.h.b16 %v3128
        %v5955 = vunpack.c.l.b16 %v3129
        %v5956 = vunpack.c.h.b16 %v3129
        %v5957 = vunpack.c.l.b16 %v3130
        %v5958 = vunpack.c.h.b16 %v3130
        %v5959 = vunpack.c.l.b16 %v3131
        %v5960 = vunpack.c.h.b16 %v3131
        %v5961 = vunpack.c.l.b16 %v3132
        %v5962 = vunpack.c.h.b16 %v3132
        %v5963 = vunpack.c.l.b16 %v3133
        %v5964 = vunpack.c.h.b16 %v3133
        %v5965 = vunpack.c.l.b16 %v3134
        %v5966 = vunpack.c.h.b16 %v3134
        %v5967 = vunpack.c.l.b16 %v3135
        %v5968 = vunpack.c.h.b16 %v3135
        %v5969 = vunpack.c.l.b16 %v3136
        %v5970 = vunpack.c.h.b16 %v3136
        %v5971 = vunpack.c.l.b16 %v3137
        %v5972 = vunpack.c.h.b16 %v3137
        %v5973 = vunpack.c.l.b16 %v3138
        %v5974 = vunpack.c.h.b16 %v3138
        %v5975 = vunpack.c.l.b16 %v3139
        %v5976 = vunpack.c.h.b16 %v3139
        %v5977 = vunpack.c.l.b16 %v3140
        %v5978 = vunpack.c.h.b16 %v3140
        %v5979 = vunpack.c.l.b16 %v3141
        %v5980 = vunpack.c.h.b16 %v3141
        %v5981 = vunpack.c.l.b16 %v3142
        %v5982 = vunpack.c.h.b16 %v3142
        %v5983 = vunpack.c.l.b16 %v3143
        %v5984 = vunpack.c.h.b16 %v3143
        %v5985 = vunpack.c.l.b16 %v3144
        %v5986 = vunpack.c.h.b16 %v3144
        %v5987 = vunpack.c.l.b16 %v3145
        %v5988 = vunpack.c.h.b16 %v3145
        %v5989 = vunpack.c.l.b16 %v3146
        %v5990 = vunpack.c.h.b16 %v3146
        %v5991 = vunpack.c.l.b16 %v3147
        %v5992 = vunpack.c.h.b16 %v3147
        %v5993 = vunpack.c.l.b16 %v3148
        %v5994 = vunpack.c.h.b16 %v3148
        %v5995 = vunpack.c.l.b16 %v3149
        %v5996 = vunpack.c.h.b16 %v3149
        %v5997 = vunpack.c.l.b16 %v3150
        %v5998 = vunpack.c.h.b16 %v3150
        %v5999 = vunpack.c.l.b16 %v3151
        %v6000 = vunpack.c.h.b16 %v3151
        %v6001 = vunpack.c.l.b16 %v3152
        %v6002 = vunpack.c.h.b16 %v3152
        %v6003 = vunpack.c.l.b16 %v3153
        %v6004 = vunpack.c.h.b16 %v3153
        %v6005 = vunpack.c.l.b16 %v3154
        %v6006 = vunpack.c.h.b16 %v3154
        %v6007 = vunpack.c.l.b16 %v3155
        %v6008 = vunpack.c.h.b16 %v3155
        %v6009 = vunpack.c.l.b16 %v3156
        %v6010 = vunpack.c.h.b16 %v3156
        %v6011 = vunpack.c.l.b16 %v3157
        %v6012 = vunpack.c.h.b16 %v3157
        %v6013 = vunpack.c.l.b16 %v3158
        %v6014 = vunpack.c.h.b16 %v3158
        %v6015 = vunpack.c.l.b16 %v3159
        %v6016 = vunpack.c.h.b16 %v3159
        %v6017 = vunpack.c.l.b16 %v3160
        %v6018 = vunpack.c.h.b16 %v3160
        %v6019 = vunpack.c.l.b16 %v3161
        %v6020 = vunpack.c.h.b16 %v3161
        %v6021 = vunpack.c.l.b16 %v3162
        %v6022 = vunpack.c.h.b16 %v3162
        %v6023 = vunpack.c.l.b16 %v3163
        %v6024 = vunpack.c.h.b16 %v3163
        %v6025 = vunpack.c.l.b16 %v3164
        %v6026 = vunpack.c.h.b16 %v3164
        %v6027 = vunpack.c.l.b16 %v3165
        %v6028 = vunpack.c.h.b16 %v3165
        %v6029 = vunpack.c.l.b16 %v3166
        %v6030 = vunpack.c.h.b16 %v3166
        %v6031 = vunpack.c.l.b16 %v3167
        %v6032 = vunpack.c.h.b16 %v3167
        %v6033 = vunpack.c.l.b16 %v3168
        %v6034 = vunpack.c.h.b16 %v3168
        %v6035 = vunpack.c.l.b16 %v3169
        %v6036 = vunpack.c.h.b16 %v3169
        %v6037 = vunpack.c.l.b16 %v3170
        %v6038 = vunpack.c.h.b16 %v3170
        %v6039 = vunpack.c.l.b16 %v3171
        %v6040 = vunpack.c.h.b16 %v3171
        %v6041 = vunpack.c.l.b16 %v3172
        %v6042 = vunpack.c.h.b16 %v3172
        %v6043 = vunpack.c.l.b16 %v3173
        %v6044 = vunpack.c.h.b16 %v3173
        %v6045 = vunpack.c.l.b16 %v3174
        %v6046 = vunpack.c.h.b16 %v3174
        %v6047 = vunpack.c.l.b16 %v3175
        %v6048 = vunpack.c.h.b16 %v3175
        %v6049 = vunpack.c.l.b16 %v3176
        %v6050 = vunpack.c.h.b16 %v3176
        %v6051 = vunpack.c.l.b16 %v3177
        %v6052 = vunpack.c.h.b16 %v3177
        %v6053 = vunpack.c.l.b16 %v3178
        %v6054 = vunpack.c.h.b16 %v3178
        %v6055 = vunpack.c.l.b16 %v3179
        %v6056 = vunpack.c.h.b16 %v3179
        %v6057 = vunpack.c.l.b16 %v3180
        %v6058 = vunpack.c.h.b16 %v3180
        %v6059 = vunpack.c.l.b16 %v3181
        %v6060 = vunpack.c.h.b16 %v3181
        %v6061 = vunpack.c.l.b16 %v3182
        %v6062 = vunpack.c.h.b16 %v3182
        %v6063 = vunpack.c.l.b16 %v3183
        %v6064 = vunpack.c.h.b16 %v3183
        %v6065 = vunpack.c.l.b16 %v3184
        %v6066 = vunpack.c.h.b16 %v3184
        %v6067 = vunpack.c.l.b16 %v3185
        %v6068 = vunpack.c.h.b16 %v3185
        %v6069 = vunpack.c.l.b16 %v3186
        %v6070 = vunpack.c.h.b16 %v3186
        %v6071 = vunpack.c.l.b16 %v3187
        %v6072 = vunpack.c.h.b16 %v3187
        %v6073 = vunpack.c.l.b16 %v3188
        %v6074 = vunpack.c.h.b16 %v3188
        %v6075 = vunpack.c.l.b16 %v3189
        %v6076 = vunpack.c.h.b16 %v3189
        %v6077 = vunpack.c.l.b16 %v3190
        %v6078 = vunpack.c.h.b16 %v3190
        %v6079 = vunpack.c.l.b16 %v3191
        %v6080 = vunpack.c.h.b16 %v3191
        %v6081 = vunpack.c.l.b16 %v3192
        %v6082 = vunpack.c.h.b16 %v3192
        %v6083 = vunpack.c.l.b16 %v3193
        %v6084 = vunpack.c.h.b16 %v3193
        %v6085 = vunpack.c.l.b16 %v3194
        %v6086 = vunpack.c.h.b16 %v3194
        %v6087 = vunpack.c.l.b16 %v3195
        %v6088 = vunpack.c.h.b16 %v3195
        %v6089 = vunpack.c.l.b16 %v3196
        %v6090 = vunpack.c.h.b16 %v3196
        %v6091 = vunpack.c.l.b16 %v3197
        %v6092 = vunpack.c.h.b16 %v3197
        %v6093 = vunpack.c.l.b16 %v3198
        %v6094 = vunpack.c.h.b16 %v3198
        %v6095 = vunpack.c.l.b16 %v3199
        %v6096 = vunpack.c.h.b16 %v3199
        %v6097 = vunpack.c.l.b16 %v3200
        %v6098 = vunpack.c.h.b16 %v3200
        %v6099 = vunpack.c.l.b16 %v3201
        %v6100 = vunpack.c.h.b16 %v3201
        %v6101 = vunpack.c.l.b16 %v3202
        %v6102 = vunpack.c.h.b16 %v3202
        %v6103 = vunpack.c.l.b16 %v3203
        %v6104 = vunpack.c.h.b16 %v3203
        %v6105 = vunpack.c.l.b16 %v3204
        %v6106 = vunpack.c.h.b16 %v3204
        %v6107 = vunpack.c.l.b16 %v3205
        %v6108 = vunpack.c.h.b16 %v3205
        %v6109 = vunpack.c.l.b16 %v3206
        %v6110 = vunpack.c.h.b16 %v3206
        %v6111 = vunpack.c.l.b16 %v3207
        %v6112 = vunpack.c.h.b16 %v3207
        %v6113 = vunpack.c.l.b16 %v3208
        %v6114 = vunpack.c.h.b16 %v3208
        %v6115 = vunpack.c.l.b16 %v3209
        %v6116 = vunpack.c.h.b16 %v3209
        %v6117 = vunpack.c.l.b16 %v3210
        %v6118 = vunpack.c.h.b16 %v3210
        %v6119 = vunpack.c.l.b16 %v3211
        %v6120 = vunpack.c.h.b16 %v3211
        %v6121 = vunpack.c.l.b16 %v3212
        %v6122 = vunpack.c.h.b16 %v3212
        %v6123 = vunpack.c.l.b16 %v3213
        %v6124 = vunpack.c.h.b16 %v3213
        %v6125 = vunpack.c.l.b16 %v3214
        %v6126 = vunpack.c.h.b16 %v3214
        %v6127 = vunpack.c.l.b16 %v3215
        %v6128 = vunpack.c.h.b16 %v3215
        %v6129 = vunpack.c.l.b16 %v3216
        %v6130 = vunpack.c.h.b16 %v3216
        %v6131 = vunpack.c.l.b16 %v3217
        %v6132 = vunpack.c.h.b16 %v3217
        %v6133 = vunpack.c.l.b16 %v3218
        %v6134 = vunpack.c.h.b16 %v3218
        %v6135 = vunpack.c.l.b16 %v3219
        %v6136 = vunpack.c.h.b16 %v3219
        %v6137 = vunpack.c.l.b16 %v3220
        %v6138 = vunpack.c.h.b16 %v3220
        %v6139 = vunpack.c.l.b16 %v3221
        %v6140 = vunpack.c.h.b16 %v3221
        %v6141 = vunpack.c.l.b16 %v3222
        %v6142 = vunpack.c.h.b16 %v3222
        %v6143 = vunpack.c.l.b16 %v3223
        %v6144 = vunpack.c.h.b16 %v3223
        %v6145 = vunpack.c.l.b16 %v3224
        %v6146 = vunpack.c.h.b16 %v3224
        %v6147 = vunpack.c.l.b16 %v3225
        %v6148 = vunpack.c.h.b16 %v3225
        %v6149 = vunpack.c.l.b16 %v3226
        %v6150 = vunpack.c.h.b16 %v3226
        %v6151 = vunpack.c.l.b16 %v3227
        %v6152 = vunpack.c.h.b16 %v3227
        %v6153 = vunpack.c.l.b16 %v3228
        %v6154 = vunpack.c.h.b16 %v3228
        %v6155 = vunpack.c.l.b16 %v3229
        %v6156 = vunpack.c.h.b16 %v3229
        %v6157 = vunpack.c.l.b16 %v3230
        %v6158 = vunpack.c.h.b16 %v3230
        %v6159 = vunpack.c.l.b16 %v3231
        %v6160 = vunpack.c.h.b16 %v3231
        %v6161 = vunpack.c.l.b16 %v3232
        %v6162 = vunpack.c.h.b16 %v3232
        %v6163 = vunpack.c.l.b16 %v3233
        %v6164 = vunpack.c.h.b16 %v3233
        %v6165 = vunpack.c.l.b16 %v3234
        %v6166 = vunpack.c.h.b16 %v3234
        %v6167 = vunpack.c.l.b16 %v3235
        %v6168 = vunpack.c.h.b16 %v3235
        %v6169 = vunpack.c.l.b16 %v3236
        %v6170 = vunpack.c.h.b16 %v3236
        %v6171 = vunpack.c.l.b16 %v3237
        %v6172 = vunpack.c.h.b16 %v3237
        %v6173 = vunpack.c.l.b16 %v3238
        %v6174 = vunpack.c.h.b16 %v3238
        %v6175 = vunpack.c.l.b16 %v3239
        %v6176 = vunpack.c.h.b16 %v3239
        %v6177 = vunpack.c.l.b16 %v3240
        %v6178 = vunpack.c.h.b16 %v3240
        %v6179 = vunpack.c.l.b16 %v3241
        %v6180 = vunpack.c.h.b16 %v3241
        %v6181 = vunpack.c.l.b16 %v3242
        %v6182 = vunpack.c.h.b16 %v3242
        %v6183 = vunpack.c.l.b16 %v3243
        %v6184 = vunpack.c.h.b16 %v3243
        %v6185 = vunpack.c.l.b16 %v3244
        %v6186 = vunpack.c.h.b16 %v3244
        %v6187 = vunpack.c.l.b16 %v3245
        %v6188 = vunpack.c.h.b16 %v3245
        %v6189 = vunpack.c.l.b16 %v3246
        %v6190 = vunpack.c.h.b16 %v3246
        %v6191 = vunpack.c.l.b16 %v3247
        %v6192 = vunpack.c.h.b16 %v3247
        %v6193 = vunpack.c.l.b16 %v3248
        %v6194 = vunpack.c.h.b16 %v3248
        %v6195 = vunpack.c.l.b16 %v3249
        %v6196 = vunpack.c.h.b16 %v3249
        %v6197 = vunpack.c.l.b16 %v3250
        %v6198 = vunpack.c.h.b16 %v3250
        %v6199 = vunpack.c.l.b16 %v3251
        %v6200 = vunpack.c.h.b16 %v3251
        %v6201 = vunpack.c.l.b16 %v3252
        %v6202 = vunpack.c.h.b16 %v3252
        %v6203 = vunpack.c.l.b16 %v3253
        %v6204 = vunpack.c.h.b16 %v3253
        %v6205 = vunpack.c.l.b16 %v3254
        %v6206 = vunpack.c.h.b16 %v3254
        %v6207 = vunpack.c.l.b16 %v3255
        %v6208 = vunpack.c.h.b16 %v3255
        %v6209 = vunpack.c.l.b16 %v3256
        %v6210 = vunpack.c.h.b16 %v3256
        %v6211 = vunpack.c.l.b16 %v3257
        %v6212 = vunpack.c.h.b16 %v3257
        %v6213 = vunpack.c.l.b16 %v3258
        %v6214 = vunpack.c.h.b16 %v3258
        %v6215 = vunpack.c.l.b16 %v3259
        %v6216 = vunpack.c.h.b16 %v3259
        %v6217 = vunpack.c.l.b16 %v3260
        %v6218 = vunpack.c.h.b16 %v3260
        %v6219 = vunpack.c.l.b16 %v3261
        %v6220 = vunpack.c.h.b16 %v3261
        %v6221 = vunpack.c.l.b16 %v3262
        %v6222 = vunpack.c.h.b16 %v3262
        %v6223 = vunpack.c.l.b16 %v3263
        %v6224 = vunpack.c.h.b16 %v3263
        %v6225 = vunpack.c.l.b16 %v3264
        %v6226 = vunpack.c.h.b16 %v3264
        %v6227 = vunpack.c.l.b16 %v3265
        %v6228 = vunpack.c.h.b16 %v3265
        %v6229 = vunpack.c.l.b16 %v3266
        %v6230 = vunpack.c.h.b16 %v3266
        %v6231 = vunpack.c.l.b16 %v3267
        %v6232 = vunpack.c.h.b16 %v3267
        %v6233 = vunpack.c.l.b16 %v3268
        %v6234 = vunpack.c.h.b16 %v3268
        %v6235 = vunpack.c.l.b16 %v3269
        %v6236 = vunpack.c.h.b16 %v3269
        %v6237 = vunpack.c.l.b16 %v3270
        %v6238 = vunpack.c.h.b16 %v3270
        %v6239 = vunpack.c.l.b16 %v3271
        %v6240 = vunpack.c.h.b16 %v3271
        %v6241 = vunpack.c.l.b16 %v3272
        %v6242 = vunpack.c.h.b16 %v3272
        %v6243 = vunpack.c.l.b16 %v3273
        %v6244 = vunpack.c.h.b16 %v3273
        %v6245 = vunpack.c.l.b16 %v3274
        %v6246 = vunpack.c.h.b16 %v3274
        %v6247 = vunpack.c.l.b16 %v3275
        %v6248 = vunpack.c.h.b16 %v3275
        %v6249 = vunpack.c.l.b16 %v3276
        %v6250 = vunpack.c.h.b16 %v3276
        %v6251 = vunpack.c.l.b16 %v3277
        %v6252 = vunpack.c.h.b16 %v3277
        %v6253 = vunpack.c.l.b16 %v3278
        %v6254 = vunpack.c.h.b16 %v3278
        %v6255 = vunpack.c.l.b16 %v3279
        %v6256 = vunpack.c.h.b16 %v3279
        %v6257 = vunpack.c.l.b16 %v3280
        %v6258 = vunpack.c.h.b16 %v3280
        %v6259 = vunpack.c.l.b16 %v3281
        %v6260 = vunpack.c.h.b16 %v3281
        %v6261 = vunpack.c.l.b16 %v3282
        %v6262 = vunpack.c.h.b16 %v3282
        %v6263 = vunpack.c.l.b16 %v3283
        %v6264 = vunpack.c.h.b16 %v3283
        %v6265 = vunpack.c.l.b16 %v3284
        %v6266 = vunpack.c.h.b16 %v3284
        %v6267 = vunpack.c.l.b16 %v3285
        %v6268 = vunpack.c.h.b16 %v3285
        %v6269 = vunpack.c.l.b16 %v3286
        %v6270 = vunpack.c.h.b16 %v3286
        %v6271 = vunpack.c.l.b16 %v3287
        %v6272 = vunpack.c.h.b16 %v3287
        %v6273 = vunpack.c.l.b16 %v3288
        %v6274 = vunpack.c.h.b16 %v3288
        %v6275 = vunpack.c.l.b16 %v3289
        %v6276 = vunpack.c.h.b16 %v3289
        %v6277 = vunpack.c.l.b16 %v3290
        %v6278 = vunpack.c.h.b16 %v3290
        %v6279 = vunpack.c.l.b16 %v3291
        %v6280 = vunpack.c.h.b16 %v3291
        %v6281 = vunpack.c.l.b16 %v3292
        %v6282 = vunpack.c.h.b16 %v3292
        %v6283 = vunpack.c.l.b16 %v3293
        %v6284 = vunpack.c.h.b16 %v3293
        %v6285 = vunpack.c.l.b16 %v3294
        %v6286 = vunpack.c.h.b16 %v3294
        %v6287 = vunpack.c.l.b16 %v3295
        %v6288 = vunpack.c.h.b16 %v3295
        %v6289 = vunpack.c.l.b16 %v3296
        %v6290 = vunpack.c.h.b16 %v3296
        %v6291 = vunpack.c.l.b16 %v3297
        %v6292 = vunpack.c.h.b16 %v3297
        %v6293 = vunpack.c.l.b16 %v3298
        %v6294 = vunpack.c.h.b16 %v3298
        %v6295 = vunpack.c.l.b16 %v3299
        %v6296 = vunpack.c.h.b16 %v3299
        %v6297 = vunpack.c.l.b16 %v3300
        %v6298 = vunpack.c.h.b16 %v3300
        %v6299 = vunpack.c.l.b16 %v3301
        %v6300 = vunpack.c.h.b16 %v3301
        %v6301 = vunpack.c.l.b16 %v3302
        %v6302 = vunpack.c.h.b16 %v3302
        %v6303 = vunpack.c.l.b16 %v3303
        %v6304 = vunpack.c.h.b16 %v3303
        %v6305 = vunpack.c.l.b16 %v3304
        %v6306 = vunpack.c.h.b16 %v3304
        %v6307 = vunpack.c.l.b16 %v3305
        %v6308 = vunpack.c.h.b16 %v3305
        %v6309 = vunpack.c.l.b16 %v3306
        %v6310 = vunpack.c.h.b16 %v3306
        %v6311 = vunpack.c.l.b16 %v3307
        %v6312 = vunpack.c.h.b16 %v3307
        %v6313 = vunpack.c.l.b16 %v3308
        %v6314 = vunpack.c.h.b16 %v3308
        %v6315 = vunpack.c.l.b16 %v3309
        %v6316 = vunpack.c.h.b16 %v3309
        %v6317 = vunpack.c.l.b16 %v3310
        %v6318 = vunpack.c.h.b16 %v3310
        %v6319 = vunpack.c.l.b16 %v3311
        %v6320 = vunpack.c.h.b16 %v3311
        %v6321 = vunpack.c.l.b16 %v3312
        %v6322 = vunpack.c.h.b16 %v3312
        %v6323 = vunpack.c.l.b16 %v3313
        %v6324 = vunpack.c.h.b16 %v3313
        %v6325 = vunpack.c.l.b16 %v3314
        %v6326 = vunpack.c.h.b16 %v3314
        %v6327 = vunpack.c.l.b16 %v3315
        %v6328 = vunpack.c.h.b16 %v3315
        %v6329 = vunpack.c.l.b16 %v3316
        %v6330 = vunpack.c.h.b16 %v3316
        %v6331 = vunpack.c.l.b16 %v3317
        %v6332 = vunpack.c.h.b16 %v3317
        %v6333 = vunpack.c.l.b16 %v3318
        %v6334 = vunpack.c.h.b16 %v3318
        %v6335 = vunpack.c.l.b16 %v3319
        %v6336 = vunpack.c.h.b16 %v3319
        %v6337 = vunpack.c.l.b16 %v3320
        %v6338 = vunpack.c.h.b16 %v3320
        %v6339 = vunpack.c.l.b16 %v3321
        %v6340 = vunpack.c.h.b16 %v3321
        %v6341 = vunpack.c.l.b16 %v3322
        %v6342 = vunpack.c.h.b16 %v3322
        %v6343 = vunpack.c.l.b16 %v3323
        %v6344 = vunpack.c.h.b16 %v3323
        %v6345 = vunpack.c.l.b16 %v3324
        %v6346 = vunpack.c.h.b16 %v3324
        %v6347 = vunpack.c.l.b16 %v3325
        %v6348 = vunpack.c.h.b16 %v3325
        %v6349 = vunpack.c.l.b16 %v3326
        %v6350 = vunpack.c.h.b16 %v3326
        %v6351 = vunpack.c.l.b16 %v3327
        %v6352 = vunpack.c.h.b16 %v3327
        %v6353 = vunpack.c.l.b16 %v3328
        %v6354 = vunpack.c.h.b16 %v3328
        %v6355 = vunpack.c.l.b16 %v3329
        %v6356 = vunpack.c.h.b16 %v3329
        %v6357 = vunpack.c.l.b16 %v3330
        %v6358 = vunpack.c.h.b16 %v3330
        %v6359 = vunpack.c.l.b16 %v3331
        %v6360 = vunpack.c.h.b16 %v3331
        %v6361 = vunpack.c.l.b16 %v3332
        %v6362 = vunpack.c.h.b16 %v3332
        %v6363 = vunpack.c.l.b16 %v3333
        %v6364 = vunpack.c.h.b16 %v3333
        %v6365 = vunpack.c.l.b16 %v3334
        %v6366 = vunpack.c.h.b16 %v3334
        %v6367 = vunpack.c.l.b16 %v3335
        %v6368 = vunpack.c.h.b16 %v3335
        %v6369 = vunpack.c.l.b16 %v3336
        %v6370 = vunpack.c.h.b16 %v3336
        %v6371 = vunpack.c.l.b16 %v3337
        %v6372 = vunpack.c.h.b16 %v3337
        %v6373 = vunpack.c.l.b16 %v3338
        %v6374 = vunpack.c.h.b16 %v3338
        %v6375 = vunpack.c.l.b16 %v3339
        %v6376 = vunpack.c.h.b16 %v3339
        %v6377 = vunpack.c.l.b16 %v3340
        %v6378 = vunpack.c.h.b16 %v3340
        %v6379 = vunpack.c.l.b16 %v3341
        %v6380 = vunpack.c.h.b16 %v3341
        %v6381 = vunpack.c.l.b16 %v3342
        %v6382 = vunpack.c.h.b16 %v3342
        %v6383 = vunpack.c.l.b16 %v3343
        %v6384 = vunpack.c.h.b16 %v3343
        %v6385 = vunpack.c.l.b16 %v3344
        %v6386 = vunpack.c.h.b16 %v3344
        %v6387 = vunpack.c.l.b16 %v3345
        %v6388 = vunpack.c.h.b16 %v3345
        %v6389 = vunpack.c.l.b16 %v3346
        %v6390 = vunpack.c.h.b16 %v3346
        %v6391 = vunpack.c.l.b16 %v3347
        %v6392 = vunpack.c.h.b16 %v3347
        %v6393 = vunpack.c.l.b16 %v3348
        %v6394 = vunpack.c.h.b16 %v3348
        %v6395 = vunpack.c.l.b16 %v3349
        %v6396 = vunpack.c.h.b16 %v3349
        %v6397 = vunpack.c.l.b16 %v3350
        %v6398 = vunpack.c.h.b16 %v3350
        %v6399 = vunpack.c.l.b16 %v3351
        %v6400 = vunpack.c.h.b16 %v3351
        %v6401 = vunpack.c.l.b16 %v3352
        %v6402 = vunpack.c.h.b16 %v3352
        %v6403 = vunpack.c.l.b16 %v3353
        %v6404 = vunpack.c.h.b16 %v3353
        %v6405 = vunpack.c.l.b16 %v3354
        %v6406 = vunpack.c.h.b16 %v3354
        %v6407 = vunpack.c.l.b16 %v3355
        %v6408 = vunpack.c.h.b16 %v3355
        %v6409 = vunpack.c.l.b16 %v3356
        %v6410 = vunpack.c.h.b16 %v3356
        %v6411 = vunpack.c.l.b16 %v3357
        %v6412 = vunpack.c.h.b16 %v3357
        %v6413 = vunpack.c.l.b16 %v3358
        %v6414 = vunpack.c.h.b16 %v3358
        %v6415 = vunpack.c.l.b16 %v3359
        %v6416 = vunpack.c.h.b16 %v3359
        %v6417 = vunpack.c.l.b16 %v3360
        %v6418 = vunpack.c.h.b16 %v3360
        %v6419 = vunpack.c.l.b16 %v3361
        %v6420 = vunpack.c.h.b16 %v3361
        %v6421 = vunpack.c.l.b16 %v3362
        %v6422 = vunpack.c.h.b16 %v3362
        %v6423 = vunpack.c.l.b16 %v3363
        %v6424 = vunpack.c.h.b16 %v3363
        %v6425 = vunpack.c.l.b16 %v3364
        %v6426 = vunpack.c.h.b16 %v3364
        %v6427 = vunpack.c.l.b16 %v3365
        %v6428 = vunpack.c.h.b16 %v3365
        %v6429 = vunpack.c.l.b16 %v3366
        %v6430 = vunpack.c.h.b16 %v3366
        %v6431 = vunpack.c.l.b16 %v3367
        %v6432 = vunpack.c.h.b16 %v3367
        %v6433 = vunpack.c.l.b16 %v3368
        %v6434 = vunpack.c.h.b16 %v3368
        %v6435 = vunpack.c.l.b16 %v3369
        %v6436 = vunpack.c.h.b16 %v3369
        %v6437 = vunpack.c.l.b16 %v3370
        %v6438 = vunpack.c.h.b16 %v3370
        %v6439 = vunpack.c.l.b16 %v3371
        %v6440 = vunpack.c.h.b16 %v3371
        %v6441 = vunpack.c.l.b16 %v3372
        %v6442 = vunpack.c.h.b16 %v3372
        %v6443 = vunpack.c.l.b16 %v3373
        %v6444 = vunpack.c.h.b16 %v3373
        %v6445 = vunpack.c.l.b16 %v3374
        %v6446 = vunpack.c.h.b16 %v3374
        %v6447 = vunpack.c.l.b16 %v3375
        %v6448 = vunpack.c.h.b16 %v3375
        %v6449 = vunpack.c.l.b16 %v3376
        %v6450 = vunpack.c.h.b16 %v3376
        %v6451 = vunpack.c.l.b16 %v3377
        %v6452 = vunpack.c.h.b16 %v3377
        %v6453 = vunpack.c.l.b16 %v3378
        %v6454 = vunpack.c.h.b16 %v3378
        %v6455 = vunpack.c.l.b16 %v3379
        %v6456 = vunpack.c.h.b16 %v3379
        %v6457 = vunpack.c.l.b16 %v3380
        %v6458 = vunpack.c.h.b16 %v3380
        %v6459 = vunpack.c.l.b16 %v3381
        %v6460 = vunpack.c.h.b16 %v3381
        %v6461 = vunpack.c.l.b16 %v3382
        %v6462 = vunpack.c.h.b16 %v3382
        %v6463 = vunpack.c.l.b16 %v3383
        %v6464 = vunpack.c.h.b16 %v3383
        %v6465 = vunpack.c.l.b16 %v3384
        %v6466 = vunpack.c.h.b16 %v3384
        %v6467 = vunpack.c.l.b16 %v3385
        %v6468 = vunpack.c.h.b16 %v3385
        %v6469 = vunpack.c.l.b16 %v3386
        %v6470 = vunpack.c.h.b16 %v3386
        %v6471 = vunpack.c.l.b16 %v3387
        %v6472 = vunpack.c.h.b16 %v3387
        %v6473 = vunpack.c.l.b16 %v3388
        %v6474 = vunpack.c.h.b16 %v3388
        %v6475 = vunpack.c.l.b16 %v3389
        %v6476 = vunpack.c.h.b16 %v3389
        %v6477 = vunpack.c.l.b16 %v3390
        %v6478 = vunpack.c.h.b16 %v3390
        %v6479 = vunpack.c.l.b16 %v3391
        %v6480 = vunpack.c.h.b16 %v3391
        %v6481 = vunpack.c.l.b16 %v3392
        %v6482 = vunpack.c.h.b16 %v3392
        %v6483 = vunpack.c.l.b16 %v3393
        %v6484 = vunpack.c.h.b16 %v3393
        %v6485 = vunpack.c.l.b16 %v3394
        %v6486 = vunpack.c.h.b16 %v3394
        %v6487 = vunpack.c.l.b16 %v3395
        %v6488 = vunpack.c.h.b16 %v3395
        %v6489 = vunpack.c.l.b16 %v3396
        %v6490 = vunpack.c.h.b16 %v3396
        %v6491 = vunpack.c.l.b16 %v3397
        %v6492 = vunpack.c.h.b16 %v3397
        %v6493 = vunpack.c.l.b16 %v3398
        %v6494 = vunpack.c.h.b16 %v3398
        %v6495 = vunpack.c.l.b16 %v3399
        %v6496 = vunpack.c.h.b16 %v3399
        %v6497 = vunpack.c.l.b16 %v3400
        %v6498 = vunpack.c.h.b16 %v3400
        %v6499 = vunpack.c.l.b16 %v3401
        %v6500 = vunpack.c.h.b16 %v3401
        %v6501 = vunpack.c.l.b16 %v3402
        %v6502 = vunpack.c.h.b16 %v3402
        %v6503 = vunpack.c.l.b16 %v3403
        %v6504 = vunpack.c.h.b16 %v3403
        %v6505 = vunpack.c.l.b16 %v3404
        %v6506 = vunpack.c.h.b16 %v3404
        %v6507 = vunpack.c.l.b16 %v3405
        %v6508 = vunpack.c.h.b16 %v3405
        %v6509 = vunpack.c.l.b16 %v3406
        %v6510 = vunpack.c.h.b16 %v3406
        %v6511 = vunpack.c.l.b16 %v3407
        %v6512 = vunpack.c.h.b16 %v3407
        %v6513 = vunpack.c.l.b16 %v3408
        %v6514 = vunpack.c.h.b16 %v3408
        %v6515 = vunpack.c.l.b16 %v3409
        %v6516 = vunpack.c.h.b16 %v3409
        %v6517 = vunpack.c.l.b16 %v3410
        %v6518 = vunpack.c.h.b16 %v3410
        %v6519 = vunpack.c.l.b16 %v3411
        %v6520 = vunpack.c.h.b16 %v3411
        %v6521 = vunpack.c.l.b16 %v3412
        %v6522 = vunpack.c.h.b16 %v3412
        %v6523 = vunpack.c.l.b16 %v3413
        %v6524 = vunpack.c.h.b16 %v3413
        %v6525 = vunpack.c.l.b16 %v3414
        %v6526 = vunpack.c.h.b16 %v3414
        %v6527 = vunpack.c.l.b16 %v3415
        %v6528 = vunpack.c.h.b16 %v3415
        %v6529 = vunpack.c.l.b16 %v3416
        %v6530 = vunpack.c.h.b16 %v3416
        %v6531 = vpack.c.b16 %v4491, %v4483
        %v6532 = vpack.c.b16 %v4492, %v4484
        %v6533 = vpack.c.b16 %v4493, %v4485
        %v6534 = vpack.c.b16 %v4494, %v4486
        %v6535 = vpack.c.b16 %v4495, %v4487
        %v6536 = vpack.c.b16 %v4496, %v4488
        %v6537 = vpack.c.b16 %v4497, %v4489
        %v6538 = vpack.c.b16 %v4498, %v4490
        %v6539 = vpack.c.b16 %v4507, %v4499
        %v6540 = vpack.c.b16 %v4508, %v4500
        %v6541 = vpack.c.b16 %v4509, %v4501
        %v6542 = vpack.c.b16 %v4510, %v4502
        %v6543 = vpack.c.b16 %v4511, %v4503
        %v6544 = vpack.c.b16 %v4512, %v4504
        %v6545 = vpack.c.b16 %v4513, %v4505
        %v6546 = vpack.c.b16 %v4514, %v4506
        %v6547 = vpack.c.b16 %v4523, %v4515
        %v6548 = vpack.c.b16 %v4524, %v4516
        %v6549 = vpack.c.b16 %v4525, %v4517
        %v6550 = vpack.c.b16 %v4526, %v4518
        %v6551 = vpack.c.b16 %v4527, %v4519
        %v6552 = vpack.c.b16 %v4528, %v4520
        %v6553 = vpack.c.b16 %v4529, %v4521
        %v6554 = vpack.c.b16 %v4530, %v4522
        %v6555 = vpack.c.b16 %v4539, %v4531
        %v6556 = vpack.c.b16 %v4540, %v4532
        %v6557 = vpack.c.b16 %v4541, %v4533
        %v6558 = vpack.c.b16 %v4542, %v4534
        %v6559 = vpack.c.b16 %v4543, %v4535
        %v6560 = vpack.c.b16 %v4544, %v4536
        %v6561 = vpack.c.b16 %v4545, %v4537
        %v6562 = vpack.c.b16 %v4546, %v4538
        %v6563 = vpack.c.b16 %v4555, %v4547
        %v6564 = vpack.c.b16 %v4556, %v4548
        %v6565 = vpack.c.b16 %v4557, %v4549
        %v6566 = vpack.c.b16 %v4558, %v4550
        %v6567 = vpack.c.b16 %v4559, %v4551
        %v6568 = vpack.c.b16 %v4560, %v4552
        %v6569 = vpack.c.b16 %v4561, %v4553
        %v6570 = vpack.c.b16 %v4562, %v4554
        %v6571 = vpack.c.b16 %v4571, %v4563
        %v6572 = vpack.c.b16 %v4572, %v4564
        %v6573 = vpack.c.b16 %v4573, %v4565
        %v6574 = vpack.c.b16 %v4574, %v4566
        %v6575 = vpack.c.b16 %v4575, %v4567
        %v6576 = vpack.c.b16 %v4576, %v4568
        %v6577 = vpack.c.b16 %v4577, %v4569
        %v6578 = vpack.c.b16 %v4578, %v4570
        %v6579 = vpack.c.b16 %v4587, %v4579
        %v6580 = vpack.c.b16 %v4588, %v4580
        %v6581 = vpack.c.b16 %v4589, %v4581
        %v6582 = vpack.c.b16 %v4590, %v4582
        %v6583 = vpack.c.b16 %v4591, %v4583
        %v6584 = vpack.c.b16 %v4592, %v4584
        %v6585 = vpack.c.b16 %v4593, %v4585
        %v6586 = vpack.c.b16 %v4594, %v4586
        %v6587 = vpack.c.b16 %v4603, %v4595
        %v6588 = vpack.c.b16 %v4604, %v4596
        %v6589 = vpack.c.b16 %v4605, %v4597
        %v6590 = vpack.c.b16 %v4606, %v4598
        %v6591 = vpack.c.b16 %v4607, %v4599
        %v6592 = vpack.c.b16 %v4608, %v4600
        %v6593 = vpack.c.b16 %v4609, %v4601
        %v6594 = vpack.c.b16 %v4610, %v4602
        %v6595 = vpack.c.b16 %v4619, %v4611
        %v6596 = vpack.c.b16 %v4620, %v4612
        %v6597 = vpack.c.b16 %v4621, %v4613
        %v6598 = vpack.c.b16 %v4622, %v4614
        %v6599 = vpack.c.b16 %v4623, %v4615
        %v6600 = vpack.c.b16 %v4624, %v4616
        %v6601 = vpack.c.b16 %v4625, %v4617
        %v6602 = vpack.c.b16 %v4626, %v4618
        %v6603 = vpack.c.b16 %v4635, %v4627
        %v6604 = vpack.c.b16 %v4636, %v4628
        %v6605 = vpack.c.b16 %v4637, %v4629
        %v6606 = vpack.c.b16 %v4638, %v4630
        %v6607 = vpack.c.b16 %v4639, %v4631
        %v6608 = vpack.c.b16 %v4640, %v4632
        %v6609 = vpack.c.b16 %v4641, %v4633
        %v6610 = vpack.c.b16 %v4642, %v4634
        %v6611 = vpack.c.b16 %v4651, %v4643
        %v6612 = vpack.c.b16 %v4652, %v4644
        %v6613 = vpack.c.b16 %v4653, %v4645
        %v6614 = vpack.c.b16 %v4654, %v4646
        %v6615 = vpack.c.b16 %v4655, %v4647
        %v6616 = vpack.c.b16 %v4656, %v4648
        %v6617 = vpack.c.b16 %v4657, %v4649
        %v6618 = vpack.c.b16 %v4658, %v4650
        %v6619 = vpack.c.b16 %v4667, %v4659
        %v6620 = vpack.c.b16 %v4668, %v4660
        %v6621 = vpack.c.b16 %v4669, %v4661
        %v6622 = vpack.c.b16 %v4670, %v4662
        %v6623 = vpack.c.b16 %v4671, %v4663
        %v6624 = vpack.c.b16 %v4672, %v4664
        %v6625 = vpack.c.b16 %v4673, %v4665
        %v6626 = vpack.c.b16 %v4674, %v4666
        %v6627 = vpack.c.b16 %v4683, %v4675
        %v6628 = vpack.c.b16 %v4684, %v4676
        %v6629 = vpack.c.b16 %v4685, %v4677
        %v6630 = vpack.c.b16 %v4686, %v4678
        %v6631 = vpack.c.b16 %v4687, %v4679
        %v6632 = vpack.c.b16 %v4688, %v4680
        %v6633 = vpack.c.b16 %v4689, %v4681
        %v6634 = vpack.c.b16 %v4690, %v4682
        %v6635 = vpack.c.b16 %v4699, %v4691
        %v6636 = vpack.c.b16 %v4700, %v4692
        %v6637 = vpack.c.b16 %v4701, %v4693
        %v6638 = vpack.c.b16 %v4702, %v4694
        %v6639 = vpack.c.b16 %v4703, %v4695
        %v6640 = vpack.c.b16 %v4704, %v4696
        %v6641 = vpack.c.b16 %v4705, %v4697
        %v6642 = vpack.c.b16 %v4706, %v4698
        %v6643 = vpack.c.b16 %v4715, %v4707
        %v6644 = vpack.c.b16 %v4716, %v4708
        %v6645 = vpack.c.b16 %v4717, %v4709
        %v6646 = vpack.c.b16 %v4718, %v4710
        %v6647 = vpack.c.b16 %v4719, %v4711
        %v6648 = vpack.c.b16 %v4720, %v4712
        %v6649 = vpack.c.b16 %v4721, %v4713
        %v6650 = vpack.c.b16 %v4722, %v4714
        %v6651 = vpack.c.b16 %v4731, %v4723
        %v6652 = vpack.c.b16 %v4732, %v4724
        %v6653 = vpack.c.b16 %v4733, %v4725
        %v6654 = vpack.c.b16 %v4734, %v4726
        %v6655 = vpack.c.b16 %v4735, %v4727
        %v6656 = vpack.c.b16 %v4736, %v4728
        %v6657 = vpack.c.b16 %v4737, %v4729
        %v6658 = vpack.c.b16 %v4738, %v4730
        %v6659 = vpack.c.b16 %v4747, %v4739
        %v6660 = vpack.c.b16 %v4748, %v4740
        %v6661 = vpack.c.b16 %v4749, %v4741
        %v6662 = vpack.c.b16 %v4750, %v4742
        %v6663 = vpack.c.b16 %v4751, %v4743
        %v6664 = vpack.c.b16 %v4752, %v4744
        %v6665 = vpack.c.b16 %v4753, %v4745
        %v6666 = vpack.c.b16 %v4754, %v4746
        %v6667 = vpack.c.b16 %v4763, %v4755
        %v6668 = vpack.c.b16 %v4764, %v4756
        %v6669 = vpack.c.b16 %v4765, %v4757
        %v6670 = vpack.c.b16 %v4766, %v4758
        %v6671 = vpack.c.b16 %v4767, %v4759
        %v6672 = vpack.c.b16 %v4768, %v4760
        %v6673 = vpack.c.b16 %v4769, %v4761
        %v6674 = vpack.c.b16 %v4770, %v4762
        %v6675 = vpack.c.b16 %v4779, %v4771
        %v6676 = vpack.c.b16 %v4780, %v4772
        %v6677 = vpack.c.b16 %v4781, %v4773
        %v6678 = vpack.c.b16 %v4782, %v4774
        %v6679 = vpack.c.b16 %v4783, %v4775
        %v6680 = vpack.c.b16 %v4784, %v4776
        %v6681 = vpack.c.b16 %v4785, %v4777
        %v6682 = vpack.c.b16 %v4786, %v4778
        %v6683 = vpack.c.b16 %v4795, %v4787
        %v6684 = vpack.c.b16 %v4796, %v4788
        %v6685 = vpack.c.b16 %v4797, %v4789
        %v6686 = vpack.c.b16 %v4798, %v4790
        %v6687 = vpack.c.b16 %v4799, %v4791
        %v6688 = vpack.c.b16 %v4800, %v4792
        %v6689 = vpack.c.b16 %v4801, %v4793
        %v6690 = vpack.c.b16 %v4802, %v4794
        %v6691 = vpack.c.b16 %v4811, %v4803
        %v6692 = vpack.c.b16 %v4812, %v4804
        %v6693 = vpack.c.b16 %v4813, %v4805
        %v6694 = vpack.c.b16 %v4814, %v4806
        %v6695 = vpack.c.b16 %v4815, %v4807
        %v6696 = vpack.c.b16 %v4816, %v4808
        %v6697 = vpack.c.b16 %v4817, %v4809
        %v6698 = vpack.c.b16 %v4818, %v4810
        %v6699 = vpack.c.b16 %v4827, %v4819
        %v6700 = vpack.c.b16 %v4828, %v4820
        %v6701 = vpack.c.b16 %v4829, %v4821
        %v6702 = vpack.c.b16 %v4830, %v4822
        %v6703 = vpack.c.b16 %v4831, %v4823
        %v6704 = vpack.c.b16 %v4832, %v4824
        %v6705 = vpack.c.b16 %v4833, %v4825
        %v6706 = vpack.c.b16 %v4834, %v4826
        %v6707 = vpack.c.b16 %v4843, %v4835
        %v6708 = vpack.c.b16 %v4844, %v4836
        %v6709 = vpack.c.b16 %v4845, %v4837
        %v6710 = vpack.c.b16 %v4846, %v4838
        %v6711 = vpack.c.b16 %v4847, %v4839
        %v6712 = vpack.c.b16 %v4848, %v4840
        %v6713 = vpack.c.b16 %v4849, %v4841
        %v6714 = vpack.c.b16 %v4850, %v4842
        %v6715 = vpack.c.b16 %v4859, %v4851
        %v6716 = vpack.c.b16 %v4860, %v4852
        %v6717 = vpack.c.b16 %v4861, %v4853
        %v6718 = vpack.c.b16 %v4862, %v4854
        %v6719 = vpack.c.b16 %v4863, %v4855
        %v6720 = vpack.c.b16 %v4864, %v4856
        %v6721 = vpack.c.b16 %v4865, %v4857
        %v6722 = vpack.c.b16 %v4866, %v4858
        %v6723 = vpack.c.b16 %v4875, %v4867
        %v6724 = vpack.c.b16 %v4876, %v4868
        %v6725 = vpack.c.b16 %v4877, %v4869
        %v6726 = vpack.c.b16 %v4878, %v4870
        %v6727 = vpack.c.b16 %v4879, %v4871
        %v6728 = vpack.c.b16 %v4880, %v4872
        %v6729 = vpack.c.b16 %v4881, %v4873
        %v6730 = vpack.c.b16 %v4882, %v4874
        %v6731 = vpack.c.b16 %v4891, %v4883
        %v6732 = vpack.c.b16 %v4892, %v4884
        %v6733 = vpack.c.b16 %v4893, %v4885
        %v6734 = vpack.c.b16 %v4894, %v4886
        %v6735 = vpack.c.b16 %v4895, %v4887
        %v6736 = vpack.c.b16 %v4896, %v4888
        %v6737 = vpack.c.b16 %v4897, %v4889
        %v6738 = vpack.c.b16 %v4898, %v4890
        %v6739 = vpack.c.b16 %v4907, %v4899
        %v6740 = vpack.c.b16 %v4908, %v4900
        %v6741 = vpack.c.b16 %v4909, %v4901
        %v6742 = vpack.c.b16 %v4910, %v4902
        %v6743 = vpack.c.b16 %v4911, %v4903
        %v6744 = vpack.c.b16 %v4912, %v4904
        %v6745 = vpack.c.b16 %v4913, %v4905
        %v6746 = vpack.c.b16 %v4914, %v4906
        %v6747 = vpack.c.b16 %v4923, %v4915
        %v6748 = vpack.c.b16 %v4924, %v4916
        %v6749 = vpack.c.b16 %v4925, %v4917
        %v6750 = vpack.c.b16 %v4926, %v4918
        %v6751 = vpack.c.b16 %v4927, %v4919
        %v6752 = vpack.c.b16 %v4928, %v4920
        %v6753 = vpack.c.b16 %v4929, %v4921
        %v6754 = vpack.c.b16 %v4930, %v4922
        %v6755 = vpack.c.b16 %v4939, %v4931
        %v6756 = vpack.c.b16 %v4940, %v4932
        %v6757 = vpack.c.b16 %v4941, %v4933
        %v6758 = vpack.c.b16 %v4942, %v4934
        %v6759 = vpack.c.b16 %v4943, %v4935
        %v6760 = vpack.c.b16 %v4944, %v4936
        %v6761 = vpack.c.b16 %v4945, %v4937
        %v6762 = vpack.c.b16 %v4946, %v4938
        %v6763 = vpack.c.b16 %v4955, %v4947
        %v6764 = vpack.c.b16 %v4956, %v4948
        %v6765 = vpack.c.b16 %v4957, %v4949
        %v6766 = vpack.c.b16 %v4958, %v4950
        %v6767 = vpack.c.b16 %v4959, %v4951
        %v6768 = vpack.c.b16 %v4960, %v4952
        %v6769 = vpack.c.b16 %v4961, %v4953
        %v6770 = vpack.c.b16 %v4962, %v4954
        %v6771 = vpack.c.b16 %v4971, %v4963
        %v6772 = vpack.c.b16 %v4972, %v4964
        %v6773 = vpack.c.b16 %v4973, %v4965
        %v6774 = vpack.c.b16 %v4974, %v4966
        %v6775 = vpack.c.b16 %v4975, %v4967
        %v6776 = vpack.c.b16 %v4976, %v4968
        %v6777 = vpack.c.b16 %v4977, %v4969
        %v6778 = vpack.c.b16 %v4978, %v4970
        %v6779 = vpack.c.b16 %v4987, %v4979
        %v6780 = vpack.c.b16 %v4988, %v4980
        %v6781 = vpack.c.b16 %v4989, %v4981
        %v6782 = vpack.c.b16 %v4990, %v4982
        %v6783 = vpack.c.b16 %v4991, %v4983
        %v6784 = vpack.c.b16 %v4992, %v4984
        %v6785 = vpack.c.b16 %v4993, %v4985
        %v6786 = vpack.c.b16 %v4994, %v4986
        %v6787 = vpack.c.b16 %v5003, %v4995
        %v6788 = vpack.c.b16 %v5004, %v4996
        %v6789 = vpack.c.b16 %v5005, %v4997
        %v6790 = vpack.c.b16 %v5006, %v4998
        %v6791 = vpack.c.b16 %v5007, %v4999
        %v6792 = vpack.c.b16 %v5008, %v5000
        %v6793 = vpack.c.b16 %v5009, %v5001
        %v6794 = vpack.c.b16 %v5010, %v5002
        %v6795 = vpack.c.b16 %v5019, %v5011
        %v6796 = vpack.c.b16 %v5020, %v5012
        %v6797 = vpack.c.b16 %v5021, %v5013
        %v6798 = vpack.c.b16 %v5022, %v5014
        %v6799 = vpack.c.b16 %v5023, %v5015
        %v6800 = vpack.c.b16 %v5024, %v5016
        %v6801 = vpack.c.b16 %v5025, %v5017
        %v6802 = vpack.c.b16 %v5026, %v5018
        %v6803 = vpack.c.b16 %v5035, %v5027
        %v6804 = vpack.c.b16 %v5036, %v5028
        %v6805 = vpack.c.b16 %v5037, %v5029
        %v6806 = vpack.c.b16 %v5038, %v5030
        %v6807 = vpack.c.b16 %v5039, %v5031
        %v6808 = vpack.c.b16 %v5040, %v5032
        %v6809 = vpack.c.b16 %v5041, %v5033
        %v6810 = vpack.c.b16 %v5042, %v5034
        %v6811 = vpack.c.b16 %v5051, %v5043
        %v6812 = vpack.c.b16 %v5052, %v5044
        %v6813 = vpack.c.b16 %v5053, %v5045
        %v6814 = vpack.c.b16 %v5054, %v5046
        %v6815 = vpack.c.b16 %v5055, %v5047
        %v6816 = vpack.c.b16 %v5056, %v5048
        %v6817 = vpack.c.b16 %v5057, %v5049
        %v6818 = vpack.c.b16 %v5058, %v5050
        %v6819 = vpack.c.b16 %v5067, %v5059
        %v6820 = vpack.c.b16 %v5068, %v5060
        %v6821 = vpack.c.b16 %v5069, %v5061
        %v6822 = vpack.c.b16 %v5070, %v5062
        %v6823 = vpack.c.b16 %v5071, %v5063
        %v6824 = vpack.c.b16 %v5072, %v5064
        %v6825 = vpack.c.b16 %v5073, %v5065
        %v6826 = vpack.c.b16 %v5074, %v5066
        %v6827 = vpack.c.b16 %v5083, %v5075
        %v6828 = vpack.c.b16 %v5084, %v5076
        %v6829 = vpack.c.b16 %v5085, %v5077
        %v6830 = vpack.c.b16 %v5086, %v5078
        %v6831 = vpack.c.b16 %v5087, %v5079
        %v6832 = vpack.c.b16 %v5088, %v5080
        %v6833 = vpack.c.b16 %v5089, %v5081
        %v6834 = vpack.c.b16 %v5090, %v5082
        %v6835 = vpack.c.b16 %v5099, %v5091
        %v6836 = vpack.c.b16 %v5100, %v5092
        %v6837 = vpack.c.b16 %v5101, %v5093
        %v6838 = vpack.c.b16 %v5102, %v5094
        %v6839 = vpack.c.b16 %v5103, %v5095
        %v6840 = vpack.c.b16 %v5104, %v5096
        %v6841 = vpack.c.b16 %v5105, %v5097
        %v6842 = vpack.c.b16 %v5106, %v5098
        %v6843 = vpack.c.b16 %v5115, %v5107
        %v6844 = vpack.c.b16 %v5116, %v5108
        %v6845 = vpack.c.b16 %v5117, %v5109
        %v6846 = vpack.c.b16 %v5118, %v5110
        %v6847 = vpack.c.b16 %v5119, %v5111
        %v6848 = vpack.c.b16 %v5120, %v5112
        %v6849 = vpack.c.b16 %v5121, %v5113
        %v6850 = vpack.c.b16 %v5122, %v5114
        %v6851 = vpack.c.b16 %v5131, %v5123
        %v6852 = vpack.c.b16 %v5132, %v5124
        %v6853 = vpack.c.b16 %v5133, %v5125
        %v6854 = vpack.c.b16 %v5134, %v5126
        %v6855 = vpack.c.b16 %v5135, %v5127
        %v6856 = vpack.c.b16 %v5136, %v5128
        %v6857 = vpack.c.b16 %v5137, %v5129
        %v6858 = vpack.c.b16 %v5138, %v5130
        %v6859 = vpack.c.b16 %v5147, %v5139
        %v6860 = vpack.c.b16 %v5148, %v5140
        %v6861 = vpack.c.b16 %v5149, %v5141
        %v6862 = vpack.c.b16 %v5150, %v5142
        %v6863 = vpack.c.b16 %v5151, %v5143
        %v6864 = vpack.c.b16 %v5152, %v5144
        %v6865 = vpack.c.b16 %v5153, %v5145
        %v6866 = vpack.c.b16 %v5154, %v5146
        %v6867 = vpack.c.b16 %v5163, %v5155
        %v6868 = vpack.c.b16 %v5164, %v5156
        %v6869 = vpack.c.b16 %v5165, %v5157
        %v6870 = vpack.c.b16 %v5166, %v5158
        %v6871 = vpack.c.b16 %v5167, %v5159
        %v6872 = vpack.c.b16 %v5168, %v5160
        %v6873 = vpack.c.b16 %v5169, %v5161
        %v6874 = vpack.c.b16 %v5170, %v5162
        %v6875 = vpack.c.b16 %v5179, %v5171
        %v6876 = vpack.c.b16 %v5180, %v5172
        %v6877 = vpack.c.b16 %v5181, %v5173
        %v6878 = vpack.c.b16 %v5182, %v5174
        %v6879 = vpack.c.b16 %v5183, %v5175
        %v6880 = vpack.c.b16 %v5184, %v5176
        %v6881 = vpack.c.b16 %v5185, %v5177
        %v6882 = vpack.c.b16 %v5186, %v5178
        %v6883 = vpack.c.b16 %v5195, %v5187
        %v6884 = vpack.c.b16 %v5196, %v5188
        %v6885 = vpack.c.b16 %v5197, %v5189
        %v6886 = vpack.c.b16 %v5198, %v5190
        %v6887 = vpack.c.b16 %v5199, %v5191
        %v6888 = vpack.c.b16 %v5200, %v5192
        %v6889 = vpack.c.b16 %v5201, %v5193
        %v6890 = vpack.c.b16 %v5202, %v5194
        %v6891 = vpack.c.b16 %v5211, %v5203
        %v6892 = vpack.c.b16 %v5212, %v5204
        %v6893 = vpack.c.b16 %v5213, %v5205
        %v6894 = vpack.c.b16 %v5214, %v5206
        %v6895 = vpack.c.b16 %v5215, %v5207
        %v6896 = vpack.c.b16 %v5216, %v5208
        %v6897 = vpack.c.b16 %v5217, %v5209
        %v6898 = vpack.c.b16 %v5218, %v5210
        %v6899 = vpack.c.b16 %v5227, %v5219
        %v6900 = vpack.c.b16 %v5228, %v5220
        %v6901 = vpack.c.b16 %v5229, %v5221
        %v6902 = vpack.c.b16 %v5230, %v5222
        %v6903 = vpack.c.b16 %v5231, %v5223
        %v6904 = vpack.c.b16 %v5232, %v5224
        %v6905 = vpack.c.b16 %v5233, %v5225
        %v6906 = vpack.c.b16 %v5234, %v5226
        %v6907 = vpack.c.b16 %v5243, %v5235
        %v6908 = vpack.c.b16 %v5244, %v5236
        %v6909 = vpack.c.b16 %v5245, %v5237
        %v6910 = vpack.c.b16 %v5246, %v5238
        %v6911 = vpack.c.b16 %v5247, %v5239
        %v6912 = vpack.c.b16 %v5248, %v5240
        %v6913 = vpack.c.b16 %v5249, %v5241
        %v6914 = vpack.c.b16 %v5250, %v5242
        %v6915 = vpack.c.b16 %v5259, %v5251
        %v6916 = vpack.c.b16 %v5260, %v5252
        %v6917 = vpack.c.b16 %v5261, %v5253
        %v6918 = vpack.c.b16 %v5262, %v5254
        %v6919 = vpack.c.b16 %v5263, %v5255
        %v6920 = vpack.c.b16 %v5264, %v5256
        %v6921 = vpack.c.b16 %v5265, %v5257
        %v6922 = vpack.c.b16 %v5266, %v5258
        %v6923 = vpack.c.b16 %v5275, %v5267
        %v6924 = vpack.c.b16 %v5276, %v5268
        %v6925 = vpack.c.b16 %v5277, %v5269
        %v6926 = vpack.c.b16 %v5278, %v5270
        %v6927 = vpack.c.b16 %v5279, %v5271
        %v6928 = vpack.c.b16 %v5280, %v5272
        %v6929 = vpack.c.b16 %v5281, %v5273
        %v6930 = vpack.c.b16 %v5282, %v5274
        %v6931 = vpack.c.b16 %v5291, %v5283
        %v6932 = vpack.c.b16 %v5292, %v5284
        %v6933 = vpack.c.b16 %v5293, %v5285
        %v6934 = vpack.c.b16 %v5294, %v5286
        %v6935 = vpack.c.b16 %v5295, %v5287
        %v6936 = vpack.c.b16 %v5296, %v5288
        %v6937 = vpack.c.b16 %v5297, %v5289
        %v6938 = vpack.c.b16 %v5298, %v5290
        %v6939 = vpack.c.b16 %v5307, %v5299
        %v6940 = vpack.c.b16 %v5308, %v5300
        %v6941 = vpack.c.b16 %v5309, %v5301
        %v6942 = vpack.c.b16 %v5310, %v5302
        %v6943 = vpack.c.b16 %v5311, %v5303
        %v6944 = vpack.c.b16 %v5312, %v5304
        %v6945 = vpack.c.b16 %v5313, %v5305
        %v6946 = vpack.c.b16 %v5314, %v5306
        %v6947 = vpack.c.b16 %v5323, %v5315
        %v6948 = vpack.c.b16 %v5324, %v5316
        %v6949 = vpack.c.b16 %v5325, %v5317
        %v6950 = vpack.c.b16 %v5326, %v5318
        %v6951 = vpack.c.b16 %v5327, %v5319
        %v6952 = vpack.c.b16 %v5328, %v5320
        %v6953 = vpack.c.b16 %v5329, %v5321
        %v6954 = vpack.c.b16 %v5330, %v5322
        %v6955 = vpack.c.b16 %v5339, %v5331
        %v6956 = vpack.c.b16 %v5340, %v5332
        %v6957 = vpack.c.b16 %v5341, %v5333
        %v6958 = vpack.c.b16 %v5342, %v5334
        %v6959 = vpack.c.b16 %v5343, %v5335
        %v6960 = vpack.c.b16 %v5344, %v5336
        %v6961 = vpack.c.b16 %v5345, %v5337
        %v6962 = vpack.c.b16 %v5346, %v5338
        %v6963 = vpack.c.b16 %v5355, %v5347
        %v6964 = vpack.c.b16 %v5356, %v5348
        %v6965 = vpack.c.b16 %v5357, %v5349
        %v6966 = vpack.c.b16 %v5358, %v5350
        %v6967 = vpack.c.b16 %v5359, %v5351
        %v6968 = vpack.c.b16 %v5360, %v5352
        %v6969 = vpack.c.b16 %v5361, %v5353
        %v6970 = vpack.c.b16 %v5362, %v5354
        %v6971 = vpack.c.b16 %v5371, %v5363
        %v6972 = vpack.c.b16 %v5372, %v5364
        %v6973 = vpack.c.b16 %v5373, %v5365
        %v6974 = vpack.c.b16 %v5374, %v5366
        %v6975 = vpack.c.b16 %v5375, %v5367
        %v6976 = vpack.c.b16 %v5376, %v5368
        %v6977 = vpack.c.b16 %v5377, %v5369
        %v6978 = vpack.c.b16 %v5378, %v5370
        %v6979 = vpack.c.b16 %v5387, %v5379
        %v6980 = vpack.c.b16 %v5388, %v5380
        %v6981 = vpack.c.b16 %v5389, %v5381
        %v6982 = vpack.c.b16 %v5390, %v5382
        %v6983 = vpack.c.b16 %v5391, %v5383
        %v6984 = vpack.c.b16 %v5392, %v5384
        %v6985 = vpack.c.b16 %v5393, %v5385
        %v6986 = vpack.c.b16 %v5394, %v5386
        %v6987 = vpack.c.b16 %v5403, %v5395
        %v6988 = vpack.c.b16 %v5404, %v5396
        %v6989 = vpack.c.b16 %v5405, %v5397
        %v6990 = vpack.c.b16 %v5406, %v5398
        %v6991 = vpack.c.b16 %v5407, %v5399
        %v6992 = vpack.c.b16 %v5408, %v5400
        %v6993 = vpack.c.b16 %v5409, %v5401
        %v6994 = vpack.c.b16 %v5410, %v5402
        %v6995 = vpack.c.b16 %v5419, %v5411
        %v6996 = vpack.c.b16 %v5420, %v5412
        %v6997 = vpack.c.b16 %v5421, %v5413
        %v6998 = vpack.c.b16 %v5422, %v5414
        %v6999 = vpack.c.b16 %v5423, %v5415
        %v7000 = vpack.c.b16 %v5424, %v5416
        %v7001 = vpack.c.b16 %v5425, %v5417
        %v7002 = vpack.c.b16 %v5426, %v5418
        %v7003 = vpack.c.b16 %v5435, %v5427
        %v7004 = vpack.c.b16 %v5436, %v5428
        %v7005 = vpack.c.b16 %v5437, %v5429
        %v7006 = vpack.c.b16 %v5438, %v5430
        %v7007 = vpack.c.b16 %v5439, %v5431
        %v7008 = vpack.c.b16 %v5440, %v5432
        %v7009 = vpack.c.b16 %v5441, %v5433
        %v7010 = vpack.c.b16 %v5442, %v5434
        %v7011 = vpack.c.b16 %v5451, %v5443
        %v7012 = vpack.c.b16 %v5452, %v5444
        %v7013 = vpack.c.b16 %v5453, %v5445
        %v7014 = vpack.c.b16 %v5454, %v5446
        %v7015 = vpack.c.b16 %v5455, %v5447
        %v7016 = vpack.c.b16 %v5456, %v5448
        %v7017 = vpack.c.b16 %v5457, %v5449
        %v7018 = vpack.c.b16 %v5458, %v5450
        %v7019 = vpack.c.b16 %v5467, %v5459
        %v7020 = vpack.c.b16 %v5468, %v5460
        %v7021 = vpack.c.b16 %v5469, %v5461
        %v7022 = vpack.c.b16 %v5470, %v5462
        %v7023 = vpack.c.b16 %v5471, %v5463
        %v7024 = vpack.c.b16 %v5472, %v5464
        %v7025 = vpack.c.b16 %v5473, %v5465
        %v7026 = vpack.c.b16 %v5474, %v5466
        %v7027 = vpack.c.b16 %v5483, %v5475
        %v7028 = vpack.c.b16 %v5484, %v5476
        %v7029 = vpack.c.b16 %v5485, %v5477
        %v7030 = vpack.c.b16 %v5486, %v5478
        %v7031 = vpack.c.b16 %v5487, %v5479
        %v7032 = vpack.c.b16 %v5488, %v5480
        %v7033 = vpack.c.b16 %v5489, %v5481
        %v7034 = vpack.c.b16 %v5490, %v5482
        %v7035 = vpack.c.b16 %v5499, %v5491
        %v7036 = vpack.c.b16 %v5500, %v5492
        %v7037 = vpack.c.b16 %v5501, %v5493
        %v7038 = vpack.c.b16 %v5502, %v5494
        %v7039 = vpack.c.b16 %v5503, %v5495
        %v7040 = vpack.c.b16 %v5504, %v5496
        %v7041 = vpack.c.b16 %v5505, %v5497
        %v7042 = vpack.c.b16 %v5506, %v5498
        %v7043 = vpack.c.b16 %v5515, %v5507
        %v7044 = vpack.c.b16 %v5516, %v5508
        %v7045 = vpack.c.b16 %v5517, %v5509
        %v7046 = vpack.c.b16 %v5518, %v5510
        %v7047 = vpack.c.b16 %v5519, %v5511
        %v7048 = vpack.c.b16 %v5520, %v5512
        %v7049 = vpack.c.b16 %v5521, %v5513
        %v7050 = vpack.c.b16 %v5522, %v5514
        %v7051 = vpack.c.b16 %v5531, %v5523
        %v7052 = vpack.c.b16 %v5532, %v5524
        %v7053 = vpack.c.b16 %v5533, %v5525
        %v7054 = vpack.c.b16 %v5534, %v5526
        %v7055 = vpack.c.b16 %v5535, %v5527
        %v7056 = vpack.c.b16 %v5536, %v5528
        %v7057 = vpack.c.b16 %v5537, %v5529
        %v7058 = vpack.c.b16 %v5538, %v5530
        %v7059 = vpack.c.b16 %v5547, %v5539
        %v7060 = vpack.c.b16 %v5548, %v5540
        %v7061 = vpack.c.b16 %v5549, %v5541
        %v7062 = vpack.c.b16 %v5550, %v5542
        %v7063 = vpack.c.b16 %v5551, %v5543
        %v7064 = vpack.c.b16 %v5552, %v5544
        %v7065 = vpack.c.b16 %v5553, %v5545
        %v7066 = vpack.c.b16 %v5554, %v5546
        %v7067 = vpack.c.b16 %v5563, %v5555
        %v7068 = vpack.c.b16 %v5564, %v5556
        %v7069 = vpack.c.b16 %v5565, %v5557
        %v7070 = vpack.c.b16 %v5566, %v5558
        %v7071 = vpack.c.b16 %v5567, %v5559
        %v7072 = vpack.c.b16 %v5568, %v5560
        %v7073 = vpack.c.b16 %v5569, %v5561
        %v7074 = vpack.c.b16 %v5570, %v5562
        %v7075 = vpack.c.b16 %v5579, %v5571
        %v7076 = vpack.c.b16 %v5580, %v5572
        %v7077 = vpack.c.b16 %v5581, %v5573
        %v7078 = vpack.c.b16 %v5582, %v5574
        %v7079 = vpack.c.b16 %v5583, %v5575
        %v7080 = vpack.c.b16 %v5584, %v5576
        %v7081 = vpack.c.b16 %v5585, %v5577
        %v7082 = vpack.c.b16 %v5586, %v5578
        %v7083 = vpack.c.b16 %v5595, %v5587
        %v7084 = vpack.c.b16 %v5596, %v5588
        %v7085 = vpack.c.b16 %v5597, %v5589
        %v7086 = vpack.c.b16 %v5598, %v5590
        %v7087 = vpack.c.b16 %v5599, %v5591
        %v7088 = vpack.c.b16 %v5600, %v5592
        %v7089 = vpack.c.b16 %v5601, %v5593
        %v7090 = vpack.c.b16 %v5602, %v5594
        %v7091 = vpack.c.b16 %v5611, %v5603
        %v7092 = vpack.c.b16 %v5612, %v5604
        %v7093 = vpack.c.b16 %v5613, %v5605
        %v7094 = vpack.c.b16 %v5614, %v5606
        %v7095 = vpack.c.b16 %v5615, %v5607
        %v7096 = vpack.c.b16 %v5616, %v5608
        %v7097 = vpack.c.b16 %v5617, %v5609
        %v7098 = vpack.c.b16 %v5618, %v5610
        %v7099 = vpack.c.b16 %v5627, %v5619
        %v7100 = vpack.c.b16 %v5628, %v5620
        %v7101 = vpack.c.b16 %v5629, %v5621
        %v7102 = vpack.c.b16 %v5630, %v5622
        %v7103 = vpack.c.b16 %v5631, %v5623
        %v7104 = vpack.c.b16 %v5632, %v5624
        %v7105 = vpack.c.b16 %v5633, %v5625
        %v7106 = vpack.c.b16 %v5634, %v5626
        %v7107 = vpack.c.b16 %v5643, %v5635
        %v7108 = vpack.c.b16 %v5644, %v5636
        %v7109 = vpack.c.b16 %v5645, %v5637
        %v7110 = vpack.c.b16 %v5646, %v5638
        %v7111 = vpack.c.b16 %v5647, %v5639
        %v7112 = vpack.c.b16 %v5648, %v5640
        %v7113 = vpack.c.b16 %v5649, %v5641
        %v7114 = vpack.c.b16 %v5650, %v5642
        %v7115 = vpack.c.b16 %v5659, %v5651
        %v7116 = vpack.c.b16 %v5660, %v5652
        %v7117 = vpack.c.b16 %v5661, %v5653
        %v7118 = vpack.c.b16 %v5662, %v5654
        %v7119 = vpack.c.b16 %v5663, %v5655
        %v7120 = vpack.c.b16 %v5664, %v5656
        %v7121 = vpack.c.b16 %v5665, %v5657
        %v7122 = vpack.c.b16 %v5666, %v5658
        %v7123 = vpack.c.b16 %v5675, %v5667
        %v7124 = vpack.c.b16 %v5676, %v5668
        %v7125 = vpack.c.b16 %v5677, %v5669
        %v7126 = vpack.c.b16 %v5678, %v5670
        %v7127 = vpack.c.b16 %v5679, %v5671
        %v7128 = vpack.c.b16 %v5680, %v5672
        %v7129 = vpack.c.b16 %v5681, %v5673
        %v7130 = vpack.c.b16 %v5682, %v5674
        %v7131 = vpack.c.b16 %v5691, %v5683
        %v7132 = vpack.c.b16 %v5692, %v5684
        %v7133 = vpack.c.b16 %v5693, %v5685
        %v7134 = vpack.c.b16 %v5694, %v5686
        %v7135 = vpack.c.b16 %v5695, %v5687
        %v7136 = vpack.c.b16 %v5696, %v5688
        %v7137 = vpack.c.b16 %v5697, %v5689
        %v7138 = vpack.c.b16 %v5698, %v5690
        %v7139 = vpack.c.b16 %v5707, %v5699
        %v7140 = vpack.c.b16 %v5708, %v5700
        %v7141 = vpack.c.b16 %v5709, %v5701
        %v7142 = vpack.c.b16 %v5710, %v5702
        %v7143 = vpack.c.b16 %v5711, %v5703
        %v7144 = vpack.c.b16 %v5712, %v5704
        %v7145 = vpack.c.b16 %v5713, %v5705
        %v7146 = vpack.c.b16 %v5714, %v5706
        %v7147 = vpack.c.b16 %v5723, %v5715
        %v7148 = vpack.c.b16 %v5724, %v5716
        %v7149 = vpack.c.b16 %v5725, %v5717
        %v7150 = vpack.c.b16 %v5726, %v5718
        %v7151 = vpack.c.b16 %v5727, %v5719
        %v7152 = vpack.c.b16 %v5728, %v5720
        %v7153 = vpack.c.b16 %v5729, %v5721
        %v7154 = vpack.c.b16 %v5730, %v5722
        %v7155 = vpack.c.b16 %v5739, %v5731
        %v7156 = vpack.c.b16 %v5740, %v5732
        %v7157 = vpack.c.b16 %v5741, %v5733
        %v7158 = vpack.c.b16 %v5742, %v5734
        %v7159 = vpack.c.b16 %v5743, %v5735
        %v7160 = vpack.c.b16 %v5744, %v5736
        %v7161 = vpack.c.b16 %v5745, %v5737
        %v7162 = vpack.c.b16 %v5746, %v5738
        %v7163 = vpack.c.b16 %v5755, %v5747
        %v7164 = vpack.c.b16 %v5756, %v5748
        %v7165 = vpack.c.b16 %v5757, %v5749
        %v7166 = vpack.c.b16 %v5758, %v5750
        %v7167 = vpack.c.b16 %v5759, %v5751
        %v7168 = vpack.c.b16 %v5760, %v5752
        %v7169 = vpack.c.b16 %v5761, %v5753
        %v7170 = vpack.c.b16 %v5762, %v5754
        %v7171 = vpack.c.b16 %v5771, %v5763
        %v7172 = vpack.c.b16 %v5772, %v5764
        %v7173 = vpack.c.b16 %v5773, %v5765
        %v7174 = vpack.c.b16 %v5774, %v5766
        %v7175 = vpack.c.b16 %v5775, %v5767
        %v7176 = vpack.c.b16 %v5776, %v5768
        %v7177 = vpack.c.b16 %v5777, %v5769
        %v7178 = vpack.c.b16 %v5778, %v5770
        %v7179 = vpack.c.b16 %v5787, %v5779
        %v7180 = vpack.c.b16 %v5788, %v5780
        %v7181 = vpack.c.b16 %v5789, %v5781
        %v7182 = vpack.c.b16 %v5790, %v5782
        %v7183 = vpack.c.b16 %v5791, %v5783
        %v7184 = vpack.c.b16 %v5792, %v5784
        %v7185 = vpack.c.b16 %v5793, %v5785
        %v7186 = vpack.c.b16 %v5794, %v5786
        %v7187 = vpack.c.b16 %v5803, %v5795
        %v7188 = vpack.c.b16 %v5804, %v5796
        %v7189 = vpack.c.b16 %v5805, %v5797
        %v7190 = vpack.c.b16 %v5806, %v5798
        %v7191 = vpack.c.b16 %v5807, %v5799
        %v7192 = vpack.c.b16 %v5808, %v5800
        %v7193 = vpack.c.b16 %v5809, %v5801
        %v7194 = vpack.c.b16 %v5810, %v5802
        %v7195 = vpack.c.b16 %v5819, %v5811
        %v7196 = vpack.c.b16 %v5820, %v5812
        %v7197 = vpack.c.b16 %v5821, %v5813
        %v7198 = vpack.c.b16 %v5822, %v5814
        %v7199 = vpack.c.b16 %v5823, %v5815
        %v7200 = vpack.c.b16 %v5824, %v5816
        %v7201 = vpack.c.b16 %v5825, %v5817
        %v7202 = vpack.c.b16 %v5826, %v5818
        %v7203 = vpack.c.b16 %v5835, %v5827
        %v7204 = vpack.c.b16 %v5836, %v5828
        %v7205 = vpack.c.b16 %v5837, %v5829
        %v7206 = vpack.c.b16 %v5838, %v5830
        %v7207 = vpack.c.b16 %v5839, %v5831
        %v7208 = vpack.c.b16 %v5840, %v5832
        %v7209 = vpack.c.b16 %v5841, %v5833
        %v7210 = vpack.c.b16 %v5842, %v5834
        %v7211 = vpack.c.b16 %v5851, %v5843
        %v7212 = vpack.c.b16 %v5852, %v5844
        %v7213 = vpack.c.b16 %v5853, %v5845
        %v7214 = vpack.c.b16 %v5854, %v5846
        %v7215 = vpack.c.b16 %v5855, %v5847
        %v7216 = vpack.c.b16 %v5856, %v5848
        %v7217 = vpack.c.b16 %v5857, %v5849
        %v7218 = vpack.c.b16 %v5858, %v5850
        %v7219 = vpack.c.b16 %v5867, %v5859
        %v7220 = vpack.c.b16 %v5868, %v5860
        %v7221 = vpack.c.b16 %v5869, %v5861
        %v7222 = vpack.c.b16 %v5870, %v5862
        %v7223 = vpack.c.b16 %v5871, %v5863
        %v7224 = vpack.c.b16 %v5872, %v5864
        %v7225 = vpack.c.b16 %v5873, %v5865
        %v7226 = vpack.c.b16 %v5874, %v5866
        %v7227 = vpack.c.b16 %v5883, %v5875
        %v7228 = vpack.c.b16 %v5884, %v5876
        %v7229 = vpack.c.b16 %v5885, %v5877
        %v7230 = vpack.c.b16 %v5886, %v5878
        %v7231 = vpack.c.b16 %v5887, %v5879
        %v7232 = vpack.c.b16 %v5888, %v5880
        %v7233 = vpack.c.b16 %v5889, %v5881
        %v7234 = vpack.c.b16 %v5890, %v5882
        %v7235 = vpack.c.b16 %v5899, %v5891
        %v7236 = vpack.c.b16 %v5900, %v5892
        %v7237 = vpack.c.b16 %v5901, %v5893
        %v7238 = vpack.c.b16 %v5902, %v5894
        %v7239 = vpack.c.b16 %v5903, %v5895
        %v7240 = vpack.c.b16 %v5904, %v5896
        %v7241 = vpack.c.b16 %v5905, %v5897
        %v7242 = vpack.c.b16 %v5906, %v5898
        %v7243 = vpack.c.b16 %v5915, %v5907
        %v7244 = vpack.c.b16 %v5916, %v5908
        %v7245 = vpack.c.b16 %v5917, %v5909
        %v7246 = vpack.c.b16 %v5918, %v5910
        %v7247 = vpack.c.b16 %v5919, %v5911
        %v7248 = vpack.c.b16 %v5920, %v5912
        %v7249 = vpack.c.b16 %v5921, %v5913
        %v7250 = vpack.c.b16 %v5922, %v5914
        %v7251 = vpack.c.b16 %v5931, %v5923
        %v7252 = vpack.c.b16 %v5932, %v5924
        %v7253 = vpack.c.b16 %v5933, %v5925
        %v7254 = vpack.c.b16 %v5934, %v5926
        %v7255 = vpack.c.b16 %v5935, %v5927
        %v7256 = vpack.c.b16 %v5936, %v5928
        %v7257 = vpack.c.b16 %v5937, %v5929
        %v7258 = vpack.c.b16 %v5938, %v5930
        %v7259 = vpack.c.b16 %v5947, %v5939
        %v7260 = vpack.c.b16 %v5948, %v5940
        %v7261 = vpack.c.b16 %v5949, %v5941
        %v7262 = vpack.c.b16 %v5950, %v5942
        %v7263 = vpack.c.b16 %v5951, %v5943
        %v7264 = vpack.c.b16 %v5952, %v5944
        %v7265 = vpack.c.b16 %v5953, %v5945
        %v7266 = vpack.c.b16 %v5954, %v5946
        %v7267 = vpack.c.b16 %v5963, %v5955
        %v7268 = vpack.c.b16 %v5964, %v5956
        %v7269 = vpack.c.b16 %v5965, %v5957
        %v7270 = vpack.c.b16 %v5966, %v5958
        %v7271 = vpack.c.b16 %v5967, %v5959
        %v7272 = vpack.c.b16 %v5968, %v5960
        %v7273 = vpack.c.b16 %v5969, %v5961
        %v7274 = vpack.c.b16 %v5970, %v5962
        %v7275 = vpack.c.b16 %v5979, %v5971
        %v7276 = vpack.c.b16 %v5980, %v5972
        %v7277 = vpack.c.b16 %v5981, %v5973
        %v7278 = vpack.c.b16 %v5982, %v5974
        %v7279 = vpack.c.b16 %v5983, %v5975
        %v7280 = vpack.c.b16 %v5984, %v5976
        %v7281 = vpack.c.b16 %v5985, %v5977
        %v7282 = vpack.c.b16 %v5986, %v5978
        %v7283 = vpack.c.b16 %v5995, %v5987
        %v7284 = vpack.c.b16 %v5996, %v5988
        %v7285 = vpack.c.b16 %v5997, %v5989
        %v7286 = vpack.c.b16 %v5998, %v5990
        %v7287 = vpack.c.b16 %v5999, %v5991
        %v7288 = vpack.c.b16 %v6000, %v5992
        %v7289 = vpack.c.b16 %v6001, %v5993
        %v7290 = vpack.c.b16 %v6002, %v5994
        %v7291 = vpack.c.b16 %v6011, %v6003
        %v7292 = vpack.c.b16 %v6012, %v6004
        %v7293 = vpack.c.b16 %v6013, %v6005
        %v7294 = vpack.c.b16 %v6014, %v6006
        %v7295 = vpack.c.b16 %v6015, %v6007
        %v7296 = vpack.c.b16 %v6016, %v6008
        %v7297 = vpack.c.b16 %v6017, %v6009
        %v7298 = vpack.c.b16 %v6018, %v6010
        %v7299 = vpack.c.b16 %v6027, %v6019
        %v7300 = vpack.c.b16 %v6028, %v6020
        %v7301 = vpack.c.b16 %v6029, %v6021
        %v7302 = vpack.c.b16 %v6030, %v6022
        %v7303 = vpack.c.b16 %v6031, %v6023
        %v7304 = vpack.c.b16 %v6032, %v6024
        %v7305 = vpack.c.b16 %v6033, %v6025
        %v7306 = vpack.c.b16 %v6034, %v6026
        %v7307 = vpack.c.b16 %v6043, %v6035
        %v7308 = vpack.c.b16 %v6044, %v6036
        %v7309 = vpack.c.b16 %v6045, %v6037
        %v7310 = vpack.c.b16 %v6046, %v6038
        %v7311 = vpack.c.b16 %v6047, %v6039
        %v7312 = vpack.c.b16 %v6048, %v6040
        %v7313 = vpack.c.b16 %v6049, %v6041
        %v7314 = vpack.c.b16 %v6050, %v6042
        %v7315 = vpack.c.b16 %v6059, %v6051
        %v7316 = vpack.c.b16 %v6060, %v6052
        %v7317 = vpack.c.b16 %v6061, %v6053
        %v7318 = vpack.c.b16 %v6062, %v6054
        %v7319 = vpack.c.b16 %v6063, %v6055
        %v7320 = vpack.c.b16 %v6064, %v6056
        %v7321 = vpack.c.b16 %v6065, %v6057
        %v7322 = vpack.c.b16 %v6066, %v6058
        %v7323 = vpack.c.b16 %v6075, %v6067
        %v7324 = vpack.c.b16 %v6076, %v6068
        %v7325 = vpack.c.b16 %v6077, %v6069
        %v7326 = vpack.c.b16 %v6078, %v6070
        %v7327 = vpack.c.b16 %v6079, %v6071
        %v7328 = vpack.c.b16 %v6080, %v6072
        %v7329 = vpack.c.b16 %v6081, %v6073
        %v7330 = vpack.c.b16 %v6082, %v6074
        %v7331 = vpack.c.b16 %v6091, %v6083
        %v7332 = vpack.c.b16 %v6092, %v6084
        %v7333 = vpack.c.b16 %v6093, %v6085
        %v7334 = vpack.c.b16 %v6094, %v6086
        %v7335 = vpack.c.b16 %v6095, %v6087
        %v7336 = vpack.c.b16 %v6096, %v6088
        %v7337 = vpack.c.b16 %v6097, %v6089
        %v7338 = vpack.c.b16 %v6098, %v6090
        %v7339 = vpack.c.b16 %v6107, %v6099
        %v7340 = vpack.c.b16 %v6108, %v6100
        %v7341 = vpack.c.b16 %v6109, %v6101
        %v7342 = vpack.c.b16 %v6110, %v6102
        %v7343 = vpack.c.b16 %v6111, %v6103
        %v7344 = vpack.c.b16 %v6112, %v6104
        %v7345 = vpack.c.b16 %v6113, %v6105
        %v7346 = vpack.c.b16 %v6114, %v6106
        %v7347 = vpack.c.b16 %v6123, %v6115
        %v7348 = vpack.c.b16 %v6124, %v6116
        %v7349 = vpack.c.b16 %v6125, %v6117
        %v7350 = vpack.c.b16 %v6126, %v6118
        %v7351 = vpack.c.b16 %v6127, %v6119
        %v7352 = vpack.c.b16 %v6128, %v6120
        %v7353 = vpack.c.b16 %v6129, %v6121
        %v7354 = vpack.c.b16 %v6130, %v6122
        %v7355 = vpack.c.b16 %v6139, %v6131
        %v7356 = vpack.c.b16 %v6140, %v6132
        %v7357 = vpack.c.b16 %v6141, %v6133
        %v7358 = vpack.c.b16 %v6142, %v6134
        %v7359 = vpack.c.b16 %v6143, %v6135
        %v7360 = vpack.c.b16 %v6144, %v6136
        %v7361 = vpack.c.b16 %v6145, %v6137
        %v7362 = vpack.c.b16 %v6146, %v6138
        %v7363 = vpack.c.b16 %v6155, %v6147
        %v7364 = vpack.c.b16 %v6156, %v6148
        %v7365 = vpack.c.b16 %v6157, %v6149
        %v7366 = vpack.c.b16 %v6158, %v6150
        %v7367 = vpack.c.b16 %v6159, %v6151
        %v7368 = vpack.c.b16 %v6160, %v6152
        %v7369 = vpack.c.b16 %v6161, %v6153
        %v7370 = vpack.c.b16 %v6162, %v6154
        %v7371 = vpack.c.b16 %v6171, %v6163
        %v7372 = vpack.c.b16 %v6172, %v6164
        %v7373 = vpack.c.b16 %v6173, %v6165
        %v7374 = vpack.c.b16 %v6174, %v6166
        %v7375 = vpack.c.b16 %v6175, %v6167
        %v7376 = vpack.c.b16 %v6176, %v6168
        %v7377 = vpack.c.b16 %v6177, %v6169
        %v7378 = vpack.c.b16 %v6178, %v6170
        %v7379 = vpack.c.b16 %v6187, %v6179
        %v7380 = vpack.c.b16 %v6188, %v6180
        %v7381 = vpack.c.b16 %v6189, %v6181
        %v7382 = vpack.c.b16 %v6190, %v6182
        %v7383 = vpack.c.b16 %v6191, %v6183
        %v7384 = vpack.c.b16 %v6192, %v6184
        %v7385 = vpack.c.b16 %v6193, %v6185
        %v7386 = vpack.c.b16 %v6194, %v6186
        %v7387 = vpack.c.b16 %v6203, %v6195
        %v7388 = vpack.c.b16 %v6204, %v6196
        %v7389 = vpack.c.b16 %v6205, %v6197
        %v7390 = vpack.c.b16 %v6206, %v6198
        %v7391 = vpack.c.b16 %v6207, %v6199
        %v7392 = vpack.c.b16 %v6208, %v6200
        %v7393 = vpack.c.b16 %v6209, %v6201
        %v7394 = vpack.c.b16 %v6210, %v6202
        %v7395 = vpack.c.b16 %v6219, %v6211
        %v7396 = vpack.c.b16 %v6220, %v6212
        %v7397 = vpack.c.b16 %v6221, %v6213
        %v7398 = vpack.c.b16 %v6222, %v6214
        %v7399 = vpack.c.b16 %v6223, %v6215
        %v7400 = vpack.c.b16 %v6224, %v6216
        %v7401 = vpack.c.b16 %v6225, %v6217
        %v7402 = vpack.c.b16 %v6226, %v6218
        %v7403 = vpack.c.b16 %v6235, %v6227
        %v7404 = vpack.c.b16 %v6236, %v6228
        %v7405 = vpack.c.b16 %v6237, %v6229
        %v7406 = vpack.c.b16 %v6238, %v6230
        %v7407 = vpack.c.b16 %v6239, %v6231
        %v7408 = vpack.c.b16 %v6240, %v6232
        %v7409 = vpack.c.b16 %v6241, %v6233
        %v7410 = vpack.c.b16 %v6242, %v6234
        %v7411 = vpack.c.b16 %v6251, %v6243
        %v7412 = vpack.c.b16 %v6252, %v6244
        %v7413 = vpack.c.b16 %v6253, %v6245
        %v7414 = vpack.c.b16 %v6254, %v6246
        %v7415 = vpack.c.b16 %v6255, %v6247
        %v7416 = vpack.c.b16 %v6256, %v6248
        %v7417 = vpack.c.b16 %v6257, %v6249
        %v7418 = vpack.c.b16 %v6258, %v6250
        %v7419 = vpack.c.b16 %v6267, %v6259
        %v7420 = vpack.c.b16 %v6268, %v6260
        %v7421 = vpack.c.b16 %v6269, %v6261
        %v7422 = vpack.c.b16 %v6270, %v6262
        %v7423 = vpack.c.b16 %v6271, %v6263
        %v7424 = vpack.c.b16 %v6272, %v6264
        %v7425 = vpack.c.b16 %v6273, %v6265
        %v7426 = vpack.c.b16 %v6274, %v6266
        %v7427 = vpack.c.b16 %v6283, %v6275
        %v7428 = vpack.c.b16 %v6284, %v6276
        %v7429 = vpack.c.b16 %v6285, %v6277
        %v7430 = vpack.c.b16 %v6286, %v6278
        %v7431 = vpack.c.b16 %v6287, %v6279
        %v7432 = vpack.c.b16 %v6288, %v6280
        %v7433 = vpack.c.b16 %v6289, %v6281
        %v7434 = vpack.c.b16 %v6290, %v6282
        %v7435 = vpack.c.b16 %v6299, %v6291
        %v7436 = vpack.c.b16 %v6300, %v6292
        %v7437 = vpack.c.b16 %v6301, %v6293
        %v7438 = vpack.c.b16 %v6302, %v6294
        %v7439 = vpack.c.b16 %v6303, %v6295
        %v7440 = vpack.c.b16 %v6304, %v6296
        %v7441 = vpack.c.b16 %v6305, %v6297
        %v7442 = vpack.c.b16 %v6306, %v6298
        %v7443 = vpack.c.b16 %v6315, %v6307
        %v7444 = vpack.c.b16 %v6316, %v6308
        %v7445 = vpack.c.b16 %v6317, %v6309
        %v7446 = vpack.c.b16 %v6318, %v6310
        %v7447 = vpack.c.b16 %v6319, %v6311
        %v7448 = vpack.c.b16 %v6320, %v6312
        %v7449 = vpack.c.b16 %v6321, %v6313
        %v7450 = vpack.c.b16 %v6322, %v6314
        %v7451 = vpack.c.b16 %v6331, %v6323
        %v7452 = vpack.c.b16 %v6332, %v6324
        %v7453 = vpack.c.b16 %v6333, %v6325
        %v7454 = vpack.c.b16 %v6334, %v6326
        %v7455 = vpack.c.b16 %v6335, %v6327
        %v7456 = vpack.c.b16 %v6336, %v6328
        %v7457 = vpack.c.b16 %v6337, %v6329
        %v7458 = vpack.c.b16 %v6338, %v6330
        %v7459 = vpack.c.b16 %v6347, %v6339
        %v7460 = vpack.c.b16 %v6348, %v6340
        %v7461 = vpack.c.b16 %v6349, %v6341
        %v7462 = vpack.c.b16 %v6350, %v6342
        %v7463 = vpack.c.b16 %v6351, %v6343
        %v7464 = vpack.c.b16 %v6352, %v6344
        %v7465 = vpack.c.b16 %v6353, %v6345
        %v7466 = vpack.c.b16 %v6354, %v6346
        %v7467 = vpack.c.b16 %v6363, %v6355
        %v7468 = vpack.c.b16 %v6364, %v6356
        %v7469 = vpack.c.b16 %v6365, %v6357
        %v7470 = vpack.c.b16 %v6366, %v6358
        %v7471 = vpack.c.b16 %v6367, %v6359
        %v7472 = vpack.c.b16 %v6368, %v6360
        %v7473 = vpack.c.b16 %v6369, %v6361
        %v7474 = vpack.c.b16 %v6370, %v6362
        %v7475 = vpack.c.b16 %v6379, %v6371
        %v7476 = vpack.c.b16 %v6380, %v6372
        %v7477 = vpack.c.b16 %v6381, %v6373
        %v7478 = vpack.c.b16 %v6382, %v6374
        %v7479 = vpack.c.b16 %v6383, %v6375
        %v7480 = vpack.c.b16 %v6384, %v6376
        %v7481 = vpack.c.b16 %v6385, %v6377
        %v7482 = vpack.c.b16 %v6386, %v6378
        %v7483 = vpack.c.b16 %v6395, %v6387
        %v7484 = vpack.c.b16 %v6396, %v6388
        %v7485 = vpack.c.b16 %v6397, %v6389
        %v7486 = vpack.c.b16 %v6398, %v6390
        %v7487 = vpack.c.b16 %v6399, %v6391
        %v7488 = vpack.c.b16 %v6400, %v6392
        %v7489 = vpack.c.b16 %v6401, %v6393
        %v7490 = vpack.c.b16 %v6402, %v6394
        %v7491 = vpack.c.b16 %v6411, %v6403
        %v7492 = vpack.c.b16 %v6412, %v6404
        %v7493 = vpack.c.b16 %v6413, %v6405
        %v7494 = vpack.c.b16 %v6414, %v6406
        %v7495 = vpack.c.b16 %v6415, %v6407
        %v7496 = vpack.c.b16 %v6416, %v6408
        %v7497 = vpack.c.b16 %v6417, %v6409
        %v7498 = vpack.c.b16 %v6418, %v6410
        %v7499 = vpack.c.b16 %v6427, %v6419
        %v7500 = vpack.c.b16 %v6428, %v6420
        %v7501 = vpack.c.b16 %v6429, %v6421
        %v7502 = vpack.c.b16 %v6430, %v6422
        %v7503 = vpack.c.b16 %v6431, %v6423
        %v7504 = vpack.c.b16 %v6432, %v6424
        %v7505 = vpack.c.b16 %v6433, %v6425
        %v7506 = vpack.c.b16 %v6434, %v6426
        %v7507 = vpack.c.b16 %v6443, %v6435
        %v7508 = vpack.c.b16 %v6444, %v6436
        %v7509 = vpack.c.b16 %v6445, %v6437
        %v7510 = vpack.c.b16 %v6446, %v6438
        %v7511 = vpack.c.b16 %v6447, %v6439
        %v7512 = vpack.c.b16 %v6448, %v6440
        %v7513 = vpack.c.b16 %v6449, %v6441
        %v7514 = vpack.c.b16 %v6450, %v6442
        %v7515 = vpack.c.b16 %v6459, %v6451
        %v7516 = vpack.c.b16 %v6460, %v6452
        %v7517 = vpack.c.b16 %v6461, %v6453
        %v7518 = vpack.c.b16 %v6462, %v6454
        %v7519 = vpack.c.b16 %v6463, %v6455
        %v7520 = vpack.c.b16 %v6464, %v6456
        %v7521 = vpack.c.b16 %v6465, %v6457
        %v7522 = vpack.c.b16 %v6466, %v6458
        %v7523 = vpack.c.b16 %v6475, %v6467
        %v7524 = vpack.c.b16 %v6476, %v6468
        %v7525 = vpack.c.b16 %v6477, %v6469
        %v7526 = vpack.c.b16 %v6478, %v6470
        %v7527 = vpack.c.b16 %v6479, %v6471
        %v7528 = vpack.c.b16 %v6480, %v6472
        %v7529 = vpack.c.b16 %v6481, %v6473
        %v7530 = vpack.c.b16 %v6482, %v6474
        %v7531 = vpack.c.b16 %v6491, %v6483
        %v7532 = vpack.c.b16 %v6492, %v6484
        %v7533 = vpack.c.b16 %v6493, %v6485
        %v7534 = vpack.c.b16 %v6494, %v6486
        %v7535 = vpack.c.b16 %v6495, %v6487
        %v7536 = vpack.c.b16 %v6496, %v6488
        %v7537 = vpack.c.b16 %v6497, %v6489
        %v7538 = vpack.c.b16 %v6498, %v6490
        %v7539 = vpack.c.b16 %v6507, %v6499
        %v7540 = vpack.c.b16 %v6508, %v6500
        %v7541 = vpack.c.b16 %v6509, %v6501
        %v7542 = vpack.c.b16 %v6510, %v6502
        %v7543 = vpack.c.b16 %v6511, %v6503
        %v7544 = vpack.c.b16 %v6512, %v6504
        %v7545 = vpack.c.b16 %v6513, %v6505
        %v7546 = vpack.c.b16 %v6514, %v6506
        %v7547 = vpack.c.b16 %v6523, %v6515
        %v7548 = vpack.c.b16 %v6524, %v6516
        %v7549 = vpack.c.b16 %v6525, %v6517
        %v7550 = vpack.c.b16 %v6526, %v6518
        %v7551 = vpack.c.b16 %v6527, %v6519
        %v7552 = vpack.c.b16 %v6528, %v6520
        %v7553 = vpack.c.b16 %v6529, %v6521
        %v7554 = vpack.c.b16 %v6530, %v6522
        %8579 = vmatprep.subr.bf16.mxu0 %v6532
        %8580 = vmatpush1.bf16.msra.mxu0 %v6531
        %8581 = vmatprep.subr.bf16.mxu0 %v6540
        %8582 = vmatpush1.bf16.msra.mxu0 %v6539
        %8583 = vmatprep.subr.bf16.mxu0 %v6548
        %8584 = vmatpush1.bf16.msra.mxu0 %v6547
        %8585 = vmatprep.subr.bf16.mxu0 %v6556
        %8586 = vmatpush1.bf16.msra.mxu0 %v6555
        %8587 = vmatprep.subr.bf16.mxu0 %v6564
        %8588 = vmatpush1.bf16.msra.mxu0 %v6563
        %8589 = vmatprep.subr.bf16.mxu0 %v6572
        %8590 = vmatpush1.bf16.msra.mxu0 %v6571
        %8591 = vmatprep.subr.bf16.mxu0 %v6580
        %8592 = vmatpush1.bf16.msra.mxu0 %v6579
        %8593 = vmatprep.subr.bf16.mxu0 %v6588
        %8594 = vmatpush1.bf16.msra.mxu0 %v6587
        %8595 = vmatprep.subr.bf16.mxu0 %v6596
        %8596 = vmatpush1.bf16.msra.mxu0 %v6595
        %8597 = vmatprep.subr.bf16.mxu0 %v6604
        %8598 = vmatpush1.bf16.msra.mxu0 %v6603
        %8599 = vmatprep.subr.bf16.mxu0 %v6612
        %8600 = vmatpush1.bf16.msra.mxu0 %v6611
        %8601 = vmatprep.subr.bf16.mxu0 %v6620
        %8602 = vmatpush1.bf16.msra.mxu0 %v6619
        %8603 = vmatprep.subr.bf16.mxu0 %v6628
        %8604 = vmatpush1.bf16.msra.mxu0 %v6627
        %8605 = vmatprep.subr.bf16.mxu0 %v6636
        %8606 = vmatpush1.bf16.msra.mxu0 %v6635
        %8607 = vmatprep.subr.bf16.mxu0 %v6644
        %8608 = vmatpush1.bf16.msra.mxu0 %v6643
        %8609 = vmatprep.subr.bf16.mxu0 %v6652
        %8610 = vmatpush1.bf16.msra.mxu0 %v6651
        %8611 = vmatprep.mubr.bf16.mxu0 %v2378
        %8612 = vmatmul.mubr.bf16.gmra.mrb[0].mxu0 %v2377
        %v8613 = vpop.f32.mrb[0].mxu0
        %v8614 = vadd.f32 %v3422, %v8613
        %v8615 = vpop.f32.mrb[0].mxu0
        %v8616 = vadd.f32 %v3426, %v8615
        %v8617 = vpop.f32.mrb[0].mxu0
        %v8618 = vpop.f32.mrb[0].mxu0
        %8619 = vdwg.mxu0
        %8620 = vmatprep.subr.bf16.mxu0 %v6660
        %8621 = vmatpush1.bf16.msra.mxu0 %v6659
        %8622 = vmatprep.subr.bf16.mxu0 %v6668
        %8623 = vmatpush1.bf16.msra.mxu0 %v6667
        %8624 = vmatprep.subr.bf16.mxu0 %v6676
        %8625 = vmatpush1.bf16.msra.mxu0 %v6675
        %8626 = vmatprep.subr.bf16.mxu0 %v6684
        %8627 = vmatpush1.bf16.msra.mxu0 %v6683
        %8628 = vmatprep.subr.bf16.mxu0 %v6692
        %8629 = vmatpush1.bf16.msra.mxu0 %v6691
        %8630 = vmatprep.subr.bf16.mxu0 %v6700
        %8631 = vmatpush1.bf16.msra.mxu0 %v6699
        %8632 = vmatprep.subr.bf16.mxu0 %v6708
        %8633 = vmatpush1.bf16.msra.mxu0 %v6707
        %8634 = vmatprep.subr.bf16.mxu0 %v6716
        %8635 = vmatpush1.bf16.msra.mxu0 %v6715
        %8636 = vmatprep.subr.bf16.mxu0 %v6724
        %8637 = vmatpush1.bf16.msra.mxu0 %v6723
        %8638 = vmatprep.subr.bf16.mxu0 %v6732
        %8639 = vmatpush1.bf16.msra.mxu0 %v6731
        %8640 = vmatprep.subr.bf16.mxu0 %v6740
        %8641 = vmatpush1.bf16.msra.mxu0 %v6739
        %8642 = vmatprep.subr.bf16.mxu0 %v6748
        %8643 = vmatpush1.bf16.msra.mxu0 %v6747
        %8644 = vmatprep.subr.bf16.mxu0 %v6756
        %8645 = vmatpush1.bf16.msra.mxu0 %v6755
        %8646 = vmatprep.subr.bf16.mxu0 %v6764
        %8647 = vmatpush1.bf16.msra.mxu0 %v6763
        %8648 = vmatprep.subr.bf16.mxu0 %v6772
        %8649 = vmatpush1.bf16.msra.mxu0 %v6771
        %8650 = vmatprep.subr.bf16.mxu0 %v6780
        %8651 = vmatpush1.bf16.msra.mxu0 %v6779
        %8652 = vmatprep.mubr.bf16.mxu0 %v2380
        %8653 = vmatmul.mubr.bf16.gmra.mrb[0].mxu0 %v2379
        %v8654 = vpop.f32.mrb[0].mxu0
        %v8655 = vadd.f32 %v8614, %v8654
        %v8656 = vpop.f32.mrb[0].mxu0
        %v8657 = vadd.f32 %v8616, %v8656
        %v8658 = vpop.f32.mrb[0].mxu0
        %v8659 = vpop.f32.mrb[0].mxu0
        %8660 = vdwg.mxu0
        %8661 = vmatprep.subr.bf16.mxu0 %v6788
        %8662 = vmatpush1.bf16.msra.mxu0 %v6787
        %8663 = vmatprep.subr.bf16.mxu0 %v6796
        %8664 = vmatpush1.bf16.msra.mxu0 %v6795
        %8665 = vmatprep.subr.bf16.mxu0 %v6804
        %8666 = vmatpush1.bf16.msra.mxu0 %v6803
        %8667 = vmatprep.subr.bf16.mxu0 %v6812
        %8668 = vmatpush1.bf16.msra.mxu0 %v6811
        %8669 = vmatprep.subr.bf16.mxu0 %v6820
        %8670 = vmatpush1.bf16.msra.mxu0 %v6819
        %8671 = vmatprep.subr.bf16.mxu0 %v6828
        %8672 = vmatpush1.bf16.msra.mxu0 %v6827
        %8673 = vmatprep.subr.bf16.mxu0 %v6836
        %8674 = vmatpush1.bf16.msra.mxu0 %v6835
        %8675 = vmatprep.subr.bf16.mxu0 %v6844
        %8676 = vmatpush1.bf16.msra.mxu0 %v6843
        %8677 = vmatprep.subr.bf16.mxu0 %v6852
        %8678 = vmatpush1.bf16.msra.mxu0 %v6851
        %8679 = vmatprep.subr.bf16.mxu0 %v6860
        %8680 = vmatpush1.bf16.msra.mxu0 %v6859
        %8681 = vmatprep.subr.bf16.mxu0 %v6868
        %8682 = vmatpush1.bf16.msra.mxu0 %v6867
        %8683 = vmatprep.subr.bf16.mxu0 %v6876
        %8684 = vmatpush1.bf16.msra.mxu0 %v6875
        %8685 = vmatprep.subr.bf16.mxu0 %v6884
        %8686 = vmatpush1.bf16.msra.mxu0 %v6883
        %8687 = vmatprep.subr.bf16.mxu0 %v6892
        %8688 = vmatpush1.bf16.msra.mxu0 %v6891
        %8689 = vmatprep.subr.bf16.mxu0 %v6900
        %8690 = vmatpush1.bf16.msra.mxu0 %v6899
        %8691 = vmatprep.subr.bf16.mxu0 %v6908
        %8692 = vmatpush1.bf16.msra.mxu0 %v6907
        %8693 = vmatprep.mubr.bf16.mxu0 %v2382
        %8694 = vmatmul.mubr.bf16.gmra.mrb[0].mxu0 %v2381
        %v8695 = vpop.f32.mrb[0].mxu0
        %v8696 = vadd.f32 %v8655, %v8695
        %v8697 = vpop.f32.mrb[0].mxu0
        %v8698 = vadd.f32 %v8657, %v8697
        %v8699 = vpop.f32.mrb[0].mxu0
        %v8700 = vpop.f32.mrb[0].mxu0
        %8701 = vdwg.mxu0
        %8702 = vmatprep.subr.bf16.mxu0 %v6916
        %8703 = vmatpush1.bf16.msra.mxu0 %v6915
        %8704 = vmatprep.subr.bf16.mxu0 %v6924
        %8705 = vmatpush1.bf16.msra.mxu0 %v6923
        %8706 = vmatprep.subr.bf16.mxu0 %v6932
        %8707 = vmatpush1.bf16.msra.mxu0 %v6931
        %8708 = vmatprep.subr.bf16.mxu0 %v6940
        %8709 = vmatpush1.bf16.msra.mxu0 %v6939
        %8710 = vmatprep.subr.bf16.mxu0 %v6948
        %8711 = vmatpush1.bf16.msra.mxu0 %v6947
        %8712 = vmatprep.subr.bf16.mxu0 %v6956
        %8713 = vmatpush1.bf16.msra.mxu0 %v6955
        %8714 = vmatprep.subr.bf16.mxu0 %v6964
        %8715 = vmatpush1.bf16.msra.mxu0 %v6963
        %8716 = vmatprep.subr.bf16.mxu0 %v6972
        %8717 = vmatpush1.bf16.msra.mxu0 %v6971
        %8718 = vmatprep.subr.bf16.mxu0 %v6980
        %8719 = vmatpush1.bf16.msra.mxu0 %v6979
        %8720 = vmatprep.subr.bf16.mxu0 %v6988
        %8721 = vmatpush1.bf16.msra.mxu0 %v6987
        %8722 = vmatprep.subr.bf16.mxu0 %v6996
        %8723 = vmatpush1.bf16.msra.mxu0 %v6995
        %8724 = vmatprep.subr.bf16.mxu0 %v7004
        %8725 = vmatpush1.bf16.msra.mxu0 %v7003
        %8726 = vmatprep.subr.bf16.mxu0 %v7012
        %8727 = vmatpush1.bf16.msra.mxu0 %v7011
        %8728 = vmatprep.subr.bf16.mxu0 %v7020
        %8729 = vmatpush1.bf16.msra.mxu0 %v7019
        %8730 = vmatprep.subr.bf16.mxu0 %v7028
        %8731 = vmatpush1.bf16.msra.mxu0 %v7027
        %8732 = vmatprep.subr.bf16.mxu0 %v7036
        %8733 = vmatpush1.bf16.msra.mxu0 %v7035
        %8734 = vmatprep.mubr.bf16.mxu0 %v2384
        %8735 = vmatmul.mubr.bf16.gmra.mrb[0].mxu0 %v2383
        %v8736 = vpop.f32.mrb[0].mxu0
        %v8737 = vadd.f32 %v8696, %v8736
        %v8738 = vpop.f32.mrb[0].mxu0
        %v8739 = vadd.f32 %v8698, %v8738
        %v8740 = vpop.f32.mrb[0].mxu0
        %v8741 = vpop.f32.mrb[0].mxu0
        %8742 = vdwg.mxu0
        %8743 = vmatprep.subr.bf16.mxu0 %v7044
        %8744 = vmatpush1.bf16.msra.mxu0 %v7043
        %8745 = vmatprep.subr.bf16.mxu0 %v7052
        %8746 = vmatpush1.bf16.msra.mxu0 %v7051
        %8747 = vmatprep.subr.bf16.mxu0 %v7060
        %8748 = vmatpush1.bf16.msra.mxu0 %v7059
        %8749 = vmatprep.subr.bf16.mxu0 %v7068
        %8750 = vmatpush1.bf16.msra.mxu0 %v7067
        %8751 = vmatprep.subr.bf16.mxu0 %v7076
        %8752 = vmatpush1.bf16.msra.mxu0 %v7075
        %8753 = vmatprep.subr.bf16.mxu0 %v7084
        %8754 = vmatpush1.bf16.msra.mxu0 %v7083
        %8755 = vmatprep.subr.bf16.mxu0 %v7092
        %8756 = vmatpush1.bf16.msra.mxu0 %v7091
        %8757 = vmatprep.subr.bf16.mxu0 %v7100
        %8758 = vmatpush1.bf16.msra.mxu0 %v7099
        %8759 = vmatprep.subr.bf16.mxu0 %v7108
        %8760 = vmatpush1.bf16.msra.mxu0 %v7107
        %8761 = vmatprep.subr.bf16.mxu0 %v7116
        %8762 = vmatpush1.bf16.msra.mxu0 %v7115
        %8763 = vmatprep.subr.bf16.mxu0 %v7124
        %8764 = vmatpush1.bf16.msra.mxu0 %v7123
        %8765 = vmatprep.subr.bf16.mxu0 %v7132
        %8766 = vmatpush1.bf16.msra.mxu0 %v7131
        %8767 = vmatprep.subr.bf16.mxu0 %v7140
        %8768 = vmatpush1.bf16.msra.mxu0 %v7139
        %8769 = vmatprep.subr.bf16.mxu0 %v7148
        %8770 = vmatpush1.bf16.msra.mxu0 %v7147
        %8771 = vmatprep.subr.bf16.mxu0 %v7156
        %8772 = vmatpush1.bf16.msra.mxu0 %v7155
        %8773 = vmatprep.subr.bf16.mxu0 %v7164
        %8774 = vmatpush1.bf16.msra.mxu0 %v7163
        %8775 = vmatprep.mubr.bf16.mxu0 %v2386
        %8776 = vmatmul.mubr.bf16.gmra.mrb[0].mxu0 %v2385
        %v8777 = vpop.f32.mrb[0].mxu0
        %v8778 = vadd.f32 %v8737, %v8777
        %v8779 = vpop.f32.mrb[0].mxu0
        %v8780 = vadd.f32 %v8739, %v8779
        %v8781 = vpop.f32.mrb[0].mxu0
        %v8782 = vpop.f32.mrb[0].mxu0
        %8783 = vdwg.mxu0
        %8784 = vmatprep.subr.bf16.mxu0 %v7172
        %8785 = vmatpush1.bf16.msra.mxu0 %v7171
        %8786 = vmatprep.subr.bf16.mxu0 %v7180
        %8787 = vmatpush1.bf16.msra.mxu0 %v7179
        %8788 = vmatprep.subr.bf16.mxu0 %v7188
        %8789 = vmatpush1.bf16.msra.mxu0 %v7187
        %8790 = vmatprep.subr.bf16.mxu0 %v7196
        %8791 = vmatpush1.bf16.msra.mxu0 %v7195
        %8792 = vmatprep.subr.bf16.mxu0 %v7204
        %8793 = vmatpush1.bf16.msra.mxu0 %v7203
        %8794 = vmatprep.subr.bf16.mxu0 %v7212
        %8795 = vmatpush1.bf16.msra.mxu0 %v7211
        %8796 = vmatprep.subr.bf16.mxu0 %v7220
        %8797 = vmatpush1.bf16.msra.mxu0 %v7219
        %8798 = vmatprep.subr.bf16.mxu0 %v7228
        %8799 = vmatpush1.bf16.msra.mxu0 %v7227
        %8800 = vmatprep.subr.bf16.mxu0 %v7236
        %8801 = vmatpush1.bf16.msra.mxu0 %v7235
        %8802 = vmatprep.subr.bf16.mxu0 %v7244
        %8803 = vmatpush1.bf16.msra.mxu0 %v7243
        %8804 = vmatprep.subr.bf16.mxu0 %v7252
        %8805 = vmatpush1.bf16.msra.mxu0 %v7251
        %8806 = vmatprep.subr.bf16.mxu0 %v7260
        %8807 = vmatpush1.bf16.msra.mxu0 %v7259
        %8808 = vmatprep.subr.bf16.mxu0 %v7268
        %8809 = vmatpush1.bf16.msra.mxu0 %v7267
        %8810 = vmatprep.subr.bf16.mxu0 %v7276
        %8811 = vmatpush1.bf16.msra.mxu0 %v7275
        %8812 = vmatprep.subr.bf16.mxu0 %v7284
        %8813 = vmatpush1.bf16.msra.mxu0 %v7283
        %8814 = vmatprep.subr.bf16.mxu0 %v7292
        %8815 = vmatpush1.bf16.msra.mxu0 %v7291
        %8816 = vmatprep.mubr.bf16.mxu0 %v2388
        %8817 = vmatmul.mubr.bf16.gmra.mrb[0].mxu0 %v2387
        %v8818 = vpop.f32.mrb[0].mxu0
        %v8819 = vadd.f32 %v8778, %v8818
        %v8820 = vpop.f32.mrb[0].mxu0
        %v8821 = vadd.f32 %v8780, %v8820
        %v8822 = vpop.f32.mrb[0].mxu0
        %v8823 = vpop.f32.mrb[0].mxu0
        %8824 = vdwg.mxu0
        %8825 = vmatprep.subr.bf16.mxu0 %v7300
        %8826 = vmatpush1.bf16.msra.mxu0 %v7299
        %8827 = vmatprep.subr.bf16.mxu0 %v7308
        %8828 = vmatpush1.bf16.msra.mxu0 %v7307
        %8829 = vmatprep.subr.bf16.mxu0 %v7316
        %8830 = vmatpush1.bf16.msra.mxu0 %v7315
        %8831 = vmatprep.subr.bf16.mxu0 %v7324
        %8832 = vmatpush1.bf16.msra.mxu0 %v7323
        %8833 = vmatprep.subr.bf16.mxu0 %v7332
        %8834 = vmatpush1.bf16.msra.mxu0 %v7331
        %8835 = vmatprep.subr.bf16.mxu0 %v7340
        %8836 = vmatpush1.bf16.msra.mxu0 %v7339
        %8837 = vmatprep.subr.bf16.mxu0 %v7348
        %8838 = vmatpush1.bf16.msra.mxu0 %v7347
        %8839 = vmatprep.subr.bf16.mxu0 %v7356
        %8840 = vmatpush1.bf16.msra.mxu0 %v7355
        %8841 = vmatprep.subr.bf16.mxu0 %v7364
        %8842 = vmatpush1.bf16.msra.mxu0 %v7363
        %8843 = vmatprep.subr.bf16.mxu0 %v7372
        %8844 = vmatpush1.bf16.msra.mxu0 %v7371
        %8845 = vmatprep.subr.bf16.mxu0 %v7380
        %8846 = vmatpush1.bf16.msra.mxu0 %v7379
        %8847 = vmatprep.subr.bf16.mxu0 %v7388
        %8848 = vmatpush1.bf16.msra.mxu0 %v7387
        %8849 = vmatprep.subr.bf16.mxu0 %v7396
        %8850 = vmatpush1.bf16.msra.mxu0 %v7395
        %8851 = vmatprep.subr.bf16.mxu0 %v7404
        %8852 = vmatpush1.bf16.msra.mxu0 %v7403
        %8853 = vmatprep.subr.bf16.mxu0 %v7412
        %8854 = vmatpush1.bf16.msra.mxu0 %v7411
        %8855 = vmatprep.subr.bf16.mxu0 %v7420
        %8856 = vmatpush1.bf16.msra.mxu0 %v7419
        %8857 = vmatprep.mubr.bf16.mxu0 %v2390
        %8858 = vmatmul.mubr.bf16.gmra.mrb[0].mxu0 %v2389
        %v8859 = vpop.f32.mrb[0].mxu0
        %v8860 = vadd.f32 %v8819, %v8859
        %v8861 = vpop.f32.mrb[0].mxu0
        %v8862 = vadd.f32 %v8821, %v8861
        %v8863 = vpop.f32.mrb[0].mxu0
        %v8864 = vpop.f32.mrb[0].mxu0
        %8865 = vdwg.mxu0
        %8866 = vmatprep.subr.bf16.mxu0 %v7428
        %8867 = vmatpush1.bf16.msra.mxu0 %v7427
        %8868 = vmatprep.subr.bf16.mxu0 %v7436
        %8869 = vmatpush1.bf16.msra.mxu0 %v7435
        %8870 = vmatprep.subr.bf16.mxu0 %v7444
        %8871 = vmatpush1.bf16.msra.mxu0 %v7443
        %8872 = vmatprep.subr.bf16.mxu0 %v7452
        %8873 = vmatpush1.bf16.msra.mxu0 %v7451
        %8874 = vmatprep.subr.bf16.mxu0 %v7460
        %8875 = vmatpush1.bf16.msra.mxu0 %v7459
        %8876 = vmatprep.subr.bf16.mxu0 %v7468
        %8877 = vmatpush1.bf16.msra.mxu0 %v7467
        %8878 = vmatprep.subr.bf16.mxu0 %v7476
        %8879 = vmatpush1.bf16.msra.mxu0 %v7475
        %8880 = vmatprep.subr.bf16.mxu0 %v7484
        %8881 = vmatpush1.bf16.msra.mxu0 %v7483
        %8882 = vmatprep.subr.bf16.mxu0 %v7492
        %8883 = vmatpush1.bf16.msra.mxu0 %v7491
        %8884 = vmatprep.subr.bf16.mxu0 %v7500
        %8885 = vmatpush1.bf16.msra.mxu0 %v7499
        %8886 = vmatprep.subr.bf16.mxu0 %v7508
        %8887 = vmatpush1.bf16.msra.mxu0 %v7507
        %8888 = vmatprep.subr.bf16.mxu0 %v7516
        %8889 = vmatpush1.bf16.msra.mxu0 %v7515
        %8890 = vmatprep.subr.bf16.mxu0 %v7524
        %8891 = vmatpush1.bf16.msra.mxu0 %v7523
        %8892 = vmatprep.subr.bf16.mxu0 %v7532
        %8893 = vmatpush1.bf16.msra.mxu0 %v7531
        %8894 = vmatprep.subr.bf16.mxu0 %v7540
        %8895 = vmatpush1.bf16.msra.mxu0 %v7539
        %8896 = vmatprep.subr.bf16.mxu0 %v7548
        %8897 = vmatpush1.bf16.msra.mxu0 %v7547
        %8898 = vmatprep.mubr.bf16.mxu0 %v2392
        %8899 = vmatmul.mubr.bf16.gmra.mrb[0].mxu0 %v2391
        %v8900 = vpop.f32.mrb[0].mxu0
        %v8901 = vadd.f32 %v8860, %v8900
        %v8902 = vpop.f32.mrb[0].mxu0
        %v8903 = vadd.f32 %v8862, %v8902
        %v8904 = vpop.f32.mrb[0].mxu0
        %v8905 = vpop.f32.mrb[0].mxu0
        %8906 = vdwg.mxu0
        %8907 = vmatprep.subr.bf16.mxu0 %v6534
        %8908 = vmatpush1.bf16.msra.mxu0 %v6533
        %8909 = vmatprep.subr.bf16.mxu0 %v6542
        %8910 = vmatpush1.bf16.msra.mxu0 %v6541
        %8911 = vmatprep.subr.bf16.mxu0 %v6550
        %8912 = vmatpush1.bf16.msra.mxu0 %v6549
        %8913 = vmatprep.subr.bf16.mxu0 %v6558
        %8914 = vmatpush1.bf16.msra.mxu0 %v6557
        %8915 = vmatprep.subr.bf16.mxu0 %v6566
        %8916 = vmatpush1.bf16.msra.mxu0 %v6565
        %8917 = vmatprep.subr.bf16.mxu0 %v6574
        %8918 = vmatpush1.bf16.msra.mxu0 %v6573
        %8919 = vmatprep.subr.bf16.mxu0 %v6582
        %8920 = vmatpush1.bf16.msra.mxu0 %v6581
        %8921 = vmatprep.subr.bf16.mxu0 %v6590
        %8922 = vmatpush1.bf16.msra.mxu0 %v6589
        %8923 = vmatprep.subr.bf16.mxu0 %v6598
        %8924 = vmatpush1.bf16.msra.mxu0 %v6597
        %8925 = vmatprep.subr.bf16.mxu0 %v6606
        %8926 = vmatpush1.bf16.msra.mxu0 %v6605
        %8927 = vmatprep.subr.bf16.mxu0 %v6614
        %8928 = vmatpush1.bf16.msra.mxu0 %v6613
        %8929 = vmatprep.subr.bf16.mxu0 %v6622
        %8930 = vmatpush1.bf16.msra.mxu0 %v6621
        %8931 = vmatprep.subr.bf16.mxu0 %v6630
        %8932 = vmatpush1.bf16.msra.mxu0 %v6629
        %8933 = vmatprep.subr.bf16.mxu0 %v6638
        %8934 = vmatpush1.bf16.msra.mxu0 %v6637
        %8935 = vmatprep.subr.bf16.mxu0 %v6646
        %8936 = vmatpush1.bf16.msra.mxu0 %v6645
        %8937 = vmatprep.subr.bf16.mxu0 %v6654
        %8938 = vmatpush1.bf16.msra.mxu0 %v6653
        %8939 = vmatprep.mubr.bf16.mxu0 %v2378
        %8940 = vmatmul.mubr.bf16.gmra.mrb[0].mxu0 %v2377
        %v8941 = vpop.f32.mrb[0].mxu0
        %v8942 = vadd.f32 %v3430, %v8941
        %v8943 = vpop.f32.mrb[0].mxu0
        %v8944 = vadd.f32 %v3434, %v8943
        %v8945 = vpop.f32.mrb[0].mxu0
        %v8946 = vpop.f32.mrb[0].mxu0
        %8947 = vdwg.mxu0
        %8948 = vmatprep.subr.bf16.mxu0 %v6662
        %8949 = vmatpush1.bf16.msra.mxu0 %v6661
        %8950 = vmatprep.subr.bf16.mxu0 %v6670
        %8951 = vmatpush1.bf16.msra.mxu0 %v6669
        %8952 = vmatprep.subr.bf16.mxu0 %v6678
        %8953 = vmatpush1.bf16.msra.mxu0 %v6677
        %8954 = vmatprep.subr.bf16.mxu0 %v6686
        %8955 = vmatpush1.bf16.msra.mxu0 %v6685
        %8956 = vmatprep.subr.bf16.mxu0 %v6694
        %8957 = vmatpush1.bf16.msra.mxu0 %v6693
        %8958 = vmatprep.subr.bf16.mxu0 %v6702
        %8959 = vmatpush1.bf16.msra.mxu0 %v6701
        %8960 = vmatprep.subr.bf16.mxu0 %v6710
        %8961 = vmatpush1.bf16.msra.mxu0 %v6709
        %8962 = vmatprep.subr.bf16.mxu0 %v6718
        %8963 = vmatpush1.bf16.msra.mxu0 %v6717
        %8964 = vmatprep.subr.bf16.mxu0 %v6726
        %8965 = vmatpush1.bf16.msra.mxu0 %v6725
        %8966 = vmatprep.subr.bf16.mxu0 %v6734
        %8967 = vmatpush1.bf16.msra.mxu0 %v6733
        %8968 = vmatprep.subr.bf16.mxu0 %v6742
        %8969 = vmatpush1.bf16.msra.mxu0 %v6741
        %8970 = vmatprep.subr.bf16.mxu0 %v6750
        %8971 = vmatpush1.bf16.msra.mxu0 %v6749
        %8972 = vmatprep.subr.bf16.mxu0 %v6758
        %8973 = vmatpush1.bf16.msra.mxu0 %v6757
        %8974 = vmatprep.subr.bf16.mxu0 %v6766
        %8975 = vmatpush1.bf16.msra.mxu0 %v6765
        %8976 = vmatprep.subr.bf16.mxu0 %v6774
        %8977 = vmatpush1.bf16.msra.mxu0 %v6773
        %8978 = vmatprep.subr.bf16.mxu0 %v6782
        %8979 = vmatpush1.bf16.msra.mxu0 %v6781
        %8980 = vmatprep.mubr.bf16.mxu0 %v2380
        %8981 = vmatmul.mubr.bf16.gmra.mrb[0].mxu0 %v2379
        %v8982 = vpop.f32.mrb[0].mxu0
        %v8983 = vadd.f32 %v8942, %v8982
        %v8984 = vpop.f32.mrb[0].mxu0
        %v8985 = vadd.f32 %v8944, %v8984
        %v8986 = vpop.f32.mrb[0].mxu0
        %v8987 = vpop.f32.mrb[0].mxu0
        %8988 = vdwg.mxu0
        %8989 = vmatprep.subr.bf16.mxu0 %v6790
        %8990 = vmatpush1.bf16.msra.mxu0 %v6789
        %8991 = vmatprep.subr.bf16.mxu0 %v6798
        %8992 = vmatpush1.bf16.msra.mxu0 %v6797
        %8993 = vmatprep.subr.bf16.mxu0 %v6806
        %8994 = vmatpush1.bf16.msra.mxu0 %v6805
        %8995 = vmatprep.subr.bf16.mxu0 %v6814
        %8996 = vmatpush1.bf16.msra.mxu0 %v6813
        %8997 = vmatprep.subr.bf16.mxu0 %v6822
        %8998 = vmatpush1.bf16.msra.mxu0 %v6821
        %8999 = vmatprep.subr.bf16.mxu0 %v6830
        %9000 = vmatpush1.bf16.msra.mxu0 %v6829
        %9001 = vmatprep.subr.bf16.mxu0 %v6838
        %9002 = vmatpush1.bf16.msra.mxu0 %v6837
        %9003 = vmatprep.subr.bf16.mxu0 %v6846
        %9004 = vmatpush1.bf16.msra.mxu0 %v6845
        %9005 = vmatprep.subr.bf16.mxu0 %v6854
        %9006 = vmatpush1.bf16.msra.mxu0 %v6853
        %9007 = vmatprep.subr.bf16.mxu0 %v6862
        %9008 = vmatpush1.bf16.msra.mxu0 %v6861
        %9009 = vmatprep.subr.bf16.mxu0 %v6870
        %9010 = vmatpush1.bf16.msra.mxu0 %v6869
        %9011 = vmatprep.subr.bf16.mxu0 %v6878
        %9012 = vmatpush1.bf16.msra.mxu0 %v6877
        %9013 = vmatprep.subr.bf16.mxu0 %v6886
        %9014 = vmatpush1.bf16.msra.mxu0 %v6885
        %9015 = vmatprep.subr.bf16.mxu0 %v6894
        %9016 = vmatpush1.bf16.msra.mxu0 %v6893
        %9017 = vmatprep.subr.bf16.mxu0 %v6902
        %9018 = vmatpush1.bf16.msra.mxu0 %v6901
        %9019 = vmatprep.subr.bf16.mxu0 %v6910
        %9020 = vmatpush1.bf16.msra.mxu0 %v6909
        %9021 = vmatprep.mubr.bf16.mxu0 %v2382
        %9022 = vmatmul.mubr.bf16.gmra.mrb[0].mxu0 %v2381
        %v9023 = vpop.f32.mrb[0].mxu0
        %v9024 = vadd.f32 %v8983, %v9023
        %v9025 = vpop.f32.mrb[0].mxu0
        %v9026 = vadd.f32 %v8985, %v9025
        %v9027 = vpop.f32.mrb[0].mxu0
        %v9028 = vpop.f32.mrb[0].mxu0
        %9029 = vdwg.mxu0
        %9030 = vmatprep.subr.bf16.mxu0 %v6918
        %9031 = vmatpush1.bf16.msra.mxu0 %v6917
        %9032 = vmatprep.subr.bf16.mxu0 %v6926
        %9033 = vmatpush1.bf16.msra.mxu0 %v6925
        %9034 = vmatprep.subr.bf16.mxu0 %v6934
        %9035 = vmatpush1.bf16.msra.mxu0 %v6933
        %9036 = vmatprep.subr.bf16.mxu0 %v6942
        %9037 = vmatpush1.bf16.msra.mxu0 %v6941
        %9038 = vmatprep.subr.bf16.mxu0 %v6950
        %9039 = vmatpush1.bf16.msra.mxu0 %v6949
        %9040 = vmatprep.subr.bf16.mxu0 %v6958
        %9041 = vmatpush1.bf16.msra.mxu0 %v6957
        %9042 = vmatprep.subr.bf16.mxu0 %v6966
        %9043 = vmatpush1.bf16.msra.mxu0 %v6965
        %9044 = vmatprep.subr.bf16.mxu0 %v6974
        %9045 = vmatpush1.bf16.msra.mxu0 %v6973
        %9046 = vmatprep.subr.bf16.mxu0 %v6982
        %9047 = vmatpush1.bf16.msra.mxu0 %v6981
        %9048 = vmatprep.subr.bf16.mxu0 %v6990
        %9049 = vmatpush1.bf16.msra.mxu0 %v6989
        %9050 = vmatprep.subr.bf16.mxu0 %v6998
        %9051 = vmatpush1.bf16.msra.mxu0 %v6997
        %9052 = vmatprep.subr.bf16.mxu0 %v7006
        %9053 = vmatpush1.bf16.msra.mxu0 %v7005
        %9054 = vmatprep.subr.bf16.mxu0 %v7014
        %9055 = vmatpush1.bf16.msra.mxu0 %v7013
        %9056 = vmatprep.subr.bf16.mxu0 %v7022
        %9057 = vmatpush1.bf16.msra.mxu0 %v7021
        %9058 = vmatprep.subr.bf16.mxu0 %v7030
        %9059 = vmatpush1.bf16.msra.mxu0 %v7029
        %9060 = vmatprep.subr.bf16.mxu0 %v7038
        %9061 = vmatpush1.bf16.msra.mxu0 %v7037
        %9062 = vmatprep.mubr.bf16.mxu0 %v2384
        %9063 = vmatmul.mubr.bf16.gmra.mrb[0].mxu0 %v2383
        %v9064 = vpop.f32.mrb[0].mxu0
        %v9065 = vadd.f32 %v9024, %v9064
        %v9066 = vpop.f32.mrb[0].mxu0
        %v9067 = vadd.f32 %v9026, %v9066
        %v9068 = vpop.f32.mrb[0].mxu0
        %v9069 = vpop.f32.mrb[0].mxu0
        %9070 = vdwg.mxu0
        %9071 = vmatprep.subr.bf16.mxu0 %v7046
        %9072 = vmatpush1.bf16.msra.mxu0 %v7045
        %9073 = vmatprep.subr.bf16.mxu0 %v7054
        %9074 = vmatpush1.bf16.msra.mxu0 %v7053
        %9075 = vmatprep.subr.bf16.mxu0 %v7062
        %9076 = vmatpush1.bf16.msra.mxu0 %v7061
        %9077 = vmatprep.subr.bf16.mxu0 %v7070
        %9078 = vmatpush1.bf16.msra.mxu0 %v7069
        %9079 = vmatprep.subr.bf16.mxu0 %v7078
        %9080 = vmatpush1.bf16.msra.mxu0 %v7077
        %9081 = vmatprep.subr.bf16.mxu0 %v7086
        %9082 = vmatpush1.bf16.msra.mxu0 %v7085
        %9083 = vmatprep.subr.bf16.mxu0 %v7094
        %9084 = vmatpush1.bf16.msra.mxu0 %v7093
        %9085 = vmatprep.subr.bf16.mxu0 %v7102
        %9086 = vmatpush1.bf16.msra.mxu0 %v7101
        %9087 = vmatprep.subr.bf16.mxu0 %v7110
        %9088 = vmatpush1.bf16.msra.mxu0 %v7109
        %9089 = vmatprep.subr.bf16.mxu0 %v7118
        %9090 = vmatpush1.bf16.msra.mxu0 %v7117
        %9091 = vmatprep.subr.bf16.mxu0 %v7126
        %9092 = vmatpush1.bf16.msra.mxu0 %v7125
        %9093 = vmatprep.subr.bf16.mxu0 %v7134
        %9094 = vmatpush1.bf16.msra.mxu0 %v7133
        %9095 = vmatprep.subr.bf16.mxu0 %v7142
        %9096 = vmatpush1.bf16.msra.mxu0 %v7141
        %9097 = vmatprep.subr.bf16.mxu0 %v7150
        %9098 = vmatpush1.bf16.msra.mxu0 %v7149
        %9099 = vmatprep.subr.bf16.mxu0 %v7158
        %9100 = vmatpush1.bf16.msra.mxu0 %v7157
        %9101 = vmatprep.subr.bf16.mxu0 %v7166
        %9102 = vmatpush1.bf16.msra.mxu0 %v7165
        %9103 = vmatprep.mubr.bf16.mxu0 %v2386
        %9104 = vmatmul.mubr.bf16.gmra.mrb[0].mxu0 %v2385
        %v9105 = vpop.f32.mrb[0].mxu0
        %v9106 = vadd.f32 %v9065, %v9105
        %v9107 = vpop.f32.mrb[0].mxu0
        %v9108 = vadd.f32 %v9067, %v9107
        %v9109 = vpop.f32.mrb[0].mxu0
        %v9110 = vpop.f32.mrb[0].mxu0
        %9111 = vdwg.mxu0
        %9112 = vmatprep.subr.bf16.mxu0 %v7174
        %9113 = vmatpush1.bf16.msra.mxu0 %v7173
        %9114 = vmatprep.subr.bf16.mxu0 %v7182
        %9115 = vmatpush1.bf16.msra.mxu0 %v7181
        %9116 = vmatprep.subr.bf16.mxu0 %v7190
        %9117 = vmatpush1.bf16.msra.mxu0 %v7189
        %9118 = vmatprep.subr.bf16.mxu0 %v7198
        %9119 = vmatpush1.bf16.msra.mxu0 %v7197
        %9120 = vmatprep.subr.bf16.mxu0 %v7206
        %9121 = vmatpush1.bf16.msra.mxu0 %v7205
        %9122 = vmatprep.subr.bf16.mxu0 %v7214
        %9123 = vmatpush1.bf16.msra.mxu0 %v7213
        %9124 = vmatprep.subr.bf16.mxu0 %v7222
        %9125 = vmatpush1.bf16.msra.mxu0 %v7221
        %9126 = vmatprep.subr.bf16.mxu0 %v7230
        %9127 = vmatpush1.bf16.msra.mxu0 %v7229
        %9128 = vmatprep.subr.bf16.mxu0 %v7238
        %9129 = vmatpush1.bf16.msra.mxu0 %v7237
        %9130 = vmatprep.subr.bf16.mxu0 %v7246
        %9131 = vmatpush1.bf16.msra.mxu0 %v7245
        %9132 = vmatprep.subr.bf16.mxu0 %v7254
        %9133 = vmatpush1.bf16.msra.mxu0 %v7253
        %9134 = vmatprep.subr.bf16.mxu0 %v7262
        %9135 = vmatpush1.bf16.msra.mxu0 %v7261
        %9136 = vmatprep.subr.bf16.mxu0 %v7270
        %9137 = vmatpush1.bf16.msra.mxu0 %v7269
        %9138 = vmatprep.subr.bf16.mxu0 %v7278
        %9139 = vmatpush1.bf16.msra.mxu0 %v7277
        %9140 = vmatprep.subr.bf16.mxu0 %v7286
        %9141 = vmatpush1.bf16.msra.mxu0 %v7285
        %9142 = vmatprep.subr.bf16.mxu0 %v7294
        %9143 = vmatpush1.bf16.msra.mxu0 %v7293
        %9144 = vmatprep.mubr.bf16.mxu0 %v2388
        %9145 = vmatmul.mubr.bf16.gmra.mrb[0].mxu0 %v2387
        %v9146 = vpop.f32.mrb[0].mxu0
        %v9147 = vadd.f32 %v9106, %v9146
        %v9148 = vpop.f32.mrb[0].mxu0
        %v9149 = vadd.f32 %v9108, %v9148
        %v9150 = vpop.f32.mrb[0].mxu0
        %v9151 = vpop.f32.mrb[0].mxu0
        %9152 = vdwg.mxu0
        %9153 = vmatprep.subr.bf16.mxu0 %v7302
        %9154 = vmatpush1.bf16.msra.mxu0 %v7301
        %9155 = vmatprep.subr.bf16.mxu0 %v7310
        %9156 = vmatpush1.bf16.msra.mxu0 %v7309
        %9157 = vmatprep.subr.bf16.mxu0 %v7318
        %9158 = vmatpush1.bf16.msra.mxu0 %v7317
        %9159 = vmatprep.subr.bf16.mxu0 %v7326
        %9160 = vmatpush1.bf16.msra.mxu0 %v7325
        %9161 = vmatprep.subr.bf16.mxu0 %v7334
        %9162 = vmatpush1.bf16.msra.mxu0 %v7333
        %9163 = vmatprep.subr.bf16.mxu0 %v7342
        %9164 = vmatpush1.bf16.msra.mxu0 %v7341
        %9165 = vmatprep.subr.bf16.mxu0 %v7350
        %9166 = vmatpush1.bf16.msra.mxu0 %v7349
        %9167 = vmatprep.subr.bf16.mxu0 %v7358
        %9168 = vmatpush1.bf16.msra.mxu0 %v7357
        %9169 = vmatprep.subr.bf16.mxu0 %v7366
        %9170 = vmatpush1.bf16.msra.mxu0 %v7365
        %9171 = vmatprep.subr.bf16.mxu0 %v7374
        %9172 = vmatpush1.bf16.msra.mxu0 %v7373
        %9173 = vmatprep.subr.bf16.mxu0 %v7382
        %9174 = vmatpush1.bf16.msra.mxu0 %v7381
        %9175 = vmatprep.subr.bf16.mxu0 %v7390
        %9176 = vmatpush1.bf16.msra.mxu0 %v7389
        %9177 = vmatprep.subr.bf16.mxu0 %v7398
        %9178 = vmatpush1.bf16.msra.mxu0 %v7397
        %9179 = vmatprep.subr.bf16.mxu0 %v7406
        %9180 = vmatpush1.bf16.msra.mxu0 %v7405
        %9181 = vmatprep.subr.bf16.mxu0 %v7414
        %9182 = vmatpush1.bf16.msra.mxu0 %v7413
        %9183 = vmatprep.subr.bf16.mxu0 %v7422
        %9184 = vmatpush1.bf16.msra.mxu0 %v7421
        %9185 = vmatprep.mubr.bf16.mxu0 %v2390
        %9186 = vmatmul.mubr.bf16.gmra.mrb[0].mxu0 %v2389
        %v9187 = vpop.f32.mrb[0].mxu0
        %v9188 = vadd.f32 %v9147, %v9187
        %v9189 = vpop.f32.mrb[0].mxu0
        %v9190 = vadd.f32 %v9149, %v9189
        %v9191 = vpop.f32.mrb[0].mxu0
        %v9192 = vpop.f32.mrb[0].mxu0
        %9193 = vdwg.mxu0
        %9194 = vmatprep.subr.bf16.mxu0 %v7430
        %9195 = vmatpush1.bf16.msra.mxu0 %v7429
        %9196 = vmatprep.subr.bf16.mxu0 %v7438
        %9197 = vmatpush1.bf16.msra.mxu0 %v7437
        %9198 = vmatprep.subr.bf16.mxu0 %v7446
        %9199 = vmatpush1.bf16.msra.mxu0 %v7445
        %9200 = vmatprep.subr.bf16.mxu0 %v7454
        %9201 = vmatpush1.bf16.msra.mxu0 %v7453
        %9202 = vmatprep.subr.bf16.mxu0 %v7462
        %9203 = vmatpush1.bf16.msra.mxu0 %v7461
        %9204 = vmatprep.subr.bf16.mxu0 %v7470
        %9205 = vmatpush1.bf16.msra.mxu0 %v7469
        %9206 = vmatprep.subr.bf16.mxu0 %v7478
        %9207 = vmatpush1.bf16.msra.mxu0 %v7477
        %9208 = vmatprep.subr.bf16.mxu0 %v7486
        %9209 = vmatpush1.bf16.msra.mxu0 %v7485
        %9210 = vmatprep.subr.bf16.mxu0 %v7494
        %9211 = vmatpush1.bf16.msra.mxu0 %v7493
        %9212 = vmatprep.subr.bf16.mxu0 %v7502
        %9213 = vmatpush1.bf16.msra.mxu0 %v7501
        %9214 = vmatprep.subr.bf16.mxu0 %v7510
        %9215 = vmatpush1.bf16.msra.mxu0 %v7509
        %9216 = vmatprep.subr.bf16.mxu0 %v7518
        %9217 = vmatpush1.bf16.msra.mxu0 %v7517
        %9218 = vmatprep.subr.bf16.mxu0 %v7526
        %9219 = vmatpush1.bf16.msra.mxu0 %v7525
        %9220 = vmatprep.subr.bf16.mxu0 %v7534
        %9221 = vmatpush1.bf16.msra.mxu0 %v7533
        %9222 = vmatprep.subr.bf16.mxu0 %v7542
        %9223 = vmatpush1.bf16.msra.mxu0 %v7541
        %9224 = vmatprep.subr.bf16.mxu0 %v7550
        %9225 = vmatpush1.bf16.msra.mxu0 %v7549
        %9226 = vmatprep.mubr.bf16.mxu0 %v2392
        %9227 = vmatmul.mubr.bf16.gmra.mrb[0].mxu0 %v2391
        %v9228 = vpop.f32.mrb[0].mxu0
        %v9229 = vadd.f32 %v9188, %v9228
        %v9230 = vpop.f32.mrb[0].mxu0
        %v9231 = vadd.f32 %v9190, %v9230
        %v9232 = vpop.f32.mrb[0].mxu0
        %v9233 = vpop.f32.mrb[0].mxu0
        %9234 = vdwg.mxu0
        %9235 = vmatprep.subr.bf16.mxu0 %v6536
        %9236 = vmatpush1.bf16.msra.mxu0 %v6535
        %9237 = vmatprep.subr.bf16.mxu0 %v6544
        %9238 = vmatpush1.bf16.msra.mxu0 %v6543
        %9239 = vmatprep.subr.bf16.mxu0 %v6552
        %9240 = vmatpush1.bf16.msra.mxu0 %v6551
        %9241 = vmatprep.subr.bf16.mxu0 %v6560
        %9242 = vmatpush1.bf16.msra.mxu0 %v6559
        %9243 = vmatprep.subr.bf16.mxu0 %v6568
        %9244 = vmatpush1.bf16.msra.mxu0 %v6567
        %9245 = vmatprep.subr.bf16.mxu0 %v6576
        %9246 = vmatpush1.bf16.msra.mxu0 %v6575
        %9247 = vmatprep.subr.bf16.mxu0 %v6584
        %9248 = vmatpush1.bf16.msra.mxu0 %v6583
        %9249 = vmatprep.subr.bf16.mxu0 %v6592
        %9250 = vmatpush1.bf16.msra.mxu0 %v6591
        %9251 = vmatprep.subr.bf16.mxu0 %v6600
        %9252 = vmatpush1.bf16.msra.mxu0 %v6599
        %9253 = vmatprep.subr.bf16.mxu0 %v6608
        %9254 = vmatpush1.bf16.msra.mxu0 %v6607
        %9255 = vmatprep.subr.bf16.mxu0 %v6616
        %9256 = vmatpush1.bf16.msra.mxu0 %v6615
        %9257 = vmatprep.subr.bf16.mxu0 %v6624
        %9258 = vmatpush1.bf16.msra.mxu0 %v6623
        %9259 = vmatprep.subr.bf16.mxu0 %v6632
        %9260 = vmatpush1.bf16.msra.mxu0 %v6631
        %9261 = vmatprep.subr.bf16.mxu0 %v6640
        %9262 = vmatpush1.bf16.msra.mxu0 %v6639
        %9263 = vmatprep.subr.bf16.mxu0 %v6648
        %9264 = vmatpush1.bf16.msra.mxu0 %v6647
        %9265 = vmatprep.subr.bf16.mxu0 %v6656
        %9266 = vmatpush1.bf16.msra.mxu0 %v6655
        %9267 = vmatprep.mubr.bf16.mxu0 %v2378
        %9268 = vmatmul.mubr.bf16.gmra.mrb[0].mxu0 %v2377
        %v9269 = vpop.f32.mrb[0].mxu0
        %v9270 = vadd.f32 %v3438, %v9269
        %v9271 = vpop.f32.mrb[0].mxu0
        %v9272 = vadd.f32 %v3442, %v9271
        %v9273 = vpop.f32.mrb[0].mxu0
        %v9274 = vpop.f32.mrb[0].mxu0
        %9275 = vdwg.mxu0
        %9276 = vmatprep.subr.bf16.mxu0 %v6664
        %9277 = vmatpush1.bf16.msra.mxu0 %v6663
        %9278 = vmatprep.subr.bf16.mxu0 %v6672
        %9279 = vmatpush1.bf16.msra.mxu0 %v6671
        %9280 = vmatprep.subr.bf16.mxu0 %v6680
        %9281 = vmatpush1.bf16.msra.mxu0 %v6679
        %9282 = vmatprep.subr.bf16.mxu0 %v6688
        %9283 = vmatpush1.bf16.msra.mxu0 %v6687
        %9284 = vmatprep.subr.bf16.mxu0 %v6696
        %9285 = vmatpush1.bf16.msra.mxu0 %v6695
        %9286 = vmatprep.subr.bf16.mxu0 %v6704
        %9287 = vmatpush1.bf16.msra.mxu0 %v6703
        %9288 = vmatprep.subr.bf16.mxu0 %v6712
        %9289 = vmatpush1.bf16.msra.mxu0 %v6711
        %9290 = vmatprep.subr.bf16.mxu0 %v6720
        %9291 = vmatpush1.bf16.msra.mxu0 %v6719
        %9292 = vmatprep.subr.bf16.mxu0 %v6728
        %9293 = vmatpush1.bf16.msra.mxu0 %v6727
        %9294 = vmatprep.subr.bf16.mxu0 %v6736
        %9295 = vmatpush1.bf16.msra.mxu0 %v6735
        %9296 = vmatprep.subr.bf16.mxu0 %v6744
        %9297 = vmatpush1.bf16.msra.mxu0 %v6743
        %9298 = vmatprep.subr.bf16.mxu0 %v6752
        %9299 = vmatpush1.bf16.msra.mxu0 %v6751
        %9300 = vmatprep.subr.bf16.mxu0 %v6760
        %9301 = vmatpush1.bf16.msra.mxu0 %v6759
        %9302 = vmatprep.subr.bf16.mxu0 %v6768
        %9303 = vmatpush1.bf16.msra.mxu0 %v6767
        %9304 = vmatprep.subr.bf16.mxu0 %v6776
        %9305 = vmatpush1.bf16.msra.mxu0 %v6775
        %9306 = vmatprep.subr.bf16.mxu0 %v6784
        %9307 = vmatpush1.bf16.msra.mxu0 %v6783
        %9308 = vmatprep.mubr.bf16.mxu0 %v2380
        %9309 = vmatmul.mubr.bf16.gmra.mrb[0].mxu0 %v2379
        %v9310 = vpop.f32.mrb[0].mxu0
        %v9311 = vadd.f32 %v9270, %v9310
        %v9312 = vpop.f32.mrb[0].mxu0
        %v9313 = vadd.f32 %v9272, %v9312
        %v9314 = vpop.f32.mrb[0].mxu0
        %v9315 = vpop.f32.mrb[0].mxu0
        %9316 = vdwg.mxu0
        %9317 = vmatprep.subr.bf16.mxu0 %v6792
        %9318 = vmatpush1.bf16.msra.mxu0 %v6791
        %9319 = vmatprep.subr.bf16.mxu0 %v6800
        %9320 = vmatpush1.bf16.msra.mxu0 %v6799
        %9321 = vmatprep.subr.bf16.mxu0 %v6808
        %9322 = vmatpush1.bf16.msra.mxu0 %v6807
        %9323 = vmatprep.subr.bf16.mxu0 %v6816
        %9324 = vmatpush1.bf16.msra.mxu0 %v6815
        %9325 = vmatprep.subr.bf16.mxu0 %v6824
        %9326 = vmatpush1.bf16.msra.mxu0 %v6823
        %9327 = vmatprep.subr.bf16.mxu0 %v6832
        %9328 = vmatpush1.bf16.msra.mxu0 %v6831
        %9329 = vmatprep.subr.bf16.mxu0 %v6840
        %9330 = vmatpush1.bf16.msra.mxu0 %v6839
        %9331 = vmatprep.subr.bf16.mxu0 %v6848
        %9332 = vmatpush1.bf16.msra.mxu0 %v6847
        %9333 = vmatprep.subr.bf16.mxu0 %v6856
        %9334 = vmatpush1.bf16.msra.mxu0 %v6855
        %9335 = vmatprep.subr.bf16.mxu0 %v6864
        %9336 = vmatpush1.bf16.msra.mxu0 %v6863
        %9337 = vmatprep.subr.bf16.mxu0 %v6872
        %9338 = vmatpush1.bf16.msra.mxu0 %v6871
        %9339 = vmatprep.subr.bf16.mxu0 %v6880
        %9340 = vmatpush1.bf16.msra.mxu0 %v6879
        %9341 = vmatprep.subr.bf16.mxu0 %v6888
        %9342 = vmatpush1.bf16.msra.mxu0 %v6887
        %9343 = vmatprep.subr.bf16.mxu0 %v6896
        %9344 = vmatpush1.bf16.msra.mxu0 %v6895
        %9345 = vmatprep.subr.bf16.mxu0 %v6904
        %9346 = vmatpush1.bf16.msra.mxu0 %v6903
        %9347 = vmatprep.subr.bf16.mxu0 %v6912
        %9348 = vmatpush1.bf16.msra.mxu0 %v6911
        %9349 = vmatprep.mubr.bf16.mxu0 %v2382
        %9350 = vmatmul.mubr.bf16.gmra.mrb[0].mxu0 %v2381
        %v9351 = vpop.f32.mrb[0].mxu0
        %v9352 = vadd.f32 %v9311, %v9351
        %v9353 = vpop.f32.mrb[0].mxu0
        %v9354 = vadd.f32 %v9313, %v9353
        %v9355 = vpop.f32.mrb[0].mxu0
        %v9356 = vpop.f32.mrb[0].mxu0
        %9357 = vdwg.mxu0
        %9358 = vmatprep.subr.bf16.mxu0 %v6920
        %9359 = vmatpush1.bf16.msra.mxu0 %v6919
        %9360 = vmatprep.subr.bf16.mxu0 %v6928
        %9361 = vmatpush1.bf16.msra.mxu0 %v6927
        %9362 = vmatprep.subr.bf16.mxu0 %v6936
        %9363 = vmatpush1.bf16.msra.mxu0 %v6935
        %9364 = vmatprep.subr.bf16.mxu0 %v6944
        %9365 = vmatpush1.bf16.msra.mxu0 %v6943
        %9366 = vmatprep.subr.bf16.mxu0 %v6952
        %9367 = vmatpush1.bf16.msra.mxu0 %v6951
        %9368 = vmatprep.subr.bf16.mxu0 %v6960
        %9369 = vmatpush1.bf16.msra.mxu0 %v6959
        %9370 = vmatprep.subr.bf16.mxu0 %v6968
        %9371 = vmatpush1.bf16.msra.mxu0 %v6967
        %9372 = vmatprep.subr.bf16.mxu0 %v6976
        %9373 = vmatpush1.bf16.msra.mxu0 %v6975
        %9374 = vmatprep.subr.bf16.mxu0 %v6984
        %9375 = vmatpush1.bf16.msra.mxu0 %v6983
        %9376 = vmatprep.subr.bf16.mxu0 %v6992
        %9377 = vmatpush1.bf16.msra.mxu0 %v6991
        %9378 = vmatprep.subr.bf16.mxu0 %v7000
        %9379 = vmatpush1.bf16.msra.mxu0 %v6999
        %9380 = vmatprep.subr.bf16.mxu0 %v7008
        %9381 = vmatpush1.bf16.msra.mxu0 %v7007
        %9382 = vmatprep.subr.bf16.mxu0 %v7016
        %9383 = vmatpush1.bf16.msra.mxu0 %v7015
        %9384 = vmatprep.subr.bf16.mxu0 %v7024
        %9385 = vmatpush1.bf16.msra.mxu0 %v7023
        %9386 = vmatprep.subr.bf16.mxu0 %v7032
        %9387 = vmatpush1.bf16.msra.mxu0 %v7031
        %9388 = vmatprep.subr.bf16.mxu0 %v7040
        %9389 = vmatpush1.bf16.msra.mxu0 %v7039
        %9390 = vmatprep.mubr.bf16.mxu0 %v2384
        %9391 = vmatmul.mubr.bf16.gmra.mrb[0].mxu0 %v2383
        %v9392 = vpop.f32.mrb[0].mxu0
        %v9393 = vadd.f32 %v9352, %v9392
        %v9394 = vpop.f32.mrb[0].mxu0
        %v9395 = vadd.f32 %v9354, %v9394
        %v9396 = vpop.f32.mrb[0].mxu0
        %v9397 = vpop.f32.mrb[0].mxu0
        %9398 = vdwg.mxu0
        %9399 = vmatprep.subr.bf16.mxu0 %v7048
        %9400 = vmatpush1.bf16.msra.mxu0 %v7047
        %9401 = vmatprep.subr.bf16.mxu0 %v7056
        %9402 = vmatpush1.bf16.msra.mxu0 %v7055
        %9403 = vmatprep.subr.bf16.mxu0 %v7064
        %9404 = vmatpush1.bf16.msra.mxu0 %v7063
        %9405 = vmatprep.subr.bf16.mxu0 %v7072
        %9406 = vmatpush1.bf16.msra.mxu0 %v7071
        %9407 = vmatprep.subr.bf16.mxu0 %v7080
        %9408 = vmatpush1.bf16.msra.mxu0 %v7079
        %9409 = vmatprep.subr.bf16.mxu0 %v7088
        %9410 = vmatpush1.bf16.msra.mxu0 %v7087
        %9411 = vmatprep.subr.bf16.mxu0 %v7096
        %9412 = vmatpush1.bf16.msra.mxu0 %v7095
        %9413 = vmatprep.subr.bf16.mxu0 %v7104
        %9414 = vmatpush1.bf16.msra.mxu0 %v7103
        %9415 = vmatprep.subr.bf16.mxu0 %v7112
        %9416 = vmatpush1.bf16.msra.mxu0 %v7111
        %9417 = vmatprep.subr.bf16.mxu0 %v7120
        %9418 = vmatpush1.bf16.msra.mxu0 %v7119
        %9419 = vmatprep.subr.bf16.mxu0 %v7128
        %9420 = vmatpush1.bf16.msra.mxu0 %v7127
        %9421 = vmatprep.subr.bf16.mxu0 %v7136
        %9422 = vmatpush1.bf16.msra.mxu0 %v7135
        %9423 = vmatprep.subr.bf16.mxu0 %v7144
        %9424 = vmatpush1.bf16.msra.mxu0 %v7143
        %9425 = vmatprep.subr.bf16.mxu0 %v7152
        %9426 = vmatpush1.bf16.msra.mxu0 %v7151
        %9427 = vmatprep.subr.bf16.mxu0 %v7160
        %9428 = vmatpush1.bf16.msra.mxu0 %v7159
        %9429 = vmatprep.subr.bf16.mxu0 %v7168
        %9430 = vmatpush1.bf16.msra.mxu0 %v7167
        %9431 = vmatprep.mubr.bf16.mxu0 %v2386
        %9432 = vmatmul.mubr.bf16.gmra.mrb[0].mxu0 %v2385
        %v9433 = vpop.f32.mrb[0].mxu0
        %v9434 = vadd.f32 %v9393, %v9433
        %v9435 = vpop.f32.mrb[0].mxu0
        %v9436 = vadd.f32 %v9395, %v9435
        %v9437 = vpop.f32.mrb[0].mxu0
        %v9438 = vpop.f32.mrb[0].mxu0
        %9439 = vdwg.mxu0
        %9440 = vmatprep.subr.bf16.mxu0 %v7176
        %9441 = vmatpush1.bf16.msra.mxu0 %v7175
        %9442 = vmatprep.subr.bf16.mxu0 %v7184
        %9443 = vmatpush1.bf16.msra.mxu0 %v7183
        %9444 = vmatprep.subr.bf16.mxu0 %v7192
        %9445 = vmatpush1.bf16.msra.mxu0 %v7191
        %9446 = vmatprep.subr.bf16.mxu0 %v7200
        %9447 = vmatpush1.bf16.msra.mxu0 %v7199
        %9448 = vmatprep.subr.bf16.mxu0 %v7208
        %9449 = vmatpush1.bf16.msra.mxu0 %v7207
        %9450 = vmatprep.subr.bf16.mxu0 %v7216
        %9451 = vmatpush1.bf16.msra.mxu0 %v7215
        %9452 = vmatprep.subr.bf16.mxu0 %v7224
        %9453 = vmatpush1.bf16.msra.mxu0 %v7223
        %9454 = vmatprep.subr.bf16.mxu0 %v7232
        %9455 = vmatpush1.bf16.msra.mxu0 %v7231
        %9456 = vmatprep.subr.bf16.mxu0 %v7240
        %9457 = vmatpush1.bf16.msra.mxu0 %v7239
        %9458 = vmatprep.subr.bf16.mxu0 %v7248
        %9459 = vmatpush1.bf16.msra.mxu0 %v7247
        %9460 = vmatprep.subr.bf16.mxu0 %v7256
        %9461 = vmatpush1.bf16.msra.mxu0 %v7255
        %9462 = vmatprep.subr.bf16.mxu0 %v7264
        %9463 = vmatpush1.bf16.msra.mxu0 %v7263
        %9464 = vmatprep.subr.bf16.mxu0 %v7272
        %9465 = vmatpush1.bf16.msra.mxu0 %v7271
        %9466 = vmatprep.subr.bf16.mxu0 %v7280
        %9467 = vmatpush1.bf16.msra.mxu0 %v7279
        %9468 = vmatprep.subr.bf16.mxu0 %v7288
        %9469 = vmatpush1.bf16.msra.mxu0 %v7287
        %9470 = vmatprep.subr.bf16.mxu0 %v7296
        %9471 = vmatpush1.bf16.msra.mxu0 %v7295
        %9472 = vmatprep.mubr.bf16.mxu0 %v2388
        %9473 = vmatmul.mubr.bf16.gmra.mrb[0].mxu0 %v2387
        %v9474 = vpop.f32.mrb[0].mxu0
        %v9475 = vadd.f32 %v9434, %v9474
        %v9476 = vpop.f32.mrb[0].mxu0
        %v9477 = vadd.f32 %v9436, %v9476
        %v9478 = vpop.f32.mrb[0].mxu0
        %v9479 = vpop.f32.mrb[0].mxu0
        %9480 = vdwg.mxu0
        %9481 = vmatprep.subr.bf16.mxu0 %v7304
        %9482 = vmatpush1.bf16.msra.mxu0 %v7303
        %9483 = vmatprep.subr.bf16.mxu0 %v7312
        %9484 = vmatpush1.bf16.msra.mxu0 %v7311
        %9485 = vmatprep.subr.bf16.mxu0 %v7320
        %9486 = vmatpush1.bf16.msra.mxu0 %v7319
        %9487 = vmatprep.subr.bf16.mxu0 %v7328
        %9488 = vmatpush1.bf16.msra.mxu0 %v7327
        %9489 = vmatprep.subr.bf16.mxu0 %v7336
        %9490 = vmatpush1.bf16.msra.mxu0 %v7335
        %9491 = vmatprep.subr.bf16.mxu0 %v7344
        %9492 = vmatpush1.bf16.msra.mxu0 %v7343
        %9493 = vmatprep.subr.bf16.mxu0 %v7352
        %9494 = vmatpush1.bf16.msra.mxu0 %v7351
        %9495 = vmatprep.subr.bf16.mxu0 %v7360
        %9496 = vmatpush1.bf16.msra.mxu0 %v7359
        %9497 = vmatprep.subr.bf16.mxu0 %v7368
        %9498 = vmatpush1.bf16.msra.mxu0 %v7367
        %9499 = vmatprep.subr.bf16.mxu0 %v7376
        %9500 = vmatpush1.bf16.msra.mxu0 %v7375
        %9501 = vmatprep.subr.bf16.mxu0 %v7384
        %9502 = vmatpush1.bf16.msra.mxu0 %v7383
        %9503 = vmatprep.subr.bf16.mxu0 %v7392
        %9504 = vmatpush1.bf16.msra.mxu0 %v7391
        %9505 = vmatprep.subr.bf16.mxu0 %v7400
        %9506 = vmatpush1.bf16.msra.mxu0 %v7399
        %9507 = vmatprep.subr.bf16.mxu0 %v7408
        %9508 = vmatpush1.bf16.msra.mxu0 %v7407
        %9509 = vmatprep.subr.bf16.mxu0 %v7416
        %9510 = vmatpush1.bf16.msra.mxu0 %v7415
        %9511 = vmatprep.subr.bf16.mxu0 %v7424
        %9512 = vmatpush1.bf16.msra.mxu0 %v7423
        %9513 = vmatprep.mubr.bf16.mxu0 %v2390
        %9514 = vmatmul.mubr.bf16.gmra.mrb[0].mxu0 %v2389
        %v9515 = vpop.f32.mrb[0].mxu0
        %v9516 = vadd.f32 %v9475, %v9515
        %v9517 = vpop.f32.mrb[0].mxu0
        %v9518 = vadd.f32 %v9477, %v9517
        %v9519 = vpop.f32.mrb[0].mxu0
        %v9520 = vpop.f32.mrb[0].mxu0
        %9521 = vdwg.mxu0
        %9522 = vmatprep.subr.bf16.mxu0 %v7432
        %9523 = vmatpush1.bf16.msra.mxu0 %v7431
        %9524 = vmatprep.subr.bf16.mxu0 %v7440
        %9525 = vmatpush1.bf16.msra.mxu0 %v7439
        %9526 = vmatprep.subr.bf16.mxu0 %v7448
        %9527 = vmatpush1.bf16.msra.mxu0 %v7447
        %9528 = vmatprep.subr.bf16.mxu0 %v7456
        %9529 = vmatpush1.bf16.msra.mxu0 %v7455
        %9530 = vmatprep.subr.bf16.mxu0 %v7464
        %9531 = vmatpush1.bf16.msra.mxu0 %v7463
        %9532 = vmatprep.subr.bf16.mxu0 %v7472
        %9533 = vmatpush1.bf16.msra.mxu0 %v7471
        %9534 = vmatprep.subr.bf16.mxu0 %v7480
        %9535 = vmatpush1.bf16.msra.mxu0 %v7479
        %9536 = vmatprep.subr.bf16.mxu0 %v7488
        %9537 = vmatpush1.bf16.msra.mxu0 %v7487
        %9538 = vmatprep.subr.bf16.mxu0 %v7496
        %9539 = vmatpush1.bf16.msra.mxu0 %v7495
        %9540 = vmatprep.subr.bf16.mxu0 %v7504
        %9541 = vmatpush1.bf16.msra.mxu0 %v7503
        %9542 = vmatprep.subr.bf16.mxu0 %v7512
        %9543 = vmatpush1.bf16.msra.mxu0 %v7511
        %9544 = vmatprep.subr.bf16.mxu0 %v7520
        %9545 = vmatpush1.bf16.msra.mxu0 %v7519
        %9546 = vmatprep.subr.bf16.mxu0 %v7528
        %9547 = vmatpush1.bf16.msra.mxu0 %v7527
        %9548 = vmatprep.subr.bf16.mxu0 %v7536
        %9549 = vmatpush1.bf16.msra.mxu0 %v7535
        %9550 = vmatprep.subr.bf16.mxu0 %v7544
        %9551 = vmatpush1.bf16.msra.mxu0 %v7543
        %9552 = vmatprep.subr.bf16.mxu0 %v7552
        %9553 = vmatpush1.bf16.msra.mxu0 %v7551
        %9554 = vmatprep.mubr.bf16.mxu0 %v2392
        %9555 = vmatmul.mubr.bf16.gmra.mrb[0].mxu0 %v2391
        %v9556 = vpop.f32.mrb[0].mxu0
        %v9557 = vadd.f32 %v9516, %v9556
        %v9558 = vpop.f32.mrb[0].mxu0
        %v9559 = vadd.f32 %v9518, %v9558
        %v9560 = vpop.f32.mrb[0].mxu0
        %v9561 = vpop.f32.mrb[0].mxu0
        %9562 = vdwg.mxu0
        %9563 = vmatprep.subr.bf16.mxu0 %v6538
        %9564 = vmatpush1.bf16.msra.mxu0 %v6537
        %9565 = vmatprep.subr.bf16.mxu0 %v6546
        %9566 = vmatpush1.bf16.msra.mxu0 %v6545
        %9567 = vmatprep.subr.bf16.mxu0 %v6554
        %9568 = vmatpush1.bf16.msra.mxu0 %v6553
        %9569 = vmatprep.subr.bf16.mxu0 %v6562
        %9570 = vmatpush1.bf16.msra.mxu0 %v6561
        %9571 = vmatprep.subr.bf16.mxu0 %v6570
        %9572 = vmatpush1.bf16.msra.mxu0 %v6569
        %9573 = vmatprep.subr.bf16.mxu0 %v6578
        %9574 = vmatpush1.bf16.msra.mxu0 %v6577
        %9575 = vmatprep.subr.bf16.mxu0 %v6586
        %9576 = vmatpush1.bf16.msra.mxu0 %v6585
        %9577 = vmatprep.subr.bf16.mxu0 %v6594
        %9578 = vmatpush1.bf16.msra.mxu0 %v6593
        %9579 = vmatprep.subr.bf16.mxu0 %v6602
        %9580 = vmatpush1.bf16.msra.mxu0 %v6601
        %9581 = vmatprep.subr.bf16.mxu0 %v6610
        %9582 = vmatpush1.bf16.msra.mxu0 %v6609
        %9583 = vmatprep.subr.bf16.mxu0 %v6618
        %9584 = vmatpush1.bf16.msra.mxu0 %v6617
        %9585 = vmatprep.subr.bf16.mxu0 %v6626
        %9586 = vmatpush1.bf16.msra.mxu0 %v6625
        %9587 = vmatprep.subr.bf16.mxu0 %v6634
        %9588 = vmatpush1.bf16.msra.mxu0 %v6633
        %9589 = vmatprep.subr.bf16.mxu0 %v6642
        %9590 = vmatpush1.bf16.msra.mxu0 %v6641
        %9591 = vmatprep.subr.bf16.mxu0 %v6650
        %9592 = vmatpush1.bf16.msra.mxu0 %v6649
        %9593 = vmatprep.subr.bf16.mxu0 %v6658
        %9594 = vmatpush1.bf16.msra.mxu0 %v6657
        %9595 = vmatprep.mubr.bf16.mxu0 %v2378
        %9596 = vmatmul.mubr.bf16.gmra.mrb[0].mxu0 %v2377
        %v9597 = vpop.f32.mrb[0].mxu0
        %v9598 = vadd.f32 %v3446, %v9597
        %v9599 = vpop.f32.mrb[0].mxu0
        %v9600 = vadd.f32 %v3450, %v9599
        %v9601 = vpop.f32.mrb[0].mxu0
        %v9602 = vpop.f32.mrb[0].mxu0
        %9603 = vdwg.mxu0
        %9604 = vmatprep.subr.bf16.mxu0 %v6666
        %9605 = vmatpush1.bf16.msra.mxu0 %v6665
        %9606 = vmatprep.subr.bf16.mxu0 %v6674
        %9607 = vmatpush1.bf16.msra.mxu0 %v6673
        %9608 = vmatprep.subr.bf16.mxu0 %v6682
        %9609 = vmatpush1.bf16.msra.mxu0 %v6681
        %9610 = vmatprep.subr.bf16.mxu0 %v6690
        %9611 = vmatpush1.bf16.msra.mxu0 %v6689
        %9612 = vmatprep.subr.bf16.mxu0 %v6698
        %9613 = vmatpush1.bf16.msra.mxu0 %v6697
        %9614 = vmatprep.subr.bf16.mxu0 %v6706
        %9615 = vmatpush1.bf16.msra.mxu0 %v6705
        %9616 = vmatprep.subr.bf16.mxu0 %v6714
        %9617 = vmatpush1.bf16.msra.mxu0 %v6713
        %9618 = vmatprep.subr.bf16.mxu0 %v6722
        %9619 = vmatpush1.bf16.msra.mxu0 %v6721
        %9620 = vmatprep.subr.bf16.mxu0 %v6730
        %9621 = vmatpush1.bf16.msra.mxu0 %v6729
        %9622 = vmatprep.subr.bf16.mxu0 %v6738
        %9623 = vmatpush1.bf16.msra.mxu0 %v6737
        %9624 = vmatprep.subr.bf16.mxu0 %v6746
        %9625 = vmatpush1.bf16.msra.mxu0 %v6745
        %9626 = vmatprep.subr.bf16.mxu0 %v6754
        %9627 = vmatpush1.bf16.msra.mxu0 %v6753
        %9628 = vmatprep.subr.bf16.mxu0 %v6762
        %9629 = vmatpush1.bf16.msra.mxu0 %v6761
        %9630 = vmatprep.subr.bf16.mxu0 %v6770
        %9631 = vmatpush1.bf16.msra.mxu0 %v6769
        %9632 = vmatprep.subr.bf16.mxu0 %v6778
        %9633 = vmatpush1.bf16.msra.mxu0 %v6777
        %9634 = vmatprep.subr.bf16.mxu0 %v6786
        %9635 = vmatpush1.bf16.msra.mxu0 %v6785
        %9636 = vmatprep.mubr.bf16.mxu0 %v2380
        %9637 = vmatmul.mubr.bf16.gmra.mrb[0].mxu0 %v2379
        %v9638 = vpop.f32.mrb[0].mxu0
        %v9639 = vadd.f32 %v9598, %v9638
        %v9640 = vpop.f32.mrb[0].mxu0
        %v9641 = vadd.f32 %v9600, %v9640
        %v9642 = vpop.f32.mrb[0].mxu0
        %v9643 = vpop.f32.mrb[0].mxu0
        %9644 = vdwg.mxu0
        %9645 = vmatprep.subr.bf16.mxu0 %v6794
        %9646 = vmatpush1.bf16.msra.mxu0 %v6793
        %9647 = vmatprep.subr.bf16.mxu0 %v6802
        %9648 = vmatpush1.bf16.msra.mxu0 %v6801
        %9649 = vmatprep.subr.bf16.mxu0 %v6810
        %9650 = vmatpush1.bf16.msra.mxu0 %v6809
        %9651 = vmatprep.subr.bf16.mxu0 %v6818
        %9652 = vmatpush1.bf16.msra.mxu0 %v6817
        %9653 = vmatprep.subr.bf16.mxu0 %v6826
        %9654 = vmatpush1.bf16.msra.mxu0 %v6825
        %9655 = vmatprep.subr.bf16.mxu0 %v6834
        %9656 = vmatpush1.bf16.msra.mxu0 %v6833
        %9657 = vmatprep.subr.bf16.mxu0 %v6842
        %9658 = vmatpush1.bf16.msra.mxu0 %v6841
        %9659 = vmatprep.subr.bf16.mxu0 %v6850
        %9660 = vmatpush1.bf16.msra.mxu0 %v6849
        %9661 = vmatprep.subr.bf16.mxu0 %v6858
        %9662 = vmatpush1.bf16.msra.mxu0 %v6857
        %9663 = vmatprep.subr.bf16.mxu0 %v6866
        %9664 = vmatpush1.bf16.msra.mxu0 %v6865
        %9665 = vmatprep.subr.bf16.mxu0 %v6874
        %9666 = vmatpush1.bf16.msra.mxu0 %v6873
        %9667 = vmatprep.subr.bf16.mxu0 %v6882
        %9668 = vmatpush1.bf16.msra.mxu0 %v6881
        %9669 = vmatprep.subr.bf16.mxu0 %v6890
        %9670 = vmatpush1.bf16.msra.mxu0 %v6889
        %9671 = vmatprep.subr.bf16.mxu0 %v6898
        %9672 = vmatpush1.bf16.msra.mxu0 %v6897
        %9673 = vmatprep.subr.bf16.mxu0 %v6906
        %9674 = vmatpush1.bf16.msra.mxu0 %v6905
        %9675 = vmatprep.subr.bf16.mxu0 %v6914
        %9676 = vmatpush1.bf16.msra.mxu0 %v6913
        %9677 = vmatprep.mubr.bf16.mxu0 %v2382
        %9678 = vmatmul.mubr.bf16.gmra.mrb[0].mxu0 %v2381
        %v9679 = vpop.f32.mrb[0].mxu0
        %v9680 = vadd.f32 %v9639, %v9679
        %v9681 = vpop.f32.mrb[0].mxu0
        %v9682 = vadd.f32 %v9641, %v9681
        %v9683 = vpop.f32.mrb[0].mxu0
        %v9684 = vpop.f32.mrb[0].mxu0
        %9685 = vdwg.mxu0
        %9686 = vmatprep.subr.bf16.mxu0 %v6922
        %9687 = vmatpush1.bf16.msra.mxu0 %v6921
        %9688 = vmatprep.subr.bf16.mxu0 %v6930
        %9689 = vmatpush1.bf16.msra.mxu0 %v6929
        %9690 = vmatprep.subr.bf16.mxu0 %v6938
        %9691 = vmatpush1.bf16.msra.mxu0 %v6937
        %9692 = vmatprep.subr.bf16.mxu0 %v6946
        %9693 = vmatpush1.bf16.msra.mxu0 %v6945
        %9694 = vmatprep.subr.bf16.mxu0 %v6954
        %9695 = vmatpush1.bf16.msra.mxu0 %v6953
        %9696 = vmatprep.subr.bf16.mxu0 %v6962
        %9697 = vmatpush1.bf16.msra.mxu0 %v6961
        %9698 = vmatprep.subr.bf16.mxu0 %v6970
        %9699 = vmatpush1.bf16.msra.mxu0 %v6969
        %9700 = vmatprep.subr.bf16.mxu0 %v6978
        %9701 = vmatpush1.bf16.msra.mxu0 %v6977
        %9702 = vmatprep.subr.bf16.mxu0 %v6986
        %9703 = vmatpush1.bf16.msra.mxu0 %v6985
        %9704 = vmatprep.subr.bf16.mxu0 %v6994
        %9705 = vmatpush1.bf16.msra.mxu0 %v6993
        %9706 = vmatprep.subr.bf16.mxu0 %v7002
        %9707 = vmatpush1.bf16.msra.mxu0 %v7001
        %9708 = vmatprep.subr.bf16.mxu0 %v7010
        %9709 = vmatpush1.bf16.msra.mxu0 %v7009
        %9710 = vmatprep.subr.bf16.mxu0 %v7018
        %9711 = vmatpush1.bf16.msra.mxu0 %v7017
        %9712 = vmatprep.subr.bf16.mxu0 %v7026
        %9713 = vmatpush1.bf16.msra.mxu0 %v7025
        %9714 = vmatprep.subr.bf16.mxu0 %v7034
        %9715 = vmatpush1.bf16.msra.mxu0 %v7033
        %9716 = vmatprep.subr.bf16.mxu0 %v7042
        %9717 = vmatpush1.bf16.msra.mxu0 %v7041
        %9718 = vmatprep.mubr.bf16.mxu0 %v2384
        %9719 = vmatmul.mubr.bf16.gmra.mrb[0].mxu0 %v2383
        %v9720 = vpop.f32.mrb[0].mxu0
        %v9721 = vadd.f32 %v9680, %v9720
        %v9722 = vpop.f32.mrb[0].mxu0
        %v9723 = vadd.f32 %v9682, %v9722
        %v9724 = vpop.f32.mrb[0].mxu0
        %v9725 = vpop.f32.mrb[0].mxu0
        %9726 = vdwg.mxu0
        %9727 = vmatprep.subr.bf16.mxu0 %v7050
        %9728 = vmatpush1.bf16.msra.mxu0 %v7049
        %9729 = vmatprep.subr.bf16.mxu0 %v7058
        %9730 = vmatpush1.bf16.msra.mxu0 %v7057
        %9731 = vmatprep.subr.bf16.mxu0 %v7066
        %9732 = vmatpush1.bf16.msra.mxu0 %v7065
        %9733 = vmatprep.subr.bf16.mxu0 %v7074
        %9734 = vmatpush1.bf16.msra.mxu0 %v7073
        %9735 = vmatprep.subr.bf16.mxu0 %v7082
        %9736 = vmatpush1.bf16.msra.mxu0 %v7081
        %9737 = vmatprep.subr.bf16.mxu0 %v7090
        %9738 = vmatpush1.bf16.msra.mxu0 %v7089
        %9739 = vmatprep.subr.bf16.mxu0 %v7098
        %9740 = vmatpush1.bf16.msra.mxu0 %v7097
        %9741 = vmatprep.subr.bf16.mxu0 %v7106
        %9742 = vmatpush1.bf16.msra.mxu0 %v7105
        %9743 = vmatprep.subr.bf16.mxu0 %v7114
        %9744 = vmatpush1.bf16.msra.mxu0 %v7113
        %9745 = vmatprep.subr.bf16.mxu0 %v7122
        %9746 = vmatpush1.bf16.msra.mxu0 %v7121
        %9747 = vmatprep.subr.bf16.mxu0 %v7130
        %9748 = vmatpush1.bf16.msra.mxu0 %v7129
        %9749 = vmatprep.subr.bf16.mxu0 %v7138
        %9750 = vmatpush1.bf16.msra.mxu0 %v7137
        %9751 = vmatprep.subr.bf16.mxu0 %v7146
        %9752 = vmatpush1.bf16.msra.mxu0 %v7145
        %9753 = vmatprep.subr.bf16.mxu0 %v7154
        %9754 = vmatpush1.bf16.msra.mxu0 %v7153
        %9755 = vmatprep.subr.bf16.mxu0 %v7162
        %9756 = vmatpush1.bf16.msra.mxu0 %v7161
        %9757 = vmatprep.subr.bf16.mxu0 %v7170
        %9758 = vmatpush1.bf16.msra.mxu0 %v7169
        %9759 = vmatprep.mubr.bf16.mxu0 %v2386
        %9760 = vmatmul.mubr.bf16.gmra.mrb[0].mxu0 %v2385
        %v9761 = vpop.f32.mrb[0].mxu0
        %v9762 = vadd.f32 %v9721, %v9761
        %v9763 = vpop.f32.mrb[0].mxu0
        %v9764 = vadd.f32 %v9723, %v9763
        %v9765 = vpop.f32.mrb[0].mxu0
        %v9766 = vpop.f32.mrb[0].mxu0
        %9767 = vdwg.mxu0
        %9768 = vmatprep.subr.bf16.mxu0 %v7178
        %9769 = vmatpush1.bf16.msra.mxu0 %v7177
        %9770 = vmatprep.subr.bf16.mxu0 %v7186
        %9771 = vmatpush1.bf16.msra.mxu0 %v7185
        %9772 = vmatprep.subr.bf16.mxu0 %v7194
        %9773 = vmatpush1.bf16.msra.mxu0 %v7193
        %9774 = vmatprep.subr.bf16.mxu0 %v7202
        %9775 = vmatpush1.bf16.msra.mxu0 %v7201
        %9776 = vmatprep.subr.bf16.mxu0 %v7210
        %9777 = vmatpush1.bf16.msra.mxu0 %v7209
        %9778 = vmatprep.subr.bf16.mxu0 %v7218
        %9779 = vmatpush1.bf16.msra.mxu0 %v7217
        %9780 = vmatprep.subr.bf16.mxu0 %v7226
        %9781 = vmatpush1.bf16.msra.mxu0 %v7225
        %9782 = vmatprep.subr.bf16.mxu0 %v7234
        %9783 = vmatpush1.bf16.msra.mxu0 %v7233
        %9784 = vmatprep.subr.bf16.mxu0 %v7242
        %9785 = vmatpush1.bf16.msra.mxu0 %v7241
        %9786 = vmatprep.subr.bf16.mxu0 %v7250
        %9787 = vmatpush1.bf16.msra.mxu0 %v7249
        %9788 = vmatprep.subr.bf16.mxu0 %v7258
        %9789 = vmatpush1.bf16.msra.mxu0 %v7257
        %9790 = vmatprep.subr.bf16.mxu0 %v7266
        %9791 = vmatpush1.bf16.msra.mxu0 %v7265
        %9792 = vmatprep.subr.bf16.mxu0 %v7274
        %9793 = vmatpush1.bf16.msra.mxu0 %v7273
        %9794 = vmatprep.subr.bf16.mxu0 %v7282
        %9795 = vmatpush1.bf16.msra.mxu0 %v7281
        %9796 = vmatprep.subr.bf16.mxu0 %v7290
        %9797 = vmatpush1.bf16.msra.mxu0 %v7289
        %9798 = vmatprep.subr.bf16.mxu0 %v7298
        %9799 = vmatpush1.bf16.msra.mxu0 %v7297
        %9800 = vmatprep.mubr.bf16.mxu0 %v2388
        %9801 = vmatmul.mubr.bf16.gmra.mrb[0].mxu0 %v2387
        %v9802 = vpop.f32.mrb[0].mxu0
        %v9803 = vadd.f32 %v9762, %v9802
        %v9804 = vpop.f32.mrb[0].mxu0
        %v9805 = vadd.f32 %v9764, %v9804
        %v9806 = vpop.f32.mrb[0].mxu0
        %v9807 = vpop.f32.mrb[0].mxu0
        %9808 = vdwg.mxu0
        %9809 = vmatprep.subr.bf16.mxu0 %v7306
        %9810 = vmatpush1.bf16.msra.mxu0 %v7305
        %9811 = vmatprep.subr.bf16.mxu0 %v7314
        %9812 = vmatpush1.bf16.msra.mxu0 %v7313
        %9813 = vmatprep.subr.bf16.mxu0 %v7322
        %9814 = vmatpush1.bf16.msra.mxu0 %v7321
        %9815 = vmatprep.subr.bf16.mxu0 %v7330
        %9816 = vmatpush1.bf16.msra.mxu0 %v7329
        %9817 = vmatprep.subr.bf16.mxu0 %v7338
        %9818 = vmatpush1.bf16.msra.mxu0 %v7337
        %9819 = vmatprep.subr.bf16.mxu0 %v7346
        %9820 = vmatpush1.bf16.msra.mxu0 %v7345
        %9821 = vmatprep.subr.bf16.mxu0 %v7354
        %9822 = vmatpush1.bf16.msra.mxu0 %v7353
        %9823 = vmatprep.subr.bf16.mxu0 %v7362
        %9824 = vmatpush1.bf16.msra.mxu0 %v7361
        %9825 = vmatprep.subr.bf16.mxu0 %v7370
        %9826 = vmatpush1.bf16.msra.mxu0 %v7369
        %9827 = vmatprep.subr.bf16.mxu0 %v7378
        %9828 = vmatpush1.bf16.msra.mxu0 %v7377
        %9829 = vmatprep.subr.bf16.mxu0 %v7386
        %9830 = vmatpush1.bf16.msra.mxu0 %v7385
        %9831 = vmatprep.subr.bf16.mxu0 %v7394
        %9832 = vmatpush1.bf16.msra.mxu0 %v7393
        %9833 = vmatprep.subr.bf16.mxu0 %v7402
        %9834 = vmatpush1.bf16.msra.mxu0 %v7401
        %9835 = vmatprep.subr.bf16.mxu0 %v7410
        %9836 = vmatpush1.bf16.msra.mxu0 %v7409
        %9837 = vmatprep.subr.bf16.mxu0 %v7418
        %9838 = vmatpush1.bf16.msra.mxu0 %v7417
        %9839 = vmatprep.subr.bf16.mxu0 %v7426
        %9840 = vmatpush1.bf16.msra.mxu0 %v7425
        %9841 = vmatprep.mubr.bf16.mxu0 %v2390
        %9842 = vmatmul.mubr.bf16.gmra.mrb[0].mxu0 %v2389
        %v9843 = vpop.f32.mrb[0].mxu0
        %v9844 = vadd.f32 %v9803, %v9843
        %v9845 = vpop.f32.mrb[0].mxu0
        %v9846 = vadd.f32 %v9805, %v9845
        %v9847 = vpop.f32.mrb[0].mxu0
        %v9848 = vpop.f32.mrb[0].mxu0
        %9849 = vdwg.mxu0
        %9850 = vmatprep.subr.bf16.mxu0 %v7434
        %9851 = vmatpush1.bf16.msra.mxu0 %v7433
        %9852 = vmatprep.subr.bf16.mxu0 %v7442
        %9853 = vmatpush1.bf16.msra.mxu0 %v7441
        %9854 = vmatprep.subr.bf16.mxu0 %v7450
        %9855 = vmatpush1.bf16.msra.mxu0 %v7449
        %9856 = vmatprep.subr.bf16.mxu0 %v7458
        %9857 = vmatpush1.bf16.msra.mxu0 %v7457
        %9858 = vmatprep.subr.bf16.mxu0 %v7466
        %9859 = vmatpush1.bf16.msra.mxu0 %v7465
        %9860 = vmatprep.subr.bf16.mxu0 %v7474
        %9861 = vmatpush1.bf16.msra.mxu0 %v7473
        %9862 = vmatprep.subr.bf16.mxu0 %v7482
        %9863 = vmatpush1.bf16.msra.mxu0 %v7481
        %9864 = vmatprep.subr.bf16.mxu0 %v7490
        %9865 = vmatpush1.bf16.msra.mxu0 %v7489
        %9866 = vmatprep.subr.bf16.mxu0 %v7498
        %9867 = vmatpush1.bf16.msra.mxu0 %v7497
        %9868 = vmatprep.subr.bf16.mxu0 %v7506
        %9869 = vmatpush1.bf16.msra.mxu0 %v7505
        %9870 = vmatprep.subr.bf16.mxu0 %v7514
        %9871 = vmatpush1.bf16.msra.mxu0 %v7513
        %9872 = vmatprep.subr.bf16.mxu0 %v7522
        %9873 = vmatpush1.bf16.msra.mxu0 %v7521
        %9874 = vmatprep.subr.bf16.mxu0 %v7530
        %9875 = vmatpush1.bf16.msra.mxu0 %v7529
        %9876 = vmatprep.subr.bf16.mxu0 %v7538
        %9877 = vmatpush1.bf16.msra.mxu0 %v7537
        %9878 = vmatprep.subr.bf16.mxu0 %v7546
        %9879 = vmatpush1.bf16.msra.mxu0 %v7545
        %9880 = vmatprep.subr.bf16.mxu0 %v7554
        %9881 = vmatpush1.bf16.msra.mxu0 %v7553
        %9882 = vmatprep.mubr.bf16.mxu0 %v2392
        %9883 = vmatmul.mubr.bf16.gmra.mrb[0].mxu0 %v2391
        %v9884 = vpop.f32.mrb[0].mxu0
        %v9885 = vadd.f32 %v9844, %v9884
        %v9886 = vpop.f32.mrb[0].mxu0
        %v9887 = vadd.f32 %v9846, %v9886
        %v9888 = vpop.f32.mrb[0].mxu0
        %v9889 = vpop.f32.mrb[0].mxu0
        %9890 = vdwg.mxu0
        %vm9891 = vcmp.gt.f32.partialorder %v8901, 0.0
        %vm9892 = vcmp.gt.f32.partialorder %v8903, 0.0
        %vm9893 = vcmp.gt.f32.partialorder %v9229, 0.0
        %vm9894 = vcmp.gt.f32.partialorder %v9231, 0.0
        %vm9895 = vcmp.gt.f32.partialorder %v9557, 0.0
        %vm9896 = vcmp.gt.f32.partialorder %v9559, 0.0
        %vm9897 = vcmp.gt.f32.partialorder %v9885, 0.0
        %vm9898 = vcmp.gt.f32.partialorder %v9887, 0.0
        %v9899 = vmul.f32 %v8901, 0.01
        %v9900 = vmul.f32 %v8903, 0.01
        %v9901 = vmul.f32 %v9229, 0.01
        %v9902 = vmul.f32 %v9231, 0.01
        %v9903 = vmul.f32 %v9557, 0.01
        %v9904 = vmul.f32 %v9559, 0.01
        %v9905 = vmul.f32 %v9885, 0.01
        %v9906 = vmul.f32 %v9887, 0.01
        %v9907 = vsel %vm9891, %v8901, %v9899
        %v9908 = vsel %vm9892, %v8903, %v9900
        %v9909 = vsel %vm9893, %v9229, %v9901
        %v9910 = vsel %vm9894, %v9231, %v9902
        %v9911 = vsel %vm9895, %v9557, %v9903
        %v9912 = vsel %vm9896, %v9559, %v9904
        %v9913 = vsel %vm9897, %v9885, %v9905
        %v9914 = vsel %vm9898, %v9887, %v9906
        %v9915 = vpack.c.bf16 %v9907, %v9907
        %v9916 = vpack.c.bf16 %v9908, %v9908
        %v9917 = vpack.c.bf16 %v9909, %v9909
        %v9918 = vpack.c.bf16 %v9910, %v9910
        %v9919 = vpack.c.bf16 %v9911, %v9911
        %v9920 = vpack.c.bf16 %v9912, %v9912
        %v9921 = vpack.c.bf16 %v9913, %v9913
        %v9922 = vpack.c.bf16 %v9914, %v9914
        %v9923 = vld [vmem:[#allocation11] sm:$0xf]
        %v9924 = vld [vmem:[#allocation11 + $0x4] sm:$0xf]
        %v9925 = vld [vmem:[#allocation11 + $0x8] sm:$0xf]
        %v9926 = vld [vmem:[#allocation11 + $0xc] sm:$0xf]
        %v9927 = vld [vmem:[#allocation11 + $0x10] sm:$0xf]
        %v9928 = vld [vmem:[#allocation11 + $0x14] sm:$0xf]
        %v9929 = vld [vmem:[#allocation11 + $0x18] sm:$0xf]
        %v9930 = vld [vmem:[#allocation11 + $0x1c] sm:$0xf]
        %v9931 = vld [vmem:[#allocation11 + $0x20] sm:$0xf]
        %v9932 = vld [vmem:[#allocation11 + $0x24] sm:$0xf]
        %v9933 = vld [vmem:[#allocation11 + $0x28] sm:$0xf]
        %v9934 = vld [vmem:[#allocation11 + $0x2c] sm:$0xf]
        %v9935 = vld [vmem:[#allocation11 + $0x30] sm:$0xf]
        %v9936 = vld [vmem:[#allocation11 + $0x34] sm:$0xf]
        %v9937 = vld [vmem:[#allocation11 + $0x38] sm:$0xf]
        %v9938 = vld [vmem:[#allocation11 + $0x3c] sm:$0xf]
        %v9939 = vld [vmem:[#allocation11 + $0x40] sm:$0xf]
        %v9940 = vld [vmem:[#allocation11 + $0x44] sm:$0xf]
        %v9941 = vld [vmem:[#allocation11 + $0x48] sm:$0xf]
        %v9942 = vld [vmem:[#allocation11 + $0x4c] sm:$0xf]
        %v9943 = vld [vmem:[#allocation11 + $0x50] sm:$0xf]
        %v9944 = vld [vmem:[#allocation11 + $0x54] sm:$0xf]
        %v9945 = vld [vmem:[#allocation11 + $0x58] sm:$0xf]
        %v9946 = vld [vmem:[#allocation11 + $0x5c] sm:$0xf]
        %v9947 = vld [vmem:[#allocation11 + $0x60] sm:$0xf]
        %v9948 = vld [vmem:[#allocation11 + $0x64] sm:$0xf]
        %v9949 = vld [vmem:[#allocation11 + $0x68] sm:$0xf]
        %v9950 = vld [vmem:[#allocation11 + $0x6c] sm:$0xf]
        %v9951 = vld [vmem:[#allocation11 + $0x70] sm:$0xf]
        %v9952 = vld [vmem:[#allocation11 + $0x74] sm:$0xf]
        %v9953 = vld [vmem:[#allocation11 + $0x78] sm:$0xf]
        %v9954 = vld [vmem:[#allocation11 + $0x7c] sm:$0xf]
        %v9955 = vld [vmem:[#allocation11 + $0x80] sm:$0xf]
        %v9956 = vld [vmem:[#allocation11 + $0x84] sm:$0xf]
        %v9957 = vld [vmem:[#allocation11 + $0x88] sm:$0xf]
        %v9958 = vld [vmem:[#allocation11 + $0x8c] sm:$0xf]
        %v9959 = vld [vmem:[#allocation11 + $0x90] sm:$0xf]
        %v9960 = vld [vmem:[#allocation11 + $0x94] sm:$0xf]
        %v9961 = vld [vmem:[#allocation11 + $0x98] sm:$0xf]
        %v9962 = vld [vmem:[#allocation11 + $0x9c] sm:$0xf]
        %v9963 = vld [vmem:[#allocation11 + $0xa0] sm:$0xf]
        %v9964 = vld [vmem:[#allocation11 + $0xa4] sm:$0xf]
        %v9965 = vld [vmem:[#allocation11 + $0xa8] sm:$0xf]
        %v9966 = vld [vmem:[#allocation11 + $0xac] sm:$0xf]
        %v9967 = vld [vmem:[#allocation11 + $0xb0] sm:$0xf]
        %v9968 = vld [vmem:[#allocation11 + $0xb4] sm:$0xf]
        %v9969 = vld [vmem:[#allocation11 + $0xb8] sm:$0xf]
        %v9970 = vld [vmem:[#allocation11 + $0xbc] sm:$0xf]
        %v9971 = vld [vmem:[#allocation11 + $0xc0] sm:$0xf]
        %v9972 = vld [vmem:[#allocation11 + $0xc4] sm:$0xf]
        %v9973 = vld [vmem:[#allocation11 + $0xc8] sm:$0xf]
        %v9974 = vld [vmem:[#allocation11 + $0xcc] sm:$0xf]
        %v9975 = vld [vmem:[#allocation11 + $0xd0] sm:$0xf]
        %v9976 = vld [vmem:[#allocation11 + $0xd4] sm:$0xf]
        %v9977 = vld [vmem:[#allocation11 + $0xd8] sm:$0xf]
        %v9978 = vld [vmem:[#allocation11 + $0xdc] sm:$0xf]
        %v9979 = vld [vmem:[#allocation11 + $0xe0] sm:$0xf]
        %v9980 = vld [vmem:[#allocation11 + $0xe4] sm:$0xf]
        %v9981 = vld [vmem:[#allocation11 + $0xe8] sm:$0xf]
        %v9982 = vld [vmem:[#allocation11 + $0xec] sm:$0xf]
        %v9983 = vld [vmem:[#allocation11 + $0xf0] sm:$0xf]
        %v9984 = vld [vmem:[#allocation11 + $0xf4] sm:$0xf]
        %v9985 = vld [vmem:[#allocation11 + $0xf8] sm:$0xf]
        %v9986 = vld [vmem:[#allocation11 + $0xfc] sm:$0xf]
        %v9987 = vld [vmem:[#allocation11 + $0x100] sm:$0xf]
        %v9988 = vld [vmem:[#allocation11 + $0x104] sm:$0xf]
        %v9989 = vld [vmem:[#allocation11 + $0x108] sm:$0xf]
        %v9990 = vld [vmem:[#allocation11 + $0x10c] sm:$0xf]
        %v9991 = vld [vmem:[#allocation11 + $0x110] sm:$0xf]
        %v9992 = vld [vmem:[#allocation11 + $0x114] sm:$0xf]
        %v9993 = vld [vmem:[#allocation11 + $0x118] sm:$0xf]
        %v9994 = vld [vmem:[#allocation11 + $0x11c] sm:$0xf]
        %v9995 = vld [vmem:[#allocation11 + $0x120] sm:$0xf]
        %v9996 = vld [vmem:[#allocation11 + $0x124] sm:$0xf]
        %v9997 = vld [vmem:[#allocation11 + $0x128] sm:$0xf]
        %v9998 = vld [vmem:[#allocation11 + $0x12c] sm:$0xf]
        %v9999 = vld [vmem:[#allocation11 + $0x130] sm:$0xf]
        %v10000 = vld [vmem:[#allocation11 + $0x134] sm:$0xf]
        %v10001 = vld [vmem:[#allocation11 + $0x138] sm:$0xf]
        %v10002 = vld [vmem:[#allocation11 + $0x13c] sm:$0xf]
        %v10003 = vld [vmem:[#allocation11 + $0x140] sm:$0xf]
        %v10004 = vld [vmem:[#allocation11 + $0x144] sm:$0xf]
        %v10005 = vld [vmem:[#allocation11 + $0x148] sm:$0xf]
        %v10006 = vld [vmem:[#allocation11 + $0x14c] sm:$0xf]
        %v10007 = vld [vmem:[#allocation11 + $0x150] sm:$0xf]
        %v10008 = vld [vmem:[#allocation11 + $0x154] sm:$0xf]
        %v10009 = vld [vmem:[#allocation11 + $0x158] sm:$0xf]
        %v10010 = vld [vmem:[#allocation11 + $0x15c] sm:$0xf]
        %v10011 = vld [vmem:[#allocation11 + $0x160] sm:$0xf]
        %v10012 = vld [vmem:[#allocation11 + $0x164] sm:$0xf]
        %v10013 = vld [vmem:[#allocation11 + $0x168] sm:$0xf]
        %v10014 = vld [vmem:[#allocation11 + $0x16c] sm:$0xf]
        %v10015 = vld [vmem:[#allocation11 + $0x170] sm:$0xf]
        %v10016 = vld [vmem:[#allocation11 + $0x174] sm:$0xf]
        %v10017 = vld [vmem:[#allocation11 + $0x178] sm:$0xf]
        %v10018 = vld [vmem:[#allocation11 + $0x17c] sm:$0xf]
        %v10019 = vld [vmem:[#allocation11 + $0x180] sm:$0xf]
        %v10020 = vld [vmem:[#allocation11 + $0x184] sm:$0xf]
        %v10021 = vld [vmem:[#allocation11 + $0x188] sm:$0xf]
        %v10022 = vld [vmem:[#allocation11 + $0x18c] sm:$0xf]
        %v10023 = vld [vmem:[#allocation11 + $0x190] sm:$0xf]
        %v10024 = vld [vmem:[#allocation11 + $0x194] sm:$0xf]
        %v10025 = vld [vmem:[#allocation11 + $0x198] sm:$0xf]
        %v10026 = vld [vmem:[#allocation11 + $0x19c] sm:$0xf]
        %v10027 = vld [vmem:[#allocation11 + $0x1a0] sm:$0xf]
        %v10028 = vld [vmem:[#allocation11 + $0x1a4] sm:$0xf]
        %v10029 = vld [vmem:[#allocation11 + $0x1a8] sm:$0xf]
        %v10030 = vld [vmem:[#allocation11 + $0x1ac] sm:$0xf]
        %v10031 = vld [vmem:[#allocation11 + $0x1b0] sm:$0xf]
        %v10032 = vld [vmem:[#allocation11 + $0x1b4] sm:$0xf]
        %v10033 = vld [vmem:[#allocation11 + $0x1b8] sm:$0xf]
        %v10034 = vld [vmem:[#allocation11 + $0x1bc] sm:$0xf]
        %v10035 = vld [vmem:[#allocation11 + $0x1c0] sm:$0xf]
        %v10036 = vld [vmem:[#allocation11 + $0x1c4] sm:$0xf]
        %v10037 = vld [vmem:[#allocation11 + $0x1c8] sm:$0xf]
        %v10038 = vld [vmem:[#allocation11 + $0x1cc] sm:$0xf]
        %v10039 = vld [vmem:[#allocation11 + $0x1d0] sm:$0xf]
        %v10040 = vld [vmem:[#allocation11 + $0x1d4] sm:$0xf]
        %v10041 = vld [vmem:[#allocation11 + $0x1d8] sm:$0xf]
        %v10042 = vld [vmem:[#allocation11 + $0x1dc] sm:$0xf]
        %v10043 = vld [vmem:[#allocation11 + $0x1e0] sm:$0xf]
        %v10044 = vld [vmem:[#allocation11 + $0x1e4] sm:$0xf]
        %v10045 = vld [vmem:[#allocation11 + $0x1e8] sm:$0xf]
        %v10046 = vld [vmem:[#allocation11 + $0x1ec] sm:$0xf]
        %v10047 = vld [vmem:[#allocation11 + $0x1f0] sm:$0xf]
        %v10048 = vld [vmem:[#allocation11 + $0x1f4] sm:$0xf]
        %v10049 = vld [vmem:[#allocation11 + $0x1f8] sm:$0xf]
        %v10050 = vld [vmem:[#allocation11 + $0x1fc] sm:$0xf]
        %v10051 = vld [vmem:[#allocation13] sm:$0x1]
        %v10053 = vlaneseq
        %v10054 = vshrl.u32 %v10053, 7
        %v10055 = vsub.s32 0, %v10054
        %v10056 = vrot.slane %v10051, %v10055
        %v10186 = vunpack.c.l.b16 %v9923
        %v10187 = vunpack.c.l.b16 %v9924
        %v10188 = vunpack.c.l.b16 %v9925
        %v10189 = vunpack.c.l.b16 %v9926
        %v10190 = vunpack.c.l.b16 %v9927
        %v10191 = vunpack.c.l.b16 %v9928
        %v10192 = vunpack.c.l.b16 %v9929
        %v10193 = vunpack.c.l.b16 %v9930
        %v10194 = vunpack.c.l.b16 %v9931
        %v10195 = vunpack.c.l.b16 %v9932
        %v10196 = vunpack.c.l.b16 %v9933
        %v10197 = vunpack.c.l.b16 %v9934
        %v10198 = vunpack.c.l.b16 %v9935
        %v10199 = vunpack.c.l.b16 %v9936
        %v10200 = vunpack.c.l.b16 %v9937
        %v10201 = vunpack.c.l.b16 %v9938
        %v10202 = vunpack.c.l.b16 %v9939
        %v10203 = vunpack.c.l.b16 %v9940
        %v10204 = vunpack.c.l.b16 %v9941
        %v10205 = vunpack.c.l.b16 %v9942
        %v10206 = vunpack.c.l.b16 %v9943
        %v10207 = vunpack.c.l.b16 %v9944
        %v10208 = vunpack.c.l.b16 %v9945
        %v10209 = vunpack.c.l.b16 %v9946
        %v10210 = vunpack.c.l.b16 %v9947
        %v10211 = vunpack.c.l.b16 %v9948
        %v10212 = vunpack.c.l.b16 %v9949
        %v10213 = vunpack.c.l.b16 %v9950
        %v10214 = vunpack.c.l.b16 %v9951
        %v10215 = vunpack.c.l.b16 %v9952
        %v10216 = vunpack.c.l.b16 %v9953
        %v10217 = vunpack.c.l.b16 %v9954
        %v10218 = vunpack.c.l.b16 %v9955
        %v10219 = vunpack.c.l.b16 %v9956
        %v10220 = vunpack.c.l.b16 %v9957
        %v10221 = vunpack.c.l.b16 %v9958
        %v10222 = vunpack.c.l.b16 %v9959
        %v10223 = vunpack.c.l.b16 %v9960
        %v10224 = vunpack.c.l.b16 %v9961
        %v10225 = vunpack.c.l.b16 %v9962
        %v10226 = vunpack.c.l.b16 %v9963
        %v10227 = vunpack.c.l.b16 %v9964
        %v10228 = vunpack.c.l.b16 %v9965
        %v10229 = vunpack.c.l.b16 %v9966
        %v10230 = vunpack.c.l.b16 %v9967
        %v10231 = vunpack.c.l.b16 %v9968
        %v10232 = vunpack.c.l.b16 %v9969
        %v10233 = vunpack.c.l.b16 %v9970
        %v10234 = vunpack.c.l.b16 %v9971
        %v10235 = vunpack.c.l.b16 %v9972
        %v10236 = vunpack.c.l.b16 %v9973
        %v10237 = vunpack.c.l.b16 %v9974
        %v10238 = vunpack.c.l.b16 %v9975
        %v10239 = vunpack.c.l.b16 %v9976
        %v10240 = vunpack.c.l.b16 %v9977
        %v10241 = vunpack.c.l.b16 %v9978
        %v10242 = vunpack.c.l.b16 %v9979
        %v10243 = vunpack.c.l.b16 %v9980
        %v10244 = vunpack.c.l.b16 %v9981
        %v10245 = vunpack.c.l.b16 %v9982
        %v10246 = vunpack.c.l.b16 %v9983
        %v10247 = vunpack.c.l.b16 %v9984
        %v10248 = vunpack.c.l.b16 %v9985
        %v10249 = vunpack.c.l.b16 %v9986
        %v10250 = vunpack.c.l.b16 %v9987
        %v10251 = vunpack.c.l.b16 %v9988
        %v10252 = vunpack.c.l.b16 %v9989
        %v10253 = vunpack.c.l.b16 %v9990
        %v10254 = vunpack.c.l.b16 %v9991
        %v10255 = vunpack.c.l.b16 %v9992
        %v10256 = vunpack.c.l.b16 %v9993
        %v10257 = vunpack.c.l.b16 %v9994
        %v10258 = vunpack.c.l.b16 %v9995
        %v10259 = vunpack.c.l.b16 %v9996
        %v10260 = vunpack.c.l.b16 %v9997
        %v10261 = vunpack.c.l.b16 %v9998
        %v10262 = vunpack.c.l.b16 %v9999
        %v10263 = vunpack.c.l.b16 %v10000
        %v10264 = vunpack.c.l.b16 %v10001
        %v10265 = vunpack.c.l.b16 %v10002
        %v10266 = vunpack.c.l.b16 %v10003
        %v10267 = vunpack.c.l.b16 %v10004
        %v10268 = vunpack.c.l.b16 %v10005
        %v10269 = vunpack.c.l.b16 %v10006
        %v10270 = vunpack.c.l.b16 %v10007
        %v10271 = vunpack.c.l.b16 %v10008
        %v10272 = vunpack.c.l.b16 %v10009
        %v10273 = vunpack.c.l.b16 %v10010
        %v10274 = vunpack.c.l.b16 %v10011
        %v10275 = vunpack.c.l.b16 %v10012
        %v10276 = vunpack.c.l.b16 %v10013
        %v10277 = vunpack.c.l.b16 %v10014
        %v10278 = vunpack.c.l.b16 %v10015
        %v10279 = vunpack.c.l.b16 %v10016
        %v10280 = vunpack.c.l.b16 %v10017
        %v10281 = vunpack.c.l.b16 %v10018
        %v10282 = vunpack.c.l.b16 %v10019
        %v10283 = vunpack.c.l.b16 %v10020
        %v10284 = vunpack.c.l.b16 %v10021
        %v10285 = vunpack.c.l.b16 %v10022
        %v10286 = vunpack.c.l.b16 %v10023
        %v10287 = vunpack.c.l.b16 %v10024
        %v10288 = vunpack.c.l.b16 %v10025
        %v10289 = vunpack.c.l.b16 %v10026
        %v10290 = vunpack.c.l.b16 %v10027
        %v10291 = vunpack.c.l.b16 %v10028
        %v10292 = vunpack.c.l.b16 %v10029
        %v10293 = vunpack.c.l.b16 %v10030
        %v10294 = vunpack.c.l.b16 %v10031
        %v10295 = vunpack.c.l.b16 %v10032
        %v10296 = vunpack.c.l.b16 %v10033
        %v10297 = vunpack.c.l.b16 %v10034
        %v10298 = vunpack.c.l.b16 %v10035
        %v10299 = vunpack.c.l.b16 %v10036
        %v10300 = vunpack.c.l.b16 %v10037
        %v10301 = vunpack.c.l.b16 %v10038
        %v10302 = vunpack.c.l.b16 %v10039
        %v10303 = vunpack.c.l.b16 %v10040
        %v10304 = vunpack.c.l.b16 %v10041
        %v10305 = vunpack.c.l.b16 %v10042
        %v10306 = vunpack.c.l.b16 %v10043
        %v10307 = vunpack.c.l.b16 %v10044
        %v10308 = vunpack.c.l.b16 %v10045
        %v10309 = vunpack.c.l.b16 %v10046
        %v10310 = vunpack.c.l.b16 %v10047
        %v10311 = vunpack.c.l.b16 %v10048
        %v10312 = vunpack.c.l.b16 %v10049
        %v10313 = vunpack.c.l.b16 %v10050
        %v10314 = vpack.c.b16 %v10187, %v10186
        %v10315 = vpack.c.b16 %v10189, %v10188
        %v10316 = vpack.c.b16 %v10191, %v10190
        %v10317 = vpack.c.b16 %v10193, %v10192
        %v10318 = vpack.c.b16 %v10195, %v10194
        %v10319 = vpack.c.b16 %v10197, %v10196
        %v10320 = vpack.c.b16 %v10199, %v10198
        %v10321 = vpack.c.b16 %v10201, %v10200
        %v10322 = vpack.c.b16 %v10203, %v10202
        %v10323 = vpack.c.b16 %v10205, %v10204
        %v10324 = vpack.c.b16 %v10207, %v10206
        %v10325 = vpack.c.b16 %v10209, %v10208
        %v10326 = vpack.c.b16 %v10211, %v10210
        %v10327 = vpack.c.b16 %v10213, %v10212
        %v10328 = vpack.c.b16 %v10215, %v10214
        %v10329 = vpack.c.b16 %v10217, %v10216
        %v10330 = vpack.c.b16 %v10219, %v10218
        %v10331 = vpack.c.b16 %v10221, %v10220
        %v10332 = vpack.c.b16 %v10223, %v10222
        %v10333 = vpack.c.b16 %v10225, %v10224
        %v10334 = vpack.c.b16 %v10227, %v10226
        %v10335 = vpack.c.b16 %v10229, %v10228
        %v10336 = vpack.c.b16 %v10231, %v10230
        %v10337 = vpack.c.b16 %v10233, %v10232
        %v10338 = vpack.c.b16 %v10235, %v10234
        %v10339 = vpack.c.b16 %v10237, %v10236
        %v10340 = vpack.c.b16 %v10239, %v10238
        %v10341 = vpack.c.b16 %v10241, %v10240
        %v10342 = vpack.c.b16 %v10243, %v10242
        %v10343 = vpack.c.b16 %v10245, %v10244
        %v10344 = vpack.c.b16 %v10247, %v10246
        %v10345 = vpack.c.b16 %v10249, %v10248
        %v10346 = vpack.c.b16 %v10251, %v10250
        %v10347 = vpack.c.b16 %v10253, %v10252
        %v10348 = vpack.c.b16 %v10255, %v10254
        %v10349 = vpack.c.b16 %v10257, %v10256
        %v10350 = vpack.c.b16 %v10259, %v10258
        %v10351 = vpack.c.b16 %v10261, %v10260
        %v10352 = vpack.c.b16 %v10263, %v10262
        %v10353 = vpack.c.b16 %v10265, %v10264
        %v10354 = vpack.c.b16 %v10267, %v10266
        %v10355 = vpack.c.b16 %v10269, %v10268
        %v10356 = vpack.c.b16 %v10271, %v10270
        %v10357 = vpack.c.b16 %v10273, %v10272
        %v10358 = vpack.c.b16 %v10275, %v10274
        %v10359 = vpack.c.b16 %v10277, %v10276
        %v10360 = vpack.c.b16 %v10279, %v10278
        %v10361 = vpack.c.b16 %v10281, %v10280
        %v10362 = vpack.c.b16 %v10283, %v10282
        %v10363 = vpack.c.b16 %v10285, %v10284
        %v10364 = vpack.c.b16 %v10287, %v10286
        %v10365 = vpack.c.b16 %v10289, %v10288
        %v10366 = vpack.c.b16 %v10291, %v10290
        %v10367 = vpack.c.b16 %v10293, %v10292
        %v10368 = vpack.c.b16 %v10295, %v10294
        %v10369 = vpack.c.b16 %v10297, %v10296
        %v10370 = vpack.c.b16 %v10299, %v10298
        %v10371 = vpack.c.b16 %v10301, %v10300
        %v10372 = vpack.c.b16 %v10303, %v10302
        %v10373 = vpack.c.b16 %v10305, %v10304
        %v10374 = vpack.c.b16 %v10307, %v10306
        %v10375 = vpack.c.b16 %v10309, %v10308
        %v10376 = vpack.c.b16 %v10311, %v10310
        %v10377 = vpack.c.b16 %v10313, %v10312
        %10442 = vmatprep.subr.bf16.mxu0 0
        %10443 = vmatpush1.bf16.msra.mxu0 %v10314
        %10444 = vmatprep.subr.bf16.mxu0 0
        %10445 = vmatpush1.bf16.msra.mxu0 %v10315
        %10446 = vmatprep.subr.bf16.mxu0 0
        %10447 = vmatpush1.bf16.msra.mxu0 %v10316
        %10448 = vmatprep.subr.bf16.mxu0 0
        %10449 = vmatpush1.bf16.msra.mxu0 %v10317
        %10450 = vmatprep.subr.bf16.mxu0 0
        %10451 = vmatpush1.bf16.msra.mxu0 %v10318
        %10452 = vmatprep.subr.bf16.mxu0 0
        %10453 = vmatpush1.bf16.msra.mxu0 %v10319
        %10454 = vmatprep.subr.bf16.mxu0 0
        %10455 = vmatpush1.bf16.msra.mxu0 %v10320
        %10456 = vmatprep.subr.bf16.mxu0 0
        %10457 = vmatpush1.bf16.msra.mxu0 %v10321
        %10458 = vmatprep.subr.bf16.mxu0 0
        %10459 = vmatpush1.bf16.msra.mxu0 %v10322
        %10460 = vmatprep.subr.bf16.mxu0 0
        %10461 = vmatpush1.bf16.msra.mxu0 %v10323
        %10462 = vmatprep.subr.bf16.mxu0 0
        %10463 = vmatpush1.bf16.msra.mxu0 %v10324
        %10464 = vmatprep.subr.bf16.mxu0 0
        %10465 = vmatpush1.bf16.msra.mxu0 %v10325
        %10466 = vmatprep.subr.bf16.mxu0 0
        %10467 = vmatpush1.bf16.msra.mxu0 %v10326
        %10468 = vmatprep.subr.bf16.mxu0 0
        %10469 = vmatpush1.bf16.msra.mxu0 %v10327
        %10470 = vmatprep.subr.bf16.mxu0 0
        %10471 = vmatpush1.bf16.msra.mxu0 %v10328
        %10472 = vmatprep.subr.bf16.mxu0 0
        %10473 = vmatpush1.bf16.msra.mxu0 %v10329
        %10474 = vmatprep.mubr.bf16.mxu0 %v9916
        %10475 = vmatmul.mubr.bf16.gmra.mrb[0].mxu0 %v9915
        %v10476 = vpop.f32.mrb[0].mxu0
        %v10477 = vadd.f32 %v10056, %v10476
        %v10478 = vpop.f32.mrb[0].mxu0
        %v10479 = vpop.f32.mrb[0].mxu0
        %v10480 = vpop.f32.mrb[0].mxu0
        %10481 = vdwg.mxu0
        %10482 = vmatprep.subr.bf16.mxu0 0
        %10483 = vmatpush1.bf16.msra.mxu0 %v10330
        %10484 = vmatprep.subr.bf16.mxu0 0
        %10485 = vmatpush1.bf16.msra.mxu0 %v10331
        %10486 = vmatprep.subr.bf16.mxu0 0
        %10487 = vmatpush1.bf16.msra.mxu0 %v10332
        %10488 = vmatprep.subr.bf16.mxu0 0
        %10489 = vmatpush1.bf16.msra.mxu0 %v10333
        %10490 = vmatprep.subr.bf16.mxu0 0
        %10491 = vmatpush1.bf16.msra.mxu0 %v10334
        %10492 = vmatprep.subr.bf16.mxu0 0
        %10493 = vmatpush1.bf16.msra.mxu0 %v10335
        %10494 = vmatprep.subr.bf16.mxu0 0
        %10495 = vmatpush1.bf16.msra.mxu0 %v10336
        %10496 = vmatprep.subr.bf16.mxu0 0
        %10497 = vmatpush1.bf16.msra.mxu0 %v10337
        %10498 = vmatprep.subr.bf16.mxu0 0
        %10499 = vmatpush1.bf16.msra.mxu0 %v10338
        %10500 = vmatprep.subr.bf16.mxu0 0
        %10501 = vmatpush1.bf16.msra.mxu0 %v10339
        %10502 = vmatprep.subr.bf16.mxu0 0
        %10503 = vmatpush1.bf16.msra.mxu0 %v10340
        %10504 = vmatprep.subr.bf16.mxu0 0
        %10505 = vmatpush1.bf16.msra.mxu0 %v10341
        %10506 = vmatprep.subr.bf16.mxu0 0
        %10507 = vmatpush1.bf16.msra.mxu0 %v10342
        %10508 = vmatprep.subr.bf16.mxu0 0
        %10509 = vmatpush1.bf16.msra.mxu0 %v10343
        %10510 = vmatprep.subr.bf16.mxu0 0
        %10511 = vmatpush1.bf16.msra.mxu0 %v10344
        %10512 = vmatprep.subr.bf16.mxu0 0
        %10513 = vmatpush1.bf16.msra.mxu0 %v10345
        %10514 = vmatprep.mubr.bf16.mxu0 %v9918
        %10515 = vmatmul.mubr.bf16.gmra.mrb[0].mxu0 %v9917
        %v10516 = vpop.f32.mrb[0].mxu0
        %v10517 = vadd.f32 %v10477, %v10516
        %v10518 = vpop.f32.mrb[0].mxu0
        %v10519 = vpop.f32.mrb[0].mxu0
        %v10520 = vpop.f32.mrb[0].mxu0
        %10521 = vdwg.mxu0
        %10522 = vmatprep.subr.bf16.mxu0 0
        %10523 = vmatpush1.bf16.msra.mxu0 %v10346
        %10524 = vmatprep.subr.bf16.mxu0 0
        %10525 = vmatpush1.bf16.msra.mxu0 %v10347
        %10526 = vmatprep.subr.bf16.mxu0 0
        %10527 = vmatpush1.bf16.msra.mxu0 %v10348
        %10528 = vmatprep.subr.bf16.mxu0 0
        %10529 = vmatpush1.bf16.msra.mxu0 %v10349
        %10530 = vmatprep.subr.bf16.mxu0 0
        %10531 = vmatpush1.bf16.msra.mxu0 %v10350
        %10532 = vmatprep.subr.bf16.mxu0 0
        %10533 = vmatpush1.bf16.msra.mxu0 %v10351
        %10534 = vmatprep.subr.bf16.mxu0 0
        %10535 = vmatpush1.bf16.msra.mxu0 %v10352
        %10536 = vmatprep.subr.bf16.mxu0 0
        %10537 = vmatpush1.bf16.msra.mxu0 %v10353
        %10538 = vmatprep.subr.bf16.mxu0 0
        %10539 = vmatpush1.bf16.msra.mxu0 %v10354
        %10540 = vmatprep.subr.bf16.mxu0 0
        %10541 = vmatpush1.bf16.msra.mxu0 %v10355
        %10542 = vmatprep.subr.bf16.mxu0 0
        %10543 = vmatpush1.bf16.msra.mxu0 %v10356
        %10544 = vmatprep.subr.bf16.mxu0 0
        %10545 = vmatpush1.bf16.msra.mxu0 %v10357
        %10546 = vmatprep.subr.bf16.mxu0 0
        %10547 = vmatpush1.bf16.msra.mxu0 %v10358
        %10548 = vmatprep.subr.bf16.mxu0 0
        %10549 = vmatpush1.bf16.msra.mxu0 %v10359
        %10550 = vmatprep.subr.bf16.mxu0 0
        %10551 = vmatpush1.bf16.msra.mxu0 %v10360
        %10552 = vmatprep.subr.bf16.mxu0 0
        %10553 = vmatpush1.bf16.msra.mxu0 %v10361
        %10554 = vmatprep.mubr.bf16.mxu0 %v9920
        %10555 = vmatmul.mubr.bf16.gmra.mrb[0].mxu0 %v9919
        %v10556 = vpop.f32.mrb[0].mxu0
        %v10557 = vadd.f32 %v10517, %v10556
        %v10558 = vpop.f32.mrb[0].mxu0
        %v10559 = vpop.f32.mrb[0].mxu0
        %v10560 = vpop.f32.mrb[0].mxu0
        %10561 = vdwg.mxu0
        %10562 = vmatprep.subr.bf16.mxu0 0
        %10563 = vmatpush1.bf16.msra.mxu0 %v10362
        %10564 = vmatprep.subr.bf16.mxu0 0
        %10565 = vmatpush1.bf16.msra.mxu0 %v10363
        %10566 = vmatprep.subr.bf16.mxu0 0
        %10567 = vmatpush1.bf16.msra.mxu0 %v10364
        %10568 = vmatprep.subr.bf16.mxu0 0
        %10569 = vmatpush1.bf16.msra.mxu0 %v10365
        %10570 = vmatprep.subr.bf16.mxu0 0
        %10571 = vmatpush1.bf16.msra.mxu0 %v10366
        %10572 = vmatprep.subr.bf16.mxu0 0
        %10573 = vmatpush1.bf16.msra.mxu0 %v10367
        %10574 = vmatprep.subr.bf16.mxu0 0
        %10575 = vmatpush1.bf16.msra.mxu0 %v10368
        %10576 = vmatprep.subr.bf16.mxu0 0
        %10577 = vmatpush1.bf16.msra.mxu0 %v10369
        %10578 = vmatprep.subr.bf16.mxu0 0
        %10579 = vmatpush1.bf16.msra.mxu0 %v10370
        %10580 = vmatprep.subr.bf16.mxu0 0
        %10581 = vmatpush1.bf16.msra.mxu0 %v10371
        %10582 = vmatprep.subr.bf16.mxu0 0
        %10583 = vmatpush1.bf16.msra.mxu0 %v10372
        %10584 = vmatprep.subr.bf16.mxu0 0
        %10585 = vmatpush1.bf16.msra.mxu0 %v10373
        %10586 = vmatprep.subr.bf16.mxu0 0
        %10587 = vmatpush1.bf16.msra.mxu0 %v10374
        %10588 = vmatprep.subr.bf16.mxu0 0
        %10589 = vmatpush1.bf16.msra.mxu0 %v10375
        %10590 = vmatprep.subr.bf16.mxu0 0
        %10591 = vmatpush1.bf16.msra.mxu0 %v10376
        %10592 = vmatprep.subr.bf16.mxu0 0
        %10593 = vmatpush1.bf16.msra.mxu0 %v10377
        %10594 = vmatprep.mubr.bf16.mxu0 %v9922
        %10595 = vmatmul.mubr.bf16.gmra.mrb[0].mxu0 %v9921
        %v10596 = vpop.f32.mrb[0].mxu0
        %v10597 = vadd.f32 %v10557, %v10596
        %v10598 = vpop.f32.mrb[0].mxu0
        %v10599 = vpop.f32.mrb[0].mxu0
        %v10600 = vpop.f32.mrb[0].mxu0
        %10601 = vdwg.mxu0
        %10602 = vst [vmem:[%s375] sm:$0xff] %v10597
        %s10603 = sand.u32 %s187, 1
        %s10604 = scalar_lea.sflag [#allocation4], %s10603
        %s10605 = sand.u32 %s187, 1
        %s10606 = smul.addr %s10605, 8
        %s10607 = scalar_lea.vmem [#allocation14], %s10606
        // Predicated region
        $region77: #{tpu_custom_call.1} parent=47 // pred_check
          %p10608 = pneg %p197
        $region78: #{tpu_custom_call.1} parent=47 // pred_check_branch
          %10610 = sbr.rel (%p10608) target = $region80
        $region79: #{tpu_custom_call.1} parent=47 // pred_region
          %s10612 = ssub.s32 128, 128
          %10613 = vsyncadd %s10604, %s10612
          %s10614 = smul.addr %s27, 128
          %s10615 = scalar_lea.hbm %s7, %s10614
          %s10617 = sshll.u32 %s10607, 4
          %s10618 = int_to_ptr.vmem [resolvable:$true] %s10617
          %10620 = dma.vmem_to_hbm [thread:$0]  %s10618, 128, %s10615, %s10604
        $region80: #{tpu_custom_call.1} parent=47 // pred_fallthru
          _
      $region48: #{tpu_custom_call.1} parent=5 // pred_fallthru
        _
      %p10621 = scmp.le.s32.totalorder 2, %s22
      // Predicated region
      $region81: #{tpu_custom_call.1} parent=5 // pred_check
        %p10622 = pneg %p10621
      $region82: #{tpu_custom_call.1} parent=5 // pred_check_branch
        %10624 = sbr.rel (%p10622) target = $region84
      $region83: #{tpu_custom_call.1} parent=5 // pred_region
        %s10625 = ssub.s32 %s22, 2
        // Predicated region
        $region85: #{tpu_custom_call.1} parent=83 // pred_check
          %p10626 = pneg %p203
        $region86: #{tpu_custom_call.1} parent=83 // pred_check_branch
          %10628 = sbr.rel (%p10626) target = $region88
        $region87: #{tpu_custom_call.1} parent=83 // pred_region
          %s10629 = sand.u32 %s188, 1
          %s10630 = scalar_lea.sflag [#allocation4], %s10629
          %s10631 = sand.u32 %s188, 1
          %s10632 = smul.addr %s10631, 8
          %s10633 = scalar_lea.vmem [#allocation14], %s10632
          %10634 = dma.done %s10630, 128
        $region88: #{tpu_custom_call.1} parent=83 // pred_fallthru
          _
      $region84: #{tpu_custom_call.1} parent=5 // pred_fallthru
        _
    $region6: #{tpu_custom_call.1} parent=1 // loop_footer
      %s26 = sadd.s32 1, %s22
    $region7: #{tpu_custom_call.1} parent=1 // loop_footer_branch
      %21 = sbr.rel target = $region3
    $region8: #{tpu_custom_call.1} parent=1 // loop_exit
      _
    %10635 = vsyncpa [#allocation3], 1
    %s10636 = scalar_lea.sflag [#allocation3], 1
    %10637 = vsyncpa %s10636, 1
    %10638 = vsyncpa [#allocation6], 1
    %10639 = vsyncpa [#allocation9], 1
    %10640 = vsyncpa [#allocation12], 1
    %10641 = vsyncpa [#allocation4], 1
    %s10642 = scalar_lea.sflag [#allocation4], 1
    %10643 = vsyncpa %s10642, 1

</llo_original>
